<compile_context>
chip_gen: v7x
topology: tpu7x:2x2x1
jax: 0.10.0
libtpu: 0.0.40
codegen_flags: <defaults>
</compile_context>

<pallas_src>
import functools

import jax
import jax.numpy as jnp
from jax import lax
from jax.experimental import pallas as pl
from jax.experimental.pallas import tpu as pltpu


def _silu(x):
    return x * jax.nn.sigmoid(x)


def _softplus(x):
    # numerically-stable log(1 + exp(x))
    return jnp.maximum(x, 0.0) + jnp.log1p(jnp.exp(-jnp.abs(x)))


def _mamba_kernel(
    x_ref,        # (tc, d_model)
    w_in_ref,     # (d_model, 2*d_inner)            [weight_dtype]
    b_in_ref,     # (1, 2*d_inner)                  f32
    w_conv_ref,   # (d_conv, d_inner)               f32   depthwise taps, transposed
    b_conv_ref,   # (1, d_inner)                    f32
    w_xp_ref,     # (d_inner, d_inner + 2*d_state)  [weight_dtype]  fused x_proj|dt_proj
    b_dt_ref,     # (1, d_inner)                    f32
    a_ref,        # (d_state, d_inner)              f32   == -exp(A_log)^T
    d_ref,        # (1, d_inner)                    f32
    w_out_ref,    # (d_inner, d_model)              [weight_dtype]
    b_out_ref,    # (1, d_model)                    f32
    out_ref,      # (tc, d_model)
    state_sc,     # VMEM (d_state, d_inner) f32     carried scan state
    hist_sc,      # VMEM (8, d_inner)       f32     carried conv history
    delta_sc,     # VMEM (tc, d_inner)      f32     per-chunk delta (read row-wise in scan)
    dbu_sc,       # VMEM (tc, d_state, d_inner) f32 dBu, overwritten in place with states
    *,
    d_inner, d_state, d_conv, tc, multi_chunk, exp_dtype,
):
    ci = pl.program_id(1)

    # Reset carried state at the first chunk of every batch element.
    @pl.when(ci == 0)
    def _():
        state_sc[...] = jnp.zeros_like(state_sc)
        hist_sc[...] = jnp.zeros_like(hist_sc)

    f32 = jnp.float32
    wdt = w_in_ref.dtype                      # matmul operand dtype (f32 or bf16)
    x = x_ref[...]                            # (tc, d_model)

    # ---- in_proj (one MXU pass) -> conv branch + gate branch -------------------
    xr = jnp.dot(x.astype(wdt), w_in_ref[...], preferred_element_type=f32) + b_in_ref[...]
    x_c = xr[:, :d_inner]                     # lane-aligned (offset 0)
    res = xr[:, d_inner:]                     # lane-aligned when d_inner % 128 == 0

    # ---- depthwise causal Conv1d, history carried across chunks ----------------
    # combined[m] == x_global[chunk_start + m - 8]   (zeros before t = 0)
    w_c = w_conv_ref[...]                     # (d_conv, d_inner)
    acc = x_c * w_c[d_conv - 1:d_conv, :] + b_conv_ref[...]
    combined = jnp.concatenate([hist_sc[...], x_c], axis=0)       # (tc + 8, d_inner)
    for s in range(1, d_conv):                # static unroll over taps
        # NOTE: a pltpu.roll(combined, s, 0) + aligned slice would move this copy to the
        # XLU; left as a plain slice because 3 tap copies are noise next to dBu traffic.
        win = combined[8 - s:8 - s + tc, :]                        # x[t - s]
        acc = acc + win * w_c[d_conv - 1 - s:d_conv - s, :]
    if multi_chunk:
        hist_sc[...] = x_c[tc - 8:, :]        # aligned: tc % 8 == 0 when multi-chunk
    xs = _silu(acc)                           # (tc, d_inner)

    # ---- fused x_proj|dt_proj: one MXU pass emits [delta_pre | B | C] ----------
    x_dbl = jnp.dot(xs.astype(wdt), w_xp_ref[...], preferred_element_type=f32)
    delta = _softplus(x_dbl[:, :d_inner] + b_dt_ref[...])          # (tc, d_inner)
    b_ch = x_dbl[:, d_inner:d_inner + d_state]                     # (tc, n)
    c_ch = x_dbl[:, d_inner + d_state:]                            # (tc, n)

    # ---- per-chunk discretized input term (B broadcast lanes -> sublanes) ------
    dbu_sc[...] = b_ch[:, :, None] * (delta * xs)[:, None, :]      # (tc, n, d_inner)
    delta_sc[...] = delta

    a = a_ref[...]                            # (n, d_inner) == -exp(A_log)^T

    # ---- sequential selective scan ----------------------------------------------
    # fori_loop with a modest static unroll; dA is recomputed per step from the stored
    # delta row (no (tc, n, d_inner) dA buffer), and the per-step state overwrites
    # dbu_sc[t] in place, so the C-contraction below needs no extra s_all buffer.
    unroll = 4 if tc % 4 == 0 else 1

    def scan_block(blk, s):
        base = blk * unroll
        for j in range(unroll):               # static unroll inside the loop body
            t = base + j
            d_row = delta_sc[pl.ds(t, 1), :]                       # (1, d_inner)
            da = jnp.exp((d_row * a).astype(exp_dtype)).astype(f32)  # (n, d_inner)
            s = da * s + dbu_sc[t]
            dbu_sc[t] = s                                          # state for step t
        return s

    s_last = lax.fori_loop(0, tc // unroll, scan_block, state_sc[...])
    state_sc[...] = s_last                    # carry to the next chunk

    # ---- y[t, d] = sum_n state_t[n, d] * C[t, n]  (batched sublane reduce) -----
    y = jnp.sum(dbu_sc[...] * c_ch[:, :, None], axis=1)            # (tc, d_inner)
    y = y + xs * d_ref[...]
    y = y * _silu(res)

    # ---- out_proj ----------------------------------------------------------------
    out_ref[...] = (jnp.dot(y.astype(wdt), w_out_ref[...], preferred_element_type=f32)
                    + b_out_ref[...]).astype(out_ref.dtype)


def _pick_chunk(l, target):
    if l % 8 != 0:
        return l                      # single full-extent chunk
    best = 8
    c = 8
    while c <= min(l, target):
        if l % c == 0:
            best = c
        c += 8
    return best


def mamba_block(x, params, *, d_inner, d_state, dt_rank, d_conv,
                seq_chunk=128, weight_dtype=jnp.bfloat16, exp_dtype=jnp.float32):
    """MambaBlock forward as a Pallas TPU kernel.

    seq_chunk: sequence tile per grid step (MXU M dimension).  128 fills the 256-row
      MXU of v6e/v7x reasonably; the per-chunk scratch is tc*d_state*d_inner*4 B, so on
      v7x (64 MiB VMEM) keep <= 128 for large d_inner, on v5e/v6e 256 is fine.
    weight_dtype: storage dtype of the three large projection weights (bf16 halves
      weight DMA and double-buffered VMEM residency; accumulation stays f32).
    exp_dtype: dtype of the dA = exp(delta * A) evaluation; bf16 roughly doubles EUP
      exp throughput on v6e/v7x (keep f32 on v5e: no bf16 EUP).
    """
    b, l, d_model = x.shape
    assert d_conv - 1 <= 8, "conv-history scratch holds 8 rows"

    tc = _pick_chunk(l, seq_chunk)
    n_chunks = l // tc
    assert tc * n_chunks == l

    f32 = jnp.float32
    # ---- host-side parameter prep (hoisted out of the kernel) -------------------
    w_conv_t = jnp.transpose(params['w_conv']).astype(f32)          # (d_conv, d_inner)
    neg_a_t = jnp.transpose(-jnp.exp(params['a_log'].astype(f32)))  # (d_state, d_inner)
    # Fold dt_proj into x_proj (exact: dt_proj is linear).  This trades the K=dt_rank
    # underfilled MXU pass and misaligned dt slice for a full d_inner x d_inner pass;
    # the extra MXU work hides under the EUP-bound scan.
    w_delta = params['w_xp'][:, :dt_rank].astype(f32) @ params['w_dt'].astype(f32)
    w_xp_fused = jnp.concatenate(
        [w_delta, params['w_xp'][:, dt_rank:].astype(f32)], axis=1)

    w_in = params['w_in'].astype(weight_dtype)
    w_xp_fused = w_xp_fused.astype(weight_dtype)
    w_out = params['w_out'].astype(weight_dtype)

    kernel = functools.partial(
        _mamba_kernel, d_inner=d_inner, d_state=d_state, d_conv=d_conv,
        tc=tc, multi_chunk=(n_chunks > 1), exp_dtype=exp_dtype)

    def full_spec(arr):
        shp = tuple(arr.shape)
        return pl.BlockSpec(shp, lambda bi, ci: (0,) * len(shp))

    x_spec = pl.BlockSpec((None, tc, d_model), lambda bi, ci: (bi, ci, 0))
    out_spec = pl.BlockSpec((None, tc, d_model), lambda bi, ci: (bi, ci, 0))

    # ---- VMEM / cost bookkeeping -------------------------------------------------
    weight_bytes = sum(int(a.size) * a.dtype.itemsize
                       for a in (w_in, w_xp_fused, w_out, w_conv_t, neg_a_t))
    scratch_bytes = 4 * (tc * d_state * d_inner + tc * d_inner
                         + d_state * d_inner + 8 * d_inner)
    act_bytes = 4 * tc * (5 * d_inner + 4 * d_state + 2 * d_model + d_state * d_inner)
    vmem_need = 2 * weight_bytes + scratch_bytes + act_bytes + 4 * 4 * tc * d_model
    vmem_limit = int(min(100 * 2**20, max(32 * 2**20, 2 * vmem_need)))

    matmul_flops = 2 * b * l * (d_model * 2 * d_inner
                                + d_inner * (d_inner + 2 * d_state)
                                + d_inner * d_model)
    scan_flops = 4 * b * l * d_inner * d_state + 12 * b * l * d_inner
    cost = pl.CostEstimate(
        flops=int(matmul_flops + scan_flops),
        transcendentals=int(b * l * d_inner * (d_state + 4)),
        bytes_accessed=int(2 * b * l * d_model * 4 + weight_bytes))

    return pl.pallas_call(
        kernel,
        out_shape=jax.ShapeDtypeStruct((b, l, d_model), x.dtype),
        grid_spec=pltpu.PrefetchScalarGridSpec(
            num_scalar_prefetch=0,
            grid=(b, n_chunks),
            in_specs=[
                x_spec,
                full_spec(w_in), full_spec(params['b_in']),
                full_spec(w_conv_t), full_spec(params['b_conv']),
                full_spec(w_xp_fused), full_spec(params['b_dt']),
                full_spec(neg_a_t), full_spec(params['d']),
                full_spec(w_out), full_spec(params['b_out']),
            ],
            out_specs=out_spec,
            scratch_shapes=[
                pltpu.VMEM((d_state, d_inner), f32),       # carried scan state
                pltpu.VMEM((8, d_inner), f32),             # carried conv history
                pltpu.VMEM((tc, d_inner), f32),            # delta rows for the scan
                pltpu.VMEM((tc, d_state, d_inner), f32),   # dBu, reused as per-step states
            ]),
        compiler_params=pltpu.CompilerParams(
            dimension_semantics=("parallel", "arbitrary"),
            vmem_limit_bytes=vmem_limit),
        cost_estimate=cost,
    )(x, w_in, params['b_in'], w_conv_t, params['b_conv'],
      w_xp_fused, params['b_dt'], neg_a_t, params['d'],
      w_out, params['b_out'])


# ---------------- plain-JAX reference (mirrors the PyTorch forward) ------------
def mamba_block_ref(x, params, *, d_inner, d_state, dt_rank, d_conv):
    b, l, d_model = x.shape
    xr = x @ params['w_in'] + params['b_in']
    x_c, res = xr[..., :d_inner], xr[..., d_inner:]
    x_pad = jnp.pad(x_c, ((0, 0), (d_conv - 1, 0), (0, 0)))
    conv = jnp.zeros_like(x_c) + params['b_conv']
    for k in range(d_conv):
        conv = conv + x_pad[:, k:k + l, :] * params['w_conv'][:, k][None, None, :]
    xs = jax.nn.silu(conv)
    x_dbl = xs @ params['w_xp']
    delta = jax.nn.softplus(x_dbl[..., :dt_rank] @ params['w_dt'] + params['b_dt'])
    Bm = x_dbl[..., dt_rank:dt_rank + d_state]
    Cm = x_dbl[..., dt_rank + d_state:]
    A = -jnp.exp(params['a_log'])
    dA = jnp.exp(delta[..., None] * A[None, None])
    dBu = delta[..., None] * Bm[:, :, None, :] * xs[..., None]
    s = jnp.zeros((b, d_inner, d_state), jnp.float32)
    ys = []
    for i in range(l):
        s = dA[:, i] * s + dBu[:, i]
        ys.append(jnp.einsum('bdn,bn->bd', s, Cm[:, i]))
    y = jnp.stack(ys, axis=1) + xs * params['d']
    y = y * jax.nn.silu(res)
    return y @ params['w_out'] + params['b_out']


def init_params(key, d_model, d_inner, d_state, dt_rank, d_conv):
    ks = jax.random.split(key, 8)

    def unif(k, shape, fan_in):
        bound = 1.0 / (fan_in ** 0.5)
        return jax.random.uniform(k, shape, jnp.float32, -bound, bound)

    a_init = jnp.broadcast_to(
        jnp.arange(1, d_state + 1, dtype=jnp.float32), (d_inner, d_state))
    return dict(
        w_in=unif(ks[0], (d_model, 2 * d_inner), d_model),
        b_in=unif(ks[1], (1, 2 * d_inner), d_model),
        w_conv=unif(ks[2], (d_inner, d_conv), d_conv),      # depthwise: fan_in = K
        b_conv=unif(ks[3], (1, d_inner), d_conv),
        w_xp=unif(ks[4], (d_inner, dt_rank + 2 * d_state), d_inner),
        w_dt=unif(ks[5], (dt_rank, d_inner), dt_rank),
        b_dt=unif(ks[6], (1, d_inner), dt_rank),
        a_log=jnp.log(a_init),
        d=jnp.ones((1, d_inner), jnp.float32),
        w_out=unif(ks[7], (d_inner, d_model), d_inner),
        b_out=jnp.zeros((1, d_model), jnp.float32),
    )


if __name__ == "__main__":
    # d_model / d_inner multiples of 128 so the test exercises lane-aligned layouts.
    d_model, d_inner, d_state, dt_rank, d_conv = 128, 256, 16, 8, 4
    b, l = 2, 64

    key = jax.random.PRNGKey(0)
    kx, kp = jax.random.split(key)
    x = jax.random.normal(kx, (b, l, d_model), jnp.float32)
    params = init_params(kp, d_model, d_inner, d_state, dt_rank, d_conv)

    ref = mamba_block_ref(x, params, d_inner=d_inner, d_state=d_state,
                          dt_rank=dt_rank, d_conv=d_conv)

    common = dict(d_inner=d_inner, d_state=d_state, dt_rank=dt_rank, d_conv=d_conv)

    # 1) exact-parity path: f32 weights, single chunk (tc = l = 64)
    out_f32 = jax.block_until_ready(
        mamba_block(x, params, **common, weight_dtype=jnp.float32))
    # 2) multi-chunk path (4 chunks of 16): exercises carried scan state + conv history
    out_multi = jax.block_until_ready(
        mamba_block(x, params, **common, weight_dtype=jnp.float32, seq_chunk=16))
    # 3) fast path: bf16 weights + bf16 dA exponent, 2 chunks of 32
    out_fast = jax.block_until_ready(
        mamba_block(x, params, **common, weight_dtype=jnp.bfloat16,
                    exp_dtype=jnp.bfloat16, seq_chunk=32))

    assert out_f32.shape == (b, l, d_model)
    if not jnp.allclose(out_f32, ref, atol=1e-3, rtol=1e-3):
        raise AssertionError("f32 single-chunk Pallas kernel mismatch vs JAX reference")
    if not jnp.allclose(out_multi, ref, atol=1e-3, rtol=1e-3):
        raise AssertionError("f32 multi-chunk Pallas kernel mismatch vs JAX reference")
    if not jnp.allclose(out_fast, ref, atol=5e-2, rtol=5e-2):
        raise AssertionError("bf16 Pallas kernel mismatch vs JAX reference")

    print("KERNEL_OK")
</pallas_src>

<mosaic_0001>
module attributes {stable_mosaic.version = 11 : i64} {
  func.func @_mamba_kernel(%arg0: i32, %arg1: i32, %arg2: memref<1x64x128xf32, #tpu.memory_space<vmem>>, %arg3: memref<128x512xf32, #tpu.memory_space<vmem>>, %arg4: memref<1x512xf32, #tpu.memory_space<vmem>>, %arg5: memref<4x256xf32, #tpu.memory_space<vmem>>, %arg6: memref<1x256xf32, #tpu.memory_space<vmem>>, %arg7: memref<256x288xf32, #tpu.memory_space<vmem>>, %arg8: memref<1x256xf32, #tpu.memory_space<vmem>>, %arg9: memref<16x256xf32, #tpu.memory_space<vmem>>, %arg10: memref<1x256xf32, #tpu.memory_space<vmem>>, %arg11: memref<256x128xf32, #tpu.memory_space<vmem>>, %arg12: memref<1x128xf32, #tpu.memory_space<vmem>>, %arg13: memref<1x64x128xf32, #tpu.memory_space<vmem>>, %arg14: memref<16x256xf32, #tpu.memory_space<vmem>>, %arg15: memref<8x256xf32, #tpu.memory_space<vmem>>, %arg16: memref<64x256xf32, #tpu.memory_space<vmem>>, %arg17: memref<64x16x256xf32, #tpu.memory_space<vmem>>) attributes {dimension_semantics = [#tpu.dimension_semantics<parallel>, #tpu.dimension_semantics<arbitrary>], iteration_bounds = array<i64: 2, 1>, scalar_prefetch = 0 : i64, scratch_operands = 4 : i64, tpu.core_type = #tpu.core_type<tc>, window_params = [{transform_indices = @transform_0, window_bounds = array<i64: 1, 64, 128>}, {pipeline_mode = #tpu.pipeline_mode<synchronous>, transform_indices = @transform_1, window_bounds = array<i64: 128, 512>}, {pipeline_mode = #tpu.pipeline_mode<synchronous>, transform_indices = @transform_2, window_bounds = array<i64: 1, 512>}, {pipeline_mode = #tpu.pipeline_mode<synchronous>, transform_indices = @transform_3, window_bounds = array<i64: 4, 256>}, {pipeline_mode = #tpu.pipeline_mode<synchronous>, transform_indices = @transform_4, window_bounds = array<i64: 1, 256>}, {pipeline_mode = #tpu.pipeline_mode<synchronous>, transform_indices = @transform_5, window_bounds = array<i64: 256, 288>}, {pipeline_mode = #tpu.pipeline_mode<synchronous>, transform_indices = @transform_6, window_bounds = array<i64: 1, 256>}, {pipeline_mode = #tpu.pipeline_mode<synchronous>, transform_indices = @transform_7, window_bounds = array<i64: 16, 256>}, {pipeline_mode = #tpu.pipeline_mode<synchronous>, transform_indices = @transform_8, window_bounds = array<i64: 1, 256>}, {pipeline_mode = #tpu.pipeline_mode<synchronous>, transform_indices = @transform_9, window_bounds = array<i64: 256, 128>}, {pipeline_mode = #tpu.pipeline_mode<synchronous>, transform_indices = @transform_10, window_bounds = array<i64: 1, 128>}, {transform_indices = @transform_11, window_bounds = array<i64: 1, 64, 128>}]} {
    %c0_i32 = arith.constant 0 : i32
    %0 = arith.cmpi eq, %arg1, %c0_i32 : i32
    %1 = arith.extui %0 : i1 to i32
    %c0_i32_0 = arith.constant 0 : i32
    %2 = arith.cmpi ne, %1, %c0_i32_0 : i32
    scf.if %2 {
      %cst_49 = arith.constant 0.000000e+00 : f32
      %95 = vector.broadcast %cst_49 : f32 to vector<16x256xf32>
      %c0_50 = arith.constant 0 : index
      %c0_51 = arith.constant 0 : index
      %96 = vector.load %arg14[%c0_50, %c0_51] : memref<16x256xf32, #tpu.memory_space<vmem>>, vector<16x256xf32>
      tpu.vector_store %arg14[%c0_50, %c0_51], %95 {strides = array<i32>} : memref<16x256xf32, #tpu.memory_space<vmem>>, vector<16x256xf32>,
      %cst_52 = arith.constant 0.000000e+00 : f32
      %97 = vector.broadcast %cst_52 : f32 to vector<8x256xf32>
      %c0_53 = arith.constant 0 : index
      %c0_54 = arith.constant 0 : index
      %98 = vector.load %arg15[%c0_53, %c0_54] : memref<8x256xf32, #tpu.memory_space<vmem>>, vector<8x256xf32>
      tpu.vector_store %arg15[%c0_53, %c0_54], %97 {strides = array<i32>} : memref<8x256xf32, #tpu.memory_space<vmem>>, vector<8x256xf32>,
    } else {
    }
    %c0 = arith.constant 0 : index
    %c0_1 = arith.constant 0 : index
    %c0_2 = arith.constant 0 : index
    %3 = vector.load %arg2[%c0, %c0_1, %c0_2] : memref<1x64x128xf32, #tpu.memory_space<vmem>>, vector<1x64x128xf32>
    %4 = vector.shape_cast %3 : vector<1x64x128xf32> to vector<64x128xf32>
    %c0_3 = arith.constant 0 : index
    %c0_4 = arith.constant 0 : index
    %5 = vector.load %arg3[%c0_3, %c0_4] : memref<128x512xf32, #tpu.memory_space<vmem>>, vector<128x512xf32>
    %cst = arith.constant dense<0.000000e+00> : vector<64x512xf32>
    %6 = tpu.matmul %4, %5, %cst {dimension_numbers = #tpu.dot_dimension_numbers<[1], [0], [0], [1], [0, 0, 1, 1], [], []>} : vector<64x128xf32>, vector<128x512xf32>, vector<64x512xf32> -> vector<64x512xf32>
    %c0_5 = arith.constant 0 : index
    %c0_6 = arith.constant 0 : index
    %7 = vector.load %arg4[%c0_5, %c0_6] : memref<1x512xf32, #tpu.memory_space<vmem>>, vector<1x512xf32>
    %8 = vector.broadcast %7 : vector<1x512xf32> to vector<64x512xf32>
    %9 = arith.addf %6, %8 : vector<64x512xf32>
    %10 = vector.extract_strided_slice %9 {offsets = [0, 0], sizes = [64, 256], strides = [1, 1]} : vector<64x512xf32> to vector<64x256xf32>
    %11 = vector.extract_strided_slice %9 {offsets = [0, 256], sizes = [64, 256], strides = [1, 1]} : vector<64x512xf32> to vector<64x256xf32>
    %c0_7 = arith.constant 0 : index
    %c0_8 = arith.constant 0 : index
    %12 = vector.load %arg5[%c0_7, %c0_8] : memref<4x256xf32, #tpu.memory_space<vmem>>, vector<4x256xf32>
    %13 = vector.extract_strided_slice %12 {offsets = [3, 0], sizes = [1, 256], strides = [1, 1]} : vector<4x256xf32> to vector<1x256xf32>
    %14 = vector.broadcast %13 : vector<1x256xf32> to vector<64x256xf32>
    %15 = arith.mulf %10, %14 : vector<64x256xf32>
    %c0_9 = arith.constant 0 : index
    %c0_10 = arith.constant 0 : index
    %16 = vector.load %arg6[%c0_9, %c0_10] : memref<1x256xf32, #tpu.memory_space<vmem>>, vector<1x256xf32>
    %17 = vector.broadcast %16 : vector<1x256xf32> to vector<64x256xf32>
    %18 = arith.addf %15, %17 : vector<64x256xf32>
    %c0_11 = arith.constant 0 : index
    %c0_12 = arith.constant 0 : index
    %19 = vector.load %arg15[%c0_11, %c0_12] : memref<8x256xf32, #tpu.memory_space<vmem>>, vector<8x256xf32>
    %20 = tpu.concatenate %19, %10 in 0 : vector<8x256xf32>, vector<64x256xf32> -> vector<72x256xf32>
    %21 = vector.extract_strided_slice %20 {offsets = [7, 0], sizes = [64, 256], strides = [1, 1]} : vector<72x256xf32> to vector<64x256xf32>
    %22 = vector.extract_strided_slice %12 {offsets = [2, 0], sizes = [1, 256], strides = [1, 1]} : vector<4x256xf32> to vector<1x256xf32>
    %23 = vector.broadcast %22 : vector<1x256xf32> to vector<64x256xf32>
    %24 = arith.mulf %21, %23 : vector<64x256xf32>
    %25 = arith.addf %18, %24 : vector<64x256xf32>
    %26 = vector.extract_strided_slice %20 {offsets = [6, 0], sizes = [64, 256], strides = [1, 1]} : vector<72x256xf32> to vector<64x256xf32>
    %27 = vector.extract_strided_slice %12 {offsets = [1, 0], sizes = [1, 256], strides = [1, 1]} : vector<4x256xf32> to vector<1x256xf32>
    %28 = vector.broadcast %27 : vector<1x256xf32> to vector<64x256xf32>
    %29 = arith.mulf %26, %28 : vector<64x256xf32>
    %30 = arith.addf %25, %29 : vector<64x256xf32>
    %31 = vector.extract_strided_slice %20 {offsets = [5, 0], sizes = [64, 256], strides = [1, 1]} : vector<72x256xf32> to vector<64x256xf32>
    %32 = vector.extract_strided_slice %12 {offsets = [0, 0], sizes = [1, 256], strides = [1, 1]} : vector<4x256xf32> to vector<1x256xf32>
    %33 = vector.broadcast %32 : vector<1x256xf32> to vector<64x256xf32>
    %34 = arith.mulf %31, %33 : vector<64x256xf32>
    %35 = arith.addf %30, %34 : vector<64x256xf32>
    %36 = arith.negf %35 : vector<64x256xf32>
    %37 = math.exp %36 : vector<64x256xf32>
    %cst_13 = arith.constant 1.000000e+00 : f32
    %38 = vector.broadcast %cst_13 : f32 to vector<64x256xf32>
    %39 = arith.addf %38, %37 : vector<64x256xf32>
    %40 = arith.divf %38, %39 : vector<64x256xf32>
    %41 = arith.mulf %35, %40 : vector<64x256xf32>
    %c0_14 = arith.constant 0 : index
    %c0_15 = arith.constant 0 : index
    %42 = vector.load %arg7[%c0_14, %c0_15] : memref<256x288xf32, #tpu.memory_space<vmem>>, vector<256x288xf32>
    %cst_16 = arith.constant dense<0.000000e+00> : vector<64x288xf32>
    %43 = tpu.matmul %41, %42, %cst_16 {dimension_numbers = #tpu.dot_dimension_numbers<[1], [0], [0], [1], [0, 0, 1, 1], [], []>} : vector<64x256xf32>, vector<256x288xf32>, vector<64x288xf32> -> vector<64x288xf32>
    %44 = vector.extract_strided_slice %43 {offsets = [0, 0], sizes = [64, 256], strides = [1, 1]} : vector<64x288xf32> to vector<64x256xf32>
    %c0_17 = arith.constant 0 : index
    %c0_18 = arith.constant 0 : index
    %45 = vector.load %arg8[%c0_17, %c0_18] : memref<1x256xf32, #tpu.memory_space<vmem>>, vector<1x256xf32>
    %46 = vector.broadcast %45 : vector<1x256xf32> to vector<64x256xf32>
    %47 = arith.addf %44, %46 : vector<64x256xf32>
    %cst_19 = arith.constant 0.000000e+00 : f32
    %48 = vector.broadcast %cst_19 : f32 to vector<64x256xf32>
    %49 = arith.maximumf %47, %48 : vector<64x256xf32>
    %50 = math.absf %47 : vector<64x256xf32>
    %cst_20 = arith.constant 0.000000e+00 : f32
    %51 = vector.broadcast %cst_20 : f32 to vector<64x256xf32>
    %52 = arith.subf %51, %50 : vector<64x256xf32>
    %53 = math.exp %52 : vector<64x256xf32>
    %54 = math.log1p %53 : vector<64x256xf32>
    %55 = arith.addf %49, %54 : vector<64x256xf32>
    %56 = vector.extract_strided_slice %43 {offsets = [0, 256], sizes = [64, 16], strides = [1, 1]} : vector<64x288xf32> to vector<64x16xf32>
    %57 = vector.extract_strided_slice %43 {offsets = [0, 272], sizes = [64, 16], strides = [1, 1]} : vector<64x288xf32> to vector<64x16xf32>
    %58 = vector.shape_cast %56 : vector<64x16xf32> to vector<64x16x1xf32>
    %59 = arith.mulf %55, %41 : vector<64x256xf32>
    %60 = vector.shape_cast %59 : vector<64x256xf32> to vector<64x1x256xf32>
    %61 = vector.broadcast %58 : vector<64x16x1xf32> to vector<64x16x256xf32>
    %62 = vector.broadcast %60 : vector<64x1x256xf32> to vector<64x16x256xf32>
    %63 = arith.mulf %61, %62 : vector<64x16x256xf32>
    %c0_21 = arith.constant 0 : index
    %c0_22 = arith.constant 0 : index
    %c0_23 = arith.constant 0 : index
    %64 = vector.load %arg17[%c0_21, %c0_22, %c0_23] : memref<64x16x256xf32, #tpu.memory_space<vmem>>, vector<64x16x256xf32>
    tpu.vector_store %arg17[%c0_21, %c0_22, %c0_23], %63 {strides = array<i32>} : memref<64x16x256xf32, #tpu.memory_space<vmem>>, vector<64x16x256xf32>,
    %c0_24 = arith.constant 0 : index
    %c0_25 = arith.constant 0 : index
    %65 = vector.load %arg16[%c0_24, %c0_25] : memref<64x256xf32, #tpu.memory_space<vmem>>, vector<64x256xf32>
    tpu.vector_store %arg16[%c0_24, %c0_25], %55 {strides = array<i32>} : memref<64x256xf32, #tpu.memory_space<vmem>>, vector<64x256xf32>,
    %c0_26 = arith.constant 0 : index
    %c0_27 = arith.constant 0 : index
    %66 = vector.load %arg9[%c0_26, %c0_27] : memref<16x256xf32, #tpu.memory_space<vmem>>, vector<16x256xf32>
    %c0_28 = arith.constant 0 : index
    %c0_29 = arith.constant 0 : index
    %67 = vector.load %arg14[%c0_28, %c0_29] : memref<16x256xf32, #tpu.memory_space<vmem>>, vector<16x256xf32>
    %c0_i32_30 = arith.constant 0 : i32
    %c16_i32 = arith.constant 16 : i32
    %68 = arith.addi %c0_i32_30, %c16_i32 : i32
    %c1_i32 = arith.constant 1 : i32
    %69 = scf.for %arg18 = %c0_i32_30 to %68 step %c1_i32 iter_args(%arg19 = %67) -> (vector<16x256xf32>)  : i32 {
      %c4_i32 = arith.constant 4 : i32
      %95 = arith.muli %arg18, %c4_i32 : i32
      %c0_i32_49 = arith.constant 0 : i32
      %96 = arith.addi %95, %c0_i32_49 : i32
      %97 = arith.index_cast %96 : i32 to index
      %c0_50 = arith.constant 0 : index
      %98 = vector.load %arg16[%97, %c0_50] : memref<64x256xf32, #tpu.memory_space<vmem>>, vector<1x256xf32>
      %99 = vector.broadcast %98 : vector<1x256xf32> to vector<16x256xf32>
      %100 = arith.mulf %99, %66 : vector<16x256xf32>
      %101 = math.exp %100 : vector<16x256xf32>
      %102 = arith.mulf %101, %arg19 : vector<16x256xf32>
      %103 = arith.index_cast %96 : i32 to index
      %c0_51 = arith.constant 0 : index
      %c0_52 = arith.constant 0 : index
      %104 = vector.load %arg17[%103, %c0_51, %c0_52] : memref<64x16x256xf32, #tpu.memory_space<vmem>>, vector<1x16x256xf32>
      %105 = vector.shape_cast %104 : vector<1x16x256xf32> to vector<16x256xf32>
      %106 = arith.addf %102, %105 : vector<16x256xf32>
      %107 = arith.index_cast %96 : i32 to index
      %c0_53 = arith.constant 0 : index
      %c0_54 = arith.constant 0 : index
      %108 = vector.load %arg17[%107, %c0_53, %c0_54] : memref<64x16x256xf32, #tpu.memory_space<vmem>>, vector<1x16x256xf32>
      %109 = vector.shape_cast %108 : vector<1x16x256xf32> to vector<16x256xf32>
      %110 = vector.shape_cast %106 : vector<16x256xf32> to vector<1x16x256xf32>
      tpu.vector_store %arg17[%107, %c0_53, %c0_54], %110 {strides = array<i32>} : memref<64x16x256xf32, #tpu.memory_space<vmem>>, vector<1x16x256xf32>,
      %c1_i32_55 = arith.constant 1 : i32
      %111 = arith.addi %95, %c1_i32_55 : i32
      %112 = arith.index_cast %111 : i32 to index
      %c0_56 = arith.constant 0 : index
      %113 = vector.load %arg16[%112, %c0_56] : memref<64x256xf32, #tpu.memory_space<vmem>>, vector<1x256xf32>
      %114 = vector.broadcast %113 : vector<1x256xf32> to vector<16x256xf32>
      %115 = arith.mulf %114, %66 : vector<16x256xf32>
      %116 = math.exp %115 : vector<16x256xf32>
      %117 = arith.mulf %116, %106 : vector<16x256xf32>
      %118 = arith.index_cast %111 : i32 to index
      %c0_57 = arith.constant 0 : index
      %c0_58 = arith.constant 0 : index
      %119 = vector.load %arg17[%118, %c0_57, %c0_58] : memref<64x16x256xf32, #tpu.memory_space<vmem>>, vector<1x16x256xf32>
      %120 = vector.shape_cast %119 : vector<1x16x256xf32> to vector<16x256xf32>
      %121 = arith.addf %117, %120 : vector<16x256xf32>
      %122 = arith.index_cast %111 : i32 to index
      %c0_59 = arith.constant 0 : index
      %c0_60 = arith.constant 0 : index
      %123 = vector.load %arg17[%122, %c0_59, %c0_60] : memref<64x16x256xf32, #tpu.memory_space<vmem>>, vector<1x16x256xf32>
      %124 = vector.shape_cast %123 : vector<1x16x256xf32> to vector<16x256xf32>
      %125 = vector.shape_cast %121 : vector<16x256xf32> to vector<1x16x256xf32>
      tpu.vector_store %arg17[%122, %c0_59, %c0_60], %125 {strides = array<i32>} : memref<64x16x256xf32, #tpu.memory_space<vmem>>, vector<1x16x256xf32>,
      %c2_i32 = arith.constant 2 : i32
      %126 = arith.addi %95, %c2_i32 : i32
      %127 = arith.index_cast %126 : i32 to index
      %c0_61 = arith.constant 0 : index
      %128 = vector.load %arg16[%127, %c0_61] : memref<64x256xf32, #tpu.memory_space<vmem>>, vector<1x256xf32>
      %129 = vector.broadcast %128 : vector<1x256xf32> to vector<16x256xf32>
      %130 = arith.mulf %129, %66 : vector<16x256xf32>
      %131 = math.exp %130 : vector<16x256xf32>
      %132 = arith.mulf %131, %121 : vector<16x256xf32>
      %133 = arith.index_cast %126 : i32 to index
      %c0_62 = arith.constant 0 : index
      %c0_63 = arith.constant 0 : index
      %134 = vector.load %arg17[%133, %c0_62, %c0_63] : memref<64x16x256xf32, #tpu.memory_space<vmem>>, vector<1x16x256xf32>
      %135 = vector.shape_cast %134 : vector<1x16x256xf32> to vector<16x256xf32>
      %136 = arith.addf %132, %135 : vector<16x256xf32>
      %137 = arith.index_cast %126 : i32 to index
      %c0_64 = arith.constant 0 : index
      %c0_65 = arith.constant 0 : index
      %138 = vector.load %arg17[%137, %c0_64, %c0_65] : memref<64x16x256xf32, #tpu.memory_space<vmem>>, vector<1x16x256xf32>
      %139 = vector.shape_cast %138 : vector<1x16x256xf32> to vector<16x256xf32>
      %140 = vector.shape_cast %136 : vector<16x256xf32> to vector<1x16x256xf32>
      tpu.vector_store %arg17[%137, %c0_64, %c0_65], %140 {strides = array<i32>} : memref<64x16x256xf32, #tpu.memory_space<vmem>>, vector<1x16x256xf32>,
      %c3_i32 = arith.constant 3 : i32
      %141 = arith.addi %95, %c3_i32 : i32
      %142 = arith.index_cast %141 : i32 to index
      %c0_66 = arith.constant 0 : index
      %143 = vector.load %arg16[%142, %c0_66] : memref<64x256xf32, #tpu.memory_space<vmem>>, vector<1x256xf32>
      %144 = vector.broadcast %143 : vector<1x256xf32> to vector<16x256xf32>
      %145 = arith.mulf %144, %66 : vector<16x256xf32>
      %146 = math.exp %145 : vector<16x256xf32>
      %147 = arith.mulf %146, %136 : vector<16x256xf32>
      %148 = arith.index_cast %141 : i32 to index
      %c0_67 = arith.constant 0 : index
      %c0_68 = arith.constant 0 : index
      %149 = vector.load %arg17[%148, %c0_67, %c0_68] : memref<64x16x256xf32, #tpu.memory_space<vmem>>, vector<1x16x256xf32>
      %150 = vector.shape_cast %149 : vector<1x16x256xf32> to vector<16x256xf32>
      %151 = arith.addf %147, %150 : vector<16x256xf32>
      %152 = arith.index_cast %141 : i32 to index
      %c0_69 = arith.constant 0 : index
      %c0_70 = arith.constant 0 : index
      %153 = vector.load %arg17[%152, %c0_69, %c0_70] : memref<64x16x256xf32, #tpu.memory_space<vmem>>, vector<1x16x256xf32>
      %154 = vector.shape_cast %153 : vector<1x16x256xf32> to vector<16x256xf32>
      %155 = vector.shape_cast %151 : vector<16x256xf32> to vector<1x16x256xf32>
      tpu.vector_store %arg17[%152, %c0_69, %c0_70], %155 {strides = array<i32>} : memref<64x16x256xf32, #tpu.memory_space<vmem>>, vector<1x16x256xf32>,
      scf.yield %151 : vector<16x256xf32>
    }
    %c16_i32_31 = arith.constant 16 : i32
    %c0_32 = arith.constant 0 : index
    %c0_33 = arith.constant 0 : index
    %70 = vector.load %arg14[%c0_32, %c0_33] : memref<16x256xf32, #tpu.memory_space<vmem>>, vector<16x256xf32>
    tpu.vector_store %arg14[%c0_32, %c0_33], %69 {strides = array<i32>} : memref<16x256xf32, #tpu.memory_space<vmem>>, vector<16x256xf32>,
    %c0_34 = arith.constant 0 : index
    %c0_35 = arith.constant 0 : index
    %c0_36 = arith.constant 0 : index
    %71 = vector.load %arg17[%c0_34, %c0_35, %c0_36] : memref<64x16x256xf32, #tpu.memory_space<vmem>>, vector<64x16x256xf32>
    %72 = vector.shape_cast %57 : vector<64x16xf32> to vector<64x16x1xf32>
    %73 = vector.broadcast %72 : vector<64x16x1xf32> to vector<64x16x256xf32>
    %74 = arith.mulf %71, %73 : vector<64x16x256xf32>
    %cst_37 = arith.constant dense<0.000000e+00> : vector<64x256xf32>
    %75 = vector.multi_reduction <add>, %74, %cst_37 [1] : vector<64x16x256xf32> to vector<64x256xf32>
    %c0_38 = arith.constant 0 : index
    %c0_39 = arith.constant 0 : index
    %76 = vector.load %arg10[%c0_38, %c0_39] : memref<1x256xf32, #tpu.memory_space<vmem>>, vector<1x256xf32>
    %77 = vector.broadcast %76 : vector<1x256xf32> to vector<64x256xf32>
    %78 = arith.mulf %41, %77 : vector<64x256xf32>
    %79 = arith.addf %75, %78 : vector<64x256xf32>
    %80 = arith.negf %11 : vector<64x256xf32>
    %81 = math.exp %80 : vector<64x256xf32>
    %cst_40 = arith.constant 1.000000e+00 : f32
    %82 = vector.broadcast %cst_40 : f32 to vector<64x256xf32>
    %83 = arith.addf %82, %81 : vector<64x256xf32>
    %84 = arith.divf %82, %83 : vector<64x256xf32>
    %85 = arith.mulf %11, %84 : vector<64x256xf32>
    %86 = arith.mulf %79, %85 : vector<64x256xf32>
    %c0_41 = arith.constant 0 : index
    %c0_42 = arith.constant 0 : index
    %87 = vector.load %arg11[%c0_41, %c0_42] : memref<256x128xf32, #tpu.memory_space<vmem>>, vector<256x128xf32>
    %cst_43 = arith.constant dense<0.000000e+00> : vector<64x128xf32>
    %88 = tpu.matmul %86, %87, %cst_43 {dimension_numbers = #tpu.dot_dimension_numbers<[1], [0], [0], [1], [0, 0, 1, 1], [], []>} : vector<64x256xf32>, vector<256x128xf32>, vector<64x128xf32> -> vector<64x128xf32>
    %c0_44 = arith.constant 0 : index
    %c0_45 = arith.constant 0 : index
    %89 = vector.load %arg12[%c0_44, %c0_45] : memref<1x128xf32, #tpu.memory_space<vmem>>, vector<1x128xf32>
    %90 = vector.broadcast %89 : vector<1x128xf32> to vector<64x128xf32>
    %91 = arith.addf %88, %90 : vector<64x128xf32>
    %c0_46 = arith.constant 0 : index
    %c0_47 = arith.constant 0 : index
    %c0_48 = arith.constant 0 : index
    %92 = vector.load %arg13[%c0_46, %c0_47, %c0_48] : memref<1x64x128xf32, #tpu.memory_space<vmem>>, vector<1x64x128xf32>
    %93 = vector.shape_cast %92 : vector<1x64x128xf32> to vector<64x128xf32>
    %94 = vector.shape_cast %91 : vector<64x128xf32> to vector<1x64x128xf32>
    tpu.vector_store %arg13[%c0_46, %c0_47, %c0_48], %94 {strides = array<i32>} : memref<1x64x128xf32, #tpu.memory_space<vmem>>, vector<1x64x128xf32>,
    return
  }
  func.func @transform_0(%arg0: i32, %arg1: i32) -> (i32, i32, i32) {
    %c0_i32 = arith.constant 0 : i32
    %c0_i32_0 = arith.constant 0 : i32
    return %arg0, %arg1, %c0_i32 : i32, i32, i32
  }
  func.func @transform_1(%arg0: i32, %arg1: i32) -> (i32, i32) {
    %c0_i32 = arith.constant 0 : i32
    %c0_i32_0 = arith.constant 0 : i32
    %c0_i32_1 = arith.constant 0 : i32
    return %c0_i32, %c0_i32_0 : i32, i32
  }
  func.func @transform_2(%arg0: i32, %arg1: i32) -> (i32, i32) {
    %c0_i32 = arith.constant 0 : i32
    %c0_i32_0 = arith.constant 0 : i32
    %c0_i32_1 = arith.constant 0 : i32
    return %c0_i32, %c0_i32_0 : i32, i32
  }
  func.func @transform_3(%arg0: i32, %arg1: i32) -> (i32, i32) {
    %c0_i32 = arith.constant 0 : i32
    %c0_i32_0 = arith.constant 0 : i32
    %c0_i32_1 = arith.constant 0 : i32
    return %c0_i32, %c0_i32_0 : i32, i32
  }
  func.func @transform_4(%arg0: i32, %arg1: i32) -> (i32, i32) {
    %c0_i32 = arith.constant 0 : i32
    %c0_i32_0 = arith.constant 0 : i32
    %c0_i32_1 = arith.constant 0 : i32
    return %c0_i32, %c0_i32_0 : i32, i32
  }
  func.func @transform_5(%arg0: i32, %arg1: i32) -> (i32, i32) {
    %c0_i32 = arith.constant 0 : i32
    %c0_i32_0 = arith.constant 0 : i32
    %c0_i32_1 = arith.constant 0 : i32
    return %c0_i32, %c0_i32_0 : i32, i32
  }
  func.func @transform_6(%arg0: i32, %arg1: i32) -> (i32, i32) {
    %c0_i32 = arith.constant 0 : i32
    %c0_i32_0 = arith.constant 0 : i32
    %c0_i32_1 = arith.constant 0 : i32
    return %c0_i32, %c0_i32_0 : i32, i32
  }
  func.func @transform_7(%arg0: i32, %arg1: i32) -> (i32, i32) {
    %c0_i32 = arith.constant 0 : i32
    %c0_i32_0 = arith.constant 0 : i32
    %c0_i32_1 = arith.constant 0 : i32
    return %c0_i32, %c0_i32_0 : i32, i32
  }
  func.func @transform_8(%arg0: i32, %arg1: i32) -> (i32, i32) {
    %c0_i32 = arith.constant 0 : i32
    %c0_i32_0 = arith.constant 0 : i32
    %c0_i32_1 = arith.constant 0 : i32
    return %c0_i32, %c0_i32_0 : i32, i32
  }
  func.func @transform_9(%arg0: i32, %arg1: i32) -> (i32, i32) {
    %c0_i32 = arith.constant 0 : i32
    %c0_i32_0 = arith.constant 0 : i32
    %c0_i32_1 = arith.constant 0 : i32
    return %c0_i32, %c0_i32_0 : i32, i32
  }
  func.func @transform_10(%arg0: i32, %arg1: i32) -> (i32, i32) {
    %c0_i32 = arith.constant 0 : i32
    %c0_i32_0 = arith.constant 0 : i32
    %c0_i32_1 = arith.constant 0 : i32
    return %c0_i32, %c0_i32_0 : i32, i32
  }
  func.func @transform_11(%arg0: i32, %arg1: i32) -> (i32, i32, i32) {
    %c0_i32 = arith.constant 0 : i32
    %c0_i32_0 = arith.constant 0 : i32
    return %arg0, %arg1, %c0_i32 : i32, i32, i32
  }
}

</mosaic_0001>

<llo_original>
// kernel: tpu_custom_call.1
$region0: #{tpu_custom_call.1}
  #allocation0 [shape = 'u32[]', space=smem, size = 0x4, offset = 0x4, fixed_abs, tag = 'smem constant byte address 0x4 - core index']
  #allocation1 [shape = 'u32[144,128]{1,0:T(1,128)}', space=vmem, size = 0x12000, scoped, tag = 'internal scratch']
  #allocation2 [shape = 'f32[16,256]{1,0:T(8,128)}', space=vmem, size = 0x4000, scoped, tag = 'scratch operand']
  #allocation3 [shape = 'f32[8,256]{1,0:T(8,128)}', space=vmem, size = 0x2000, scoped, tag = 'scratch operand']
  #allocation4 [shape = 'f32[64,256]{1,0:T(8,128)}', space=vmem, size = 0x10000, scoped, tag = 'scratch operand']
  #allocation5 [shape = 'f32[64,16,256]{2,1,0:T(8,128)}', space=vmem, size = 0x100000, scoped, tag = 'scratch operand']
  %s0 = inlined_call_operand.vmem [shape: f32[2,64,128], index: 0, kind: input, shape index: {}]
  %s1 = inlined_call_operand.vmem [shape: f32[128,512], index: 1, kind: input, shape index: {}]
  %s2 = inlined_call_operand.vmem [shape: f32[1,512], index: 2, kind: input, shape index: {}]
  %s3 = inlined_call_operand.vmem [shape: f32[4,256], index: 3, kind: input, shape index: {}]
  %s4 = inlined_call_operand.vmem [shape: f32[1,256], index: 4, kind: input, shape index: {}]
  %s5 = inlined_call_operand.vmem [shape: f32[256,288], index: 5, kind: input, shape index: {}]
  %s6 = inlined_call_operand.vmem [shape: f32[1,256], index: 6, kind: input, shape index: {}]
  %s7 = inlined_call_operand.vmem [shape: f32[16,256], index: 7, kind: input, shape index: {}]
  %s8 = inlined_call_operand.vmem [shape: f32[1,256], index: 8, kind: input, shape index: {}]
  %s9 = inlined_call_operand.vmem [shape: f32[256,128], index: 9, kind: input, shape index: {}]
  %s10 = inlined_call_operand.vmem [shape: f32[1,128], index: 10, kind: input, shape index: {}]
  %s11 = inlined_call_operand.hbm [shape: f32[2,64,128], index: 11, kind: output, shape index: {}]
  %s12 = sld [smem:[#allocation0]]
  $region88: #{tpu_custom_call.1} parent=0
    _
  %s14 = ssub.s32 1, %s12
  %s15 = scalar_select 0, %s14, %s12
  $region1: #{tpu_custom_call.1} parent=0
    #allocation6 [shape = 'u8[65536]{0}', space=vmem, size = 0x10000, scoped, tag = 'output window, operand 0']
    #allocation7 [shape = 's32[2]{0}', space=sflag, size = 0x8, scoped, tag = 'scoped memory for tpu_custom_call.1']
    %16 = vsyncpa [#allocation7], 0
    %s17 = scalar_lea.sflag [#allocation7], 1
    %18 = vsyncpa %s17, 0
    loop: start=0, step=1, limit=4
    $region2: #{tpu_custom_call.1} parent=1 // loop_pre_header
      _
    $region3: #{tpu_custom_call.1} parent=1 // loop_header
      %s20 = sphi 0, %s24
      %p21 = scmp.ge.s32.totalorder %s20, 4
      %s27 = sphi 0, %s39
      %s28 = sphi 0, %s35
      %s29 = sphi 0, %s27
      %s30 = sphi 0, %s28
      %s31 = sphi 0, %s29
      %s32 = sphi 0, %s30
      %s44 = sphi 0, %s46
      %s47 = sphi 0, %s44
      %s48 = sphi 0, %s47
      %s64 = sphi 0, %s48
      %s68 = sphi 0, %s68
      %s70 = sphi 0, %s68
      %s71 = sphi 0, %s70
      %s85 = sphi 0, %s71
      %s89 = sphi 0, %s89
      %s91 = sphi 0, %s89
      %s92 = sphi 0, %s91
      %s106 = sphi 0, %s92
      %s110 = sphi 0, %s110
      %s112 = sphi 0, %s110
      %s113 = sphi 0, %s112
      %s127 = sphi 0, %s113
      %s131 = sphi 0, %s131
      %s133 = sphi 0, %s131
      %s134 = sphi 0, %s133
      %s148 = sphi 0, %s134
      %s152 = sphi 0, %s152
      %s154 = sphi 0, %s152
      %s155 = sphi 0, %s154
      %s169 = sphi 0, %s155
      %s173 = sphi 0, %s173
      %s175 = sphi 0, %s173
      %s176 = sphi 0, %s175
      %s190 = sphi 0, %s176
      %s194 = sphi 0, %s194
      %s196 = sphi 0, %s194
      %s197 = sphi 0, %s196
      %s211 = sphi 0, %s197
      %s215 = sphi 0, %s215
      %s217 = sphi 0, %s215
      %s218 = sphi 0, %s217
      %s232 = sphi 0, %s218
      %s236 = sphi 0, %s236
      %s238 = sphi 0, %s236
      %s239 = sphi 0, %s238
      %s253 = sphi 0, %s239
      %s257 = sphi 0, %s257
      %s259 = sphi 0, %s257
      %s260 = sphi 0, %s259
      %s274 = sphi 0, %s260
      %s282 = sphi 0, %s284
      %s285 = sphi 0, %s282
      %s286 = sphi 0, %s285
      %s302 = sphi 0, %s286
    $region4: #{tpu_custom_call.1} parent=1 // loop_header_branch
      %23 = sbr.rel (%p21) target = $region8
    $region5: #{tpu_custom_call.1} parent=1 // loop_body
      %s25 = ssub.s32 %s20, 1
      %s26 = ssub.s32 %s20, 2
      %s33 = sadd.s32 1, %s28
      %p34 = scmp.ge.s32.totalorder %s33, 1
      %s35 = scalar_select %p34, 0, %s33
      %s36 = sadd.s32 1, %s27
      %s37 = scalar_select %p34, %s36, %s27
      %p38 = scmp.ge.s32.totalorder %s37, 2
      %s39 = scalar_select %p38, 0, %s37
      %s40 = ssub.s32 %s27, %s39
      %s41 = ssub.s32 %s28, %s35
      %s42 = sor.u32 %s40, %s41
      %p43 = scmp.eq.s32.totalorder %s42, 0
      %s45 = sadd.s32 %s44, 1
      %s46 = scalar_select %p43, %s44, %s45
      %p49 = pneg %p43
      %p50 = scmp.eq.s32.totalorder %s20, 1
      %p51 = por %p49, %p50
      %p52 = scmp.ne.s32.totalorder %s44, %s47
      %p53 = scmp.eq.s32.totalorder %s20, 0
      %p54 = por %p52, %p53
      %p55 = scmp.ne.s32.totalorder %s44, %s47
      %p56 = scmp.eq.s32.totalorder %s25, 1
      %p57 = por %p55, %p56
      %p58 = scmp.ne.s32.totalorder %s47, %s48
      %p59 = scmp.eq.s32.totalorder %s25, 0
      %p60 = por %p58, %p59
      %p61 = scmp.ne.s32.totalorder %s47, %s48
      %p62 = scmp.eq.s32.totalorder %s26, 1
      %p63 = por %p61, %p62
      %p65 = scmp.ne.s32.totalorder %s48, %s64
      %p66 = scmp.eq.s32.totalorder %s26, 0
      %p67 = por %p65, %p66
      %s69 = sadd.s32 %s68, 1
      %p72 = scmp.eq.s32.totalorder %s20, 1
      %p73 = scmp.ne.s32.totalorder %s68, %s70
      %p74 = scmp.eq.s32.totalorder %s20, 0
      %p75 = por %p73, %p74
      %p76 = scmp.ne.s32.totalorder %s68, %s70
      %p77 = scmp.eq.s32.totalorder %s25, 1
      %p78 = por %p76, %p77
      %p79 = scmp.ne.s32.totalorder %s70, %s71
      %p80 = scmp.eq.s32.totalorder %s25, 0
      %p81 = por %p79, %p80
      %p82 = scmp.ne.s32.totalorder %s70, %s71
      %p83 = scmp.eq.s32.totalorder %s26, 1
      %p84 = por %p82, %p83
      %p86 = scmp.ne.s32.totalorder %s71, %s85
      %p87 = scmp.eq.s32.totalorder %s26, 0
      %p88 = por %p86, %p87
      %s90 = sadd.s32 %s89, 1
      %p93 = scmp.eq.s32.totalorder %s20, 1
      %p94 = scmp.ne.s32.totalorder %s89, %s91
      %p95 = scmp.eq.s32.totalorder %s20, 0
      %p96 = por %p94, %p95
      %p97 = scmp.ne.s32.totalorder %s89, %s91
      %p98 = scmp.eq.s32.totalorder %s25, 1
      %p99 = por %p97, %p98
      %p100 = scmp.ne.s32.totalorder %s91, %s92
      %p101 = scmp.eq.s32.totalorder %s25, 0
      %p102 = por %p100, %p101
      %p103 = scmp.ne.s32.totalorder %s91, %s92
      %p104 = scmp.eq.s32.totalorder %s26, 1
      %p105 = por %p103, %p104
      %p107 = scmp.ne.s32.totalorder %s92, %s106
      %p108 = scmp.eq.s32.totalorder %s26, 0
      %p109 = por %p107, %p108
      %s111 = sadd.s32 %s110, 1
      %p114 = scmp.eq.s32.totalorder %s20, 1
      %p115 = scmp.ne.s32.totalorder %s110, %s112
      %p116 = scmp.eq.s32.totalorder %s20, 0
      %p117 = por %p115, %p116
      %p118 = scmp.ne.s32.totalorder %s110, %s112
      %p119 = scmp.eq.s32.totalorder %s25, 1
      %p120 = por %p118, %p119
      %p121 = scmp.ne.s32.totalorder %s112, %s113
      %p122 = scmp.eq.s32.totalorder %s25, 0
      %p123 = por %p121, %p122
      %p124 = scmp.ne.s32.totalorder %s112, %s113
      %p125 = scmp.eq.s32.totalorder %s26, 1
      %p126 = por %p124, %p125
      %p128 = scmp.ne.s32.totalorder %s113, %s127
      %p129 = scmp.eq.s32.totalorder %s26, 0
      %p130 = por %p128, %p129
      %s132 = sadd.s32 %s131, 1
      %p135 = scmp.eq.s32.totalorder %s20, 1
      %p136 = scmp.ne.s32.totalorder %s131, %s133
      %p137 = scmp.eq.s32.totalorder %s20, 0
      %p138 = por %p136, %p137
      %p139 = scmp.ne.s32.totalorder %s131, %s133
      %p140 = scmp.eq.s32.totalorder %s25, 1
      %p141 = por %p139, %p140
      %p142 = scmp.ne.s32.totalorder %s133, %s134
      %p143 = scmp.eq.s32.totalorder %s25, 0
      %p144 = por %p142, %p143
      %p145 = scmp.ne.s32.totalorder %s133, %s134
      %p146 = scmp.eq.s32.totalorder %s26, 1
      %p147 = por %p145, %p146
      %p149 = scmp.ne.s32.totalorder %s134, %s148
      %p150 = scmp.eq.s32.totalorder %s26, 0
      %p151 = por %p149, %p150
      %s153 = sadd.s32 %s152, 1
      %p156 = scmp.eq.s32.totalorder %s20, 1
      %p157 = scmp.ne.s32.totalorder %s152, %s154
      %p158 = scmp.eq.s32.totalorder %s20, 0
      %p159 = por %p157, %p158
      %p160 = scmp.ne.s32.totalorder %s152, %s154
      %p161 = scmp.eq.s32.totalorder %s25, 1
      %p162 = por %p160, %p161
      %p163 = scmp.ne.s32.totalorder %s154, %s155
      %p164 = scmp.eq.s32.totalorder %s25, 0
      %p165 = por %p163, %p164
      %p166 = scmp.ne.s32.totalorder %s154, %s155
      %p167 = scmp.eq.s32.totalorder %s26, 1
      %p168 = por %p166, %p167
      %p170 = scmp.ne.s32.totalorder %s155, %s169
      %p171 = scmp.eq.s32.totalorder %s26, 0
      %p172 = por %p170, %p171
      %s174 = sadd.s32 %s173, 1
      %p177 = scmp.eq.s32.totalorder %s20, 1
      %p178 = scmp.ne.s32.totalorder %s173, %s175
      %p179 = scmp.eq.s32.totalorder %s20, 0
      %p180 = por %p178, %p179
      %p181 = scmp.ne.s32.totalorder %s173, %s175
      %p182 = scmp.eq.s32.totalorder %s25, 1
      %p183 = por %p181, %p182
      %p184 = scmp.ne.s32.totalorder %s175, %s176
      %p185 = scmp.eq.s32.totalorder %s25, 0
      %p186 = por %p184, %p185
      %p187 = scmp.ne.s32.totalorder %s175, %s176
      %p188 = scmp.eq.s32.totalorder %s26, 1
      %p189 = por %p187, %p188
      %p191 = scmp.ne.s32.totalorder %s176, %s190
      %p192 = scmp.eq.s32.totalorder %s26, 0
      %p193 = por %p191, %p192
      %s195 = sadd.s32 %s194, 1
      %p198 = scmp.eq.s32.totalorder %s20, 1
      %p199 = scmp.ne.s32.totalorder %s194, %s196
      %p200 = scmp.eq.s32.totalorder %s20, 0
      %p201 = por %p199, %p200
      %p202 = scmp.ne.s32.totalorder %s194, %s196
      %p203 = scmp.eq.s32.totalorder %s25, 1
      %p204 = por %p202, %p203
      %p205 = scmp.ne.s32.totalorder %s196, %s197
      %p206 = scmp.eq.s32.totalorder %s25, 0
      %p207 = por %p205, %p206
      %p208 = scmp.ne.s32.totalorder %s196, %s197
      %p209 = scmp.eq.s32.totalorder %s26, 1
      %p210 = por %p208, %p209
      %p212 = scmp.ne.s32.totalorder %s197, %s211
      %p213 = scmp.eq.s32.totalorder %s26, 0
      %p214 = por %p212, %p213
      %s216 = sadd.s32 %s215, 1
      %p219 = scmp.eq.s32.totalorder %s20, 1
      %p220 = scmp.ne.s32.totalorder %s215, %s217
      %p221 = scmp.eq.s32.totalorder %s20, 0
      %p222 = por %p220, %p221
      %p223 = scmp.ne.s32.totalorder %s215, %s217
      %p224 = scmp.eq.s32.totalorder %s25, 1
      %p225 = por %p223, %p224
      %p226 = scmp.ne.s32.totalorder %s217, %s218
      %p227 = scmp.eq.s32.totalorder %s25, 0
      %p228 = por %p226, %p227
      %p229 = scmp.ne.s32.totalorder %s217, %s218
      %p230 = scmp.eq.s32.totalorder %s26, 1
      %p231 = por %p229, %p230
      %p233 = scmp.ne.s32.totalorder %s218, %s232
      %p234 = scmp.eq.s32.totalorder %s26, 0
      %p235 = por %p233, %p234
      %s237 = sadd.s32 %s236, 1
      %p240 = scmp.eq.s32.totalorder %s20, 1
      %p241 = scmp.ne.s32.totalorder %s236, %s238
      %p242 = scmp.eq.s32.totalorder %s20, 0
      %p243 = por %p241, %p242
      %p244 = scmp.ne.s32.totalorder %s236, %s238
      %p245 = scmp.eq.s32.totalorder %s25, 1
      %p246 = por %p244, %p245
      %p247 = scmp.ne.s32.totalorder %s238, %s239
      %p248 = scmp.eq.s32.totalorder %s25, 0
      %p249 = por %p247, %p248
      %p250 = scmp.ne.s32.totalorder %s238, %s239
      %p251 = scmp.eq.s32.totalorder %s26, 1
      %p252 = por %p250, %p251
      %p254 = scmp.ne.s32.totalorder %s239, %s253
      %p255 = scmp.eq.s32.totalorder %s26, 0
      %p256 = por %p254, %p255
      %s258 = sadd.s32 %s257, 1
      %p261 = scmp.eq.s32.totalorder %s20, 1
      %p262 = scmp.ne.s32.totalorder %s257, %s259
      %p263 = scmp.eq.s32.totalorder %s20, 0
      %p264 = por %p262, %p263
      %p265 = scmp.ne.s32.totalorder %s257, %s259
      %p266 = scmp.eq.s32.totalorder %s25, 1
      %p267 = por %p265, %p266
      %p268 = scmp.ne.s32.totalorder %s259, %s260
      %p269 = scmp.eq.s32.totalorder %s25, 0
      %p270 = por %p268, %p269
      %p271 = scmp.ne.s32.totalorder %s259, %s260
      %p272 = scmp.eq.s32.totalorder %s26, 1
      %p273 = por %p271, %p272
      %p275 = scmp.ne.s32.totalorder %s260, %s274
      %p276 = scmp.eq.s32.totalorder %s26, 0
      %p277 = por %p275, %p276
      %s278 = ssub.s32 %s27, %s39
      %s279 = ssub.s32 %s28, %s35
      %s280 = sor.u32 %s278, %s279
      %p281 = scmp.eq.s32.totalorder %s280, 0
      %s283 = sadd.s32 %s282, 1
      %s284 = scalar_select %p281, %s282, %s283
      %p287 = pneg %p281
      %p288 = scmp.eq.s32.totalorder %s20, 1
      %p289 = por %p287, %p288
      %p290 = scmp.ne.s32.totalorder %s282, %s285
      %p291 = scmp.eq.s32.totalorder %s20, 0
      %p292 = por %p290, %p291
      %p293 = scmp.ne.s32.totalorder %s282, %s285
      %p294 = scmp.eq.s32.totalorder %s25, 1
      %p295 = por %p293, %p294
      %p296 = scmp.ne.s32.totalorder %s285, %s286
      %p297 = scmp.eq.s32.totalorder %s25, 0
      %p298 = por %p296, %p297
      %p299 = scmp.ne.s32.totalorder %s285, %s286
      %p300 = scmp.eq.s32.totalorder %s26, 1
      %p301 = por %p299, %p300
      %p303 = scmp.ne.s32.totalorder %s286, %s302
      %p304 = scmp.eq.s32.totalorder %s26, 0
      %p305 = por %p303, %p304
      %p306 = scmp.le.s32.totalorder 1, %s20
      %p307 = scmp.lt.s32.totalorder %s20, 3
      %p308 = pnand %p306, %p307
      %p309 = pneg %p308
      // Predicated region
      $region9: #{tpu_custom_call.1} parent=5 // pred_check
        _
      $region10: #{tpu_custom_call.1} parent=5 // pred_check_branch
        %311 = sbr.rel (%p308) target = $region12
      $region11: #{tpu_custom_call.1} parent=5 // pred_region
        %s312 = ssub.s32 %s20, 1
        // Predicated region
        $region13: #{tpu_custom_call.1} parent=11 // pred_check
          %p313 = pneg %p81
        $region14: #{tpu_custom_call.1} parent=11 // pred_check_branch
          %315 = sbr.rel (%p313) target = $region16
        $region15: #{tpu_custom_call.1} parent=11 // pred_region
          _
        $region16: #{tpu_custom_call.1} parent=11 // pred_fallthru
          _
        // Predicated region
        $region17: #{tpu_custom_call.1} parent=11 // pred_check
          %p316 = pneg %p102
        $region18: #{tpu_custom_call.1} parent=11 // pred_check_branch
          %318 = sbr.rel (%p316) target = $region20
        $region19: #{tpu_custom_call.1} parent=11 // pred_region
          _
        $region20: #{tpu_custom_call.1} parent=11 // pred_fallthru
          _
        // Predicated region
        $region21: #{tpu_custom_call.1} parent=11 // pred_check
          %p319 = pneg %p123
        $region22: #{tpu_custom_call.1} parent=11 // pred_check_branch
          %321 = sbr.rel (%p319) target = $region24
        $region23: #{tpu_custom_call.1} parent=11 // pred_region
          _
        $region24: #{tpu_custom_call.1} parent=11 // pred_fallthru
          _
        // Predicated region
        $region25: #{tpu_custom_call.1} parent=11 // pred_check
          %p322 = pneg %p144
        $region26: #{tpu_custom_call.1} parent=11 // pred_check_branch
          %324 = sbr.rel (%p322) target = $region28
        $region27: #{tpu_custom_call.1} parent=11 // pred_region
          _
        $region28: #{tpu_custom_call.1} parent=11 // pred_fallthru
          _
        // Predicated region
        $region29: #{tpu_custom_call.1} parent=11 // pred_check
          %p325 = pneg %p165
        $region30: #{tpu_custom_call.1} parent=11 // pred_check_branch
          %327 = sbr.rel (%p325) target = $region32
        $region31: #{tpu_custom_call.1} parent=11 // pred_region
          _
        $region32: #{tpu_custom_call.1} parent=11 // pred_fallthru
          _
        // Predicated region
        $region33: #{tpu_custom_call.1} parent=11 // pred_check
          %p328 = pneg %p186
        $region34: #{tpu_custom_call.1} parent=11 // pred_check_branch
          %330 = sbr.rel (%p328) target = $region36
        $region35: #{tpu_custom_call.1} parent=11 // pred_region
          _
        $region36: #{tpu_custom_call.1} parent=11 // pred_fallthru
          _
        // Predicated region
        $region37: #{tpu_custom_call.1} parent=11 // pred_check
          %p331 = pneg %p207
        $region38: #{tpu_custom_call.1} parent=11 // pred_check_branch
          %333 = sbr.rel (%p331) target = $region40
        $region39: #{tpu_custom_call.1} parent=11 // pred_region
          _
        $region40: #{tpu_custom_call.1} parent=11 // pred_fallthru
          _
        // Predicated region
        $region41: #{tpu_custom_call.1} parent=11 // pred_check
          %p334 = pneg %p228
        $region42: #{tpu_custom_call.1} parent=11 // pred_check_branch
          %336 = sbr.rel (%p334) target = $region44
        $region43: #{tpu_custom_call.1} parent=11 // pred_region
          _
        $region44: #{tpu_custom_call.1} parent=11 // pred_fallthru
          _
        // Predicated region
        $region45: #{tpu_custom_call.1} parent=11 // pred_check
          %p337 = pneg %p249
        $region46: #{tpu_custom_call.1} parent=11 // pred_check_branch
          %339 = sbr.rel (%p337) target = $region48
        $region47: #{tpu_custom_call.1} parent=11 // pred_region
          _
        $region48: #{tpu_custom_call.1} parent=11 // pred_fallthru
          _
        // Predicated region
        $region49: #{tpu_custom_call.1} parent=11 // pred_check
          %p340 = pneg %p270
        $region50: #{tpu_custom_call.1} parent=11 // pred_check_branch
          %342 = sbr.rel (%p340) target = $region52
        $region51: #{tpu_custom_call.1} parent=11 // pred_region
          _
        $region52: #{tpu_custom_call.1} parent=11 // pred_fallthru
          _
      $region12: #{tpu_custom_call.1} parent=5 // pred_fallthru
        _
      %p343 = scmp.lt.s32.totalorder %s20, 2
      // Predicated region
      $region53: #{tpu_custom_call.1} parent=5 // pred_check
        %p344 = pneg %p343
      $region54: #{tpu_custom_call.1} parent=5 // pred_check_branch
        %346 = sbr.rel (%p344) target = $region56
      $region55: #{tpu_custom_call.1} parent=5 // pred_region
        // Predicated region
        $region57: #{tpu_custom_call.1} parent=55 // pred_check
          %p347 = pneg %p54
        $region58: #{tpu_custom_call.1} parent=55 // pred_check_branch
          %349 = sbr.rel (%p347) target = $region60
        $region59: #{tpu_custom_call.1} parent=55 // pred_region
          %s350 = smul.u32 8, %s28
          %p351 = scmp.lt.s32.totalorder %s27, 1
          %s352 = scalar_select %p351, %s27, 1
          %p353 = scmp.lt.s32.totalorder %s350, 7
          %s354 = scalar_select %p353, %s350, 7
          %s355 = smul.addr %s352, 8
          %s356 = sadd.s32 %s354, %s355
          %s357 = smul.addr %s356, 8
          %s358 = scalar_lea.vmem %s0, %s357
          %s359 = smul.u32 8, %s28
        $region60: #{tpu_custom_call.1} parent=55 // pred_fallthru
          _
      $region56: #{tpu_custom_call.1} parent=5 // pred_fallthru
        _
      %p360 = scmp.le.s32.totalorder 1, %s20
      %p361 = scmp.lt.s32.totalorder %s20, 3
      %p362 = pnand %p360, %p361
      %p363 = pneg %p362
      // Predicated region
      $region61: #{tpu_custom_call.1} parent=5 // pred_check
        _
      $region62: #{tpu_custom_call.1} parent=5 // pred_check_branch
        %365 = sbr.rel (%p362) target = $region64
      $region63: #{tpu_custom_call.1} parent=5 // pred_region
        %s366 = ssub.s32 %s20, 1
        %s367 = smul.u32 8, %s30
        %p368 = scmp.lt.s32.totalorder %s29, 1
        %s369 = scalar_select %p368, %s29, 1
        %p370 = scmp.lt.s32.totalorder %s367, 7
        %s371 = scalar_select %p370, %s367, 7
        %s372 = smul.addr %s369, 8
        %s373 = sadd.s32 %s371, %s372
        %s374 = smul.addr %s373, 8
        %s375 = scalar_lea.vmem %s0, %s374
        %p376 = pneg %p60
        %p377 = pneg %p57
        %p378 = pneg %p81
        %p379 = pneg %p78
        %p380 = pneg %p102
        %p381 = pneg %p99
        %p382 = pneg %p123
        %p383 = pneg %p120
        %p384 = pneg %p144
        %p385 = pneg %p141
        %p386 = pneg %p165
        %p387 = pneg %p162
        %p388 = pneg %p186
        %p389 = pneg %p183
        %p390 = pneg %p207
        %p391 = pneg %p204
        %p392 = pneg %p228
        %p393 = pneg %p225
        %p394 = pneg %p249
        %p395 = pneg %p246
        %p396 = pneg %p270
        %p397 = pneg %p267
        %p398 = pneg %p298
        %p399 = pneg %p295
        %s400 = sand.u32 %s285, 1
        %s401 = scalar_lea.sflag [#allocation7], %s400
        %s402 = sand.u32 %s285, 1
        %s403 = smul.addr %s402, 64
        %s404 = scalar_lea.vmem [#allocation6], %s403
        %s405 = smul.u32 8, %s30
        %p406 = scmp.lt.s32.totalorder %s29, 1
        %s407 = scalar_select %p406, %s29, 1
        %p408 = scmp.lt.s32.totalorder %s405, 7
        %s409 = scalar_select %p408, %s405, 7
        %s410 = smul.addr %s407, 8
        %s411 = sadd.s32 %s409, %s410
        %s412 = smul.addr %s411, 8
        %s413 = scalar_lea.vmem %s0, %s412
        %s414 = smul.u32 8, %s30
        %s415 = smul.u32 8, %s30
        %p416 = scmp.eq.s32.totalorder %s30, 0
        // Predicated region
        $region65: #{tpu_custom_call.1} parent=63 // pred_check
          %p417 = pneg %p416
        $region66: #{tpu_custom_call.1} parent=63 // pred_check_branch
          %419 = sbr.rel (%p417) target = $region68
        $region67: #{tpu_custom_call.1} parent=63 // pred_region
          %420 = vst [vmem:[#allocation2] sm:$0xff] 0.0
          %421 = vst [vmem:[#allocation2 + $0x8] sm:$0xff] 0.0
          %422 = vst [vmem:[#allocation2 + $0x10] sm:$0xff] 0.0
          %423 = vst [vmem:[#allocation2 + $0x18] sm:$0xff] 0.0
          %424 = vst [vmem:[#allocation3] sm:$0xff] 0.0
          %425 = vst [vmem:[#allocation3 + $0x8] sm:$0xff] 0.0
        $region68: #{tpu_custom_call.1} parent=63 // pred_fallthru
          _
        %v426 = vld [vmem:[%s413] sm:$0xff]
        %v427 = vld [vmem:[%s413 + $0x8] sm:$0xff]
        %v428 = vld [vmem:[%s413 + $0x10] sm:$0xff]
        %v429 = vld [vmem:[%s413 + $0x18] sm:$0xff]
        %v430 = vld [vmem:[%s413 + $0x20] sm:$0xff]
        %v431 = vld [vmem:[%s413 + $0x28] sm:$0xff]
        %v432 = vld [vmem:[%s413 + $0x30] sm:$0xff]
        %v433 = vld [vmem:[%s413 + $0x38] sm:$0xff]
        %v434 = vld [vmem:[%s1] sm:$0xff]
        %v435 = vld [vmem:[%s1 + $0x8] sm:$0xff]
        %v436 = vld [vmem:[%s1 + $0x10] sm:$0xff]
        %v437 = vld [vmem:[%s1 + $0x18] sm:$0xff]
        %v438 = vld [vmem:[%s1 + $0x20] sm:$0xff]
        %v439 = vld [vmem:[%s1 + $0x28] sm:$0xff]
        %v440 = vld [vmem:[%s1 + $0x30] sm:$0xff]
        %v441 = vld [vmem:[%s1 + $0x38] sm:$0xff]
        %v442 = vld [vmem:[%s1 + $0x40] sm:$0xff]
        %v443 = vld [vmem:[%s1 + $0x48] sm:$0xff]
        %v444 = vld [vmem:[%s1 + $0x50] sm:$0xff]
        %v445 = vld [vmem:[%s1 + $0x58] sm:$0xff]
        %v446 = vld [vmem:[%s1 + $0x60] sm:$0xff]
        %v447 = vld [vmem:[%s1 + $0x68] sm:$0xff]
        %v448 = vld [vmem:[%s1 + $0x70] sm:$0xff]
        %v449 = vld [vmem:[%s1 + $0x78] sm:$0xff]
        %v450 = vld [vmem:[%s1 + $0x80] sm:$0xff]
        %v451 = vld [vmem:[%s1 + $0x88] sm:$0xff]
        %v452 = vld [vmem:[%s1 + $0x90] sm:$0xff]
        %v453 = vld [vmem:[%s1 + $0x98] sm:$0xff]
        %v454 = vld [vmem:[%s1 + $0xa0] sm:$0xff]
        %v455 = vld [vmem:[%s1 + $0xa8] sm:$0xff]
        %v456 = vld [vmem:[%s1 + $0xb0] sm:$0xff]
        %v457 = vld [vmem:[%s1 + $0xb8] sm:$0xff]
        %v458 = vld [vmem:[%s1 + $0xc0] sm:$0xff]
        %v459 = vld [vmem:[%s1 + $0xc8] sm:$0xff]
        %v460 = vld [vmem:[%s1 + $0xd0] sm:$0xff]
        %v461 = vld [vmem:[%s1 + $0xd8] sm:$0xff]
        %v462 = vld [vmem:[%s1 + $0xe0] sm:$0xff]
        %v463 = vld [vmem:[%s1 + $0xe8] sm:$0xff]
        %v464 = vld [vmem:[%s1 + $0xf0] sm:$0xff]
        %v465 = vld [vmem:[%s1 + $0xf8] sm:$0xff]
        %v466 = vld [vmem:[%s1 + $0x100] sm:$0xff]
        %v467 = vld [vmem:[%s1 + $0x108] sm:$0xff]
        %v468 = vld [vmem:[%s1 + $0x110] sm:$0xff]
        %v469 = vld [vmem:[%s1 + $0x118] sm:$0xff]
        %v470 = vld [vmem:[%s1 + $0x120] sm:$0xff]
        %v471 = vld [vmem:[%s1 + $0x128] sm:$0xff]
        %v472 = vld [vmem:[%s1 + $0x130] sm:$0xff]
        %v473 = vld [vmem:[%s1 + $0x138] sm:$0xff]
        %v474 = vld [vmem:[%s1 + $0x140] sm:$0xff]
        %v475 = vld [vmem:[%s1 + $0x148] sm:$0xff]
        %v476 = vld [vmem:[%s1 + $0x150] sm:$0xff]
        %v477 = vld [vmem:[%s1 + $0x158] sm:$0xff]
        %v478 = vld [vmem:[%s1 + $0x160] sm:$0xff]
        %v479 = vld [vmem:[%s1 + $0x168] sm:$0xff]
        %v480 = vld [vmem:[%s1 + $0x170] sm:$0xff]
        %v481 = vld [vmem:[%s1 + $0x178] sm:$0xff]
        %v482 = vld [vmem:[%s1 + $0x180] sm:$0xff]
        %v483 = vld [vmem:[%s1 + $0x188] sm:$0xff]
        %v484 = vld [vmem:[%s1 + $0x190] sm:$0xff]
        %v485 = vld [vmem:[%s1 + $0x198] sm:$0xff]
        %v486 = vld [vmem:[%s1 + $0x1a0] sm:$0xff]
        %v487 = vld [vmem:[%s1 + $0x1a8] sm:$0xff]
        %v488 = vld [vmem:[%s1 + $0x1b0] sm:$0xff]
        %v489 = vld [vmem:[%s1 + $0x1b8] sm:$0xff]
        %v490 = vld [vmem:[%s1 + $0x1c0] sm:$0xff]
        %v491 = vld [vmem:[%s1 + $0x1c8] sm:$0xff]
        %v492 = vld [vmem:[%s1 + $0x1d0] sm:$0xff]
        %v493 = vld [vmem:[%s1 + $0x1d8] sm:$0xff]
        %v494 = vld [vmem:[%s1 + $0x1e0] sm:$0xff]
        %v495 = vld [vmem:[%s1 + $0x1e8] sm:$0xff]
        %v496 = vld [vmem:[%s1 + $0x1f0] sm:$0xff]
        %v497 = vld [vmem:[%s1 + $0x1f8] sm:$0xff]
        %v498 = vld [vmem:[%s2] sm:$0xf]
        %v500 = vlaneseq
        %v501 = vshrl.u32 %v500, 7
        %v502 = vsub.s32 0, %v501
        %v503 = vrot.slane %v498, %v502
        %v504 = vlaneseq
        %v505 = vshrl.u32 %v504, 7
        %v506 = vsub.s32 1, %v505
        %v507 = vrot.slane %v498, %v506
        %v508 = vlaneseq
        %v509 = vshrl.u32 %v508, 7
        %v510 = vsub.s32 2, %v509
        %v511 = vrot.slane %v498, %v510
        %v512 = vlaneseq
        %v513 = vshrl.u32 %v512, 7
        %v514 = vsub.s32 3, %v513
        %v515 = vrot.slane %v498, %v514
        %520 = vmatprep.subr.mxu0 %v435
        %521 = vmatpush1.msra.mxu0 %v434
        %522 = vmatprep.subr.mxu0 %v439
        %523 = vmatpush1.msra.mxu0 %v438
        %524 = vmatprep.subr.mxu0 %v443
        %525 = vmatpush1.msra.mxu0 %v442
        %526 = vmatprep.subr.mxu0 %v447
        %527 = vmatpush1.msra.mxu0 %v446
        %528 = vmatprep.subr.mxu0 %v451
        %529 = vmatpush1.msra.mxu0 %v450
        %530 = vmatprep.subr.mxu0 %v455
        %531 = vmatpush1.msra.mxu0 %v454
        %532 = vmatprep.subr.mxu0 %v459
        %533 = vmatpush1.msra.mxu0 %v458
        %534 = vmatprep.subr.mxu0 %v463
        %535 = vmatpush1.msra.mxu0 %v462
        %536 = vmatprep.subr.mxu0 %v467
        %537 = vmatpush1.msra.mxu0 %v466
        %538 = vmatprep.subr.mxu0 %v471
        %539 = vmatpush1.msra.mxu0 %v470
        %540 = vmatprep.subr.mxu0 %v475
        %541 = vmatpush1.msra.mxu0 %v474
        %542 = vmatprep.subr.mxu0 %v479
        %543 = vmatpush1.msra.mxu0 %v478
        %544 = vmatprep.subr.mxu0 %v483
        %545 = vmatpush1.msra.mxu0 %v482
        %546 = vmatprep.subr.mxu0 %v487
        %547 = vmatpush1.msra.mxu0 %v486
        %548 = vmatprep.subr.mxu0 %v491
        %549 = vmatpush1.msra.mxu0 %v490
        %550 = vmatprep.subr.mxu0 %v495
        %551 = vmatpush1.msra.mxu0 %v494
        %552 = vmatprep.subr.mxu0 0.0
        %553 = vmatpush1.msra.mxu0 0.0
        %554 = vmatprep.subr.mxu0 0.0
        %555 = vmatpush1.msra.mxu0 0.0
        %556 = vmatprep.subr.mxu0 0.0
        %557 = vmatpush1.msra.mxu0 0.0
        %558 = vmatprep.subr.mxu0 0.0
        %559 = vmatpush1.msra.mxu0 0.0
        %560 = vmatprep.subr.mxu0 0.0
        %561 = vmatpush1.msra.mxu0 0.0
        %562 = vmatprep.subr.mxu0 0.0
        %563 = vmatpush1.msra.mxu0 0.0
        %564 = vmatprep.subr.mxu0 0.0
        %565 = vmatpush1.msra.mxu0 0.0
        %566 = vmatprep.subr.mxu0 0.0
        %567 = vmatpush1.msra.mxu0 0.0
        %568 = vmatprep.subr.mxu0 0.0
        %569 = vmatpush1.msra.mxu0 0.0
        %570 = vmatprep.subr.mxu0 0.0
        %571 = vmatpush1.msra.mxu0 0.0
        %572 = vmatprep.subr.mxu0 0.0
        %573 = vmatpush1.msra.mxu0 0.0
        %574 = vmatprep.subr.mxu0 0.0
        %575 = vmatpush1.msra.mxu0 0.0
        %576 = vmatprep.subr.mxu0 0.0
        %577 = vmatpush1.msra.mxu0 0.0
        %578 = vmatprep.subr.mxu0 0.0
        %579 = vmatpush1.msra.mxu0 0.0
        %580 = vmatprep.subr.mxu0 0.0
        %581 = vmatpush1.msra.mxu0 0.0
        %582 = vmatprep.subr.mxu0 0.0
        %583 = vmatpush1.msra.mxu0 0.0
        %584 = vmatprep.mubr.f32.mxu0 0.0
        %585 = vmatmul.mubr.f32.gmra.mrb[0].mxu0 %v426
        %v586 = vpop.f32.mrb[0].mxu0
        %v587 = vadd.f32 %v503, %v586
        %v588 = vpop.f32.mrb[0].mxu0
        %v589 = vadd.f32 %v507, %v588
        %590 = vmatprep.mubr.f32.mxu0 0.0
        %591 = vmatmul.mubr.f32.gmra.mrb[0].mxu0 %v427
        %v592 = vpop.f32.mrb[0].mxu0
        %v593 = vadd.f32 %v503, %v592
        %v594 = vpop.f32.mrb[0].mxu0
        %v595 = vadd.f32 %v507, %v594
        %596 = vmatprep.mubr.f32.mxu0 0.0
        %597 = vmatmul.mubr.f32.gmra.mrb[0].mxu0 %v428
        %v598 = vpop.f32.mrb[0].mxu0
        %v599 = vadd.f32 %v503, %v598
        %v600 = vpop.f32.mrb[0].mxu0
        %v601 = vadd.f32 %v507, %v600
        %602 = vmatprep.mubr.f32.mxu0 0.0
        %603 = vmatmul.mubr.f32.gmra.mrb[0].mxu0 %v429
        %v604 = vpop.f32.mrb[0].mxu0
        %v605 = vadd.f32 %v503, %v604
        %v606 = vpop.f32.mrb[0].mxu0
        %v607 = vadd.f32 %v507, %v606
        %608 = vmatprep.mubr.f32.mxu0 0.0
        %609 = vmatmul.mubr.f32.gmra.mrb[0].mxu0 %v430
        %v610 = vpop.f32.mrb[0].mxu0
        %v611 = vadd.f32 %v503, %v610
        %v612 = vpop.f32.mrb[0].mxu0
        %v613 = vadd.f32 %v507, %v612
        %614 = vmatprep.mubr.f32.mxu0 0.0
        %615 = vmatmul.mubr.f32.gmra.mrb[0].mxu0 %v431
        %v616 = vpop.f32.mrb[0].mxu0
        %v617 = vadd.f32 %v503, %v616
        %v618 = vpop.f32.mrb[0].mxu0
        %v619 = vadd.f32 %v507, %v618
        %620 = vmatprep.mubr.f32.mxu0 0.0
        %621 = vmatmul.mubr.f32.gmra.mrb[0].mxu0 %v432
        %v622 = vpop.f32.mrb[0].mxu0
        %v623 = vadd.f32 %v503, %v622
        %v624 = vpop.f32.mrb[0].mxu0
        %v625 = vadd.f32 %v507, %v624
        %626 = vmatprep.mubr.f32.mxu0 0.0
        %627 = vmatmul.mubr.f32.gmra.mrb[0].mxu0 %v433
        %v628 = vpop.f32.mrb[0].mxu0
        %v629 = vadd.f32 %v503, %v628
        %v630 = vpop.f32.mrb[0].mxu0
        %v631 = vadd.f32 %v507, %v630
        %632 = vdwg.mxu0
        %633 = vmatprep.subr.mxu0 %v437
        %634 = vmatpush1.msra.mxu0 %v436
        %635 = vmatprep.subr.mxu0 %v441
        %636 = vmatpush1.msra.mxu0 %v440
        %637 = vmatprep.subr.mxu0 %v445
        %638 = vmatpush1.msra.mxu0 %v444
        %639 = vmatprep.subr.mxu0 %v449
        %640 = vmatpush1.msra.mxu0 %v448
        %641 = vmatprep.subr.mxu0 %v453
        %642 = vmatpush1.msra.mxu0 %v452
        %643 = vmatprep.subr.mxu0 %v457
        %644 = vmatpush1.msra.mxu0 %v456
        %645 = vmatprep.subr.mxu0 %v461
        %646 = vmatpush1.msra.mxu0 %v460
        %647 = vmatprep.subr.mxu0 %v465
        %648 = vmatpush1.msra.mxu0 %v464
        %649 = vmatprep.subr.mxu0 %v469
        %650 = vmatpush1.msra.mxu0 %v468
        %651 = vmatprep.subr.mxu0 %v473
        %652 = vmatpush1.msra.mxu0 %v472
        %653 = vmatprep.subr.mxu0 %v477
        %654 = vmatpush1.msra.mxu0 %v476
        %655 = vmatprep.subr.mxu0 %v481
        %656 = vmatpush1.msra.mxu0 %v480
        %657 = vmatprep.subr.mxu0 %v485
        %658 = vmatpush1.msra.mxu0 %v484
        %659 = vmatprep.subr.mxu0 %v489
        %660 = vmatpush1.msra.mxu0 %v488
        %661 = vmatprep.subr.mxu0 %v493
        %662 = vmatpush1.msra.mxu0 %v492
        %663 = vmatprep.subr.mxu0 %v497
        %664 = vmatpush1.msra.mxu0 %v496
        %665 = vmatprep.subr.mxu0 0.0
        %666 = vmatpush1.msra.mxu0 0.0
        %667 = vmatprep.subr.mxu0 0.0
        %668 = vmatpush1.msra.mxu0 0.0
        %669 = vmatprep.subr.mxu0 0.0
        %670 = vmatpush1.msra.mxu0 0.0
        %671 = vmatprep.subr.mxu0 0.0
        %672 = vmatpush1.msra.mxu0 0.0
        %673 = vmatprep.subr.mxu0 0.0
        %674 = vmatpush1.msra.mxu0 0.0
        %675 = vmatprep.subr.mxu0 0.0
        %676 = vmatpush1.msra.mxu0 0.0
        %677 = vmatprep.subr.mxu0 0.0
        %678 = vmatpush1.msra.mxu0 0.0
        %679 = vmatprep.subr.mxu0 0.0
        %680 = vmatpush1.msra.mxu0 0.0
        %681 = vmatprep.subr.mxu0 0.0
        %682 = vmatpush1.msra.mxu0 0.0
        %683 = vmatprep.subr.mxu0 0.0
        %684 = vmatpush1.msra.mxu0 0.0
        %685 = vmatprep.subr.mxu0 0.0
        %686 = vmatpush1.msra.mxu0 0.0
        %687 = vmatprep.subr.mxu0 0.0
        %688 = vmatpush1.msra.mxu0 0.0
        %689 = vmatprep.subr.mxu0 0.0
        %690 = vmatpush1.msra.mxu0 0.0
        %691 = vmatprep.subr.mxu0 0.0
        %692 = vmatpush1.msra.mxu0 0.0
        %693 = vmatprep.subr.mxu0 0.0
        %694 = vmatpush1.msra.mxu0 0.0
        %695 = vmatprep.subr.mxu0 0.0
        %696 = vmatpush1.msra.mxu0 0.0
        %697 = vmatprep.mubr.f32.mxu0 0.0
        %698 = vmatmul.mubr.f32.gmra.mrb[0].mxu0 %v426
        %v699 = vpop.f32.mrb[0].mxu0
        %v700 = vadd.f32 %v511, %v699
        %v701 = vpop.f32.mrb[0].mxu0
        %v702 = vadd.f32 %v515, %v701
        %703 = vmatprep.mubr.f32.mxu0 0.0
        %704 = vmatmul.mubr.f32.gmra.mrb[0].mxu0 %v427
        %v705 = vpop.f32.mrb[0].mxu0
        %v706 = vadd.f32 %v511, %v705
        %v707 = vpop.f32.mrb[0].mxu0
        %v708 = vadd.f32 %v515, %v707
        %709 = vmatprep.mubr.f32.mxu0 0.0
        %710 = vmatmul.mubr.f32.gmra.mrb[0].mxu0 %v428
        %v711 = vpop.f32.mrb[0].mxu0
        %v712 = vadd.f32 %v511, %v711
        %v713 = vpop.f32.mrb[0].mxu0
        %v714 = vadd.f32 %v515, %v713
        %715 = vmatprep.mubr.f32.mxu0 0.0
        %716 = vmatmul.mubr.f32.gmra.mrb[0].mxu0 %v429
        %v717 = vpop.f32.mrb[0].mxu0
        %v718 = vadd.f32 %v511, %v717
        %v719 = vpop.f32.mrb[0].mxu0
        %v720 = vadd.f32 %v515, %v719
        %721 = vmatprep.mubr.f32.mxu0 0.0
        %722 = vmatmul.mubr.f32.gmra.mrb[0].mxu0 %v430
        %v723 = vpop.f32.mrb[0].mxu0
        %v724 = vadd.f32 %v511, %v723
        %v725 = vpop.f32.mrb[0].mxu0
        %v726 = vadd.f32 %v515, %v725
        %727 = vmatprep.mubr.f32.mxu0 0.0
        %728 = vmatmul.mubr.f32.gmra.mrb[0].mxu0 %v431
        %v729 = vpop.f32.mrb[0].mxu0
        %v730 = vadd.f32 %v511, %v729
        %v731 = vpop.f32.mrb[0].mxu0
        %v732 = vadd.f32 %v515, %v731
        %733 = vmatprep.mubr.f32.mxu0 0.0
        %734 = vmatmul.mubr.f32.gmra.mrb[0].mxu0 %v432
        %v735 = vpop.f32.mrb[0].mxu0
        %v736 = vadd.f32 %v511, %v735
        %v737 = vpop.f32.mrb[0].mxu0
        %v738 = vadd.f32 %v515, %v737
        %739 = vmatprep.mubr.f32.mxu0 0.0
        %740 = vmatmul.mubr.f32.gmra.mrb[0].mxu0 %v433
        %v741 = vpop.f32.mrb[0].mxu0
        %v742 = vadd.f32 %v511, %v741
        %v743 = vpop.f32.mrb[0].mxu0
        %v744 = vadd.f32 %v515, %v743
        %745 = vdwg.mxu0
        %v746 = vld [vmem:[%s3] sm:$0xff]
        %v748 = vlaneseq
        %v749 = vshrl.u32 %v748, 7
        %v750 = vsub.s32 3, %v749
        %v751 = vrot.slane %v746, %v750
        %v752 = vlaneseq
        %v753 = vshrl.u32 %v752, 7
        %v754 = vsub.s32 7, %v753
        %v755 = vrot.slane %v746, %v754
        %v758 = vlaneseq
        %v759 = vshrl.u32 %v758, 7
        %v760 = vsub.s32 3, %v759
        %v761 = vrot.slane %v751, %v760
        %v762 = vlaneseq
        %v763 = vshrl.u32 %v762, 7
        %v764 = vsub.s32 3, %v763
        %v765 = vrot.slane %v755, %v764
        %v766 = vmul.f32 %v587, %v761
        %v767 = vmul.f32 %v589, %v765
        %v768 = vmul.f32 %v593, %v761
        %v769 = vmul.f32 %v595, %v765
        %v770 = vmul.f32 %v599, %v761
        %v771 = vmul.f32 %v601, %v765
        %v772 = vmul.f32 %v605, %v761
        %v773 = vmul.f32 %v607, %v765
        %v774 = vmul.f32 %v611, %v761
        %v775 = vmul.f32 %v613, %v765
        %v776 = vmul.f32 %v617, %v761
        %v777 = vmul.f32 %v619, %v765
        %v778 = vmul.f32 %v623, %v761
        %v779 = vmul.f32 %v625, %v765
        %v780 = vmul.f32 %v629, %v761
        %v781 = vmul.f32 %v631, %v765
        %v782 = vld [vmem:[%s4] sm:$0x3]
        %v784 = vlaneseq
        %v785 = vshrl.u32 %v784, 7
        %v786 = vsub.s32 0, %v785
        %v787 = vrot.slane %v782, %v786
        %v788 = vlaneseq
        %v789 = vshrl.u32 %v788, 7
        %v790 = vsub.s32 1, %v789
        %v791 = vrot.slane %v782, %v790
        %v794 = vadd.f32 %v766, %v787
        %v795 = vadd.f32 %v767, %v791
        %v796 = vadd.f32 %v768, %v787
        %v797 = vadd.f32 %v769, %v791
        %v798 = vadd.f32 %v770, %v787
        %v799 = vadd.f32 %v771, %v791
        %v800 = vadd.f32 %v772, %v787
        %v801 = vadd.f32 %v773, %v791
        %v802 = vadd.f32 %v774, %v787
        %v803 = vadd.f32 %v775, %v791
        %v804 = vadd.f32 %v776, %v787
        %v805 = vadd.f32 %v777, %v791
        %v806 = vadd.f32 %v778, %v787
        %v807 = vadd.f32 %v779, %v791
        %v808 = vadd.f32 %v780, %v787
        %v809 = vadd.f32 %v781, %v791
        %v810 = vld [vmem:[#allocation3] sm:$0xff]
        %v811 = vld [vmem:[#allocation3 + $0x8] sm:$0xff]
        %v812 = vlaneseq
        %v813 = vshrl.u32 %v812, 7
        %v814 = vsub.s32 2, %v813
        %v815 = vrot.slane %v746, %v814
        %v816 = vlaneseq
        %v817 = vshrl.u32 %v816, 7
        %v818 = vsub.s32 6, %v817
        %v819 = vrot.slane %v746, %v818
        %v822 = vlaneseq
        %v823 = vshrl.u32 %v822, 7
        %v824 = vsub.s32 2, %v823
        %v825 = vrot.slane %v815, %v824
        %v826 = vlaneseq
        %v827 = vshrl.u32 %v826, 7
        %v828 = vsub.s32 2, %v827
        %v829 = vrot.slane %v819, %v828
        %v830 = vmul.f32 %v810, %v825
        %v831 = vmul.f32 %v811, %v829
        %v832 = vmul.f32 %v587, %v825
        %v833 = vmul.f32 %v589, %v829
        %v834 = vmul.f32 %v593, %v825
        %v835 = vmul.f32 %v595, %v829
        %v836 = vmul.f32 %v599, %v825
        %v837 = vmul.f32 %v601, %v829
        %v838 = vmul.f32 %v605, %v825
        %v839 = vmul.f32 %v607, %v829
        %v840 = vmul.f32 %v611, %v825
        %v841 = vmul.f32 %v613, %v829
        %v842 = vmul.f32 %v617, %v825
        %v843 = vmul.f32 %v619, %v829
        %v844 = vmul.f32 %v623, %v825
        %v845 = vmul.f32 %v625, %v829
        %v846 = vmul.f32 %v629, %v825
        %v847 = vmul.f32 %v631, %v829
        %vm866 = vcmask 1040384
        %v867 = vrot.slane %v830, 7
        %v868 = vrot.slane %v832, 7
        %v869 = vsel %vm866, %v867, %v868
        %v870 = vrot.slane %v831, 7
        %v871 = vrot.slane %v833, 7
        %v872 = vsel %vm866, %v870, %v871
        %v873 = vrot.slane %v834, 7
        %v874 = vsel %vm866, %v868, %v873
        %v875 = vrot.slane %v835, 7
        %v876 = vsel %vm866, %v871, %v875
        %v877 = vrot.slane %v836, 7
        %v878 = vsel %vm866, %v873, %v877
        %v879 = vrot.slane %v837, 7
        %v880 = vsel %vm866, %v875, %v879
        %v881 = vrot.slane %v838, 7
        %v882 = vsel %vm866, %v877, %v881
        %v883 = vrot.slane %v839, 7
        %v884 = vsel %vm866, %v879, %v883
        %v885 = vrot.slane %v840, 7
        %v886 = vsel %vm866, %v881, %v885
        %v887 = vrot.slane %v841, 7
        %v888 = vsel %vm866, %v883, %v887
        %v889 = vrot.slane %v842, 7
        %v890 = vsel %vm866, %v885, %v889
        %v891 = vrot.slane %v843, 7
        %v892 = vsel %vm866, %v887, %v891
        %v893 = vrot.slane %v844, 7
        %v894 = vsel %vm866, %v889, %v893
        %v895 = vrot.slane %v845, 7
        %v896 = vsel %vm866, %v891, %v895
        %v897 = vrot.slane %v846, 7
        %v898 = vsel %vm866, %v893, %v897
        %v899 = vrot.slane %v847, 7
        %v900 = vsel %vm866, %v895, %v899
        %v917 = vadd.f32 %v794, %v869
        %v918 = vadd.f32 %v795, %v872
        %v919 = vadd.f32 %v796, %v874
        %v920 = vadd.f32 %v797, %v876
        %v921 = vadd.f32 %v798, %v878
        %v922 = vadd.f32 %v799, %v880
        %v923 = vadd.f32 %v800, %v882
        %v924 = vadd.f32 %v801, %v884
        %v925 = vadd.f32 %v802, %v886
        %v926 = vadd.f32 %v803, %v888
        %v927 = vadd.f32 %v804, %v890
        %v928 = vadd.f32 %v805, %v892
        %v929 = vadd.f32 %v806, %v894
        %v930 = vadd.f32 %v807, %v896
        %v931 = vadd.f32 %v808, %v898
        %v932 = vadd.f32 %v809, %v900
        %v933 = vlaneseq
        %v934 = vshrl.u32 %v933, 7
        %v935 = vsub.s32 1, %v934
        %v936 = vrot.slane %v746, %v935
        %v937 = vlaneseq
        %v938 = vshrl.u32 %v937, 7
        %v939 = vsub.s32 5, %v938
        %v940 = vrot.slane %v746, %v939
        %v943 = vlaneseq
        %v944 = vshrl.u32 %v943, 7
        %v945 = vsub.s32 1, %v944
        %v946 = vrot.slane %v936, %v945
        %v947 = vlaneseq
        %v948 = vshrl.u32 %v947, 7
        %v949 = vsub.s32 1, %v948
        %v950 = vrot.slane %v940, %v949
        %v951 = vmul.f32 %v810, %v946
        %v952 = vmul.f32 %v811, %v950
        %v953 = vmul.f32 %v587, %v946
        %v954 = vmul.f32 %v589, %v950
        %v955 = vmul.f32 %v593, %v946
        %v956 = vmul.f32 %v595, %v950
        %v957 = vmul.f32 %v599, %v946
        %v958 = vmul.f32 %v601, %v950
        %v959 = vmul.f32 %v605, %v946
        %v960 = vmul.f32 %v607, %v950
        %v961 = vmul.f32 %v611, %v946
        %v962 = vmul.f32 %v613, %v950
        %v963 = vmul.f32 %v617, %v946
        %v964 = vmul.f32 %v619, %v950
        %v965 = vmul.f32 %v623, %v946
        %v966 = vmul.f32 %v625, %v950
        %v967 = vmul.f32 %v629, %v946
        %v968 = vmul.f32 %v631, %v950
        %vm987 = vcmask 1041408
        %v988 = vrot.slane %v951, 6
        %v989 = vrot.slane %v953, 6
        %v990 = vsel %vm987, %v988, %v989
        %v991 = vrot.slane %v952, 6
        %v992 = vrot.slane %v954, 6
        %v993 = vsel %vm987, %v991, %v992
        %v994 = vrot.slane %v955, 6
        %v995 = vsel %vm987, %v989, %v994
        %v996 = vrot.slane %v956, 6
        %v997 = vsel %vm987, %v992, %v996
        %v998 = vrot.slane %v957, 6
        %v999 = vsel %vm987, %v994, %v998
        %v1000 = vrot.slane %v958, 6
        %v1001 = vsel %vm987, %v996, %v1000
        %v1002 = vrot.slane %v959, 6
        %v1003 = vsel %vm987, %v998, %v1002
        %v1004 = vrot.slane %v960, 6
        %v1005 = vsel %vm987, %v1000, %v1004
        %v1006 = vrot.slane %v961, 6
        %v1007 = vsel %vm987, %v1002, %v1006
        %v1008 = vrot.slane %v962, 6
        %v1009 = vsel %vm987, %v1004, %v1008
        %v1010 = vrot.slane %v963, 6
        %v1011 = vsel %vm987, %v1006, %v1010
        %v1012 = vrot.slane %v964, 6
        %v1013 = vsel %vm987, %v1008, %v1012
        %v1014 = vrot.slane %v965, 6
        %v1015 = vsel %vm987, %v1010, %v1014
        %v1016 = vrot.slane %v966, 6
        %v1017 = vsel %vm987, %v1012, %v1016
        %v1018 = vrot.slane %v967, 6
        %v1019 = vsel %vm987, %v1014, %v1018
        %v1020 = vrot.slane %v968, 6
        %v1021 = vsel %vm987, %v1016, %v1020
        %v1038 = vadd.f32 %v917, %v990
        %v1039 = vadd.f32 %v918, %v993
        %v1040 = vadd.f32 %v919, %v995
        %v1041 = vadd.f32 %v920, %v997
        %v1042 = vadd.f32 %v921, %v999
        %v1043 = vadd.f32 %v922, %v1001
        %v1044 = vadd.f32 %v923, %v1003
        %v1045 = vadd.f32 %v924, %v1005
        %v1046 = vadd.f32 %v925, %v1007
        %v1047 = vadd.f32 %v926, %v1009
        %v1048 = vadd.f32 %v927, %v1011
        %v1049 = vadd.f32 %v928, %v1013
        %v1050 = vadd.f32 %v929, %v1015
        %v1051 = vadd.f32 %v930, %v1017
        %v1052 = vadd.f32 %v931, %v1019
        %v1053 = vadd.f32 %v932, %v1021
        %v1054 = vlaneseq
        %v1055 = vshrl.u32 %v1054, 7
        %v1056 = vsub.s32 0, %v1055
        %v1057 = vrot.slane %v746, %v1056
        %v1058 = vlaneseq
        %v1059 = vshrl.u32 %v1058, 7
        %v1060 = vsub.s32 4, %v1059
        %v1061 = vrot.slane %v746, %v1060
        %v1064 = vlaneseq
        %v1065 = vshrl.u32 %v1064, 7
        %v1066 = vsub.s32 0, %v1065
        %v1067 = vrot.slane %v1057, %v1066
        %v1068 = vlaneseq
        %v1069 = vshrl.u32 %v1068, 7
        %v1070 = vsub.s32 0, %v1069
        %v1071 = vrot.slane %v1061, %v1070
        %v1072 = vmul.f32 %v810, %v1067
        %v1073 = vmul.f32 %v811, %v1071
        %v1074 = vmul.f32 %v587, %v1067
        %v1075 = vmul.f32 %v589, %v1071
        %v1076 = vmul.f32 %v593, %v1067
        %v1077 = vmul.f32 %v595, %v1071
        %v1078 = vmul.f32 %v599, %v1067
        %v1079 = vmul.f32 %v601, %v1071
        %v1080 = vmul.f32 %v605, %v1067
        %v1081 = vmul.f32 %v607, %v1071
        %v1082 = vmul.f32 %v611, %v1067
        %v1083 = vmul.f32 %v613, %v1071
        %v1084 = vmul.f32 %v617, %v1067
        %v1085 = vmul.f32 %v619, %v1071
        %v1086 = vmul.f32 %v623, %v1067
        %v1087 = vmul.f32 %v625, %v1071
        %v1088 = vmul.f32 %v629, %v1067
        %v1089 = vmul.f32 %v631, %v1071
        %vm1108 = vcmask 1042432
        %v1109 = vrot.slane %v1072, 5
        %v1110 = vrot.slane %v1074, 5
        %v1111 = vsel %vm1108, %v1109, %v1110
        %v1112 = vrot.slane %v1073, 5
        %v1113 = vrot.slane %v1075, 5
        %v1114 = vsel %vm1108, %v1112, %v1113
        %v1115 = vrot.slane %v1076, 5
        %v1116 = vsel %vm1108, %v1110, %v1115
        %v1117 = vrot.slane %v1077, 5
        %v1118 = vsel %vm1108, %v1113, %v1117
        %v1119 = vrot.slane %v1078, 5
        %v1120 = vsel %vm1108, %v1115, %v1119
        %v1121 = vrot.slane %v1079, 5
        %v1122 = vsel %vm1108, %v1117, %v1121
        %v1123 = vrot.slane %v1080, 5
        %v1124 = vsel %vm1108, %v1119, %v1123
        %v1125 = vrot.slane %v1081, 5
        %v1126 = vsel %vm1108, %v1121, %v1125
        %v1127 = vrot.slane %v1082, 5
        %v1128 = vsel %vm1108, %v1123, %v1127
        %v1129 = vrot.slane %v1083, 5
        %v1130 = vsel %vm1108, %v1125, %v1129
        %v1131 = vrot.slane %v1084, 5
        %v1132 = vsel %vm1108, %v1127, %v1131
        %v1133 = vrot.slane %v1085, 5
        %v1134 = vsel %vm1108, %v1129, %v1133
        %v1135 = vrot.slane %v1086, 5
        %v1136 = vsel %vm1108, %v1131, %v1135
        %v1137 = vrot.slane %v1087, 5
        %v1138 = vsel %vm1108, %v1133, %v1137
        %v1139 = vrot.slane %v1088, 5
        %v1140 = vsel %vm1108, %v1135, %v1139
        %v1141 = vrot.slane %v1089, 5
        %v1142 = vsel %vm1108, %v1137, %v1141
        %v1159 = vadd.f32 %v1038, %v1111
        %v1160 = vadd.f32 %v1039, %v1114
        %v1161 = vadd.f32 %v1040, %v1116
        %v1162 = vadd.f32 %v1041, %v1118
        %v1163 = vadd.f32 %v1042, %v1120
        %v1164 = vadd.f32 %v1043, %v1122
        %v1165 = vadd.f32 %v1044, %v1124
        %v1166 = vadd.f32 %v1045, %v1126
        %v1167 = vadd.f32 %v1046, %v1128
        %v1168 = vadd.f32 %v1047, %v1130
        %v1169 = vadd.f32 %v1048, %v1132
        %v1170 = vadd.f32 %v1049, %v1134
        %v1171 = vadd.f32 %v1050, %v1136
        %v1172 = vadd.f32 %v1051, %v1138
        %v1173 = vadd.f32 %v1052, %v1140
        %v1174 = vadd.f32 %v1053, %v1142
        %v1175 = vxor.u32 %v1159, 2147483648
        %v1176 = vxor.u32 %v1160, 2147483648
        %v1177 = vxor.u32 %v1161, 2147483648
        %v1178 = vxor.u32 %v1162, 2147483648
        %v1179 = vxor.u32 %v1163, 2147483648
        %v1180 = vxor.u32 %v1164, 2147483648
        %v1181 = vxor.u32 %v1165, 2147483648
        %v1182 = vxor.u32 %v1166, 2147483648
        %v1183 = vxor.u32 %v1167, 2147483648
        %v1184 = vxor.u32 %v1168, 2147483648
        %v1185 = vxor.u32 %v1169, 2147483648
        %v1186 = vxor.u32 %v1170, 2147483648
        %v1187 = vxor.u32 %v1171, 2147483648
        %v1188 = vxor.u32 %v1172, 2147483648
        %v1189 = vxor.u32 %v1173, 2147483648
        %v1190 = vxor.u32 %v1174, 2147483648
        %v1191 = vmul.f32 %v1175, 1.442695
        %v1192 = vpow.pop %v1191
        %v1193 = vmul.f32 %v1176, 1.442695
        %v1194 = vpow.pop %v1193
        %v1195 = vmul.f32 %v1177, 1.442695
        %v1196 = vpow.pop %v1195
        %v1197 = vmul.f32 %v1178, 1.442695
        %v1198 = vpow.pop %v1197
        %v1199 = vmul.f32 %v1179, 1.442695
        %v1200 = vpow.pop %v1199
        %v1201 = vmul.f32 %v1180, 1.442695
        %v1202 = vpow.pop %v1201
        %v1203 = vmul.f32 %v1181, 1.442695
        %v1204 = vpow.pop %v1203
        %v1205 = vmul.f32 %v1182, 1.442695
        %v1206 = vpow.pop %v1205
        %v1207 = vmul.f32 %v1183, 1.442695
        %v1208 = vpow.pop %v1207
        %v1209 = vmul.f32 %v1184, 1.442695
        %v1210 = vpow.pop %v1209
        %v1211 = vmul.f32 %v1185, 1.442695
        %v1212 = vpow.pop %v1211
        %v1213 = vmul.f32 %v1186, 1.442695
        %v1214 = vpow.pop %v1213
        %v1215 = vmul.f32 %v1187, 1.442695
        %v1216 = vpow.pop %v1215
        %v1217 = vmul.f32 %v1188, 1.442695
        %v1218 = vpow.pop %v1217
        %v1219 = vmul.f32 %v1189, 1.442695
        %v1220 = vpow.pop %v1219
        %v1221 = vmul.f32 %v1190, 1.442695
        %v1222 = vpow.pop %v1221
        %v1223 = vadd.f32 %v1192, 1.0
        %v1224 = vadd.f32 %v1194, 1.0
        %v1225 = vadd.f32 %v1196, 1.0
        %v1226 = vadd.f32 %v1198, 1.0
        %v1227 = vadd.f32 %v1200, 1.0
        %v1228 = vadd.f32 %v1202, 1.0
        %v1229 = vadd.f32 %v1204, 1.0
        %v1230 = vadd.f32 %v1206, 1.0
        %v1231 = vadd.f32 %v1208, 1.0
        %v1232 = vadd.f32 %v1210, 1.0
        %v1233 = vadd.f32 %v1212, 1.0
        %v1234 = vadd.f32 %v1214, 1.0
        %v1235 = vadd.f32 %v1216, 1.0
        %v1236 = vadd.f32 %v1218, 1.0
        %v1237 = vadd.f32 %v1220, 1.0
        %v1238 = vadd.f32 %v1222, 1.0
        %v1239 = vrcp.pop %v1223
        %v1240 = vmul.f32 1.0, %v1239
        %v1241 = vrcp.pop %v1224
        %v1242 = vmul.f32 1.0, %v1241
        %v1243 = vrcp.pop %v1225
        %v1244 = vmul.f32 1.0, %v1243
        %v1245 = vrcp.pop %v1226
        %v1246 = vmul.f32 1.0, %v1245
        %v1247 = vrcp.pop %v1227
        %v1248 = vmul.f32 1.0, %v1247
        %v1249 = vrcp.pop %v1228
        %v1250 = vmul.f32 1.0, %v1249
        %v1251 = vrcp.pop %v1229
        %v1252 = vmul.f32 1.0, %v1251
        %v1253 = vrcp.pop %v1230
        %v1254 = vmul.f32 1.0, %v1253
        %v1255 = vrcp.pop %v1231
        %v1256 = vmul.f32 1.0, %v1255
        %v1257 = vrcp.pop %v1232
        %v1258 = vmul.f32 1.0, %v1257
        %v1259 = vrcp.pop %v1233
        %v1260 = vmul.f32 1.0, %v1259
        %v1261 = vrcp.pop %v1234
        %v1262 = vmul.f32 1.0, %v1261
        %v1263 = vrcp.pop %v1235
        %v1264 = vmul.f32 1.0, %v1263
        %v1265 = vrcp.pop %v1236
        %v1266 = vmul.f32 1.0, %v1265
        %v1267 = vrcp.pop %v1237
        %v1268 = vmul.f32 1.0, %v1267
        %v1269 = vrcp.pop %v1238
        %v1270 = vmul.f32 1.0, %v1269
        %v1271 = vmul.f32 %v1159, %v1240
        %v1272 = vmul.f32 %v1160, %v1242
        %v1273 = vmul.f32 %v1161, %v1244
        %v1274 = vmul.f32 %v1162, %v1246
        %v1275 = vmul.f32 %v1163, %v1248
        %v1276 = vmul.f32 %v1164, %v1250
        %v1277 = vmul.f32 %v1165, %v1252
        %v1278 = vmul.f32 %v1166, %v1254
        %v1279 = vmul.f32 %v1167, %v1256
        %v1280 = vmul.f32 %v1168, %v1258
        %v1281 = vmul.f32 %v1169, %v1260
        %v1282 = vmul.f32 %v1170, %v1262
        %v1283 = vmul.f32 %v1171, %v1264
        %v1284 = vmul.f32 %v1172, %v1266
        %v1285 = vmul.f32 %v1173, %v1268
        %v1286 = vmul.f32 %v1174, %v1270
        %v1287 = vld [vmem:[%s5] sm:$0xff]
        %v1288 = vld [vmem:[%s5 + $0x8] sm:$0xff]
        %v1289 = vld [vmem:[%s5 + $0x10] sm:$0xff]
        %v1290 = vld [vmem:[%s5 + $0x18] sm:$0xff]
        %v1291 = vld [vmem:[%s5 + $0x20] sm:$0xff]
        %v1292 = vld [vmem:[%s5 + $0x28] sm:$0xff]
        %v1293 = vld [vmem:[%s5 + $0x30] sm:$0xff]
        %v1294 = vld [vmem:[%s5 + $0x38] sm:$0xff]
        %v1295 = vld [vmem:[%s5 + $0x40] sm:$0xff]
        %v1296 = vld [vmem:[%s5 + $0x48] sm:$0xff]
        %v1297 = vld [vmem:[%s5 + $0x50] sm:$0xff]
        %v1298 = vld [vmem:[%s5 + $0x58] sm:$0xff]
        %v1299 = vld [vmem:[%s5 + $0x60] sm:$0xff]
        %v1300 = vld [vmem:[%s5 + $0x68] sm:$0xff]
        %v1301 = vld [vmem:[%s5 + $0x70] sm:$0xff]
        %v1302 = vld [vmem:[%s5 + $0x78] sm:$0xff]
        %v1303 = vld [vmem:[%s5 + $0x80] sm:$0xff]
        %v1304 = vld [vmem:[%s5 + $0x88] sm:$0xff]
        %v1305 = vld [vmem:[%s5 + $0x90] sm:$0xff]
        %v1306 = vld [vmem:[%s5 + $0x98] sm:$0xff]
        %v1307 = vld [vmem:[%s5 + $0xa0] sm:$0xff]
        %v1308 = vld [vmem:[%s5 + $0xa8] sm:$0xff]
        %v1309 = vld [vmem:[%s5 + $0xb0] sm:$0xff]
        %v1310 = vld [vmem:[%s5 + $0xb8] sm:$0xff]
        %v1311 = vld [vmem:[%s5 + $0xc0] sm:$0xff]
        %v1312 = vld [vmem:[%s5 + $0xc8] sm:$0xff]
        %v1313 = vld [vmem:[%s5 + $0xd0] sm:$0xff]
        %v1314 = vld [vmem:[%s5 + $0xd8] sm:$0xff]
        %v1315 = vld [vmem:[%s5 + $0xe0] sm:$0xff]
        %v1316 = vld [vmem:[%s5 + $0xe8] sm:$0xff]
        %v1317 = vld [vmem:[%s5 + $0xf0] sm:$0xff]
        %v1318 = vld [vmem:[%s5 + $0xf8] sm:$0xff]
        %v1319 = vld [vmem:[%s5 + $0x100] sm:$0xff]
        %v1320 = vld [vmem:[%s5 + $0x108] sm:$0xff]
        %v1321 = vld [vmem:[%s5 + $0x110] sm:$0xff]
        %v1322 = vld [vmem:[%s5 + $0x118] sm:$0xff]
        %v1323 = vld [vmem:[%s5 + $0x120] sm:$0xff]
        %v1324 = vld [vmem:[%s5 + $0x128] sm:$0xff]
        %v1325 = vld [vmem:[%s5 + $0x130] sm:$0xff]
        %v1326 = vld [vmem:[%s5 + $0x138] sm:$0xff]
        %v1327 = vld [vmem:[%s5 + $0x140] sm:$0xff]
        %v1328 = vld [vmem:[%s5 + $0x148] sm:$0xff]
        %v1329 = vld [vmem:[%s5 + $0x150] sm:$0xff]
        %v1330 = vld [vmem:[%s5 + $0x158] sm:$0xff]
        %v1331 = vld [vmem:[%s5 + $0x160] sm:$0xff]
        %v1332 = vld [vmem:[%s5 + $0x168] sm:$0xff]
        %v1333 = vld [vmem:[%s5 + $0x170] sm:$0xff]
        %v1334 = vld [vmem:[%s5 + $0x178] sm:$0xff]
        %v1335 = vld [vmem:[%s5 + $0x180] sm:$0xff]
        %v1336 = vld [vmem:[%s5 + $0x188] sm:$0xff]
        %v1337 = vld [vmem:[%s5 + $0x190] sm:$0xff]
        %v1338 = vld [vmem:[%s5 + $0x198] sm:$0xff]
        %v1339 = vld [vmem:[%s5 + $0x1a0] sm:$0xff]
        %v1340 = vld [vmem:[%s5 + $0x1a8] sm:$0xff]
        %v1341 = vld [vmem:[%s5 + $0x1b0] sm:$0xff]
        %v1342 = vld [vmem:[%s5 + $0x1b8] sm:$0xff]
        %v1343 = vld [vmem:[%s5 + $0x1c0] sm:$0xff]
        %v1344 = vld [vmem:[%s5 + $0x1c8] sm:$0xff]
        %v1345 = vld [vmem:[%s5 + $0x1d0] sm:$0xff]
        %v1346 = vld [vmem:[%s5 + $0x1d8] sm:$0xff]
        %v1347 = vld [vmem:[%s5 + $0x1e0] sm:$0xff]
        %v1348 = vld [vmem:[%s5 + $0x1e8] sm:$0xff]
        %v1349 = vld [vmem:[%s5 + $0x1f0] sm:$0xff]
        %v1350 = vld [vmem:[%s5 + $0x1f8] sm:$0xff]
        %v1351 = vld [vmem:[%s5 + $0x200] sm:$0xff]
        %v1352 = vld [vmem:[%s5 + $0x208] sm:$0xff]
        %v1353 = vld [vmem:[%s5 + $0x210] sm:$0xff]
        %v1354 = vld [vmem:[%s5 + $0x218] sm:$0xff]
        %v1355 = vld [vmem:[%s5 + $0x220] sm:$0xff]
        %v1356 = vld [vmem:[%s5 + $0x228] sm:$0xff]
        %v1357 = vld [vmem:[%s5 + $0x230] sm:$0xff]
        %v1358 = vld [vmem:[%s5 + $0x238] sm:$0xff]
        %v1359 = vld [vmem:[%s5 + $0x240] sm:$0xff]
        %v1360 = vld [vmem:[%s5 + $0x248] sm:$0xff]
        %v1361 = vld [vmem:[%s5 + $0x250] sm:$0xff]
        %v1362 = vld [vmem:[%s5 + $0x258] sm:$0xff]
        %v1363 = vld [vmem:[%s5 + $0x260] sm:$0xff]
        %v1364 = vld [vmem:[%s5 + $0x268] sm:$0xff]
        %v1365 = vld [vmem:[%s5 + $0x270] sm:$0xff]
        %v1366 = vld [vmem:[%s5 + $0x278] sm:$0xff]
        %v1367 = vld [vmem:[%s5 + $0x280] sm:$0xff]
        %v1368 = vld [vmem:[%s5 + $0x288] sm:$0xff]
        %v1369 = vld [vmem:[%s5 + $0x290] sm:$0xff]
        %v1370 = vld [vmem:[%s5 + $0x298] sm:$0xff]
        %v1371 = vld [vmem:[%s5 + $0x2a0] sm:$0xff]
        %v1372 = vld [vmem:[%s5 + $0x2a8] sm:$0xff]
        %v1373 = vld [vmem:[%s5 + $0x2b0] sm:$0xff]
        %v1374 = vld [vmem:[%s5 + $0x2b8] sm:$0xff]
        %v1375 = vld [vmem:[%s5 + $0x2c0] sm:$0xff]
        %v1376 = vld [vmem:[%s5 + $0x2c8] sm:$0xff]
        %v1377 = vld [vmem:[%s5 + $0x2d0] sm:$0xff]
        %v1378 = vld [vmem:[%s5 + $0x2d8] sm:$0xff]
        %v1379 = vld [vmem:[%s5 + $0x2e0] sm:$0xff]
        %v1380 = vld [vmem:[%s5 + $0x2e8] sm:$0xff]
        %v1381 = vld [vmem:[%s5 + $0x2f0] sm:$0xff]
        %v1382 = vld [vmem:[%s5 + $0x2f8] sm:$0xff]
        %1383 = vmatprep.subr.mxu0 %v1288
        %1384 = vmatpush1.msra.mxu0 %v1287
        %1385 = vmatprep.subr.mxu0 %v1291
        %1386 = vmatpush1.msra.mxu0 %v1290
        %1387 = vmatprep.subr.mxu0 %v1294
        %1388 = vmatpush1.msra.mxu0 %v1293
        %1389 = vmatprep.subr.mxu0 %v1297
        %1390 = vmatpush1.msra.mxu0 %v1296
        %1391 = vmatprep.subr.mxu0 %v1300
        %1392 = vmatpush1.msra.mxu0 %v1299
        %1393 = vmatprep.subr.mxu0 %v1303
        %1394 = vmatpush1.msra.mxu0 %v1302
        %1395 = vmatprep.subr.mxu0 %v1306
        %1396 = vmatpush1.msra.mxu0 %v1305
        %1397 = vmatprep.subr.mxu0 %v1309
        %1398 = vmatpush1.msra.mxu0 %v1308
        %1399 = vmatprep.subr.mxu0 %v1312
        %1400 = vmatpush1.msra.mxu0 %v1311
        %1401 = vmatprep.subr.mxu0 %v1315
        %1402 = vmatpush1.msra.mxu0 %v1314
        %1403 = vmatprep.subr.mxu0 %v1318
        %1404 = vmatpush1.msra.mxu0 %v1317
        %1405 = vmatprep.subr.mxu0 %v1321
        %1406 = vmatpush1.msra.mxu0 %v1320
        %1407 = vmatprep.subr.mxu0 %v1324
        %1408 = vmatpush1.msra.mxu0 %v1323
        %1409 = vmatprep.subr.mxu0 %v1327
        %1410 = vmatpush1.msra.mxu0 %v1326
        %1411 = vmatprep.subr.mxu0 %v1330
        %1412 = vmatpush1.msra.mxu0 %v1329
        %1413 = vmatprep.subr.mxu0 %v1333
        %1414 = vmatpush1.msra.mxu0 %v1332
        %1415 = vmatprep.subr.mxu0 %v1336
        %1416 = vmatpush1.msra.mxu0 %v1335
        %1417 = vmatprep.subr.mxu0 %v1339
        %1418 = vmatpush1.msra.mxu0 %v1338
        %1419 = vmatprep.subr.mxu0 %v1342
        %1420 = vmatpush1.msra.mxu0 %v1341
        %1421 = vmatprep.subr.mxu0 %v1345
        %1422 = vmatpush1.msra.mxu0 %v1344
        %1423 = vmatprep.subr.mxu0 %v1348
        %1424 = vmatpush1.msra.mxu0 %v1347
        %1425 = vmatprep.subr.mxu0 %v1351
        %1426 = vmatpush1.msra.mxu0 %v1350
        %1427 = vmatprep.subr.mxu0 %v1354
        %1428 = vmatpush1.msra.mxu0 %v1353
        %1429 = vmatprep.subr.mxu0 %v1357
        %1430 = vmatpush1.msra.mxu0 %v1356
        %1431 = vmatprep.subr.mxu0 %v1360
        %1432 = vmatpush1.msra.mxu0 %v1359
        %1433 = vmatprep.subr.mxu0 %v1363
        %1434 = vmatpush1.msra.mxu0 %v1362
        %1435 = vmatprep.subr.mxu0 %v1366
        %1436 = vmatpush1.msra.mxu0 %v1365
        %1437 = vmatprep.subr.mxu0 %v1369
        %1438 = vmatpush1.msra.mxu0 %v1368
        %1439 = vmatprep.subr.mxu0 %v1372
        %1440 = vmatpush1.msra.mxu0 %v1371
        %1441 = vmatprep.subr.mxu0 %v1375
        %1442 = vmatpush1.msra.mxu0 %v1374
        %1443 = vmatprep.subr.mxu0 %v1378
        %1444 = vmatpush1.msra.mxu0 %v1377
        %1445 = vmatprep.subr.mxu0 %v1381
        %1446 = vmatpush1.msra.mxu0 %v1380
        %1447 = vmatprep.mubr.f32.mxu0 %v1272
        %1448 = vmatmul.mubr.f32.gmra.mrb[0].mxu0 %v1271
        %v1449 = vpop.f32.mrb[0].mxu0
        %v1450 = vadd.f32 0.0, %v1449
        %v1451 = vpop.f32.mrb[0].mxu0
        %v1452 = vadd.f32 0.0, %v1451
        %1453 = vmatprep.mubr.f32.mxu0 %v1274
        %1454 = vmatmul.mubr.f32.gmra.mrb[0].mxu0 %v1273
        %v1455 = vpop.f32.mrb[0].mxu0
        %v1456 = vadd.f32 0.0, %v1455
        %v1457 = vpop.f32.mrb[0].mxu0
        %v1458 = vadd.f32 0.0, %v1457
        %1459 = vmatprep.mubr.f32.mxu0 %v1276
        %1460 = vmatmul.mubr.f32.gmra.mrb[0].mxu0 %v1275
        %v1461 = vpop.f32.mrb[0].mxu0
        %v1462 = vadd.f32 0.0, %v1461
        %v1463 = vpop.f32.mrb[0].mxu0
        %v1464 = vadd.f32 0.0, %v1463
        %1465 = vmatprep.mubr.f32.mxu0 %v1278
        %1466 = vmatmul.mubr.f32.gmra.mrb[0].mxu0 %v1277
        %v1467 = vpop.f32.mrb[0].mxu0
        %v1468 = vadd.f32 0.0, %v1467
        %v1469 = vpop.f32.mrb[0].mxu0
        %v1470 = vadd.f32 0.0, %v1469
        %1471 = vmatprep.mubr.f32.mxu0 %v1280
        %1472 = vmatmul.mubr.f32.gmra.mrb[0].mxu0 %v1279
        %v1473 = vpop.f32.mrb[0].mxu0
        %v1474 = vadd.f32 0.0, %v1473
        %v1475 = vpop.f32.mrb[0].mxu0
        %v1476 = vadd.f32 0.0, %v1475
        %1477 = vmatprep.mubr.f32.mxu0 %v1282
        %1478 = vmatmul.mubr.f32.gmra.mrb[0].mxu0 %v1281
        %v1479 = vpop.f32.mrb[0].mxu0
        %v1480 = vadd.f32 0.0, %v1479
        %v1481 = vpop.f32.mrb[0].mxu0
        %v1482 = vadd.f32 0.0, %v1481
        %1483 = vmatprep.mubr.f32.mxu0 %v1284
        %1484 = vmatmul.mubr.f32.gmra.mrb[0].mxu0 %v1283
        %v1485 = vpop.f32.mrb[0].mxu0
        %v1486 = vadd.f32 0.0, %v1485
        %v1487 = vpop.f32.mrb[0].mxu0
        %v1488 = vadd.f32 0.0, %v1487
        %1489 = vmatprep.mubr.f32.mxu0 %v1286
        %1490 = vmatmul.mubr.f32.gmra.mrb[0].mxu0 %v1285
        %v1491 = vpop.f32.mrb[0].mxu0
        %v1492 = vadd.f32 0.0, %v1491
        %v1493 = vpop.f32.mrb[0].mxu0
        %v1494 = vadd.f32 0.0, %v1493
        %1495 = vdwg.mxu0
        %1496 = vmatprep.subr.mxu0 0.0
        %1497 = vmatpush1.msra.mxu0 %v1289
        %1498 = vmatprep.subr.mxu0 0.0
        %1499 = vmatpush1.msra.mxu0 %v1292
        %1500 = vmatprep.subr.mxu0 0.0
        %1501 = vmatpush1.msra.mxu0 %v1295
        %1502 = vmatprep.subr.mxu0 0.0
        %1503 = vmatpush1.msra.mxu0 %v1298
        %1504 = vmatprep.subr.mxu0 0.0
        %1505 = vmatpush1.msra.mxu0 %v1301
        %1506 = vmatprep.subr.mxu0 0.0
        %1507 = vmatpush1.msra.mxu0 %v1304
        %1508 = vmatprep.subr.mxu0 0.0
        %1509 = vmatpush1.msra.mxu0 %v1307
        %1510 = vmatprep.subr.mxu0 0.0
        %1511 = vmatpush1.msra.mxu0 %v1310
        %1512 = vmatprep.subr.mxu0 0.0
        %1513 = vmatpush1.msra.mxu0 %v1313
        %1514 = vmatprep.subr.mxu0 0.0
        %1515 = vmatpush1.msra.mxu0 %v1316
        %1516 = vmatprep.subr.mxu0 0.0
        %1517 = vmatpush1.msra.mxu0 %v1319
        %1518 = vmatprep.subr.mxu0 0.0
        %1519 = vmatpush1.msra.mxu0 %v1322
        %1520 = vmatprep.subr.mxu0 0.0
        %1521 = vmatpush1.msra.mxu0 %v1325
        %1522 = vmatprep.subr.mxu0 0.0
        %1523 = vmatpush1.msra.mxu0 %v1328
        %1524 = vmatprep.subr.mxu0 0.0
        %1525 = vmatpush1.msra.mxu0 %v1331
        %1526 = vmatprep.subr.mxu0 0.0
        %1527 = vmatpush1.msra.mxu0 %v1334
        %1528 = vmatprep.subr.mxu0 0.0
        %1529 = vmatpush1.msra.mxu0 %v1337
        %1530 = vmatprep.subr.mxu0 0.0
        %1531 = vmatpush1.msra.mxu0 %v1340
        %1532 = vmatprep.subr.mxu0 0.0
        %1533 = vmatpush1.msra.mxu0 %v1343
        %1534 = vmatprep.subr.mxu0 0.0
        %1535 = vmatpush1.msra.mxu0 %v1346
        %1536 = vmatprep.subr.mxu0 0.0
        %1537 = vmatpush1.msra.mxu0 %v1349
        %1538 = vmatprep.subr.mxu0 0.0
        %1539 = vmatpush1.msra.mxu0 %v1352
        %1540 = vmatprep.subr.mxu0 0.0
        %1541 = vmatpush1.msra.mxu0 %v1355
        %1542 = vmatprep.subr.mxu0 0.0
        %1543 = vmatpush1.msra.mxu0 %v1358
        %1544 = vmatprep.subr.mxu0 0.0
        %1545 = vmatpush1.msra.mxu0 %v1361
        %1546 = vmatprep.subr.mxu0 0.0
        %1547 = vmatpush1.msra.mxu0 %v1364
        %1548 = vmatprep.subr.mxu0 0.0
        %1549 = vmatpush1.msra.mxu0 %v1367
        %1550 = vmatprep.subr.mxu0 0.0
        %1551 = vmatpush1.msra.mxu0 %v1370
        %1552 = vmatprep.subr.mxu0 0.0
        %1553 = vmatpush1.msra.mxu0 %v1373
        %1554 = vmatprep.subr.mxu0 0.0
        %1555 = vmatpush1.msra.mxu0 %v1376
        %1556 = vmatprep.subr.mxu0 0.0
        %1557 = vmatpush1.msra.mxu0 %v1379
        %1558 = vmatprep.subr.mxu0 0.0
        %1559 = vmatpush1.msra.mxu0 %v1382
        %1560 = vmatprep.mubr.f32.mxu0 %v1272
        %1561 = vmatmul.mubr.f32.gmra.mrb[0].mxu0 %v1271
        %v1562 = vpop.f32.mrb[0].mxu0
        %v1563 = vadd.f32 0.0, %v1562
        %v1564 = vpop.f32.mrb[0].mxu0
        %1565 = vmatprep.mubr.f32.mxu0 %v1274
        %1566 = vmatmul.mubr.f32.gmra.mrb[0].mxu0 %v1273
        %v1567 = vpop.f32.mrb[0].mxu0
        %v1568 = vadd.f32 0.0, %v1567
        %v1569 = vpop.f32.mrb[0].mxu0
        %1570 = vmatprep.mubr.f32.mxu0 %v1276
        %1571 = vmatmul.mubr.f32.gmra.mrb[0].mxu0 %v1275
        %v1572 = vpop.f32.mrb[0].mxu0
        %v1573 = vadd.f32 0.0, %v1572
        %v1574 = vpop.f32.mrb[0].mxu0
        %1575 = vmatprep.mubr.f32.mxu0 %v1278
        %1576 = vmatmul.mubr.f32.gmra.mrb[0].mxu0 %v1277
        %v1577 = vpop.f32.mrb[0].mxu0
        %v1578 = vadd.f32 0.0, %v1577
        %v1579 = vpop.f32.mrb[0].mxu0
        %1580 = vmatprep.mubr.f32.mxu0 %v1280
        %1581 = vmatmul.mubr.f32.gmra.mrb[0].mxu0 %v1279
        %v1582 = vpop.f32.mrb[0].mxu0
        %v1583 = vadd.f32 0.0, %v1582
        %v1584 = vpop.f32.mrb[0].mxu0
        %1585 = vmatprep.mubr.f32.mxu0 %v1282
        %1586 = vmatmul.mubr.f32.gmra.mrb[0].mxu0 %v1281
        %v1587 = vpop.f32.mrb[0].mxu0
        %v1588 = vadd.f32 0.0, %v1587
        %v1589 = vpop.f32.mrb[0].mxu0
        %1590 = vmatprep.mubr.f32.mxu0 %v1284
        %1591 = vmatmul.mubr.f32.gmra.mrb[0].mxu0 %v1283
        %v1592 = vpop.f32.mrb[0].mxu0
        %v1593 = vadd.f32 0.0, %v1592
        %v1594 = vpop.f32.mrb[0].mxu0
        %1595 = vmatprep.mubr.f32.mxu0 %v1286
        %1596 = vmatmul.mubr.f32.gmra.mrb[0].mxu0 %v1285
        %v1597 = vpop.f32.mrb[0].mxu0
        %v1598 = vadd.f32 0.0, %v1597
        %v1599 = vpop.f32.mrb[0].mxu0
        %1600 = vdwg.mxu0
        %v1601 = vld [vmem:[%s6] sm:$0x3]
        %v1603 = vlaneseq
        %v1604 = vshrl.u32 %v1603, 7
        %v1605 = vsub.s32 0, %v1604
        %v1606 = vrot.slane %v1601, %v1605
        %v1607 = vlaneseq
        %v1608 = vshrl.u32 %v1607, 7
        %v1609 = vsub.s32 1, %v1608
        %v1610 = vrot.slane %v1601, %v1609
        %v1613 = vadd.f32 %v1450, %v1606
        %v1614 = vadd.f32 %v1452, %v1610
        %v1615 = vadd.f32 %v1456, %v1606
        %v1616 = vadd.f32 %v1458, %v1610
        %v1617 = vadd.f32 %v1462, %v1606
        %v1618 = vadd.f32 %v1464, %v1610
        %v1619 = vadd.f32 %v1468, %v1606
        %v1620 = vadd.f32 %v1470, %v1610
        %v1621 = vadd.f32 %v1474, %v1606
        %v1622 = vadd.f32 %v1476, %v1610
        %v1623 = vadd.f32 %v1480, %v1606
        %v1624 = vadd.f32 %v1482, %v1610
        %v1625 = vadd.f32 %v1486, %v1606
        %v1626 = vadd.f32 %v1488, %v1610
        %v1627 = vadd.f32 %v1492, %v1606
        %v1628 = vadd.f32 %v1494, %v1610
        %v1629 = vmax.f32 %v1613, 0.0
        %v1630 = vmax.f32 %v1614, 0.0
        %v1631 = vmax.f32 %v1615, 0.0
        %v1632 = vmax.f32 %v1616, 0.0
        %v1633 = vmax.f32 %v1617, 0.0
        %v1634 = vmax.f32 %v1618, 0.0
        %v1635 = vmax.f32 %v1619, 0.0
        %v1636 = vmax.f32 %v1620, 0.0
        %v1637 = vmax.f32 %v1621, 0.0
        %v1638 = vmax.f32 %v1622, 0.0
        %v1639 = vmax.f32 %v1623, 0.0
        %v1640 = vmax.f32 %v1624, 0.0
        %v1641 = vmax.f32 %v1625, 0.0
        %v1642 = vmax.f32 %v1626, 0.0
        %v1643 = vmax.f32 %v1627, 0.0
        %v1644 = vmax.f32 %v1628, 0.0
        %v1645 = vand.u32 2147483647, %v1613
        %v1646 = vand.u32 2147483647, %v1614
        %v1647 = vand.u32 2147483647, %v1615
        %v1648 = vand.u32 2147483647, %v1616
        %v1649 = vand.u32 2147483647, %v1617
        %v1650 = vand.u32 2147483647, %v1618
        %v1651 = vand.u32 2147483647, %v1619
        %v1652 = vand.u32 2147483647, %v1620
        %v1653 = vand.u32 2147483647, %v1621
        %v1654 = vand.u32 2147483647, %v1622
        %v1655 = vand.u32 2147483647, %v1623
        %v1656 = vand.u32 2147483647, %v1624
        %v1657 = vand.u32 2147483647, %v1625
        %v1658 = vand.u32 2147483647, %v1626
        %v1659 = vand.u32 2147483647, %v1627
        %v1660 = vand.u32 2147483647, %v1628
        %v1661 = vsub.f32 0.0, %v1645
        %v1662 = vsub.f32 0.0, %v1646
        %v1663 = vsub.f32 0.0, %v1647
        %v1664 = vsub.f32 0.0, %v1648
        %v1665 = vsub.f32 0.0, %v1649
        %v1666 = vsub.f32 0.0, %v1650
        %v1667 = vsub.f32 0.0, %v1651
        %v1668 = vsub.f32 0.0, %v1652
        %v1669 = vsub.f32 0.0, %v1653
        %v1670 = vsub.f32 0.0, %v1654
        %v1671 = vsub.f32 0.0, %v1655
        %v1672 = vsub.f32 0.0, %v1656
        %v1673 = vsub.f32 0.0, %v1657
        %v1674 = vsub.f32 0.0, %v1658
        %v1675 = vsub.f32 0.0, %v1659
        %v1676 = vsub.f32 0.0, %v1660
        %v1677 = vmul.f32 %v1661, 1.442695
        %v1678 = vpow.pop %v1677
        %v1679 = vmul.f32 %v1662, 1.442695
        %v1680 = vpow.pop %v1679
        %v1681 = vmul.f32 %v1663, 1.442695
        %v1682 = vpow.pop %v1681
        %v1683 = vmul.f32 %v1664, 1.442695
        %v1684 = vpow.pop %v1683
        %v1685 = vmul.f32 %v1665, 1.442695
        %v1686 = vpow.pop %v1685
        %v1687 = vmul.f32 %v1666, 1.442695
        %v1688 = vpow.pop %v1687
        %v1689 = vmul.f32 %v1667, 1.442695
        %v1690 = vpow.pop %v1689
        %v1691 = vmul.f32 %v1668, 1.442695
        %v1692 = vpow.pop %v1691
        %v1693 = vmul.f32 %v1669, 1.442695
        %v1694 = vpow.pop %v1693
        %v1695 = vmul.f32 %v1670, 1.442695
        %v1696 = vpow.pop %v1695
        %v1697 = vmul.f32 %v1671, 1.442695
        %v1698 = vpow.pop %v1697
        %v1699 = vmul.f32 %v1672, 1.442695
        %v1700 = vpow.pop %v1699
        %v1701 = vmul.f32 %v1673, 1.442695
        %v1702 = vpow.pop %v1701
        %v1703 = vmul.f32 %v1674, 1.442695
        %v1704 = vpow.pop %v1703
        %v1705 = vmul.f32 %v1675, 1.442695
        %v1706 = vpow.pop %v1705
        %v1707 = vmul.f32 %v1676, 1.442695
        %v1708 = vpow.pop %v1707
        %v1709 = vadd.f32 %v1678, 1.0
        %v1710 = vlog2.pop %v1709
        %v1711 = vmul.f32 %v1710, 0.6931472
        %v1712 = vmul.f32 -0.5, %v1678
        %v1713 = vadd.f32 %v1712, 1.0
        %v1714 = vmul.f32 %v1713, %v1678
        %v1715 = vand.u32 2147483647, %v1678
        %vm1716 = vcmp.lt.f32.partialorder %v1715, 0.0004427343
        %v1717 = vsel %vm1716, %v1714, %v1711
        %v1718 = vadd.f32 %v1680, 1.0
        %v1719 = vlog2.pop %v1718
        %v1720 = vmul.f32 %v1719, 0.6931472
        %v1721 = vmul.f32 -0.5, %v1680
        %v1722 = vadd.f32 %v1721, 1.0
        %v1723 = vmul.f32 %v1722, %v1680
        %v1724 = vand.u32 2147483647, %v1680
        %vm1725 = vcmp.lt.f32.partialorder %v1724, 0.0004427343
        %v1726 = vsel %vm1725, %v1723, %v1720
        %v1727 = vadd.f32 %v1682, 1.0
        %v1728 = vlog2.pop %v1727
        %v1729 = vmul.f32 %v1728, 0.6931472
        %v1730 = vmul.f32 -0.5, %v1682
        %v1731 = vadd.f32 %v1730, 1.0
        %v1732 = vmul.f32 %v1731, %v1682
        %v1733 = vand.u32 2147483647, %v1682
        %vm1734 = vcmp.lt.f32.partialorder %v1733, 0.0004427343
        %v1735 = vsel %vm1734, %v1732, %v1729
        %v1736 = vadd.f32 %v1684, 1.0
        %v1737 = vlog2.pop %v1736
        %v1738 = vmul.f32 %v1737, 0.6931472
        %v1739 = vmul.f32 -0.5, %v1684
        %v1740 = vadd.f32 %v1739, 1.0
        %v1741 = vmul.f32 %v1740, %v1684
        %v1742 = vand.u32 2147483647, %v1684
        %vm1743 = vcmp.lt.f32.partialorder %v1742, 0.0004427343
        %v1744 = vsel %vm1743, %v1741, %v1738
        %v1745 = vadd.f32 %v1686, 1.0
        %v1746 = vlog2.pop %v1745
        %v1747 = vmul.f32 %v1746, 0.6931472
        %v1748 = vmul.f32 -0.5, %v1686
        %v1749 = vadd.f32 %v1748, 1.0
        %v1750 = vmul.f32 %v1749, %v1686
        %v1751 = vand.u32 2147483647, %v1686
        %vm1752 = vcmp.lt.f32.partialorder %v1751, 0.0004427343
        %v1753 = vsel %vm1752, %v1750, %v1747
        %v1754 = vadd.f32 %v1688, 1.0
        %v1755 = vlog2.pop %v1754
        %v1756 = vmul.f32 %v1755, 0.6931472
        %v1757 = vmul.f32 -0.5, %v1688
        %v1758 = vadd.f32 %v1757, 1.0
        %v1759 = vmul.f32 %v1758, %v1688
        %v1760 = vand.u32 2147483647, %v1688
        %vm1761 = vcmp.lt.f32.partialorder %v1760, 0.0004427343
        %v1762 = vsel %vm1761, %v1759, %v1756
        %v1763 = vadd.f32 %v1690, 1.0
        %v1764 = vlog2.pop %v1763
        %v1765 = vmul.f32 %v1764, 0.6931472
        %v1766 = vmul.f32 -0.5, %v1690
        %v1767 = vadd.f32 %v1766, 1.0
        %v1768 = vmul.f32 %v1767, %v1690
        %v1769 = vand.u32 2147483647, %v1690
        %vm1770 = vcmp.lt.f32.partialorder %v1769, 0.0004427343
        %v1771 = vsel %vm1770, %v1768, %v1765
        %v1772 = vadd.f32 %v1692, 1.0
        %v1773 = vlog2.pop %v1772
        %v1774 = vmul.f32 %v1773, 0.6931472
        %v1775 = vmul.f32 -0.5, %v1692
        %v1776 = vadd.f32 %v1775, 1.0
        %v1777 = vmul.f32 %v1776, %v1692
        %v1778 = vand.u32 2147483647, %v1692
        %vm1779 = vcmp.lt.f32.partialorder %v1778, 0.0004427343
        %v1780 = vsel %vm1779, %v1777, %v1774
        %v1781 = vadd.f32 %v1694, 1.0
        %v1782 = vlog2.pop %v1781
        %v1783 = vmul.f32 %v1782, 0.6931472
        %v1784 = vmul.f32 -0.5, %v1694
        %v1785 = vadd.f32 %v1784, 1.0
        %v1786 = vmul.f32 %v1785, %v1694
        %v1787 = vand.u32 2147483647, %v1694
        %vm1788 = vcmp.lt.f32.partialorder %v1787, 0.0004427343
        %v1789 = vsel %vm1788, %v1786, %v1783
        %v1790 = vadd.f32 %v1696, 1.0
        %v1791 = vlog2.pop %v1790
        %v1792 = vmul.f32 %v1791, 0.6931472
        %v1793 = vmul.f32 -0.5, %v1696
        %v1794 = vadd.f32 %v1793, 1.0
        %v1795 = vmul.f32 %v1794, %v1696
        %v1796 = vand.u32 2147483647, %v1696
        %vm1797 = vcmp.lt.f32.partialorder %v1796, 0.0004427343
        %v1798 = vsel %vm1797, %v1795, %v1792
        %v1799 = vadd.f32 %v1698, 1.0
        %v1800 = vlog2.pop %v1799
        %v1801 = vmul.f32 %v1800, 0.6931472
        %v1802 = vmul.f32 -0.5, %v1698
        %v1803 = vadd.f32 %v1802, 1.0
        %v1804 = vmul.f32 %v1803, %v1698
        %v1805 = vand.u32 2147483647, %v1698
        %vm1806 = vcmp.lt.f32.partialorder %v1805, 0.0004427343
        %v1807 = vsel %vm1806, %v1804, %v1801
        %v1808 = vadd.f32 %v1700, 1.0
        %v1809 = vlog2.pop %v1808
        %v1810 = vmul.f32 %v1809, 0.6931472
        %v1811 = vmul.f32 -0.5, %v1700
        %v1812 = vadd.f32 %v1811, 1.0
        %v1813 = vmul.f32 %v1812, %v1700
        %v1814 = vand.u32 2147483647, %v1700
        %vm1815 = vcmp.lt.f32.partialorder %v1814, 0.0004427343
        %v1816 = vsel %vm1815, %v1813, %v1810
        %v1817 = vadd.f32 %v1702, 1.0
        %v1818 = vlog2.pop %v1817
        %v1819 = vmul.f32 %v1818, 0.6931472
        %v1820 = vmul.f32 -0.5, %v1702
        %v1821 = vadd.f32 %v1820, 1.0
        %v1822 = vmul.f32 %v1821, %v1702
        %v1823 = vand.u32 2147483647, %v1702
        %vm1824 = vcmp.lt.f32.partialorder %v1823, 0.0004427343
        %v1825 = vsel %vm1824, %v1822, %v1819
        %v1826 = vadd.f32 %v1704, 1.0
        %v1827 = vlog2.pop %v1826
        %v1828 = vmul.f32 %v1827, 0.6931472
        %v1829 = vmul.f32 -0.5, %v1704
        %v1830 = vadd.f32 %v1829, 1.0
        %v1831 = vmul.f32 %v1830, %v1704
        %v1832 = vand.u32 2147483647, %v1704
        %vm1833 = vcmp.lt.f32.partialorder %v1832, 0.0004427343
        %v1834 = vsel %vm1833, %v1831, %v1828
        %v1835 = vadd.f32 %v1706, 1.0
        %v1836 = vlog2.pop %v1835
        %v1837 = vmul.f32 %v1836, 0.6931472
        %v1838 = vmul.f32 -0.5, %v1706
        %v1839 = vadd.f32 %v1838, 1.0
        %v1840 = vmul.f32 %v1839, %v1706
        %v1841 = vand.u32 2147483647, %v1706
        %vm1842 = vcmp.lt.f32.partialorder %v1841, 0.0004427343
        %v1843 = vsel %vm1842, %v1840, %v1837
        %v1844 = vadd.f32 %v1708, 1.0
        %v1845 = vlog2.pop %v1844
        %v1846 = vmul.f32 %v1845, 0.6931472
        %v1847 = vmul.f32 -0.5, %v1708
        %v1848 = vadd.f32 %v1847, 1.0
        %v1849 = vmul.f32 %v1848, %v1708
        %v1850 = vand.u32 2147483647, %v1708
        %vm1851 = vcmp.lt.f32.partialorder %v1850, 0.0004427343
        %v1852 = vsel %vm1851, %v1849, %v1846
        %v1853 = vadd.f32 %v1629, %v1717
        %v1854 = vadd.f32 %v1630, %v1726
        %v1855 = vadd.f32 %v1631, %v1735
        %v1856 = vadd.f32 %v1632, %v1744
        %v1857 = vadd.f32 %v1633, %v1753
        %v1858 = vadd.f32 %v1634, %v1762
        %v1859 = vadd.f32 %v1635, %v1771
        %v1860 = vadd.f32 %v1636, %v1780
        %v1861 = vadd.f32 %v1637, %v1789
        %v1862 = vadd.f32 %v1638, %v1798
        %v1863 = vadd.f32 %v1639, %v1807
        %v1864 = vadd.f32 %v1640, %v1816
        %v1865 = vadd.f32 %v1641, %v1825
        %v1866 = vadd.f32 %v1642, %v1834
        %v1867 = vadd.f32 %v1643, %v1843
        %v1868 = vadd.f32 %v1644, %v1852
        %v1869 = vlaneseq
        %v1870 = vshrl.u32 %v1869, 7
        %v1871 = vsub.s32 0, %v1870
        %v1872 = vrot.slane %v1563, %v1871
        %1874 = vbcast.lane.b32.xlu0 %v1872, 256
        %v1875 = vpop.permute.xlu0 %1874
        %s1877 = sor.u32 256, 8
        %1878 = vbcast.lane.b32.xlu0 %v1872, %s1877
        %v1879 = vpop.permute.xlu0 %1878
        %v1880 = vlaneseq
        %v1881 = vshrl.u32 %v1880, 7
        %v1882 = vsub.s32 1, %v1881
        %v1883 = vrot.slane %v1563, %v1882
        %1885 = vbcast.lane.b32.xlu0 %v1883, 256
        %v1886 = vpop.permute.xlu0 %1885
        %s1888 = sor.u32 256, 8
        %1889 = vbcast.lane.b32.xlu0 %v1883, %s1888
        %v1890 = vpop.permute.xlu0 %1889
        %v1891 = vlaneseq
        %v1892 = vshrl.u32 %v1891, 7
        %v1893 = vsub.s32 2, %v1892
        %v1894 = vrot.slane %v1563, %v1893
        %1896 = vbcast.lane.b32.xlu0 %v1894, 256
        %v1897 = vpop.permute.xlu0 %1896
        %s1899 = sor.u32 256, 8
        %1900 = vbcast.lane.b32.xlu0 %v1894, %s1899
        %v1901 = vpop.permute.xlu0 %1900
        %v1902 = vlaneseq
        %v1903 = vshrl.u32 %v1902, 7
        %v1904 = vsub.s32 3, %v1903
        %v1905 = vrot.slane %v1563, %v1904
        %1907 = vbcast.lane.b32.xlu0 %v1905, 256
        %v1908 = vpop.permute.xlu0 %1907
        %s1910 = sor.u32 256, 8
        %1911 = vbcast.lane.b32.xlu0 %v1905, %s1910
        %v1912 = vpop.permute.xlu0 %1911
        %v1913 = vlaneseq
        %v1914 = vshrl.u32 %v1913, 7
        %v1915 = vsub.s32 4, %v1914
        %v1916 = vrot.slane %v1563, %v1915
        %1918 = vbcast.lane.b32.xlu0 %v1916, 256
        %v1919 = vpop.permute.xlu0 %1918
        %s1921 = sor.u32 256, 8
        %1922 = vbcast.lane.b32.xlu0 %v1916, %s1921
        %v1923 = vpop.permute.xlu0 %1922
        %v1924 = vlaneseq
        %v1925 = vshrl.u32 %v1924, 7
        %v1926 = vsub.s32 5, %v1925
        %v1927 = vrot.slane %v1563, %v1926
        %1929 = vbcast.lane.b32.xlu0 %v1927, 256
        %v1930 = vpop.permute.xlu0 %1929
        %s1932 = sor.u32 256, 8
        %1933 = vbcast.lane.b32.xlu0 %v1927, %s1932
        %v1934 = vpop.permute.xlu0 %1933
        %v1935 = vlaneseq
        %v1936 = vshrl.u32 %v1935, 7
        %v1937 = vsub.s32 6, %v1936
        %v1938 = vrot.slane %v1563, %v1937
        %1940 = vbcast.lane.b32.xlu0 %v1938, 256
        %v1941 = vpop.permute.xlu0 %1940
        %s1943 = sor.u32 256, 8
        %1944 = vbcast.lane.b32.xlu0 %v1938, %s1943
        %v1945 = vpop.permute.xlu0 %1944
        %v1946 = vlaneseq
        %v1947 = vshrl.u32 %v1946, 7
        %v1948 = vsub.s32 7, %v1947
        %v1949 = vrot.slane %v1563, %v1948
        %1951 = vbcast.lane.b32.xlu0 %v1949, 256
        %v1952 = vpop.permute.xlu0 %1951
        %s1954 = sor.u32 256, 8
        %1955 = vbcast.lane.b32.xlu0 %v1949, %s1954
        %v1956 = vpop.permute.xlu0 %1955
        %v1957 = vlaneseq
        %v1958 = vshrl.u32 %v1957, 7
        %v1959 = vsub.s32 0, %v1958
        %v1960 = vrot.slane %v1568, %v1959
        %1962 = vbcast.lane.b32.xlu0 %v1960, 256
        %v1963 = vpop.permute.xlu0 %1962
        %s1965 = sor.u32 256, 8
        %1966 = vbcast.lane.b32.xlu0 %v1960, %s1965
        %v1967 = vpop.permute.xlu0 %1966
        %v1968 = vlaneseq
        %v1969 = vshrl.u32 %v1968, 7
        %v1970 = vsub.s32 1, %v1969
        %v1971 = vrot.slane %v1568, %v1970
        %1973 = vbcast.lane.b32.xlu0 %v1971, 256
        %v1974 = vpop.permute.xlu0 %1973
        %s1976 = sor.u32 256, 8
        %1977 = vbcast.lane.b32.xlu0 %v1971, %s1976
        %v1978 = vpop.permute.xlu0 %1977
        %v1979 = vlaneseq
        %v1980 = vshrl.u32 %v1979, 7
        %v1981 = vsub.s32 2, %v1980
        %v1982 = vrot.slane %v1568, %v1981
        %1984 = vbcast.lane.b32.xlu0 %v1982, 256
        %v1985 = vpop.permute.xlu0 %1984
        %s1987 = sor.u32 256, 8
        %1988 = vbcast.lane.b32.xlu0 %v1982, %s1987
        %v1989 = vpop.permute.xlu0 %1988
        %v1990 = vlaneseq
        %v1991 = vshrl.u32 %v1990, 7
        %v1992 = vsub.s32 3, %v1991
        %v1993 = vrot.slane %v1568, %v1992
        %1995 = vbcast.lane.b32.xlu0 %v1993, 256
        %v1996 = vpop.permute.xlu0 %1995
        %s1998 = sor.u32 256, 8
        %1999 = vbcast.lane.b32.xlu0 %v1993, %s1998
        %v2000 = vpop.permute.xlu0 %1999
        %v2001 = vlaneseq
        %v2002 = vshrl.u32 %v2001, 7
        %v2003 = vsub.s32 4, %v2002
        %v2004 = vrot.slane %v1568, %v2003
        %2006 = vbcast.lane.b32.xlu0 %v2004, 256
        %v2007 = vpop.permute.xlu0 %2006
        %s2009 = sor.u32 256, 8
        %2010 = vbcast.lane.b32.xlu0 %v2004, %s2009
        %v2011 = vpop.permute.xlu0 %2010
        %v2012 = vlaneseq
        %v2013 = vshrl.u32 %v2012, 7
        %v2014 = vsub.s32 5, %v2013
        %v2015 = vrot.slane %v1568, %v2014
        %2017 = vbcast.lane.b32.xlu0 %v2015, 256
        %v2018 = vpop.permute.xlu0 %2017
        %s2020 = sor.u32 256, 8
        %2021 = vbcast.lane.b32.xlu0 %v2015, %s2020
        %v2022 = vpop.permute.xlu0 %2021
        %v2023 = vlaneseq
        %v2024 = vshrl.u32 %v2023, 7
        %v2025 = vsub.s32 6, %v2024
        %v2026 = vrot.slane %v1568, %v2025
        %2028 = vbcast.lane.b32.xlu0 %v2026, 256
        %v2029 = vpop.permute.xlu0 %2028
        %s2031 = sor.u32 256, 8
        %2032 = vbcast.lane.b32.xlu0 %v2026, %s2031
        %v2033 = vpop.permute.xlu0 %2032
        %v2034 = vlaneseq
        %v2035 = vshrl.u32 %v2034, 7
        %v2036 = vsub.s32 7, %v2035
        %v2037 = vrot.slane %v1568, %v2036
        %2039 = vbcast.lane.b32.xlu0 %v2037, 256
        %v2040 = vpop.permute.xlu0 %2039
        %s2042 = sor.u32 256, 8
        %2043 = vbcast.lane.b32.xlu0 %v2037, %s2042
        %v2044 = vpop.permute.xlu0 %2043
        %v2045 = vlaneseq
        %v2046 = vshrl.u32 %v2045, 7
        %v2047 = vsub.s32 0, %v2046
        %v2048 = vrot.slane %v1573, %v2047
        %2050 = vbcast.lane.b32.xlu0 %v2048, 256
        %v2051 = vpop.permute.xlu0 %2050
        %s2053 = sor.u32 256, 8
        %2054 = vbcast.lane.b32.xlu0 %v2048, %s2053
        %v2055 = vpop.permute.xlu0 %2054
        %v2056 = vlaneseq
        %v2057 = vshrl.u32 %v2056, 7
        %v2058 = vsub.s32 1, %v2057
        %v2059 = vrot.slane %v1573, %v2058
        %2061 = vbcast.lane.b32.xlu0 %v2059, 256
        %v2062 = vpop.permute.xlu0 %2061
        %s2064 = sor.u32 256, 8
        %2065 = vbcast.lane.b32.xlu0 %v2059, %s2064
        %v2066 = vpop.permute.xlu0 %2065
        %v2067 = vlaneseq
        %v2068 = vshrl.u32 %v2067, 7
        %v2069 = vsub.s32 2, %v2068
        %v2070 = vrot.slane %v1573, %v2069
        %2072 = vbcast.lane.b32.xlu0 %v2070, 256
        %v2073 = vpop.permute.xlu0 %2072
        %s2075 = sor.u32 256, 8
        %2076 = vbcast.lane.b32.xlu0 %v2070, %s2075
        %v2077 = vpop.permute.xlu0 %2076
        %v2078 = vlaneseq
        %v2079 = vshrl.u32 %v2078, 7
        %v2080 = vsub.s32 3, %v2079
        %v2081 = vrot.slane %v1573, %v2080
        %2083 = vbcast.lane.b32.xlu0 %v2081, 256
        %v2084 = vpop.permute.xlu0 %2083
        %s2086 = sor.u32 256, 8
        %2087 = vbcast.lane.b32.xlu0 %v2081, %s2086
        %v2088 = vpop.permute.xlu0 %2087
        %v2089 = vlaneseq
        %v2090 = vshrl.u32 %v2089, 7
        %v2091 = vsub.s32 4, %v2090
        %v2092 = vrot.slane %v1573, %v2091
        %2094 = vbcast.lane.b32.xlu0 %v2092, 256
        %v2095 = vpop.permute.xlu0 %2094
        %s2097 = sor.u32 256, 8
        %2098 = vbcast.lane.b32.xlu0 %v2092, %s2097
        %v2099 = vpop.permute.xlu0 %2098
        %v2100 = vlaneseq
        %v2101 = vshrl.u32 %v2100, 7
        %v2102 = vsub.s32 5, %v2101
        %v2103 = vrot.slane %v1573, %v2102
        %2105 = vbcast.lane.b32.xlu0 %v2103, 256
        %v2106 = vpop.permute.xlu0 %2105
        %s2108 = sor.u32 256, 8
        %2109 = vbcast.lane.b32.xlu0 %v2103, %s2108
        %v2110 = vpop.permute.xlu0 %2109
        %v2111 = vlaneseq
        %v2112 = vshrl.u32 %v2111, 7
        %v2113 = vsub.s32 6, %v2112
        %v2114 = vrot.slane %v1573, %v2113
        %2116 = vbcast.lane.b32.xlu0 %v2114, 256
        %v2117 = vpop.permute.xlu0 %2116
        %s2119 = sor.u32 256, 8
        %2120 = vbcast.lane.b32.xlu0 %v2114, %s2119
        %v2121 = vpop.permute.xlu0 %2120
        %v2122 = vlaneseq
        %v2123 = vshrl.u32 %v2122, 7
        %v2124 = vsub.s32 7, %v2123
        %v2125 = vrot.slane %v1573, %v2124
        %2127 = vbcast.lane.b32.xlu0 %v2125, 256
        %v2128 = vpop.permute.xlu0 %2127
        %s2130 = sor.u32 256, 8
        %2131 = vbcast.lane.b32.xlu0 %v2125, %s2130
        %v2132 = vpop.permute.xlu0 %2131
        %v2133 = vlaneseq
        %v2134 = vshrl.u32 %v2133, 7
        %v2135 = vsub.s32 0, %v2134
        %v2136 = vrot.slane %v1578, %v2135
        %2138 = vbcast.lane.b32.xlu0 %v2136, 256
        %v2139 = vpop.permute.xlu0 %2138
        %s2141 = sor.u32 256, 8
        %2142 = vbcast.lane.b32.xlu0 %v2136, %s2141
        %v2143 = vpop.permute.xlu0 %2142
        %v2144 = vlaneseq
        %v2145 = vshrl.u32 %v2144, 7
        %v2146 = vsub.s32 1, %v2145
        %v2147 = vrot.slane %v1578, %v2146
        %2149 = vbcast.lane.b32.xlu0 %v2147, 256
        %v2150 = vpop.permute.xlu0 %2149
        %s2152 = sor.u32 256, 8
        %2153 = vbcast.lane.b32.xlu0 %v2147, %s2152
        %v2154 = vpop.permute.xlu0 %2153
        %v2155 = vlaneseq
        %v2156 = vshrl.u32 %v2155, 7
        %v2157 = vsub.s32 2, %v2156
        %v2158 = vrot.slane %v1578, %v2157
        %2160 = vbcast.lane.b32.xlu0 %v2158, 256
        %v2161 = vpop.permute.xlu0 %2160
        %s2163 = sor.u32 256, 8
        %2164 = vbcast.lane.b32.xlu0 %v2158, %s2163
        %v2165 = vpop.permute.xlu0 %2164
        %v2166 = vlaneseq
        %v2167 = vshrl.u32 %v2166, 7
        %v2168 = vsub.s32 3, %v2167
        %v2169 = vrot.slane %v1578, %v2168
        %2171 = vbcast.lane.b32.xlu0 %v2169, 256
        %v2172 = vpop.permute.xlu0 %2171
        %s2174 = sor.u32 256, 8
        %2175 = vbcast.lane.b32.xlu0 %v2169, %s2174
        %v2176 = vpop.permute.xlu0 %2175
        %v2177 = vlaneseq
        %v2178 = vshrl.u32 %v2177, 7
        %v2179 = vsub.s32 4, %v2178
        %v2180 = vrot.slane %v1578, %v2179
        %2182 = vbcast.lane.b32.xlu0 %v2180, 256
        %v2183 = vpop.permute.xlu0 %2182
        %s2185 = sor.u32 256, 8
        %2186 = vbcast.lane.b32.xlu0 %v2180, %s2185
        %v2187 = vpop.permute.xlu0 %2186
        %v2188 = vlaneseq
        %v2189 = vshrl.u32 %v2188, 7
        %v2190 = vsub.s32 5, %v2189
        %v2191 = vrot.slane %v1578, %v2190
        %2193 = vbcast.lane.b32.xlu0 %v2191, 256
        %v2194 = vpop.permute.xlu0 %2193
        %s2196 = sor.u32 256, 8
        %2197 = vbcast.lane.b32.xlu0 %v2191, %s2196
        %v2198 = vpop.permute.xlu0 %2197
        %v2199 = vlaneseq
        %v2200 = vshrl.u32 %v2199, 7
        %v2201 = vsub.s32 6, %v2200
        %v2202 = vrot.slane %v1578, %v2201
        %2204 = vbcast.lane.b32.xlu0 %v2202, 256
        %v2205 = vpop.permute.xlu0 %2204
        %s2207 = sor.u32 256, 8
        %2208 = vbcast.lane.b32.xlu0 %v2202, %s2207
        %v2209 = vpop.permute.xlu0 %2208
        %v2210 = vlaneseq
        %v2211 = vshrl.u32 %v2210, 7
        %v2212 = vsub.s32 7, %v2211
        %v2213 = vrot.slane %v1578, %v2212
        %2215 = vbcast.lane.b32.xlu0 %v2213, 256
        %v2216 = vpop.permute.xlu0 %2215
        %s2218 = sor.u32 256, 8
        %2219 = vbcast.lane.b32.xlu0 %v2213, %s2218
        %v2220 = vpop.permute.xlu0 %2219
        %v2221 = vlaneseq
        %v2222 = vshrl.u32 %v2221, 7
        %v2223 = vsub.s32 0, %v2222
        %v2224 = vrot.slane %v1583, %v2223
        %2226 = vbcast.lane.b32.xlu0 %v2224, 256
        %v2227 = vpop.permute.xlu0 %2226
        %s2229 = sor.u32 256, 8
        %2230 = vbcast.lane.b32.xlu0 %v2224, %s2229
        %v2231 = vpop.permute.xlu0 %2230
        %v2232 = vlaneseq
        %v2233 = vshrl.u32 %v2232, 7
        %v2234 = vsub.s32 1, %v2233
        %v2235 = vrot.slane %v1583, %v2234
        %2237 = vbcast.lane.b32.xlu0 %v2235, 256
        %v2238 = vpop.permute.xlu0 %2237
        %s2240 = sor.u32 256, 8
        %2241 = vbcast.lane.b32.xlu0 %v2235, %s2240
        %v2242 = vpop.permute.xlu0 %2241
        %v2243 = vlaneseq
        %v2244 = vshrl.u32 %v2243, 7
        %v2245 = vsub.s32 2, %v2244
        %v2246 = vrot.slane %v1583, %v2245
        %2248 = vbcast.lane.b32.xlu0 %v2246, 256
        %v2249 = vpop.permute.xlu0 %2248
        %s2251 = sor.u32 256, 8
        %2252 = vbcast.lane.b32.xlu0 %v2246, %s2251
        %v2253 = vpop.permute.xlu0 %2252
        %v2254 = vlaneseq
        %v2255 = vshrl.u32 %v2254, 7
        %v2256 = vsub.s32 3, %v2255
        %v2257 = vrot.slane %v1583, %v2256
        %2259 = vbcast.lane.b32.xlu0 %v2257, 256
        %v2260 = vpop.permute.xlu0 %2259
        %s2262 = sor.u32 256, 8
        %2263 = vbcast.lane.b32.xlu0 %v2257, %s2262
        %v2264 = vpop.permute.xlu0 %2263
        %v2265 = vlaneseq
        %v2266 = vshrl.u32 %v2265, 7
        %v2267 = vsub.s32 4, %v2266
        %v2268 = vrot.slane %v1583, %v2267
        %2270 = vbcast.lane.b32.xlu0 %v2268, 256
        %v2271 = vpop.permute.xlu0 %2270
        %s2273 = sor.u32 256, 8
        %2274 = vbcast.lane.b32.xlu0 %v2268, %s2273
        %v2275 = vpop.permute.xlu0 %2274
        %v2276 = vlaneseq
        %v2277 = vshrl.u32 %v2276, 7
        %v2278 = vsub.s32 5, %v2277
        %v2279 = vrot.slane %v1583, %v2278
        %2281 = vbcast.lane.b32.xlu0 %v2279, 256
        %v2282 = vpop.permute.xlu0 %2281
        %s2284 = sor.u32 256, 8
        %2285 = vbcast.lane.b32.xlu0 %v2279, %s2284
        %v2286 = vpop.permute.xlu0 %2285
        %v2287 = vlaneseq
        %v2288 = vshrl.u32 %v2287, 7
        %v2289 = vsub.s32 6, %v2288
        %v2290 = vrot.slane %v1583, %v2289
        %2292 = vbcast.lane.b32.xlu0 %v2290, 256
        %v2293 = vpop.permute.xlu0 %2292
        %s2295 = sor.u32 256, 8
        %2296 = vbcast.lane.b32.xlu0 %v2290, %s2295
        %v2297 = vpop.permute.xlu0 %2296
        %v2298 = vlaneseq
        %v2299 = vshrl.u32 %v2298, 7
        %v2300 = vsub.s32 7, %v2299
        %v2301 = vrot.slane %v1583, %v2300
        %2303 = vbcast.lane.b32.xlu0 %v2301, 256
        %v2304 = vpop.permute.xlu0 %2303
        %s2306 = sor.u32 256, 8
        %2307 = vbcast.lane.b32.xlu0 %v2301, %s2306
        %v2308 = vpop.permute.xlu0 %2307
        %v2309 = vlaneseq
        %v2310 = vshrl.u32 %v2309, 7
        %v2311 = vsub.s32 0, %v2310
        %v2312 = vrot.slane %v1588, %v2311
        %2314 = vbcast.lane.b32.xlu0 %v2312, 256
        %v2315 = vpop.permute.xlu0 %2314
        %s2317 = sor.u32 256, 8
        %2318 = vbcast.lane.b32.xlu0 %v2312, %s2317
        %v2319 = vpop.permute.xlu0 %2318
        %v2320 = vlaneseq
        %v2321 = vshrl.u32 %v2320, 7
        %v2322 = vsub.s32 1, %v2321
        %v2323 = vrot.slane %v1588, %v2322
        %2325 = vbcast.lane.b32.xlu0 %v2323, 256
        %v2326 = vpop.permute.xlu0 %2325
        %s2328 = sor.u32 256, 8
        %2329 = vbcast.lane.b32.xlu0 %v2323, %s2328
        %v2330 = vpop.permute.xlu0 %2329
        %v2331 = vlaneseq
        %v2332 = vshrl.u32 %v2331, 7
        %v2333 = vsub.s32 2, %v2332
        %v2334 = vrot.slane %v1588, %v2333
        %2336 = vbcast.lane.b32.xlu0 %v2334, 256
        %v2337 = vpop.permute.xlu0 %2336
        %s2339 = sor.u32 256, 8
        %2340 = vbcast.lane.b32.xlu0 %v2334, %s2339
        %v2341 = vpop.permute.xlu0 %2340
        %v2342 = vlaneseq
        %v2343 = vshrl.u32 %v2342, 7
        %v2344 = vsub.s32 3, %v2343
        %v2345 = vrot.slane %v1588, %v2344
        %2347 = vbcast.lane.b32.xlu0 %v2345, 256
        %v2348 = vpop.permute.xlu0 %2347
        %s2350 = sor.u32 256, 8
        %2351 = vbcast.lane.b32.xlu0 %v2345, %s2350
        %v2352 = vpop.permute.xlu0 %2351
        %v2353 = vlaneseq
        %v2354 = vshrl.u32 %v2353, 7
        %v2355 = vsub.s32 4, %v2354
        %v2356 = vrot.slane %v1588, %v2355
        %2358 = vbcast.lane.b32.xlu0 %v2356, 256
        %v2359 = vpop.permute.xlu0 %2358
        %s2361 = sor.u32 256, 8
        %2362 = vbcast.lane.b32.xlu0 %v2356, %s2361
        %v2363 = vpop.permute.xlu0 %2362
        %v2364 = vlaneseq
        %v2365 = vshrl.u32 %v2364, 7
        %v2366 = vsub.s32 5, %v2365
        %v2367 = vrot.slane %v1588, %v2366
        %2369 = vbcast.lane.b32.xlu0 %v2367, 256
        %v2370 = vpop.permute.xlu0 %2369
        %s2372 = sor.u32 256, 8
        %2373 = vbcast.lane.b32.xlu0 %v2367, %s2372
        %v2374 = vpop.permute.xlu0 %2373
        %v2375 = vlaneseq
        %v2376 = vshrl.u32 %v2375, 7
        %v2377 = vsub.s32 6, %v2376
        %v2378 = vrot.slane %v1588, %v2377
        %2380 = vbcast.lane.b32.xlu0 %v2378, 256
        %v2381 = vpop.permute.xlu0 %2380
        %s2383 = sor.u32 256, 8
        %2384 = vbcast.lane.b32.xlu0 %v2378, %s2383
        %v2385 = vpop.permute.xlu0 %2384
        %v2386 = vlaneseq
        %v2387 = vshrl.u32 %v2386, 7
        %v2388 = vsub.s32 7, %v2387
        %v2389 = vrot.slane %v1588, %v2388
        %2391 = vbcast.lane.b32.xlu0 %v2389, 256
        %v2392 = vpop.permute.xlu0 %2391
        %s2394 = sor.u32 256, 8
        %2395 = vbcast.lane.b32.xlu0 %v2389, %s2394
        %v2396 = vpop.permute.xlu0 %2395
        %v2397 = vlaneseq
        %v2398 = vshrl.u32 %v2397, 7
        %v2399 = vsub.s32 0, %v2398
        %v2400 = vrot.slane %v1593, %v2399
        %2402 = vbcast.lane.b32.xlu0 %v2400, 256
        %v2403 = vpop.permute.xlu0 %2402
        %s2405 = sor.u32 256, 8
        %2406 = vbcast.lane.b32.xlu0 %v2400, %s2405
        %v2407 = vpop.permute.xlu0 %2406
        %v2408 = vlaneseq
        %v2409 = vshrl.u32 %v2408, 7
        %v2410 = vsub.s32 1, %v2409
        %v2411 = vrot.slane %v1593, %v2410
        %2413 = vbcast.lane.b32.xlu0 %v2411, 256
        %v2414 = vpop.permute.xlu0 %2413
        %s2416 = sor.u32 256, 8
        %2417 = vbcast.lane.b32.xlu0 %v2411, %s2416
        %v2418 = vpop.permute.xlu0 %2417
        %v2419 = vlaneseq
        %v2420 = vshrl.u32 %v2419, 7
        %v2421 = vsub.s32 2, %v2420
        %v2422 = vrot.slane %v1593, %v2421
        %2424 = vbcast.lane.b32.xlu0 %v2422, 256
        %v2425 = vpop.permute.xlu0 %2424
        %s2427 = sor.u32 256, 8
        %2428 = vbcast.lane.b32.xlu0 %v2422, %s2427
        %v2429 = vpop.permute.xlu0 %2428
        %v2430 = vlaneseq
        %v2431 = vshrl.u32 %v2430, 7
        %v2432 = vsub.s32 3, %v2431
        %v2433 = vrot.slane %v1593, %v2432
        %2435 = vbcast.lane.b32.xlu0 %v2433, 256
        %v2436 = vpop.permute.xlu0 %2435
        %s2438 = sor.u32 256, 8
        %2439 = vbcast.lane.b32.xlu0 %v2433, %s2438
        %v2440 = vpop.permute.xlu0 %2439
        %v2441 = vlaneseq
        %v2442 = vshrl.u32 %v2441, 7
        %v2443 = vsub.s32 4, %v2442
        %v2444 = vrot.slane %v1593, %v2443
        %2446 = vbcast.lane.b32.xlu0 %v2444, 256
        %v2447 = vpop.permute.xlu0 %2446
        %s2449 = sor.u32 256, 8
        %2450 = vbcast.lane.b32.xlu0 %v2444, %s2449
        %v2451 = vpop.permute.xlu0 %2450
        %v2452 = vlaneseq
        %v2453 = vshrl.u32 %v2452, 7
        %v2454 = vsub.s32 5, %v2453
        %v2455 = vrot.slane %v1593, %v2454
        %2457 = vbcast.lane.b32.xlu0 %v2455, 256
        %v2458 = vpop.permute.xlu0 %2457
        %s2460 = sor.u32 256, 8
        %2461 = vbcast.lane.b32.xlu0 %v2455, %s2460
        %v2462 = vpop.permute.xlu0 %2461
        %v2463 = vlaneseq
        %v2464 = vshrl.u32 %v2463, 7
        %v2465 = vsub.s32 6, %v2464
        %v2466 = vrot.slane %v1593, %v2465
        %2468 = vbcast.lane.b32.xlu0 %v2466, 256
        %v2469 = vpop.permute.xlu0 %2468
        %s2471 = sor.u32 256, 8
        %2472 = vbcast.lane.b32.xlu0 %v2466, %s2471
        %v2473 = vpop.permute.xlu0 %2472
        %v2474 = vlaneseq
        %v2475 = vshrl.u32 %v2474, 7
        %v2476 = vsub.s32 7, %v2475
        %v2477 = vrot.slane %v1593, %v2476
        %2479 = vbcast.lane.b32.xlu0 %v2477, 256
        %v2480 = vpop.permute.xlu0 %2479
        %s2482 = sor.u32 256, 8
        %2483 = vbcast.lane.b32.xlu0 %v2477, %s2482
        %v2484 = vpop.permute.xlu0 %2483
        %v2485 = vlaneseq
        %v2486 = vshrl.u32 %v2485, 7
        %v2487 = vsub.s32 0, %v2486
        %v2488 = vrot.slane %v1598, %v2487
        %2490 = vbcast.lane.b32.xlu0 %v2488, 256
        %v2491 = vpop.permute.xlu0 %2490
        %s2493 = sor.u32 256, 8
        %2494 = vbcast.lane.b32.xlu0 %v2488, %s2493
        %v2495 = vpop.permute.xlu0 %2494
        %v2496 = vlaneseq
        %v2497 = vshrl.u32 %v2496, 7
        %v2498 = vsub.s32 1, %v2497
        %v2499 = vrot.slane %v1598, %v2498
        %2501 = vbcast.lane.b32.xlu0 %v2499, 256
        %v2502 = vpop.permute.xlu0 %2501
        %s2504 = sor.u32 256, 8
        %2505 = vbcast.lane.b32.xlu0 %v2499, %s2504
        %v2506 = vpop.permute.xlu0 %2505
        %v2507 = vlaneseq
        %v2508 = vshrl.u32 %v2507, 7
        %v2509 = vsub.s32 2, %v2508
        %v2510 = vrot.slane %v1598, %v2509
        %2512 = vbcast.lane.b32.xlu0 %v2510, 256
        %v2513 = vpop.permute.xlu0 %2512
        %s2515 = sor.u32 256, 8
        %2516 = vbcast.lane.b32.xlu0 %v2510, %s2515
        %v2517 = vpop.permute.xlu0 %2516
        %v2518 = vlaneseq
        %v2519 = vshrl.u32 %v2518, 7
        %v2520 = vsub.s32 3, %v2519
        %v2521 = vrot.slane %v1598, %v2520
        %2523 = vbcast.lane.b32.xlu0 %v2521, 256
        %v2524 = vpop.permute.xlu0 %2523
        %s2526 = sor.u32 256, 8
        %2527 = vbcast.lane.b32.xlu0 %v2521, %s2526
        %v2528 = vpop.permute.xlu0 %2527
        %v2529 = vlaneseq
        %v2530 = vshrl.u32 %v2529, 7
        %v2531 = vsub.s32 4, %v2530
        %v2532 = vrot.slane %v1598, %v2531
        %2534 = vbcast.lane.b32.xlu0 %v2532, 256
        %v2535 = vpop.permute.xlu0 %2534
        %s2537 = sor.u32 256, 8
        %2538 = vbcast.lane.b32.xlu0 %v2532, %s2537
        %v2539 = vpop.permute.xlu0 %2538
        %v2540 = vlaneseq
        %v2541 = vshrl.u32 %v2540, 7
        %v2542 = vsub.s32 5, %v2541
        %v2543 = vrot.slane %v1598, %v2542
        %2545 = vbcast.lane.b32.xlu0 %v2543, 256
        %v2546 = vpop.permute.xlu0 %2545
        %s2548 = sor.u32 256, 8
        %2549 = vbcast.lane.b32.xlu0 %v2543, %s2548
        %v2550 = vpop.permute.xlu0 %2549
        %v2551 = vlaneseq
        %v2552 = vshrl.u32 %v2551, 7
        %v2553 = vsub.s32 6, %v2552
        %v2554 = vrot.slane %v1598, %v2553
        %2556 = vbcast.lane.b32.xlu0 %v2554, 256
        %v2557 = vpop.permute.xlu0 %2556
        %s2559 = sor.u32 256, 8
        %2560 = vbcast.lane.b32.xlu0 %v2554, %s2559
        %v2561 = vpop.permute.xlu0 %2560
        %v2562 = vlaneseq
        %v2563 = vshrl.u32 %v2562, 7
        %v2564 = vsub.s32 7, %v2563
        %v2565 = vrot.slane %v1598, %v2564
        %2567 = vbcast.lane.b32.xlu0 %v2565, 256
        %v2568 = vpop.permute.xlu0 %2567
        %s2570 = sor.u32 256, 8
        %2571 = vbcast.lane.b32.xlu0 %v2565, %s2570
        %v2572 = vpop.permute.xlu0 %2571
        %v2573 = vmul.f32 %v1853, %v1271
        %v2574 = vmul.f32 %v1854, %v1272
        %v2575 = vmul.f32 %v1855, %v1273
        %v2576 = vmul.f32 %v1856, %v1274
        %v2577 = vmul.f32 %v1857, %v1275
        %v2578 = vmul.f32 %v1858, %v1276
        %v2579 = vmul.f32 %v1859, %v1277
        %v2580 = vmul.f32 %v1860, %v1278
        %v2581 = vmul.f32 %v1861, %v1279
        %v2582 = vmul.f32 %v1862, %v1280
        %v2583 = vmul.f32 %v1863, %v1281
        %v2584 = vmul.f32 %v1864, %v1282
        %v2585 = vmul.f32 %v1865, %v1283
        %v2586 = vmul.f32 %v1866, %v1284
        %v2587 = vmul.f32 %v1867, %v1285
        %v2588 = vmul.f32 %v1868, %v1286
        %v2605 = vcombine.low %v2573, %v2574
        %v2606 = vcombine.high %v2573, %v2574
        %v2608 = vunpack.c.l.s4 1966171168
        %v2609 = vunpack.c.0.s8 %v2608
        %v2610 = vlaneseq
        %v2611 = vshrl.u32 %v2610, 7
        %v2612 = vsub.s32 %v2609, %v2611
        %v2613 = vrot.slane %v2605, %v2612
        %v2615 = vunpack.c.l.s4 1966171168
        %v2616 = vunpack.c.0.s8 %v2615
        %v2617 = vlaneseq
        %v2618 = vshrl.u32 %v2617, 7
        %v2619 = vsub.s32 %v2616, %v2618
        %v2620 = vrot.slane %v2606, %v2619
        %v2621 = vcombine.high %v2613, %v2613
        %v2622 = vcombine.high %v2620, %v2620
        %v2624 = vunpack.c.l.s4 1966171168
        %v2625 = vunpack.c.0.s8 %v2624
        %v2626 = vlaneseq
        %v2627 = vshrl.u32 %v2626, 7
        %v2628 = vsub.s32 %v2625, %v2627
        %v2629 = vrot.slane %v2613, %v2628
        %v2631 = vunpack.c.l.s4 1966171168
        %v2632 = vunpack.c.0.s8 %v2631
        %v2633 = vlaneseq
        %v2634 = vshrl.u32 %v2633, 7
        %v2635 = vsub.s32 %v2632, %v2634
        %v2636 = vrot.slane %v2620, %v2635
        %v2638 = vunpack.c.l.s4 1966171168
        %v2639 = vunpack.c.0.s8 %v2638
        %v2640 = vlaneseq
        %v2641 = vshrl.u32 %v2640, 7
        %v2642 = vsub.s32 %v2639, %v2641
        %v2643 = vrot.slane %v2621, %v2642
        %v2645 = vunpack.c.l.s4 1966171168
        %v2646 = vunpack.c.0.s8 %v2645
        %v2647 = vlaneseq
        %v2648 = vshrl.u32 %v2647, 7
        %v2649 = vsub.s32 %v2646, %v2648
        %v2650 = vrot.slane %v2622, %v2649
        %v2651 = vcombine.high %v2629, %v2629
        %v2652 = vcombine.high %v2636, %v2636
        %v2653 = vcombine.high %v2643, %v2643
        %v2654 = vcombine.high %v2650, %v2650
        %v2655 = vcombine.low %v2575, %v2576
        %v2656 = vcombine.high %v2575, %v2576
        %v2658 = vunpack.c.l.s4 1966171168
        %v2659 = vunpack.c.0.s8 %v2658
        %v2660 = vlaneseq
        %v2661 = vshrl.u32 %v2660, 7
        %v2662 = vsub.s32 %v2659, %v2661
        %v2663 = vrot.slane %v2655, %v2662
        %v2665 = vunpack.c.l.s4 1966171168
        %v2666 = vunpack.c.0.s8 %v2665
        %v2667 = vlaneseq
        %v2668 = vshrl.u32 %v2667, 7
        %v2669 = vsub.s32 %v2666, %v2668
        %v2670 = vrot.slane %v2656, %v2669
        %v2671 = vcombine.high %v2663, %v2663
        %v2672 = vcombine.high %v2670, %v2670
        %v2674 = vunpack.c.l.s4 1966171168
        %v2675 = vunpack.c.0.s8 %v2674
        %v2676 = vlaneseq
        %v2677 = vshrl.u32 %v2676, 7
        %v2678 = vsub.s32 %v2675, %v2677
        %v2679 = vrot.slane %v2663, %v2678
        %v2681 = vunpack.c.l.s4 1966171168
        %v2682 = vunpack.c.0.s8 %v2681
        %v2683 = vlaneseq
        %v2684 = vshrl.u32 %v2683, 7
        %v2685 = vsub.s32 %v2682, %v2684
        %v2686 = vrot.slane %v2670, %v2685
        %v2688 = vunpack.c.l.s4 1966171168
        %v2689 = vunpack.c.0.s8 %v2688
        %v2690 = vlaneseq
        %v2691 = vshrl.u32 %v2690, 7
        %v2692 = vsub.s32 %v2689, %v2691
        %v2693 = vrot.slane %v2671, %v2692
        %v2695 = vunpack.c.l.s4 1966171168
        %v2696 = vunpack.c.0.s8 %v2695
        %v2697 = vlaneseq
        %v2698 = vshrl.u32 %v2697, 7
        %v2699 = vsub.s32 %v2696, %v2698
        %v2700 = vrot.slane %v2672, %v2699
        %v2701 = vcombine.high %v2679, %v2679
        %v2702 = vcombine.high %v2686, %v2686
        %v2703 = vcombine.high %v2693, %v2693
        %v2704 = vcombine.high %v2700, %v2700
        %v2705 = vcombine.low %v2577, %v2578
        %v2706 = vcombine.high %v2577, %v2578
        %v2708 = vunpack.c.l.s4 1966171168
        %v2709 = vunpack.c.0.s8 %v2708
        %v2710 = vlaneseq
        %v2711 = vshrl.u32 %v2710, 7
        %v2712 = vsub.s32 %v2709, %v2711
        %v2713 = vrot.slane %v2705, %v2712
        %v2715 = vunpack.c.l.s4 1966171168
        %v2716 = vunpack.c.0.s8 %v2715
        %v2717 = vlaneseq
        %v2718 = vshrl.u32 %v2717, 7
        %v2719 = vsub.s32 %v2716, %v2718
        %v2720 = vrot.slane %v2706, %v2719
        %v2721 = vcombine.high %v2713, %v2713
        %v2722 = vcombine.high %v2720, %v2720
        %v2724 = vunpack.c.l.s4 1966171168
        %v2725 = vunpack.c.0.s8 %v2724
        %v2726 = vlaneseq
        %v2727 = vshrl.u32 %v2726, 7
        %v2728 = vsub.s32 %v2725, %v2727
        %v2729 = vrot.slane %v2713, %v2728
        %v2731 = vunpack.c.l.s4 1966171168
        %v2732 = vunpack.c.0.s8 %v2731
        %v2733 = vlaneseq
        %v2734 = vshrl.u32 %v2733, 7
        %v2735 = vsub.s32 %v2732, %v2734
        %v2736 = vrot.slane %v2720, %v2735
        %v2738 = vunpack.c.l.s4 1966171168
        %v2739 = vunpack.c.0.s8 %v2738
        %v2740 = vlaneseq
        %v2741 = vshrl.u32 %v2740, 7
        %v2742 = vsub.s32 %v2739, %v2741
        %v2743 = vrot.slane %v2721, %v2742
        %v2745 = vunpack.c.l.s4 1966171168
        %v2746 = vunpack.c.0.s8 %v2745
        %v2747 = vlaneseq
        %v2748 = vshrl.u32 %v2747, 7
        %v2749 = vsub.s32 %v2746, %v2748
        %v2750 = vrot.slane %v2722, %v2749
        %v2751 = vcombine.high %v2729, %v2729
        %v2752 = vcombine.high %v2736, %v2736
        %v2753 = vcombine.high %v2743, %v2743
        %v2754 = vcombine.high %v2750, %v2750
        %v2755 = vcombine.low %v2579, %v2580
        %v2756 = vcombine.high %v2579, %v2580
        %v2758 = vunpack.c.l.s4 1966171168
        %v2759 = vunpack.c.0.s8 %v2758
        %v2760 = vlaneseq
        %v2761 = vshrl.u32 %v2760, 7
        %v2762 = vsub.s32 %v2759, %v2761
        %v2763 = vrot.slane %v2755, %v2762
        %v2765 = vunpack.c.l.s4 1966171168
        %v2766 = vunpack.c.0.s8 %v2765
        %v2767 = vlaneseq
        %v2768 = vshrl.u32 %v2767, 7
        %v2769 = vsub.s32 %v2766, %v2768
        %v2770 = vrot.slane %v2756, %v2769
        %v2771 = vcombine.high %v2763, %v2763
        %v2772 = vcombine.high %v2770, %v2770
        %v2774 = vunpack.c.l.s4 1966171168
        %v2775 = vunpack.c.0.s8 %v2774
        %v2776 = vlaneseq
        %v2777 = vshrl.u32 %v2776, 7
        %v2778 = vsub.s32 %v2775, %v2777
        %v2779 = vrot.slane %v2763, %v2778
        %v2781 = vunpack.c.l.s4 1966171168
        %v2782 = vunpack.c.0.s8 %v2781
        %v2783 = vlaneseq
        %v2784 = vshrl.u32 %v2783, 7
        %v2785 = vsub.s32 %v2782, %v2784
        %v2786 = vrot.slane %v2770, %v2785
        %v2788 = vunpack.c.l.s4 1966171168
        %v2789 = vunpack.c.0.s8 %v2788
        %v2790 = vlaneseq
        %v2791 = vshrl.u32 %v2790, 7
        %v2792 = vsub.s32 %v2789, %v2791
        %v2793 = vrot.slane %v2771, %v2792
        %v2795 = vunpack.c.l.s4 1966171168
        %v2796 = vunpack.c.0.s8 %v2795
        %v2797 = vlaneseq
        %v2798 = vshrl.u32 %v2797, 7
        %v2799 = vsub.s32 %v2796, %v2798
        %v2800 = vrot.slane %v2772, %v2799
        %v2801 = vcombine.high %v2779, %v2779
        %v2802 = vcombine.high %v2786, %v2786
        %v2803 = vcombine.high %v2793, %v2793
        %v2804 = vcombine.high %v2800, %v2800
        %v2805 = vcombine.low %v2581, %v2582
        %v2806 = vcombine.high %v2581, %v2582
        %v2808 = vunpack.c.l.s4 1966171168
        %v2809 = vunpack.c.0.s8 %v2808
        %v2810 = vlaneseq
        %v2811 = vshrl.u32 %v2810, 7
        %v2812 = vsub.s32 %v2809, %v2811
        %v2813 = vrot.slane %v2805, %v2812
        %v2815 = vunpack.c.l.s4 1966171168
        %v2816 = vunpack.c.0.s8 %v2815
        %v2817 = vlaneseq
        %v2818 = vshrl.u32 %v2817, 7
        %v2819 = vsub.s32 %v2816, %v2818
        %v2820 = vrot.slane %v2806, %v2819
        %v2821 = vcombine.high %v2813, %v2813
        %v2822 = vcombine.high %v2820, %v2820
        %v2824 = vunpack.c.l.s4 1966171168
        %v2825 = vunpack.c.0.s8 %v2824
        %v2826 = vlaneseq
        %v2827 = vshrl.u32 %v2826, 7
        %v2828 = vsub.s32 %v2825, %v2827
        %v2829 = vrot.slane %v2813, %v2828
        %v2831 = vunpack.c.l.s4 1966171168
        %v2832 = vunpack.c.0.s8 %v2831
        %v2833 = vlaneseq
        %v2834 = vshrl.u32 %v2833, 7
        %v2835 = vsub.s32 %v2832, %v2834
        %v2836 = vrot.slane %v2820, %v2835
        %v2838 = vunpack.c.l.s4 1966171168
        %v2839 = vunpack.c.0.s8 %v2838
        %v2840 = vlaneseq
        %v2841 = vshrl.u32 %v2840, 7
        %v2842 = vsub.s32 %v2839, %v2841
        %v2843 = vrot.slane %v2821, %v2842
        %v2845 = vunpack.c.l.s4 1966171168
        %v2846 = vunpack.c.0.s8 %v2845
        %v2847 = vlaneseq
        %v2848 = vshrl.u32 %v2847, 7
        %v2849 = vsub.s32 %v2846, %v2848
        %v2850 = vrot.slane %v2822, %v2849
        %v2851 = vcombine.high %v2829, %v2829
        %v2852 = vcombine.high %v2836, %v2836
        %v2853 = vcombine.high %v2843, %v2843
        %v2854 = vcombine.high %v2850, %v2850
        %v2855 = vcombine.low %v2583, %v2584
        %v2856 = vcombine.high %v2583, %v2584
        %v2858 = vunpack.c.l.s4 1966171168
        %v2859 = vunpack.c.0.s8 %v2858
        %v2860 = vlaneseq
        %v2861 = vshrl.u32 %v2860, 7
        %v2862 = vsub.s32 %v2859, %v2861
        %v2863 = vrot.slane %v2855, %v2862
        %v2865 = vunpack.c.l.s4 1966171168
        %v2866 = vunpack.c.0.s8 %v2865
        %v2867 = vlaneseq
        %v2868 = vshrl.u32 %v2867, 7
        %v2869 = vsub.s32 %v2866, %v2868
        %v2870 = vrot.slane %v2856, %v2869
        %v2871 = vcombine.high %v2863, %v2863
        %v2872 = vcombine.high %v2870, %v2870
        %v2874 = vunpack.c.l.s4 1966171168
        %v2875 = vunpack.c.0.s8 %v2874
        %v2876 = vlaneseq
        %v2877 = vshrl.u32 %v2876, 7
        %v2878 = vsub.s32 %v2875, %v2877
        %v2879 = vrot.slane %v2863, %v2878
        %v2881 = vunpack.c.l.s4 1966171168
        %v2882 = vunpack.c.0.s8 %v2881
        %v2883 = vlaneseq
        %v2884 = vshrl.u32 %v2883, 7
        %v2885 = vsub.s32 %v2882, %v2884
        %v2886 = vrot.slane %v2870, %v2885
        %v2888 = vunpack.c.l.s4 1966171168
        %v2889 = vunpack.c.0.s8 %v2888
        %v2890 = vlaneseq
        %v2891 = vshrl.u32 %v2890, 7
        %v2892 = vsub.s32 %v2889, %v2891
        %v2893 = vrot.slane %v2871, %v2892
        %v2895 = vunpack.c.l.s4 1966171168
        %v2896 = vunpack.c.0.s8 %v2895
        %v2897 = vlaneseq
        %v2898 = vshrl.u32 %v2897, 7
        %v2899 = vsub.s32 %v2896, %v2898
        %v2900 = vrot.slane %v2872, %v2899
        %v2901 = vcombine.high %v2879, %v2879
        %v2902 = vcombine.high %v2886, %v2886
        %v2903 = vcombine.high %v2893, %v2893
        %v2904 = vcombine.high %v2900, %v2900
        %v2905 = vcombine.low %v2585, %v2586
        %v2906 = vcombine.high %v2585, %v2586
        %v2908 = vunpack.c.l.s4 1966171168
        %v2909 = vunpack.c.0.s8 %v2908
        %v2910 = vlaneseq
        %v2911 = vshrl.u32 %v2910, 7
        %v2912 = vsub.s32 %v2909, %v2911
        %v2913 = vrot.slane %v2905, %v2912
        %v2915 = vunpack.c.l.s4 1966171168
        %v2916 = vunpack.c.0.s8 %v2915
        %v2917 = vlaneseq
        %v2918 = vshrl.u32 %v2917, 7
        %v2919 = vsub.s32 %v2916, %v2918
        %v2920 = vrot.slane %v2906, %v2919
        %v2921 = vcombine.high %v2913, %v2913
        %v2922 = vcombine.high %v2920, %v2920
        %v2924 = vunpack.c.l.s4 1966171168
        %v2925 = vunpack.c.0.s8 %v2924
        %v2926 = vlaneseq
        %v2927 = vshrl.u32 %v2926, 7
        %v2928 = vsub.s32 %v2925, %v2927
        %v2929 = vrot.slane %v2913, %v2928
        %v2931 = vunpack.c.l.s4 1966171168
        %v2932 = vunpack.c.0.s8 %v2931
        %v2933 = vlaneseq
        %v2934 = vshrl.u32 %v2933, 7
        %v2935 = vsub.s32 %v2932, %v2934
        %v2936 = vrot.slane %v2920, %v2935
        %v2938 = vunpack.c.l.s4 1966171168
        %v2939 = vunpack.c.0.s8 %v2938
        %v2940 = vlaneseq
        %v2941 = vshrl.u32 %v2940, 7
        %v2942 = vsub.s32 %v2939, %v2941
        %v2943 = vrot.slane %v2921, %v2942
        %v2945 = vunpack.c.l.s4 1966171168
        %v2946 = vunpack.c.0.s8 %v2945
        %v2947 = vlaneseq
        %v2948 = vshrl.u32 %v2947, 7
        %v2949 = vsub.s32 %v2946, %v2948
        %v2950 = vrot.slane %v2922, %v2949
        %v2951 = vcombine.high %v2929, %v2929
        %v2952 = vcombine.high %v2936, %v2936
        %v2953 = vcombine.high %v2943, %v2943
        %v2954 = vcombine.high %v2950, %v2950
        %v2955 = vcombine.low %v2587, %v2588
        %v2956 = vcombine.high %v2587, %v2588
        %v2958 = vunpack.c.l.s4 1966171168
        %v2959 = vunpack.c.0.s8 %v2958
        %v2960 = vlaneseq
        %v2961 = vshrl.u32 %v2960, 7
        %v2962 = vsub.s32 %v2959, %v2961
        %v2963 = vrot.slane %v2955, %v2962
        %v2965 = vunpack.c.l.s4 1966171168
        %v2966 = vunpack.c.0.s8 %v2965
        %v2967 = vlaneseq
        %v2968 = vshrl.u32 %v2967, 7
        %v2969 = vsub.s32 %v2966, %v2968
        %v2970 = vrot.slane %v2956, %v2969
        %v2971 = vcombine.high %v2963, %v2963
        %v2972 = vcombine.high %v2970, %v2970
        %v2974 = vunpack.c.l.s4 1966171168
        %v2975 = vunpack.c.0.s8 %v2974
        %v2976 = vlaneseq
        %v2977 = vshrl.u32 %v2976, 7
        %v2978 = vsub.s32 %v2975, %v2977
        %v2979 = vrot.slane %v2963, %v2978
        %v2981 = vunpack.c.l.s4 1966171168
        %v2982 = vunpack.c.0.s8 %v2981
        %v2983 = vlaneseq
        %v2984 = vshrl.u32 %v2983, 7
        %v2985 = vsub.s32 %v2982, %v2984
        %v2986 = vrot.slane %v2970, %v2985
        %v2988 = vunpack.c.l.s4 1966171168
        %v2989 = vunpack.c.0.s8 %v2988
        %v2990 = vlaneseq
        %v2991 = vshrl.u32 %v2990, 7
        %v2992 = vsub.s32 %v2989, %v2991
        %v2993 = vrot.slane %v2971, %v2992
        %v2995 = vunpack.c.l.s4 1966171168
        %v2996 = vunpack.c.0.s8 %v2995
        %v2997 = vlaneseq
        %v2998 = vshrl.u32 %v2997, 7
        %v2999 = vsub.s32 %v2996, %v2998
        %v3000 = vrot.slane %v2972, %v2999
        %v3001 = vcombine.high %v2979, %v2979
        %v3002 = vcombine.high %v2986, %v2986
        %v3003 = vcombine.high %v2993, %v2993
        %v3004 = vcombine.high %v3000, %v3000
        %v3005 = vlaneseq
        %v3006 = vshrl.u32 %v3005, 7
        %v3007 = vsub.s32 0, %v3006
        %v3008 = vrot.slane %v2629, %v3007
        %v3009 = vlaneseq
        %v3010 = vshrl.u32 %v3009, 7
        %v3011 = vsub.s32 1, %v3010
        %v3012 = vrot.slane %v2629, %v3011
        %v3013 = vlaneseq
        %v3014 = vshrl.u32 %v3013, 7
        %v3015 = vsub.s32 0, %v3014
        %v3016 = vrot.slane %v2643, %v3015
        %v3017 = vlaneseq
        %v3018 = vshrl.u32 %v3017, 7
        %v3019 = vsub.s32 1, %v3018
        %v3020 = vrot.slane %v2643, %v3019
        %v3021 = vlaneseq
        %v3022 = vshrl.u32 %v3021, 7
        %v3023 = vsub.s32 0, %v3022
        %v3024 = vrot.slane %v2651, %v3023
        %v3025 = vlaneseq
        %v3026 = vshrl.u32 %v3025, 7
        %v3027 = vsub.s32 1, %v3026
        %v3028 = vrot.slane %v2651, %v3027
        %v3029 = vlaneseq
        %v3030 = vshrl.u32 %v3029, 7
        %v3031 = vsub.s32 0, %v3030
        %v3032 = vrot.slane %v2653, %v3031
        %v3033 = vlaneseq
        %v3034 = vshrl.u32 %v3033, 7
        %v3035 = vsub.s32 1, %v3034
        %v3036 = vrot.slane %v2653, %v3035
        %v3037 = vlaneseq
        %v3038 = vshrl.u32 %v3037, 7
        %v3039 = vsub.s32 0, %v3038
        %v3040 = vrot.slane %v2636, %v3039
        %v3041 = vlaneseq
        %v3042 = vshrl.u32 %v3041, 7
        %v3043 = vsub.s32 1, %v3042
        %v3044 = vrot.slane %v2636, %v3043
        %v3045 = vlaneseq
        %v3046 = vshrl.u32 %v3045, 7
        %v3047 = vsub.s32 0, %v3046
        %v3048 = vrot.slane %v2650, %v3047
        %v3049 = vlaneseq
        %v3050 = vshrl.u32 %v3049, 7
        %v3051 = vsub.s32 1, %v3050
        %v3052 = vrot.slane %v2650, %v3051
        %v3053 = vlaneseq
        %v3054 = vshrl.u32 %v3053, 7
        %v3055 = vsub.s32 0, %v3054
        %v3056 = vrot.slane %v2652, %v3055
        %v3057 = vlaneseq
        %v3058 = vshrl.u32 %v3057, 7
        %v3059 = vsub.s32 1, %v3058
        %v3060 = vrot.slane %v2652, %v3059
        %v3061 = vlaneseq
        %v3062 = vshrl.u32 %v3061, 7
        %v3063 = vsub.s32 0, %v3062
        %v3064 = vrot.slane %v2654, %v3063
        %v3065 = vlaneseq
        %v3066 = vshrl.u32 %v3065, 7
        %v3067 = vsub.s32 1, %v3066
        %v3068 = vrot.slane %v2654, %v3067
        %v3069 = vlaneseq
        %v3070 = vshrl.u32 %v3069, 7
        %v3071 = vsub.s32 0, %v3070
        %v3072 = vrot.slane %v2679, %v3071
        %v3073 = vlaneseq
        %v3074 = vshrl.u32 %v3073, 7
        %v3075 = vsub.s32 1, %v3074
        %v3076 = vrot.slane %v2679, %v3075
        %v3077 = vlaneseq
        %v3078 = vshrl.u32 %v3077, 7
        %v3079 = vsub.s32 0, %v3078
        %v3080 = vrot.slane %v2693, %v3079
        %v3081 = vlaneseq
        %v3082 = vshrl.u32 %v3081, 7
        %v3083 = vsub.s32 1, %v3082
        %v3084 = vrot.slane %v2693, %v3083
        %v3085 = vlaneseq
        %v3086 = vshrl.u32 %v3085, 7
        %v3087 = vsub.s32 0, %v3086
        %v3088 = vrot.slane %v2701, %v3087
        %v3089 = vlaneseq
        %v3090 = vshrl.u32 %v3089, 7
        %v3091 = vsub.s32 1, %v3090
        %v3092 = vrot.slane %v2701, %v3091
        %v3093 = vlaneseq
        %v3094 = vshrl.u32 %v3093, 7
        %v3095 = vsub.s32 0, %v3094
        %v3096 = vrot.slane %v2703, %v3095
        %v3097 = vlaneseq
        %v3098 = vshrl.u32 %v3097, 7
        %v3099 = vsub.s32 1, %v3098
        %v3100 = vrot.slane %v2703, %v3099
        %v3101 = vlaneseq
        %v3102 = vshrl.u32 %v3101, 7
        %v3103 = vsub.s32 0, %v3102
        %v3104 = vrot.slane %v2686, %v3103
        %v3105 = vlaneseq
        %v3106 = vshrl.u32 %v3105, 7
        %v3107 = vsub.s32 1, %v3106
        %v3108 = vrot.slane %v2686, %v3107
        %v3109 = vlaneseq
        %v3110 = vshrl.u32 %v3109, 7
        %v3111 = vsub.s32 0, %v3110
        %v3112 = vrot.slane %v2700, %v3111
        %v3113 = vlaneseq
        %v3114 = vshrl.u32 %v3113, 7
        %v3115 = vsub.s32 1, %v3114
        %v3116 = vrot.slane %v2700, %v3115
        %v3117 = vlaneseq
        %v3118 = vshrl.u32 %v3117, 7
        %v3119 = vsub.s32 0, %v3118
        %v3120 = vrot.slane %v2702, %v3119
        %v3121 = vlaneseq
        %v3122 = vshrl.u32 %v3121, 7
        %v3123 = vsub.s32 1, %v3122
        %v3124 = vrot.slane %v2702, %v3123
        %v3125 = vlaneseq
        %v3126 = vshrl.u32 %v3125, 7
        %v3127 = vsub.s32 0, %v3126
        %v3128 = vrot.slane %v2704, %v3127
        %v3129 = vlaneseq
        %v3130 = vshrl.u32 %v3129, 7
        %v3131 = vsub.s32 1, %v3130
        %v3132 = vrot.slane %v2704, %v3131
        %v3133 = vlaneseq
        %v3134 = vshrl.u32 %v3133, 7
        %v3135 = vsub.s32 0, %v3134
        %v3136 = vrot.slane %v2729, %v3135
        %v3137 = vlaneseq
        %v3138 = vshrl.u32 %v3137, 7
        %v3139 = vsub.s32 1, %v3138
        %v3140 = vrot.slane %v2729, %v3139
        %v3141 = vlaneseq
        %v3142 = vshrl.u32 %v3141, 7
        %v3143 = vsub.s32 0, %v3142
        %v3144 = vrot.slane %v2743, %v3143
        %v3145 = vlaneseq
        %v3146 = vshrl.u32 %v3145, 7
        %v3147 = vsub.s32 1, %v3146
        %v3148 = vrot.slane %v2743, %v3147
        %v3149 = vlaneseq
        %v3150 = vshrl.u32 %v3149, 7
        %v3151 = vsub.s32 0, %v3150
        %v3152 = vrot.slane %v2751, %v3151
        %v3153 = vlaneseq
        %v3154 = vshrl.u32 %v3153, 7
        %v3155 = vsub.s32 1, %v3154
        %v3156 = vrot.slane %v2751, %v3155
        %v3157 = vlaneseq
        %v3158 = vshrl.u32 %v3157, 7
        %v3159 = vsub.s32 0, %v3158
        %v3160 = vrot.slane %v2753, %v3159
        %v3161 = vlaneseq
        %v3162 = vshrl.u32 %v3161, 7
        %v3163 = vsub.s32 1, %v3162
        %v3164 = vrot.slane %v2753, %v3163
        %v3165 = vlaneseq
        %v3166 = vshrl.u32 %v3165, 7
        %v3167 = vsub.s32 0, %v3166
        %v3168 = vrot.slane %v2736, %v3167
        %v3169 = vlaneseq
        %v3170 = vshrl.u32 %v3169, 7
        %v3171 = vsub.s32 1, %v3170
        %v3172 = vrot.slane %v2736, %v3171
        %v3173 = vlaneseq
        %v3174 = vshrl.u32 %v3173, 7
        %v3175 = vsub.s32 0, %v3174
        %v3176 = vrot.slane %v2750, %v3175
        %v3177 = vlaneseq
        %v3178 = vshrl.u32 %v3177, 7
        %v3179 = vsub.s32 1, %v3178
        %v3180 = vrot.slane %v2750, %v3179
        %v3181 = vlaneseq
        %v3182 = vshrl.u32 %v3181, 7
        %v3183 = vsub.s32 0, %v3182
        %v3184 = vrot.slane %v2752, %v3183
        %v3185 = vlaneseq
        %v3186 = vshrl.u32 %v3185, 7
        %v3187 = vsub.s32 1, %v3186
        %v3188 = vrot.slane %v2752, %v3187
        %v3189 = vlaneseq
        %v3190 = vshrl.u32 %v3189, 7
        %v3191 = vsub.s32 0, %v3190
        %v3192 = vrot.slane %v2754, %v3191
        %v3193 = vlaneseq
        %v3194 = vshrl.u32 %v3193, 7
        %v3195 = vsub.s32 1, %v3194
        %v3196 = vrot.slane %v2754, %v3195
        %v3197 = vlaneseq
        %v3198 = vshrl.u32 %v3197, 7
        %v3199 = vsub.s32 0, %v3198
        %v3200 = vrot.slane %v2779, %v3199
        %v3201 = vlaneseq
        %v3202 = vshrl.u32 %v3201, 7
        %v3203 = vsub.s32 1, %v3202
        %v3204 = vrot.slane %v2779, %v3203
        %v3205 = vlaneseq
        %v3206 = vshrl.u32 %v3205, 7
        %v3207 = vsub.s32 0, %v3206
        %v3208 = vrot.slane %v2793, %v3207
        %v3209 = vlaneseq
        %v3210 = vshrl.u32 %v3209, 7
        %v3211 = vsub.s32 1, %v3210
        %v3212 = vrot.slane %v2793, %v3211
        %v3213 = vlaneseq
        %v3214 = vshrl.u32 %v3213, 7
        %v3215 = vsub.s32 0, %v3214
        %v3216 = vrot.slane %v2801, %v3215
        %v3217 = vlaneseq
        %v3218 = vshrl.u32 %v3217, 7
        %v3219 = vsub.s32 1, %v3218
        %v3220 = vrot.slane %v2801, %v3219
        %v3221 = vlaneseq
        %v3222 = vshrl.u32 %v3221, 7
        %v3223 = vsub.s32 0, %v3222
        %v3224 = vrot.slane %v2803, %v3223
        %v3225 = vlaneseq
        %v3226 = vshrl.u32 %v3225, 7
        %v3227 = vsub.s32 1, %v3226
        %v3228 = vrot.slane %v2803, %v3227
        %v3229 = vlaneseq
        %v3230 = vshrl.u32 %v3229, 7
        %v3231 = vsub.s32 0, %v3230
        %v3232 = vrot.slane %v2786, %v3231
        %v3233 = vlaneseq
        %v3234 = vshrl.u32 %v3233, 7
        %v3235 = vsub.s32 1, %v3234
        %v3236 = vrot.slane %v2786, %v3235
        %v3237 = vlaneseq
        %v3238 = vshrl.u32 %v3237, 7
        %v3239 = vsub.s32 0, %v3238
        %v3240 = vrot.slane %v2800, %v3239
        %v3241 = vlaneseq
        %v3242 = vshrl.u32 %v3241, 7
        %v3243 = vsub.s32 1, %v3242
        %v3244 = vrot.slane %v2800, %v3243
        %v3245 = vlaneseq
        %v3246 = vshrl.u32 %v3245, 7
        %v3247 = vsub.s32 0, %v3246
        %v3248 = vrot.slane %v2802, %v3247
        %v3249 = vlaneseq
        %v3250 = vshrl.u32 %v3249, 7
        %v3251 = vsub.s32 1, %v3250
        %v3252 = vrot.slane %v2802, %v3251
        %v3253 = vlaneseq
        %v3254 = vshrl.u32 %v3253, 7
        %v3255 = vsub.s32 0, %v3254
        %v3256 = vrot.slane %v2804, %v3255
        %v3257 = vlaneseq
        %v3258 = vshrl.u32 %v3257, 7
        %v3259 = vsub.s32 1, %v3258
        %v3260 = vrot.slane %v2804, %v3259
        %v3261 = vlaneseq
        %v3262 = vshrl.u32 %v3261, 7
        %v3263 = vsub.s32 0, %v3262
        %v3264 = vrot.slane %v2829, %v3263
        %v3265 = vlaneseq
        %v3266 = vshrl.u32 %v3265, 7
        %v3267 = vsub.s32 1, %v3266
        %v3268 = vrot.slane %v2829, %v3267
        %v3269 = vlaneseq
        %v3270 = vshrl.u32 %v3269, 7
        %v3271 = vsub.s32 0, %v3270
        %v3272 = vrot.slane %v2843, %v3271
        %v3273 = vlaneseq
        %v3274 = vshrl.u32 %v3273, 7
        %v3275 = vsub.s32 1, %v3274
        %v3276 = vrot.slane %v2843, %v3275
        %v3277 = vlaneseq
        %v3278 = vshrl.u32 %v3277, 7
        %v3279 = vsub.s32 0, %v3278
        %v3280 = vrot.slane %v2851, %v3279
        %v3281 = vlaneseq
        %v3282 = vshrl.u32 %v3281, 7
        %v3283 = vsub.s32 1, %v3282
        %v3284 = vrot.slane %v2851, %v3283
        %v3285 = vlaneseq
        %v3286 = vshrl.u32 %v3285, 7
        %v3287 = vsub.s32 0, %v3286
        %v3288 = vrot.slane %v2853, %v3287
        %v3289 = vlaneseq
        %v3290 = vshrl.u32 %v3289, 7
        %v3291 = vsub.s32 1, %v3290
        %v3292 = vrot.slane %v2853, %v3291
        %v3293 = vlaneseq
        %v3294 = vshrl.u32 %v3293, 7
        %v3295 = vsub.s32 0, %v3294
        %v3296 = vrot.slane %v2836, %v3295
        %v3297 = vlaneseq
        %v3298 = vshrl.u32 %v3297, 7
        %v3299 = vsub.s32 1, %v3298
        %v3300 = vrot.slane %v2836, %v3299
        %v3301 = vlaneseq
        %v3302 = vshrl.u32 %v3301, 7
        %v3303 = vsub.s32 0, %v3302
        %v3304 = vrot.slane %v2850, %v3303
        %v3305 = vlaneseq
        %v3306 = vshrl.u32 %v3305, 7
        %v3307 = vsub.s32 1, %v3306
        %v3308 = vrot.slane %v2850, %v3307
        %v3309 = vlaneseq
        %v3310 = vshrl.u32 %v3309, 7
        %v3311 = vsub.s32 0, %v3310
        %v3312 = vrot.slane %v2852, %v3311
        %v3313 = vlaneseq
        %v3314 = vshrl.u32 %v3313, 7
        %v3315 = vsub.s32 1, %v3314
        %v3316 = vrot.slane %v2852, %v3315
        %v3317 = vlaneseq
        %v3318 = vshrl.u32 %v3317, 7
        %v3319 = vsub.s32 0, %v3318
        %v3320 = vrot.slane %v2854, %v3319
        %v3321 = vlaneseq
        %v3322 = vshrl.u32 %v3321, 7
        %v3323 = vsub.s32 1, %v3322
        %v3324 = vrot.slane %v2854, %v3323
        %v3325 = vlaneseq
        %v3326 = vshrl.u32 %v3325, 7
        %v3327 = vsub.s32 0, %v3326
        %v3328 = vrot.slane %v2879, %v3327
        %v3329 = vlaneseq
        %v3330 = vshrl.u32 %v3329, 7
        %v3331 = vsub.s32 1, %v3330
        %v3332 = vrot.slane %v2879, %v3331
        %v3333 = vlaneseq
        %v3334 = vshrl.u32 %v3333, 7
        %v3335 = vsub.s32 0, %v3334
        %v3336 = vrot.slane %v2893, %v3335
        %v3337 = vlaneseq
        %v3338 = vshrl.u32 %v3337, 7
        %v3339 = vsub.s32 1, %v3338
        %v3340 = vrot.slane %v2893, %v3339
        %v3341 = vlaneseq
        %v3342 = vshrl.u32 %v3341, 7
        %v3343 = vsub.s32 0, %v3342
        %v3344 = vrot.slane %v2901, %v3343
        %v3345 = vlaneseq
        %v3346 = vshrl.u32 %v3345, 7
        %v3347 = vsub.s32 1, %v3346
        %v3348 = vrot.slane %v2901, %v3347
        %v3349 = vlaneseq
        %v3350 = vshrl.u32 %v3349, 7
        %v3351 = vsub.s32 0, %v3350
        %v3352 = vrot.slane %v2903, %v3351
        %v3353 = vlaneseq
        %v3354 = vshrl.u32 %v3353, 7
        %v3355 = vsub.s32 1, %v3354
        %v3356 = vrot.slane %v2903, %v3355
        %v3357 = vlaneseq
        %v3358 = vshrl.u32 %v3357, 7
        %v3359 = vsub.s32 0, %v3358
        %v3360 = vrot.slane %v2886, %v3359
        %v3361 = vlaneseq
        %v3362 = vshrl.u32 %v3361, 7
        %v3363 = vsub.s32 1, %v3362
        %v3364 = vrot.slane %v2886, %v3363
        %v3365 = vlaneseq
        %v3366 = vshrl.u32 %v3365, 7
        %v3367 = vsub.s32 0, %v3366
        %v3368 = vrot.slane %v2900, %v3367
        %v3369 = vlaneseq
        %v3370 = vshrl.u32 %v3369, 7
        %v3371 = vsub.s32 1, %v3370
        %v3372 = vrot.slane %v2900, %v3371
        %v3373 = vlaneseq
        %v3374 = vshrl.u32 %v3373, 7
        %v3375 = vsub.s32 0, %v3374
        %v3376 = vrot.slane %v2902, %v3375
        %v3377 = vlaneseq
        %v3378 = vshrl.u32 %v3377, 7
        %v3379 = vsub.s32 1, %v3378
        %v3380 = vrot.slane %v2902, %v3379
        %v3381 = vlaneseq
        %v3382 = vshrl.u32 %v3381, 7
        %v3383 = vsub.s32 0, %v3382
        %v3384 = vrot.slane %v2904, %v3383
        %v3385 = vlaneseq
        %v3386 = vshrl.u32 %v3385, 7
        %v3387 = vsub.s32 1, %v3386
        %v3388 = vrot.slane %v2904, %v3387
        %v3389 = vlaneseq
        %v3390 = vshrl.u32 %v3389, 7
        %v3391 = vsub.s32 0, %v3390
        %v3392 = vrot.slane %v2929, %v3391
        %v3393 = vlaneseq
        %v3394 = vshrl.u32 %v3393, 7
        %v3395 = vsub.s32 1, %v3394
        %v3396 = vrot.slane %v2929, %v3395
        %v3397 = vlaneseq
        %v3398 = vshrl.u32 %v3397, 7
        %v3399 = vsub.s32 0, %v3398
        %v3400 = vrot.slane %v2943, %v3399
        %v3401 = vlaneseq
        %v3402 = vshrl.u32 %v3401, 7
        %v3403 = vsub.s32 1, %v3402
        %v3404 = vrot.slane %v2943, %v3403
        %v3405 = vlaneseq
        %v3406 = vshrl.u32 %v3405, 7
        %v3407 = vsub.s32 0, %v3406
        %v3408 = vrot.slane %v2951, %v3407
        %v3409 = vlaneseq
        %v3410 = vshrl.u32 %v3409, 7
        %v3411 = vsub.s32 1, %v3410
        %v3412 = vrot.slane %v2951, %v3411
        %v3413 = vlaneseq
        %v3414 = vshrl.u32 %v3413, 7
        %v3415 = vsub.s32 0, %v3414
        %v3416 = vrot.slane %v2953, %v3415
        %v3417 = vlaneseq
        %v3418 = vshrl.u32 %v3417, 7
        %v3419 = vsub.s32 1, %v3418
        %v3420 = vrot.slane %v2953, %v3419
        %v3421 = vlaneseq
        %v3422 = vshrl.u32 %v3421, 7
        %v3423 = vsub.s32 0, %v3422
        %v3424 = vrot.slane %v2936, %v3423
        %v3425 = vlaneseq
        %v3426 = vshrl.u32 %v3425, 7
        %v3427 = vsub.s32 1, %v3426
        %v3428 = vrot.slane %v2936, %v3427
        %v3429 = vlaneseq
        %v3430 = vshrl.u32 %v3429, 7
        %v3431 = vsub.s32 0, %v3430
        %v3432 = vrot.slane %v2950, %v3431
        %v3433 = vlaneseq
        %v3434 = vshrl.u32 %v3433, 7
        %v3435 = vsub.s32 1, %v3434
        %v3436 = vrot.slane %v2950, %v3435
        %v3437 = vlaneseq
        %v3438 = vshrl.u32 %v3437, 7
        %v3439 = vsub.s32 0, %v3438
        %v3440 = vrot.slane %v2952, %v3439
        %v3441 = vlaneseq
        %v3442 = vshrl.u32 %v3441, 7
        %v3443 = vsub.s32 1, %v3442
        %v3444 = vrot.slane %v2952, %v3443
        %v3445 = vlaneseq
        %v3446 = vshrl.u32 %v3445, 7
        %v3447 = vsub.s32 0, %v3446
        %v3448 = vrot.slane %v2954, %v3447
        %v3449 = vlaneseq
        %v3450 = vshrl.u32 %v3449, 7
        %v3451 = vsub.s32 1, %v3450
        %v3452 = vrot.slane %v2954, %v3451
        %v3453 = vlaneseq
        %v3454 = vshrl.u32 %v3453, 7
        %v3455 = vsub.s32 0, %v3454
        %v3456 = vrot.slane %v2979, %v3455
        %v3457 = vlaneseq
        %v3458 = vshrl.u32 %v3457, 7
        %v3459 = vsub.s32 1, %v3458
        %v3460 = vrot.slane %v2979, %v3459
        %v3461 = vlaneseq
        %v3462 = vshrl.u32 %v3461, 7
        %v3463 = vsub.s32 0, %v3462
        %v3464 = vrot.slane %v2993, %v3463
        %v3465 = vlaneseq
        %v3466 = vshrl.u32 %v3465, 7
        %v3467 = vsub.s32 1, %v3466
        %v3468 = vrot.slane %v2993, %v3467
        %v3469 = vlaneseq
        %v3470 = vshrl.u32 %v3469, 7
        %v3471 = vsub.s32 0, %v3470
        %v3472 = vrot.slane %v3001, %v3471
        %v3473 = vlaneseq
        %v3474 = vshrl.u32 %v3473, 7
        %v3475 = vsub.s32 1, %v3474
        %v3476 = vrot.slane %v3001, %v3475
        %v3477 = vlaneseq
        %v3478 = vshrl.u32 %v3477, 7
        %v3479 = vsub.s32 0, %v3478
        %v3480 = vrot.slane %v3003, %v3479
        %v3481 = vlaneseq
        %v3482 = vshrl.u32 %v3481, 7
        %v3483 = vsub.s32 1, %v3482
        %v3484 = vrot.slane %v3003, %v3483
        %v3485 = vlaneseq
        %v3486 = vshrl.u32 %v3485, 7
        %v3487 = vsub.s32 0, %v3486
        %v3488 = vrot.slane %v2986, %v3487
        %v3489 = vlaneseq
        %v3490 = vshrl.u32 %v3489, 7
        %v3491 = vsub.s32 1, %v3490
        %v3492 = vrot.slane %v2986, %v3491
        %v3493 = vlaneseq
        %v3494 = vshrl.u32 %v3493, 7
        %v3495 = vsub.s32 0, %v3494
        %v3496 = vrot.slane %v3000, %v3495
        %v3497 = vlaneseq
        %v3498 = vshrl.u32 %v3497, 7
        %v3499 = vsub.s32 1, %v3498
        %v3500 = vrot.slane %v3000, %v3499
        %v3501 = vlaneseq
        %v3502 = vshrl.u32 %v3501, 7
        %v3503 = vsub.s32 0, %v3502
        %v3504 = vrot.slane %v3002, %v3503
        %v3505 = vlaneseq
        %v3506 = vshrl.u32 %v3505, 7
        %v3507 = vsub.s32 1, %v3506
        %v3508 = vrot.slane %v3002, %v3507
        %v3509 = vlaneseq
        %v3510 = vshrl.u32 %v3509, 7
        %v3511 = vsub.s32 0, %v3510
        %v3512 = vrot.slane %v3004, %v3511
        %v3513 = vlaneseq
        %v3514 = vshrl.u32 %v3513, 7
        %v3515 = vsub.s32 1, %v3514
        %v3516 = vrot.slane %v3004, %v3515
        %v3645 = vmul.f32 %v1875, %v3008
        %v3646 = vmul.f32 %v1875, %v3012
        %v3647 = vmul.f32 %v1879, %v3008
        %v3648 = vmul.f32 %v1879, %v3012
        %v3649 = vmul.f32 %v1886, %v3016
        %v3650 = vmul.f32 %v1886, %v3020
        %v3651 = vmul.f32 %v1890, %v3016
        %v3652 = vmul.f32 %v1890, %v3020
        %v3653 = vmul.f32 %v1897, %v3024
        %v3654 = vmul.f32 %v1897, %v3028
        %v3655 = vmul.f32 %v1901, %v3024
        %v3656 = vmul.f32 %v1901, %v3028
        %v3657 = vmul.f32 %v1908, %v3032
        %v3658 = vmul.f32 %v1908, %v3036
        %v3659 = vmul.f32 %v1912, %v3032
        %v3660 = vmul.f32 %v1912, %v3036
        %v3661 = vmul.f32 %v1919, %v3040
        %v3662 = vmul.f32 %v1919, %v3044
        %v3663 = vmul.f32 %v1923, %v3040
        %v3664 = vmul.f32 %v1923, %v3044
        %v3665 = vmul.f32 %v1930, %v3048
        %v3666 = vmul.f32 %v1930, %v3052
        %v3667 = vmul.f32 %v1934, %v3048
        %v3668 = vmul.f32 %v1934, %v3052
        %v3669 = vmul.f32 %v1941, %v3056
        %v3670 = vmul.f32 %v1941, %v3060
        %v3671 = vmul.f32 %v1945, %v3056
        %v3672 = vmul.f32 %v1945, %v3060
        %v3673 = vmul.f32 %v1952, %v3064
        %v3674 = vmul.f32 %v1952, %v3068
        %v3675 = vmul.f32 %v1956, %v3064
        %v3676 = vmul.f32 %v1956, %v3068
        %v3677 = vmul.f32 %v1963, %v3072
        %v3678 = vmul.f32 %v1963, %v3076
        %v3679 = vmul.f32 %v1967, %v3072
        %v3680 = vmul.f32 %v1967, %v3076
        %v3681 = vmul.f32 %v1974, %v3080
        %v3682 = vmul.f32 %v1974, %v3084
        %v3683 = vmul.f32 %v1978, %v3080
        %v3684 = vmul.f32 %v1978, %v3084
        %v3685 = vmul.f32 %v1985, %v3088
        %v3686 = vmul.f32 %v1985, %v3092
        %v3687 = vmul.f32 %v1989, %v3088
        %v3688 = vmul.f32 %v1989, %v3092
        %v3689 = vmul.f32 %v1996, %v3096
        %v3690 = vmul.f32 %v1996, %v3100
        %v3691 = vmul.f32 %v2000, %v3096
        %v3692 = vmul.f32 %v2000, %v3100
        %v3693 = vmul.f32 %v2007, %v3104
        %v3694 = vmul.f32 %v2007, %v3108
        %v3695 = vmul.f32 %v2011, %v3104
        %v3696 = vmul.f32 %v2011, %v3108
        %v3697 = vmul.f32 %v2018, %v3112
        %v3698 = vmul.f32 %v2018, %v3116
        %v3699 = vmul.f32 %v2022, %v3112
        %v3700 = vmul.f32 %v2022, %v3116
        %v3701 = vmul.f32 %v2029, %v3120
        %v3702 = vmul.f32 %v2029, %v3124
        %v3703 = vmul.f32 %v2033, %v3120
        %v3704 = vmul.f32 %v2033, %v3124
        %v3705 = vmul.f32 %v2040, %v3128
        %v3706 = vmul.f32 %v2040, %v3132
        %v3707 = vmul.f32 %v2044, %v3128
        %v3708 = vmul.f32 %v2044, %v3132
        %v3709 = vmul.f32 %v2051, %v3136
        %v3710 = vmul.f32 %v2051, %v3140
        %v3711 = vmul.f32 %v2055, %v3136
        %v3712 = vmul.f32 %v2055, %v3140
        %v3713 = vmul.f32 %v2062, %v3144
        %v3714 = vmul.f32 %v2062, %v3148
        %v3715 = vmul.f32 %v2066, %v3144
        %v3716 = vmul.f32 %v2066, %v3148
        %v3717 = vmul.f32 %v2073, %v3152
        %v3718 = vmul.f32 %v2073, %v3156
        %v3719 = vmul.f32 %v2077, %v3152
        %v3720 = vmul.f32 %v2077, %v3156
        %v3721 = vmul.f32 %v2084, %v3160
        %v3722 = vmul.f32 %v2084, %v3164
        %v3723 = vmul.f32 %v2088, %v3160
        %v3724 = vmul.f32 %v2088, %v3164
        %v3725 = vmul.f32 %v2095, %v3168
        %v3726 = vmul.f32 %v2095, %v3172
        %v3727 = vmul.f32 %v2099, %v3168
        %v3728 = vmul.f32 %v2099, %v3172
        %v3729 = vmul.f32 %v2106, %v3176
        %v3730 = vmul.f32 %v2106, %v3180
        %v3731 = vmul.f32 %v2110, %v3176
        %v3732 = vmul.f32 %v2110, %v3180
        %v3733 = vmul.f32 %v2117, %v3184
        %v3734 = vmul.f32 %v2117, %v3188
        %v3735 = vmul.f32 %v2121, %v3184
        %v3736 = vmul.f32 %v2121, %v3188
        %v3737 = vmul.f32 %v2128, %v3192
        %v3738 = vmul.f32 %v2128, %v3196
        %v3739 = vmul.f32 %v2132, %v3192
        %v3740 = vmul.f32 %v2132, %v3196
        %v3741 = vmul.f32 %v2139, %v3200
        %v3742 = vmul.f32 %v2139, %v3204
        %v3743 = vmul.f32 %v2143, %v3200
        %v3744 = vmul.f32 %v2143, %v3204
        %v3745 = vmul.f32 %v2150, %v3208
        %v3746 = vmul.f32 %v2150, %v3212
        %v3747 = vmul.f32 %v2154, %v3208
        %v3748 = vmul.f32 %v2154, %v3212
        %v3749 = vmul.f32 %v2161, %v3216
        %v3750 = vmul.f32 %v2161, %v3220
        %v3751 = vmul.f32 %v2165, %v3216
        %v3752 = vmul.f32 %v2165, %v3220
        %v3753 = vmul.f32 %v2172, %v3224
        %v3754 = vmul.f32 %v2172, %v3228
        %v3755 = vmul.f32 %v2176, %v3224
        %v3756 = vmul.f32 %v2176, %v3228
        %v3757 = vmul.f32 %v2183, %v3232
        %v3758 = vmul.f32 %v2183, %v3236
        %v3759 = vmul.f32 %v2187, %v3232
        %v3760 = vmul.f32 %v2187, %v3236
        %v3761 = vmul.f32 %v2194, %v3240
        %v3762 = vmul.f32 %v2194, %v3244
        %v3763 = vmul.f32 %v2198, %v3240
        %v3764 = vmul.f32 %v2198, %v3244
        %v3765 = vmul.f32 %v2205, %v3248
        %v3766 = vmul.f32 %v2205, %v3252
        %v3767 = vmul.f32 %v2209, %v3248
        %v3768 = vmul.f32 %v2209, %v3252
        %v3769 = vmul.f32 %v2216, %v3256
        %v3770 = vmul.f32 %v2216, %v3260
        %v3771 = vmul.f32 %v2220, %v3256
        %v3772 = vmul.f32 %v2220, %v3260
        %v3773 = vmul.f32 %v2227, %v3264
        %v3774 = vmul.f32 %v2227, %v3268
        %v3775 = vmul.f32 %v2231, %v3264
        %v3776 = vmul.f32 %v2231, %v3268
        %v3777 = vmul.f32 %v2238, %v3272
        %v3778 = vmul.f32 %v2238, %v3276
        %v3779 = vmul.f32 %v2242, %v3272
        %v3780 = vmul.f32 %v2242, %v3276
        %v3781 = vmul.f32 %v2249, %v3280
        %v3782 = vmul.f32 %v2249, %v3284
        %v3783 = vmul.f32 %v2253, %v3280
        %v3784 = vmul.f32 %v2253, %v3284
        %v3785 = vmul.f32 %v2260, %v3288
        %v3786 = vmul.f32 %v2260, %v3292
        %v3787 = vmul.f32 %v2264, %v3288
        %v3788 = vmul.f32 %v2264, %v3292
        %v3789 = vmul.f32 %v2271, %v3296
        %v3790 = vmul.f32 %v2271, %v3300
        %v3791 = vmul.f32 %v2275, %v3296
        %v3792 = vmul.f32 %v2275, %v3300
        %v3793 = vmul.f32 %v2282, %v3304
        %v3794 = vmul.f32 %v2282, %v3308
        %v3795 = vmul.f32 %v2286, %v3304
        %v3796 = vmul.f32 %v2286, %v3308
        %v3797 = vmul.f32 %v2293, %v3312
        %v3798 = vmul.f32 %v2293, %v3316
        %v3799 = vmul.f32 %v2297, %v3312
        %v3800 = vmul.f32 %v2297, %v3316
        %v3801 = vmul.f32 %v2304, %v3320
        %v3802 = vmul.f32 %v2304, %v3324
        %v3803 = vmul.f32 %v2308, %v3320
        %v3804 = vmul.f32 %v2308, %v3324
        %v3805 = vmul.f32 %v2315, %v3328
        %v3806 = vmul.f32 %v2315, %v3332
        %v3807 = vmul.f32 %v2319, %v3328
        %v3808 = vmul.f32 %v2319, %v3332
        %v3809 = vmul.f32 %v2326, %v3336
        %v3810 = vmul.f32 %v2326, %v3340
        %v3811 = vmul.f32 %v2330, %v3336
        %v3812 = vmul.f32 %v2330, %v3340
        %v3813 = vmul.f32 %v2337, %v3344
        %v3814 = vmul.f32 %v2337, %v3348
        %v3815 = vmul.f32 %v2341, %v3344
        %v3816 = vmul.f32 %v2341, %v3348
        %v3817 = vmul.f32 %v2348, %v3352
        %v3818 = vmul.f32 %v2348, %v3356
        %v3819 = vmul.f32 %v2352, %v3352
        %v3820 = vmul.f32 %v2352, %v3356
        %v3821 = vmul.f32 %v2359, %v3360
        %v3822 = vmul.f32 %v2359, %v3364
        %v3823 = vmul.f32 %v2363, %v3360
        %v3824 = vmul.f32 %v2363, %v3364
        %v3825 = vmul.f32 %v2370, %v3368
        %v3826 = vmul.f32 %v2370, %v3372
        %v3827 = vmul.f32 %v2374, %v3368
        %v3828 = vmul.f32 %v2374, %v3372
        %v3829 = vmul.f32 %v2381, %v3376
        %v3830 = vmul.f32 %v2381, %v3380
        %v3831 = vmul.f32 %v2385, %v3376
        %v3832 = vmul.f32 %v2385, %v3380
        %v3833 = vmul.f32 %v2392, %v3384
        %v3834 = vmul.f32 %v2392, %v3388
        %v3835 = vmul.f32 %v2396, %v3384
        %v3836 = vmul.f32 %v2396, %v3388
        %v3837 = vmul.f32 %v2403, %v3392
        %v3838 = vmul.f32 %v2403, %v3396
        %v3839 = vmul.f32 %v2407, %v3392
        %v3840 = vmul.f32 %v2407, %v3396
        %v3841 = vmul.f32 %v2414, %v3400
        %v3842 = vmul.f32 %v2414, %v3404
        %v3843 = vmul.f32 %v2418, %v3400
        %v3844 = vmul.f32 %v2418, %v3404
        %v3845 = vmul.f32 %v2425, %v3408
        %v3846 = vmul.f32 %v2425, %v3412
        %v3847 = vmul.f32 %v2429, %v3408
        %v3848 = vmul.f32 %v2429, %v3412
        %v3849 = vmul.f32 %v2436, %v3416
        %v3850 = vmul.f32 %v2436, %v3420
        %v3851 = vmul.f32 %v2440, %v3416
        %v3852 = vmul.f32 %v2440, %v3420
        %v3853 = vmul.f32 %v2447, %v3424
        %v3854 = vmul.f32 %v2447, %v3428
        %v3855 = vmul.f32 %v2451, %v3424
        %v3856 = vmul.f32 %v2451, %v3428
        %v3857 = vmul.f32 %v2458, %v3432
        %v3858 = vmul.f32 %v2458, %v3436
        %v3859 = vmul.f32 %v2462, %v3432
        %v3860 = vmul.f32 %v2462, %v3436
        %v3861 = vmul.f32 %v2469, %v3440
        %v3862 = vmul.f32 %v2469, %v3444
        %v3863 = vmul.f32 %v2473, %v3440
        %v3864 = vmul.f32 %v2473, %v3444
        %v3865 = vmul.f32 %v2480, %v3448
        %v3866 = vmul.f32 %v2480, %v3452
        %v3867 = vmul.f32 %v2484, %v3448
        %v3868 = vmul.f32 %v2484, %v3452
        %v3869 = vmul.f32 %v2491, %v3456
        %v3870 = vmul.f32 %v2491, %v3460
        %v3871 = vmul.f32 %v2495, %v3456
        %v3872 = vmul.f32 %v2495, %v3460
        %v3873 = vmul.f32 %v2502, %v3464
        %v3874 = vmul.f32 %v2502, %v3468
        %v3875 = vmul.f32 %v2506, %v3464
        %v3876 = vmul.f32 %v2506, %v3468
        %v3877 = vmul.f32 %v2513, %v3472
        %v3878 = vmul.f32 %v2513, %v3476
        %v3879 = vmul.f32 %v2517, %v3472
        %v3880 = vmul.f32 %v2517, %v3476
        %v3881 = vmul.f32 %v2524, %v3480
        %v3882 = vmul.f32 %v2524, %v3484
        %v3883 = vmul.f32 %v2528, %v3480
        %v3884 = vmul.f32 %v2528, %v3484
        %v3885 = vmul.f32 %v2535, %v3488
        %v3886 = vmul.f32 %v2535, %v3492
        %v3887 = vmul.f32 %v2539, %v3488
        %v3888 = vmul.f32 %v2539, %v3492
        %v3889 = vmul.f32 %v2546, %v3496
        %v3890 = vmul.f32 %v2546, %v3500
        %v3891 = vmul.f32 %v2550, %v3496
        %v3892 = vmul.f32 %v2550, %v3500
        %v3893 = vmul.f32 %v2557, %v3504
        %v3894 = vmul.f32 %v2557, %v3508
        %v3895 = vmul.f32 %v2561, %v3504
        %v3896 = vmul.f32 %v2561, %v3508
        %v3897 = vmul.f32 %v2568, %v3512
        %v3898 = vmul.f32 %v2568, %v3516
        %v3899 = vmul.f32 %v2572, %v3512
        %v3900 = vmul.f32 %v2572, %v3516
        %3901 = vst [vmem:[#allocation5] sm:$0xff] %v3645
        %3902 = vst [vmem:[#allocation5 + $0x8] sm:$0xff] %v3646
        %3903 = vst [vmem:[#allocation5 + $0x10] sm:$0xff] %v3647
        %3904 = vst [vmem:[#allocation5 + $0x18] sm:$0xff] %v3648
        %3905 = vst [vmem:[#allocation5 + $0x20] sm:$0xff] %v3649
        %3906 = vst [vmem:[#allocation5 + $0x28] sm:$0xff] %v3650
        %3907 = vst [vmem:[#allocation5 + $0x30] sm:$0xff] %v3651
        %3908 = vst [vmem:[#allocation5 + $0x38] sm:$0xff] %v3652
        %3909 = vst [vmem:[#allocation5 + $0x40] sm:$0xff] %v3653
        %3910 = vst [vmem:[#allocation5 + $0x48] sm:$0xff] %v3654
        %3911 = vst [vmem:[#allocation5 + $0x50] sm:$0xff] %v3655
        %3912 = vst [vmem:[#allocation5 + $0x58] sm:$0xff] %v3656
        %3913 = vst [vmem:[#allocation5 + $0x60] sm:$0xff] %v3657
        %3914 = vst [vmem:[#allocation5 + $0x68] sm:$0xff] %v3658
        %3915 = vst [vmem:[#allocation5 + $0x70] sm:$0xff] %v3659
        %3916 = vst [vmem:[#allocation5 + $0x78] sm:$0xff] %v3660
        %3917 = vst [vmem:[#allocation5 + $0x80] sm:$0xff] %v3661
        %3918 = vst [vmem:[#allocation5 + $0x88] sm:$0xff] %v3662
        %3919 = vst [vmem:[#allocation5 + $0x90] sm:$0xff] %v3663
        %3920 = vst [vmem:[#allocation5 + $0x98] sm:$0xff] %v3664
        %3921 = vst [vmem:[#allocation5 + $0xa0] sm:$0xff] %v3665
        %3922 = vst [vmem:[#allocation5 + $0xa8] sm:$0xff] %v3666
        %3923 = vst [vmem:[#allocation5 + $0xb0] sm:$0xff] %v3667
        %3924 = vst [vmem:[#allocation5 + $0xb8] sm:$0xff] %v3668
        %3925 = vst [vmem:[#allocation5 + $0xc0] sm:$0xff] %v3669
        %3926 = vst [vmem:[#allocation5 + $0xc8] sm:$0xff] %v3670
        %3927 = vst [vmem:[#allocation5 + $0xd0] sm:$0xff] %v3671
        %3928 = vst [vmem:[#allocation5 + $0xd8] sm:$0xff] %v3672
        %3929 = vst [vmem:[#allocation5 + $0xe0] sm:$0xff] %v3673
        %3930 = vst [vmem:[#allocation5 + $0xe8] sm:$0xff] %v3674
        %3931 = vst [vmem:[#allocation5 + $0xf0] sm:$0xff] %v3675
        %3932 = vst [vmem:[#allocation5 + $0xf8] sm:$0xff] %v3676
        %3933 = vst [vmem:[#allocation5 + $0x100] sm:$0xff] %v3677
        %3934 = vst [vmem:[#allocation5 + $0x108] sm:$0xff] %v3678
        %3935 = vst [vmem:[#allocation5 + $0x110] sm:$0xff] %v3679
        %3936 = vst [vmem:[#allocation5 + $0x118] sm:$0xff] %v3680
        %3937 = vst [vmem:[#allocation5 + $0x120] sm:$0xff] %v3681
        %3938 = vst [vmem:[#allocation5 + $0x128] sm:$0xff] %v3682
        %3939 = vst [vmem:[#allocation5 + $0x130] sm:$0xff] %v3683
        %3940 = vst [vmem:[#allocation5 + $0x138] sm:$0xff] %v3684
        %3941 = vst [vmem:[#allocation5 + $0x140] sm:$0xff] %v3685
        %3942 = vst [vmem:[#allocation5 + $0x148] sm:$0xff] %v3686
        %3943 = vst [vmem:[#allocation5 + $0x150] sm:$0xff] %v3687
        %3944 = vst [vmem:[#allocation5 + $0x158] sm:$0xff] %v3688
        %3945 = vst [vmem:[#allocation5 + $0x160] sm:$0xff] %v3689
        %3946 = vst [vmem:[#allocation5 + $0x168] sm:$0xff] %v3690
        %3947 = vst [vmem:[#allocation5 + $0x170] sm:$0xff] %v3691
        %3948 = vst [vmem:[#allocation5 + $0x178] sm:$0xff] %v3692
        %3949 = vst [vmem:[#allocation5 + $0x180] sm:$0xff] %v3693
        %3950 = vst [vmem:[#allocation5 + $0x188] sm:$0xff] %v3694
        %3951 = vst [vmem:[#allocation5 + $0x190] sm:$0xff] %v3695
        %3952 = vst [vmem:[#allocation5 + $0x198] sm:$0xff] %v3696
        %3953 = vst [vmem:[#allocation5 + $0x1a0] sm:$0xff] %v3697
        %3954 = vst [vmem:[#allocation5 + $0x1a8] sm:$0xff] %v3698
        %3955 = vst [vmem:[#allocation5 + $0x1b0] sm:$0xff] %v3699
        %3956 = vst [vmem:[#allocation5 + $0x1b8] sm:$0xff] %v3700
        %3957 = vst [vmem:[#allocation5 + $0x1c0] sm:$0xff] %v3701
        %3958 = vst [vmem:[#allocation5 + $0x1c8] sm:$0xff] %v3702
        %3959 = vst [vmem:[#allocation5 + $0x1d0] sm:$0xff] %v3703
        %3960 = vst [vmem:[#allocation5 + $0x1d8] sm:$0xff] %v3704
        %3961 = vst [vmem:[#allocation5 + $0x1e0] sm:$0xff] %v3705
        %3962 = vst [vmem:[#allocation5 + $0x1e8] sm:$0xff] %v3706
        %3963 = vst [vmem:[#allocation5 + $0x1f0] sm:$0xff] %v3707
        %3964 = vst [vmem:[#allocation5 + $0x1f8] sm:$0xff] %v3708
        %3965 = vst [vmem:[#allocation5 + $0x200] sm:$0xff] %v3709
        %3966 = vst [vmem:[#allocation5 + $0x208] sm:$0xff] %v3710
        %3967 = vst [vmem:[#allocation5 + $0x210] sm:$0xff] %v3711
        %3968 = vst [vmem:[#allocation5 + $0x218] sm:$0xff] %v3712
        %3969 = vst [vmem:[#allocation5 + $0x220] sm:$0xff] %v3713
        %3970 = vst [vmem:[#allocation5 + $0x228] sm:$0xff] %v3714
        %3971 = vst [vmem:[#allocation5 + $0x230] sm:$0xff] %v3715
        %3972 = vst [vmem:[#allocation5 + $0x238] sm:$0xff] %v3716
        %3973 = vst [vmem:[#allocation5 + $0x240] sm:$0xff] %v3717
        %3974 = vst [vmem:[#allocation5 + $0x248] sm:$0xff] %v3718
        %3975 = vst [vmem:[#allocation5 + $0x250] sm:$0xff] %v3719
        %3976 = vst [vmem:[#allocation5 + $0x258] sm:$0xff] %v3720
        %3977 = vst [vmem:[#allocation5 + $0x260] sm:$0xff] %v3721
        %3978 = vst [vmem:[#allocation5 + $0x268] sm:$0xff] %v3722
        %3979 = vst [vmem:[#allocation5 + $0x270] sm:$0xff] %v3723
        %3980 = vst [vmem:[#allocation5 + $0x278] sm:$0xff] %v3724
        %3981 = vst [vmem:[#allocation5 + $0x280] sm:$0xff] %v3725
        %3982 = vst [vmem:[#allocation5 + $0x288] sm:$0xff] %v3726
        %3983 = vst [vmem:[#allocation5 + $0x290] sm:$0xff] %v3727
        %3984 = vst [vmem:[#allocation5 + $0x298] sm:$0xff] %v3728
        %3985 = vst [vmem:[#allocation5 + $0x2a0] sm:$0xff] %v3729
        %3986 = vst [vmem:[#allocation5 + $0x2a8] sm:$0xff] %v3730
        %3987 = vst [vmem:[#allocation5 + $0x2b0] sm:$0xff] %v3731
        %3988 = vst [vmem:[#allocation5 + $0x2b8] sm:$0xff] %v3732
        %3989 = vst [vmem:[#allocation5 + $0x2c0] sm:$0xff] %v3733
        %3990 = vst [vmem:[#allocation5 + $0x2c8] sm:$0xff] %v3734
        %3991 = vst [vmem:[#allocation5 + $0x2d0] sm:$0xff] %v3735
        %3992 = vst [vmem:[#allocation5 + $0x2d8] sm:$0xff] %v3736
        %3993 = vst [vmem:[#allocation5 + $0x2e0] sm:$0xff] %v3737
        %3994 = vst [vmem:[#allocation5 + $0x2e8] sm:$0xff] %v3738
        %3995 = vst [vmem:[#allocation5 + $0x2f0] sm:$0xff] %v3739
        %3996 = vst [vmem:[#allocation5 + $0x2f8] sm:$0xff] %v3740
        %3997 = vst [vmem:[#allocation5 + $0x300] sm:$0xff] %v3741
        %3998 = vst [vmem:[#allocation5 + $0x308] sm:$0xff] %v3742
        %3999 = vst [vmem:[#allocation5 + $0x310] sm:$0xff] %v3743
        %4000 = vst [vmem:[#allocation5 + $0x318] sm:$0xff] %v3744
        %4001 = vst [vmem:[#allocation5 + $0x320] sm:$0xff] %v3745
        %4002 = vst [vmem:[#allocation5 + $0x328] sm:$0xff] %v3746
        %4003 = vst [vmem:[#allocation5 + $0x330] sm:$0xff] %v3747
        %4004 = vst [vmem:[#allocation5 + $0x338] sm:$0xff] %v3748
        %4005 = vst [vmem:[#allocation5 + $0x340] sm:$0xff] %v3749
        %4006 = vst [vmem:[#allocation5 + $0x348] sm:$0xff] %v3750
        %4007 = vst [vmem:[#allocation5 + $0x350] sm:$0xff] %v3751
        %4008 = vst [vmem:[#allocation5 + $0x358] sm:$0xff] %v3752
        %4009 = vst [vmem:[#allocation5 + $0x360] sm:$0xff] %v3753
        %4010 = vst [vmem:[#allocation5 + $0x368] sm:$0xff] %v3754
        %4011 = vst [vmem:[#allocation5 + $0x370] sm:$0xff] %v3755
        %4012 = vst [vmem:[#allocation5 + $0x378] sm:$0xff] %v3756
        %4013 = vst [vmem:[#allocation5 + $0x380] sm:$0xff] %v3757
        %4014 = vst [vmem:[#allocation5 + $0x388] sm:$0xff] %v3758
        %4015 = vst [vmem:[#allocation5 + $0x390] sm:$0xff] %v3759
        %4016 = vst [vmem:[#allocation5 + $0x398] sm:$0xff] %v3760
        %4017 = vst [vmem:[#allocation5 + $0x3a0] sm:$0xff] %v3761
        %4018 = vst [vmem:[#allocation5 + $0x3a8] sm:$0xff] %v3762
        %4019 = vst [vmem:[#allocation5 + $0x3b0] sm:$0xff] %v3763
        %4020 = vst [vmem:[#allocation5 + $0x3b8] sm:$0xff] %v3764
        %4021 = vst [vmem:[#allocation5 + $0x3c0] sm:$0xff] %v3765
        %4022 = vst [vmem:[#allocation5 + $0x3c8] sm:$0xff] %v3766
        %4023 = vst [vmem:[#allocation5 + $0x3d0] sm:$0xff] %v3767
        %4024 = vst [vmem:[#allocation5 + $0x3d8] sm:$0xff] %v3768
        %4025 = vst [vmem:[#allocation5 + $0x3e0] sm:$0xff] %v3769
        %4026 = vst [vmem:[#allocation5 + $0x3e8] sm:$0xff] %v3770
        %4027 = vst [vmem:[#allocation5 + $0x3f0] sm:$0xff] %v3771
        %4028 = vst [vmem:[#allocation5 + $0x3f8] sm:$0xff] %v3772
        %4029 = vst [vmem:[#allocation5 + $0x400] sm:$0xff] %v3773
        %4030 = vst [vmem:[#allocation5 + $0x408] sm:$0xff] %v3774
        %4031 = vst [vmem:[#allocation5 + $0x410] sm:$0xff] %v3775
        %4032 = vst [vmem:[#allocation5 + $0x418] sm:$0xff] %v3776
        %4033 = vst [vmem:[#allocation5 + $0x420] sm:$0xff] %v3777
        %4034 = vst [vmem:[#allocation5 + $0x428] sm:$0xff] %v3778
        %4035 = vst [vmem:[#allocation5 + $0x430] sm:$0xff] %v3779
        %4036 = vst [vmem:[#allocation5 + $0x438] sm:$0xff] %v3780
        %4037 = vst [vmem:[#allocation5 + $0x440] sm:$0xff] %v3781
        %4038 = vst [vmem:[#allocation5 + $0x448] sm:$0xff] %v3782
        %4039 = vst [vmem:[#allocation5 + $0x450] sm:$0xff] %v3783
        %4040 = vst [vmem:[#allocation5 + $0x458] sm:$0xff] %v3784
        %4041 = vst [vmem:[#allocation5 + $0x460] sm:$0xff] %v3785
        %4042 = vst [vmem:[#allocation5 + $0x468] sm:$0xff] %v3786
        %4043 = vst [vmem:[#allocation5 + $0x470] sm:$0xff] %v3787
        %4044 = vst [vmem:[#allocation5 + $0x478] sm:$0xff] %v3788
        %4045 = vst [vmem:[#allocation5 + $0x480] sm:$0xff] %v3789
        %4046 = vst [vmem:[#allocation5 + $0x488] sm:$0xff] %v3790
        %4047 = vst [vmem:[#allocation5 + $0x490] sm:$0xff] %v3791
        %4048 = vst [vmem:[#allocation5 + $0x498] sm:$0xff] %v3792
        %4049 = vst [vmem:[#allocation5 + $0x4a0] sm:$0xff] %v3793
        %4050 = vst [vmem:[#allocation5 + $0x4a8] sm:$0xff] %v3794
        %4051 = vst [vmem:[#allocation5 + $0x4b0] sm:$0xff] %v3795
        %4052 = vst [vmem:[#allocation5 + $0x4b8] sm:$0xff] %v3796
        %4053 = vst [vmem:[#allocation5 + $0x4c0] sm:$0xff] %v3797
        %4054 = vst [vmem:[#allocation5 + $0x4c8] sm:$0xff] %v3798
        %4055 = vst [vmem:[#allocation5 + $0x4d0] sm:$0xff] %v3799
        %4056 = vst [vmem:[#allocation5 + $0x4d8] sm:$0xff] %v3800
        %4057 = vst [vmem:[#allocation5 + $0x4e0] sm:$0xff] %v3801
        %4058 = vst [vmem:[#allocation5 + $0x4e8] sm:$0xff] %v3802
        %4059 = vst [vmem:[#allocation5 + $0x4f0] sm:$0xff] %v3803
        %4060 = vst [vmem:[#allocation5 + $0x4f8] sm:$0xff] %v3804
        %4061 = vst [vmem:[#allocation5 + $0x500] sm:$0xff] %v3805
        %4062 = vst [vmem:[#allocation5 + $0x508] sm:$0xff] %v3806
        %4063 = vst [vmem:[#allocation5 + $0x510] sm:$0xff] %v3807
        %4064 = vst [vmem:[#allocation5 + $0x518] sm:$0xff] %v3808
        %4065 = vst [vmem:[#allocation5 + $0x520] sm:$0xff] %v3809
        %4066 = vst [vmem:[#allocation5 + $0x528] sm:$0xff] %v3810
        %4067 = vst [vmem:[#allocation5 + $0x530] sm:$0xff] %v3811
        %4068 = vst [vmem:[#allocation5 + $0x538] sm:$0xff] %v3812
        %4069 = vst [vmem:[#allocation5 + $0x540] sm:$0xff] %v3813
        %4070 = vst [vmem:[#allocation5 + $0x548] sm:$0xff] %v3814
        %4071 = vst [vmem:[#allocation5 + $0x550] sm:$0xff] %v3815
        %4072 = vst [vmem:[#allocation5 + $0x558] sm:$0xff] %v3816
        %4073 = vst [vmem:[#allocation5 + $0x560] sm:$0xff] %v3817
        %4074 = vst [vmem:[#allocation5 + $0x568] sm:$0xff] %v3818
        %4075 = vst [vmem:[#allocation5 + $0x570] sm:$0xff] %v3819
        %4076 = vst [vmem:[#allocation5 + $0x578] sm:$0xff] %v3820
        %4077 = vst [vmem:[#allocation5 + $0x580] sm:$0xff] %v3821
        %4078 = vst [vmem:[#allocation5 + $0x588] sm:$0xff] %v3822
        %4079 = vst [vmem:[#allocation5 + $0x590] sm:$0xff] %v3823
        %4080 = vst [vmem:[#allocation5 + $0x598] sm:$0xff] %v3824
        %4081 = vst [vmem:[#allocation5 + $0x5a0] sm:$0xff] %v3825
        %4082 = vst [vmem:[#allocation5 + $0x5a8] sm:$0xff] %v3826
        %4083 = vst [vmem:[#allocation5 + $0x5b0] sm:$0xff] %v3827
        %4084 = vst [vmem:[#allocation5 + $0x5b8] sm:$0xff] %v3828
        %4085 = vst [vmem:[#allocation5 + $0x5c0] sm:$0xff] %v3829
        %4086 = vst [vmem:[#allocation5 + $0x5c8] sm:$0xff] %v3830
        %4087 = vst [vmem:[#allocation5 + $0x5d0] sm:$0xff] %v3831
        %4088 = vst [vmem:[#allocation5 + $0x5d8] sm:$0xff] %v3832
        %4089 = vst [vmem:[#allocation5 + $0x5e0] sm:$0xff] %v3833
        %4090 = vst [vmem:[#allocation5 + $0x5e8] sm:$0xff] %v3834
        %4091 = vst [vmem:[#allocation5 + $0x5f0] sm:$0xff] %v3835
        %4092 = vst [vmem:[#allocation5 + $0x5f8] sm:$0xff] %v3836
        %4093 = vst [vmem:[#allocation5 + $0x600] sm:$0xff] %v3837
        %4094 = vst [vmem:[#allocation5 + $0x608] sm:$0xff] %v3838
        %4095 = vst [vmem:[#allocation5 + $0x610] sm:$0xff] %v3839
        %4096 = vst [vmem:[#allocation5 + $0x618] sm:$0xff] %v3840
        %4097 = vst [vmem:[#allocation5 + $0x620] sm:$0xff] %v3841
        %4098 = vst [vmem:[#allocation5 + $0x628] sm:$0xff] %v3842
        %4099 = vst [vmem:[#allocation5 + $0x630] sm:$0xff] %v3843
        %4100 = vst [vmem:[#allocation5 + $0x638] sm:$0xff] %v3844
        %4101 = vst [vmem:[#allocation5 + $0x640] sm:$0xff] %v3845
        %4102 = vst [vmem:[#allocation5 + $0x648] sm:$0xff] %v3846
        %4103 = vst [vmem:[#allocation5 + $0x650] sm:$0xff] %v3847
        %4104 = vst [vmem:[#allocation5 + $0x658] sm:$0xff] %v3848
        %4105 = vst [vmem:[#allocation5 + $0x660] sm:$0xff] %v3849
        %4106 = vst [vmem:[#allocation5 + $0x668] sm:$0xff] %v3850
        %4107 = vst [vmem:[#allocation5 + $0x670] sm:$0xff] %v3851
        %4108 = vst [vmem:[#allocation5 + $0x678] sm:$0xff] %v3852
        %4109 = vst [vmem:[#allocation5 + $0x680] sm:$0xff] %v3853
        %4110 = vst [vmem:[#allocation5 + $0x688] sm:$0xff] %v3854
        %4111 = vst [vmem:[#allocation5 + $0x690] sm:$0xff] %v3855
        %4112 = vst [vmem:[#allocation5 + $0x698] sm:$0xff] %v3856
        %4113 = vst [vmem:[#allocation5 + $0x6a0] sm:$0xff] %v3857
        %4114 = vst [vmem:[#allocation5 + $0x6a8] sm:$0xff] %v3858
        %4115 = vst [vmem:[#allocation5 + $0x6b0] sm:$0xff] %v3859
        %4116 = vst [vmem:[#allocation5 + $0x6b8] sm:$0xff] %v3860
        %4117 = vst [vmem:[#allocation5 + $0x6c0] sm:$0xff] %v3861
        %4118 = vst [vmem:[#allocation5 + $0x6c8] sm:$0xff] %v3862
        %4119 = vst [vmem:[#allocation5 + $0x6d0] sm:$0xff] %v3863
        %4120 = vst [vmem:[#allocation5 + $0x6d8] sm:$0xff] %v3864
        %4121 = vst [vmem:[#allocation5 + $0x6e0] sm:$0xff] %v3865
        %4122 = vst [vmem:[#allocation5 + $0x6e8] sm:$0xff] %v3866
        %4123 = vst [vmem:[#allocation5 + $0x6f0] sm:$0xff] %v3867
        %4124 = vst [vmem:[#allocation5 + $0x6f8] sm:$0xff] %v3868
        %4125 = vst [vmem:[#allocation5 + $0x700] sm:$0xff] %v3869
        %4126 = vst [vmem:[#allocation5 + $0x708] sm:$0xff] %v3870
        %4127 = vst [vmem:[#allocation5 + $0x710] sm:$0xff] %v3871
        %4128 = vst [vmem:[#allocation5 + $0x718] sm:$0xff] %v3872
        %4129 = vst [vmem:[#allocation5 + $0x720] sm:$0xff] %v3873
        %4130 = vst [vmem:[#allocation5 + $0x728] sm:$0xff] %v3874
        %4131 = vst [vmem:[#allocation5 + $0x730] sm:$0xff] %v3875
        %4132 = vst [vmem:[#allocation5 + $0x738] sm:$0xff] %v3876
        %4133 = vst [vmem:[#allocation5 + $0x740] sm:$0xff] %v3877
        %4134 = vst [vmem:[#allocation5 + $0x748] sm:$0xff] %v3878
        %4135 = vst [vmem:[#allocation5 + $0x750] sm:$0xff] %v3879
        %4136 = vst [vmem:[#allocation5 + $0x758] sm:$0xff] %v3880
        %4137 = vst [vmem:[#allocation5 + $0x760] sm:$0xff] %v3881
        %4138 = vst [vmem:[#allocation5 + $0x768] sm:$0xff] %v3882
        %4139 = vst [vmem:[#allocation5 + $0x770] sm:$0xff] %v3883
        %4140 = vst [vmem:[#allocation5 + $0x778] sm:$0xff] %v3884
        %4141 = vst [vmem:[#allocation5 + $0x780] sm:$0xff] %v3885
        %4142 = vst [vmem:[#allocation5 + $0x788] sm:$0xff] %v3886
        %4143 = vst [vmem:[#allocation5 + $0x790] sm:$0xff] %v3887
        %4144 = vst [vmem:[#allocation5 + $0x798] sm:$0xff] %v3888
        %4145 = vst [vmem:[#allocation5 + $0x7a0] sm:$0xff] %v3889
        %4146 = vst [vmem:[#allocation5 + $0x7a8] sm:$0xff] %v3890
        %4147 = vst [vmem:[#allocation5 + $0x7b0] sm:$0xff] %v3891
        %4148 = vst [vmem:[#allocation5 + $0x7b8] sm:$0xff] %v3892
        %4149 = vst [vmem:[#allocation5 + $0x7c0] sm:$0xff] %v3893
        %4150 = vst [vmem:[#allocation5 + $0x7c8] sm:$0xff] %v3894
        %4151 = vst [vmem:[#allocation5 + $0x7d0] sm:$0xff] %v3895
        %4152 = vst [vmem:[#allocation5 + $0x7d8] sm:$0xff] %v3896
        %4153 = vst [vmem:[#allocation5 + $0x7e0] sm:$0xff] %v3897
        %4154 = vst [vmem:[#allocation5 + $0x7e8] sm:$0xff] %v3898
        %4155 = vst [vmem:[#allocation5 + $0x7f0] sm:$0xff] %v3899
        %4156 = vst [vmem:[#allocation5 + $0x7f8] sm:$0xff] %v3900
        %4157 = vst [vmem:[#allocation4] sm:$0xff] %v1853
        %4158 = vst [vmem:[#allocation4 + $0x8] sm:$0xff] %v1854
        %4159 = vst [vmem:[#allocation4 + $0x10] sm:$0xff] %v1855
        %4160 = vst [vmem:[#allocation4 + $0x18] sm:$0xff] %v1856
        %4161 = vst [vmem:[#allocation4 + $0x20] sm:$0xff] %v1857
        %4162 = vst [vmem:[#allocation4 + $0x28] sm:$0xff] %v1858
        %4163 = vst [vmem:[#allocation4 + $0x30] sm:$0xff] %v1859
        %4164 = vst [vmem:[#allocation4 + $0x38] sm:$0xff] %v1860
        %4165 = vst [vmem:[#allocation4 + $0x40] sm:$0xff] %v1861
        %4166 = vst [vmem:[#allocation4 + $0x48] sm:$0xff] %v1862
        %4167 = vst [vmem:[#allocation4 + $0x50] sm:$0xff] %v1863
        %4168 = vst [vmem:[#allocation4 + $0x58] sm:$0xff] %v1864
        %4169 = vst [vmem:[#allocation4 + $0x60] sm:$0xff] %v1865
        %4170 = vst [vmem:[#allocation4 + $0x68] sm:$0xff] %v1866
        %4171 = vst [vmem:[#allocation4 + $0x70] sm:$0xff] %v1867
        %4172 = vst [vmem:[#allocation4 + $0x78] sm:$0xff] %v1868
        %v4173 = vld [vmem:[%s7] sm:$0xff]
        %v4174 = vld [vmem:[%s7 + $0x8] sm:$0xff]
        %v4175 = vld [vmem:[%s7 + $0x10] sm:$0xff]
        %v4176 = vld [vmem:[%s7 + $0x18] sm:$0xff]
        %v4177 = vld [vmem:[#allocation2] sm:$0xff]
        %v4178 = vld [vmem:[#allocation2 + $0x8] sm:$0xff]
        %v4179 = vld [vmem:[#allocation2 + $0x10] sm:$0xff]
        %v4180 = vld [vmem:[#allocation2 + $0x18] sm:$0xff]
        loop: start=0, step=1, limit=16
        $region69: #{tpu_custom_call.1} parent=63 // loop_pre_header
          _
        $region70: #{tpu_custom_call.1} parent=63 // loop_header
          %s4182 = sphi 0, %s4186
          %p4183 = scmp.ge.s32.totalorder %s4182, 16
          %v4187 = vphi %v4177, %v4391
          %v4188 = vphi %v4178, %v4392
          %v4189 = vphi %v4179, %v4393
          %v4190 = vphi %v4180, %v4394
        $region71: #{tpu_custom_call.1} parent=63 // loop_header_branch
          %4185 = sbr.rel (%p4183) target = $region75
        $region72: #{tpu_custom_call.1} parent=63 // loop_body
          %s4191 = smul.u32 %s4182, 4
          %s4192 = sshra.s32 %s4191, 3
          %s4193 = sand.u32 %s4191, 7
          %s4194 = sshra.s32 %s4191, 3
          %s4195 = sand.u32 %s4191, 7
          %s4196 = smul.u32 %s4192, 2
          %s4197 = smul.u32 %s4196, 8
          %s4198 = sadd.s32 %s4197, %s4195
          %s4199 = scalar_lea.vmem [#allocation4], %s4198
          %v4200 = vld [vmem:[%s4199] ss:$8 sm:$0x3]
          %v4202 = vlaneseq
          %v4203 = vshrl.u32 %v4202, 7
          %v4204 = vsub.s32 0, %v4203
          %v4205 = vrot.slane %v4200, %v4204
          %v4206 = vlaneseq
          %v4207 = vshrl.u32 %v4206, 7
          %v4208 = vsub.s32 1, %v4207
          %v4209 = vrot.slane %v4200, %v4208
          %v4212 = vmul.f32 %v4205, %v4173
          %v4213 = vmul.f32 %v4209, %v4174
          %v4214 = vmul.f32 %v4205, %v4175
          %v4215 = vmul.f32 %v4209, %v4176
          %v4216 = vmul.f32 %v4212, 1.442695
          %v4217 = vpow.pop %v4216
          %v4218 = vmul.f32 %v4213, 1.442695
          %v4219 = vpow.pop %v4218
          %v4220 = vmul.f32 %v4214, 1.442695
          %v4221 = vpow.pop %v4220
          %v4222 = vmul.f32 %v4215, 1.442695
          %v4223 = vpow.pop %v4222
          %v4224 = vmul.f32 %v4217, %v4187
          %v4225 = vmul.f32 %v4219, %v4188
          %v4226 = vmul.f32 %v4221, %v4189
          %v4227 = vmul.f32 %v4223, %v4190
          %s4228 = smul.u32 %s4191, 4
          %s4229 = smul.addr %s4228, 8
          %s4230 = scalar_lea.vmem [#allocation5], %s4229
          %v4231 = vld [vmem:[%s4230] sm:$0xff]
          %v4232 = vld [vmem:[%s4230 + $0x8] sm:$0xff]
          %v4233 = vld [vmem:[%s4230 + $0x10] sm:$0xff]
          %v4234 = vld [vmem:[%s4230 + $0x18] sm:$0xff]
          %v4235 = vadd.f32 %v4224, %v4231
          %v4236 = vadd.f32 %v4225, %v4232
          %v4237 = vadd.f32 %v4226, %v4233
          %v4238 = vadd.f32 %v4227, %v4234
          %4239 = vst [vmem:[%s4230] sm:$0xff] %v4235
          %4240 = vst [vmem:[%s4230 + $0x8] sm:$0xff] %v4236
          %4241 = vst [vmem:[%s4230 + $0x10] sm:$0xff] %v4237
          %4242 = vst [vmem:[%s4230 + $0x18] sm:$0xff] %v4238
          %s4243 = sadd.s32 %s4191, 1
          %s4244 = sshra.s32 %s4243, 3
          %s4245 = sand.u32 %s4243, 7
          %s4246 = sshra.s32 %s4243, 3
          %s4247 = sand.u32 %s4243, 7
          %s4248 = smul.u32 %s4244, 2
          %s4249 = smul.u32 %s4248, 8
          %s4250 = sadd.s32 %s4249, %s4247
          %s4251 = scalar_lea.vmem [#allocation4], %s4250
          %v4252 = vld [vmem:[%s4251] ss:$8 sm:$0x3]
          %v4254 = vlaneseq
          %v4255 = vshrl.u32 %v4254, 7
          %v4256 = vsub.s32 0, %v4255
          %v4257 = vrot.slane %v4252, %v4256
          %v4258 = vlaneseq
          %v4259 = vshrl.u32 %v4258, 7
          %v4260 = vsub.s32 1, %v4259
          %v4261 = vrot.slane %v4252, %v4260
          %v4264 = vmul.f32 %v4257, %v4173
          %v4265 = vmul.f32 %v4261, %v4174
          %v4266 = vmul.f32 %v4257, %v4175
          %v4267 = vmul.f32 %v4261, %v4176
          %v4268 = vmul.f32 %v4264, 1.442695
          %v4269 = vpow.pop %v4268
          %v4270 = vmul.f32 %v4265, 1.442695
          %v4271 = vpow.pop %v4270
          %v4272 = vmul.f32 %v4266, 1.442695
          %v4273 = vpow.pop %v4272
          %v4274 = vmul.f32 %v4267, 1.442695
          %v4275 = vpow.pop %v4274
          %v4276 = vmul.f32 %v4269, %v4235
          %v4277 = vmul.f32 %v4271, %v4236
          %v4278 = vmul.f32 %v4273, %v4237
          %v4279 = vmul.f32 %v4275, %v4238
          %s4280 = smul.u32 %s4243, 4
          %s4281 = smul.addr %s4280, 8
          %s4282 = scalar_lea.vmem [#allocation5], %s4281
          %v4283 = vld [vmem:[%s4282] sm:$0xff]
          %v4284 = vld [vmem:[%s4282 + $0x8] sm:$0xff]
          %v4285 = vld [vmem:[%s4282 + $0x10] sm:$0xff]
          %v4286 = vld [vmem:[%s4282 + $0x18] sm:$0xff]
          %v4287 = vadd.f32 %v4276, %v4283
          %v4288 = vadd.f32 %v4277, %v4284
          %v4289 = vadd.f32 %v4278, %v4285
          %v4290 = vadd.f32 %v4279, %v4286
          %4291 = vst [vmem:[%s4282] sm:$0xff] %v4287
          %4292 = vst [vmem:[%s4282 + $0x8] sm:$0xff] %v4288
          %4293 = vst [vmem:[%s4282 + $0x10] sm:$0xff] %v4289
          %4294 = vst [vmem:[%s4282 + $0x18] sm:$0xff] %v4290
          %s4295 = sadd.s32 %s4191, 2
          %s4296 = sshra.s32 %s4295, 3
          %s4297 = sand.u32 %s4295, 7
          %s4298 = sshra.s32 %s4295, 3
          %s4299 = sand.u32 %s4295, 7
          %s4300 = smul.u32 %s4296, 2
          %s4301 = smul.u32 %s4300, 8
          %s4302 = sadd.s32 %s4301, %s4299
          %s4303 = scalar_lea.vmem [#allocation4], %s4302
          %v4304 = vld [vmem:[%s4303] ss:$8 sm:$0x3]
          %v4306 = vlaneseq
          %v4307 = vshrl.u32 %v4306, 7
          %v4308 = vsub.s32 0, %v4307
          %v4309 = vrot.slane %v4304, %v4308
          %v4310 = vlaneseq
          %v4311 = vshrl.u32 %v4310, 7
          %v4312 = vsub.s32 1, %v4311
          %v4313 = vrot.slane %v4304, %v4312
          %v4316 = vmul.f32 %v4309, %v4173
          %v4317 = vmul.f32 %v4313, %v4174
          %v4318 = vmul.f32 %v4309, %v4175
          %v4319 = vmul.f32 %v4313, %v4176
          %v4320 = vmul.f32 %v4316, 1.442695
          %v4321 = vpow.pop %v4320
          %v4322 = vmul.f32 %v4317, 1.442695
          %v4323 = vpow.pop %v4322
          %v4324 = vmul.f32 %v4318, 1.442695
          %v4325 = vpow.pop %v4324
          %v4326 = vmul.f32 %v4319, 1.442695
          %v4327 = vpow.pop %v4326
          %v4328 = vmul.f32 %v4321, %v4287
          %v4329 = vmul.f32 %v4323, %v4288
          %v4330 = vmul.f32 %v4325, %v4289
          %v4331 = vmul.f32 %v4327, %v4290
          %s4332 = smul.u32 %s4295, 4
          %s4333 = smul.addr %s4332, 8
          %s4334 = scalar_lea.vmem [#allocation5], %s4333
          %v4335 = vld [vmem:[%s4334] sm:$0xff]
          %v4336 = vld [vmem:[%s4334 + $0x8] sm:$0xff]
          %v4337 = vld [vmem:[%s4334 + $0x10] sm:$0xff]
          %v4338 = vld [vmem:[%s4334 + $0x18] sm:$0xff]
          %v4339 = vadd.f32 %v4328, %v4335
          %v4340 = vadd.f32 %v4329, %v4336
          %v4341 = vadd.f32 %v4330, %v4337
          %v4342 = vadd.f32 %v4331, %v4338
          %4343 = vst [vmem:[%s4334] sm:$0xff] %v4339
          %4344 = vst [vmem:[%s4334 + $0x8] sm:$0xff] %v4340
          %4345 = vst [vmem:[%s4334 + $0x10] sm:$0xff] %v4341
          %4346 = vst [vmem:[%s4334 + $0x18] sm:$0xff] %v4342
          %s4347 = sadd.s32 %s4191, 3
          %s4348 = sshra.s32 %s4347, 3
          %s4349 = sand.u32 %s4347, 7
          %s4350 = sshra.s32 %s4347, 3
          %s4351 = sand.u32 %s4347, 7
          %s4352 = smul.u32 %s4348, 2
          %s4353 = smul.u32 %s4352, 8
          %s4354 = sadd.s32 %s4353, %s4351
          %s4355 = scalar_lea.vmem [#allocation4], %s4354
          %v4356 = vld [vmem:[%s4355] ss:$8 sm:$0x3]
          %v4358 = vlaneseq
          %v4359 = vshrl.u32 %v4358, 7
          %v4360 = vsub.s32 0, %v4359
          %v4361 = vrot.slane %v4356, %v4360
          %v4362 = vlaneseq
          %v4363 = vshrl.u32 %v4362, 7
          %v4364 = vsub.s32 1, %v4363
          %v4365 = vrot.slane %v4356, %v4364
          %v4368 = vmul.f32 %v4361, %v4173
          %v4369 = vmul.f32 %v4365, %v4174
          %v4370 = vmul.f32 %v4361, %v4175
          %v4371 = vmul.f32 %v4365, %v4176
          %v4372 = vmul.f32 %v4368, 1.442695
          %v4373 = vpow.pop %v4372
          %v4374 = vmul.f32 %v4369, 1.442695
          %v4375 = vpow.pop %v4374
          %v4376 = vmul.f32 %v4370, 1.442695
          %v4377 = vpow.pop %v4376
          %v4378 = vmul.f32 %v4371, 1.442695
          %v4379 = vpow.pop %v4378
          %v4380 = vmul.f32 %v4373, %v4339
          %v4381 = vmul.f32 %v4375, %v4340
          %v4382 = vmul.f32 %v4377, %v4341
          %v4383 = vmul.f32 %v4379, %v4342
          %s4384 = smul.u32 %s4347, 4
          %s4385 = smul.addr %s4384, 8
          %s4386 = scalar_lea.vmem [#allocation5], %s4385
          %v4387 = vld [vmem:[%s4386] sm:$0xff]
          %v4388 = vld [vmem:[%s4386 + $0x8] sm:$0xff]
          %v4389 = vld [vmem:[%s4386 + $0x10] sm:$0xff]
          %v4390 = vld [vmem:[%s4386 + $0x18] sm:$0xff]
          %v4391 = vadd.f32 %v4380, %v4387
          %v4392 = vadd.f32 %v4381, %v4388
          %v4393 = vadd.f32 %v4382, %v4389
          %v4394 = vadd.f32 %v4383, %v4390
          %4395 = vst [vmem:[%s4386] sm:$0xff] %v4391
          %4396 = vst [vmem:[%s4386 + $0x8] sm:$0xff] %v4392
          %4397 = vst [vmem:[%s4386 + $0x10] sm:$0xff] %v4393
          %4398 = vst [vmem:[%s4386 + $0x18] sm:$0xff] %v4394
        $region73: #{tpu_custom_call.1} parent=63 // loop_footer
          %s4186 = sadd.s32 1, %s4182
        $region74: #{tpu_custom_call.1} parent=63 // loop_footer_branch
          %4181 = sbr.rel target = $region70
        $region75: #{tpu_custom_call.1} parent=63 // loop_exit
          _
        %4399 = vst [vmem:[#allocation2] sm:$0xff] %v4187
        %4400 = vst [vmem:[#allocation2 + $0x8] sm:$0xff] %v4188
        %4401 = vst [vmem:[#allocation2 + $0x10] sm:$0xff] %v4189
        %4402 = vst [vmem:[#allocation2 + $0x18] sm:$0xff] %v4190
        %v4403 = vld [vmem:[#allocation5] sm:$0xff]
        %v4404 = vld [vmem:[#allocation5 + $0x8] sm:$0xff]
        %v4405 = vld [vmem:[#allocation5 + $0x10] sm:$0xff]
        %v4406 = vld [vmem:[#allocation5 + $0x18] sm:$0xff]
        %v4407 = vld [vmem:[#allocation5 + $0x20] sm:$0xff]
        %v4408 = vld [vmem:[#allocation5 + $0x28] sm:$0xff]
        %v4409 = vld [vmem:[#allocation5 + $0x30] sm:$0xff]
        %v4410 = vld [vmem:[#allocation5 + $0x38] sm:$0xff]
        %v4411 = vld [vmem:[#allocation5 + $0x40] sm:$0xff]
        %v4412 = vld [vmem:[#allocation5 + $0x48] sm:$0xff]
        %v4413 = vld [vmem:[#allocation5 + $0x50] sm:$0xff]
        %v4414 = vld [vmem:[#allocation5 + $0x58] sm:$0xff]
        %v4415 = vld [vmem:[#allocation5 + $0x60] sm:$0xff]
        %v4416 = vld [vmem:[#allocation5 + $0x68] sm:$0xff]
        %v4417 = vld [vmem:[#allocation5 + $0x70] sm:$0xff]
        %v4418 = vld [vmem:[#allocation5 + $0x78] sm:$0xff]
        %v4419 = vld [vmem:[#allocation5 + $0x80] sm:$0xff]
        %v4420 = vld [vmem:[#allocation5 + $0x88] sm:$0xff]
        %v4421 = vld [vmem:[#allocation5 + $0x90] sm:$0xff]
        %v4422 = vld [vmem:[#allocation5 + $0x98] sm:$0xff]
        %v4423 = vld [vmem:[#allocation5 + $0xa0] sm:$0xff]
        %v4424 = vld [vmem:[#allocation5 + $0xa8] sm:$0xff]
        %v4425 = vld [vmem:[#allocation5 + $0xb0] sm:$0xff]
        %v4426 = vld [vmem:[#allocation5 + $0xb8] sm:$0xff]
        %v4427 = vld [vmem:[#allocation5 + $0xc0] sm:$0xff]
        %v4428 = vld [vmem:[#allocation5 + $0xc8] sm:$0xff]
        %v4429 = vld [vmem:[#allocation5 + $0xd0] sm:$0xff]
        %v4430 = vld [vmem:[#allocation5 + $0xd8] sm:$0xff]
        %v4431 = vld [vmem:[#allocation5 + $0xe0] sm:$0xff]
        %v4432 = vld [vmem:[#allocation5 + $0xe8] sm:$0xff]
        %v4433 = vld [vmem:[#allocation5 + $0xf0] sm:$0xff]
        %v4434 = vld [vmem:[#allocation5 + $0xf8] sm:$0xff]
        %v4435 = vld [vmem:[#allocation5 + $0x100] sm:$0xff]
        %v4436 = vld [vmem:[#allocation5 + $0x108] sm:$0xff]
        %v4437 = vld [vmem:[#allocation5 + $0x110] sm:$0xff]
        %v4438 = vld [vmem:[#allocation5 + $0x118] sm:$0xff]
        %v4439 = vld [vmem:[#allocation5 + $0x120] sm:$0xff]
        %v4440 = vld [vmem:[#allocation5 + $0x128] sm:$0xff]
        %v4441 = vld [vmem:[#allocation5 + $0x130] sm:$0xff]
        %v4442 = vld [vmem:[#allocation5 + $0x138] sm:$0xff]
        %v4443 = vld [vmem:[#allocation5 + $0x140] sm:$0xff]
        %v4444 = vld [vmem:[#allocation5 + $0x148] sm:$0xff]
        %v4445 = vld [vmem:[#allocation5 + $0x150] sm:$0xff]
        %v4446 = vld [vmem:[#allocation5 + $0x158] sm:$0xff]
        %v4447 = vld [vmem:[#allocation5 + $0x160] sm:$0xff]
        %v4448 = vld [vmem:[#allocation5 + $0x168] sm:$0xff]
        %v4449 = vld [vmem:[#allocation5 + $0x170] sm:$0xff]
        %v4450 = vld [vmem:[#allocation5 + $0x178] sm:$0xff]
        %v4451 = vld [vmem:[#allocation5 + $0x180] sm:$0xff]
        %v4452 = vld [vmem:[#allocation5 + $0x188] sm:$0xff]
        %v4453 = vld [vmem:[#allocation5 + $0x190] sm:$0xff]
        %v4454 = vld [vmem:[#allocation5 + $0x198] sm:$0xff]
        %v4455 = vld [vmem:[#allocation5 + $0x1a0] sm:$0xff]
        %v4456 = vld [vmem:[#allocation5 + $0x1a8] sm:$0xff]
        %v4457 = vld [vmem:[#allocation5 + $0x1b0] sm:$0xff]
        %v4458 = vld [vmem:[#allocation5 + $0x1b8] sm:$0xff]
        %v4459 = vld [vmem:[#allocation5 + $0x1c0] sm:$0xff]
        %v4460 = vld [vmem:[#allocation5 + $0x1c8] sm:$0xff]
        %v4461 = vld [vmem:[#allocation5 + $0x1d0] sm:$0xff]
        %v4462 = vld [vmem:[#allocation5 + $0x1d8] sm:$0xff]
        %v4463 = vld [vmem:[#allocation5 + $0x1e0] sm:$0xff]
        %v4464 = vld [vmem:[#allocation5 + $0x1e8] sm:$0xff]
        %v4465 = vld [vmem:[#allocation5 + $0x1f0] sm:$0xff]
        %v4466 = vld [vmem:[#allocation5 + $0x1f8] sm:$0xff]
        %v4467 = vld [vmem:[#allocation5 + $0x200] sm:$0xff]
        %v4468 = vld [vmem:[#allocation5 + $0x208] sm:$0xff]
        %v4469 = vld [vmem:[#allocation5 + $0x210] sm:$0xff]
        %v4470 = vld [vmem:[#allocation5 + $0x218] sm:$0xff]
        %v4471 = vld [vmem:[#allocation5 + $0x220] sm:$0xff]
        %v4472 = vld [vmem:[#allocation5 + $0x228] sm:$0xff]
        %v4473 = vld [vmem:[#allocation5 + $0x230] sm:$0xff]
        %v4474 = vld [vmem:[#allocation5 + $0x238] sm:$0xff]
        %v4475 = vld [vmem:[#allocation5 + $0x240] sm:$0xff]
        %v4476 = vld [vmem:[#allocation5 + $0x248] sm:$0xff]
        %v4477 = vld [vmem:[#allocation5 + $0x250] sm:$0xff]
        %v4478 = vld [vmem:[#allocation5 + $0x258] sm:$0xff]
        %v4479 = vld [vmem:[#allocation5 + $0x260] sm:$0xff]
        %v4480 = vld [vmem:[#allocation5 + $0x268] sm:$0xff]
        %v4481 = vld [vmem:[#allocation5 + $0x270] sm:$0xff]
        %v4482 = vld [vmem:[#allocation5 + $0x278] sm:$0xff]
        %v4483 = vld [vmem:[#allocation5 + $0x280] sm:$0xff]
        %v4484 = vld [vmem:[#allocation5 + $0x288] sm:$0xff]
        %v4485 = vld [vmem:[#allocation5 + $0x290] sm:$0xff]
        %v4486 = vld [vmem:[#allocation5 + $0x298] sm:$0xff]
        %v4487 = vld [vmem:[#allocation5 + $0x2a0] sm:$0xff]
        %v4488 = vld [vmem:[#allocation5 + $0x2a8] sm:$0xff]
        %v4489 = vld [vmem:[#allocation5 + $0x2b0] sm:$0xff]
        %v4490 = vld [vmem:[#allocation5 + $0x2b8] sm:$0xff]
        %v4491 = vld [vmem:[#allocation5 + $0x2c0] sm:$0xff]
        %v4492 = vld [vmem:[#allocation5 + $0x2c8] sm:$0xff]
        %v4493 = vld [vmem:[#allocation5 + $0x2d0] sm:$0xff]
        %v4494 = vld [vmem:[#allocation5 + $0x2d8] sm:$0xff]
        %v4495 = vld [vmem:[#allocation5 + $0x2e0] sm:$0xff]
        %v4496 = vld [vmem:[#allocation5 + $0x2e8] sm:$0xff]
        %v4497 = vld [vmem:[#allocation5 + $0x2f0] sm:$0xff]
        %v4498 = vld [vmem:[#allocation5 + $0x2f8] sm:$0xff]
        %v4499 = vld [vmem:[#allocation5 + $0x300] sm:$0xff]
        %v4500 = vld [vmem:[#allocation5 + $0x308] sm:$0xff]
        %v4501 = vld [vmem:[#allocation5 + $0x310] sm:$0xff]
        %v4502 = vld [vmem:[#allocation5 + $0x318] sm:$0xff]
        %v4503 = vld [vmem:[#allocation5 + $0x320] sm:$0xff]
        %v4504 = vld [vmem:[#allocation5 + $0x328] sm:$0xff]
        %v4505 = vld [vmem:[#allocation5 + $0x330] sm:$0xff]
        %v4506 = vld [vmem:[#allocation5 + $0x338] sm:$0xff]
        %v4507 = vld [vmem:[#allocation5 + $0x340] sm:$0xff]
        %v4508 = vld [vmem:[#allocation5 + $0x348] sm:$0xff]
        %v4509 = vld [vmem:[#allocation5 + $0x350] sm:$0xff]
        %v4510 = vld [vmem:[#allocation5 + $0x358] sm:$0xff]
        %v4511 = vld [vmem:[#allocation5 + $0x360] sm:$0xff]
        %v4512 = vld [vmem:[#allocation5 + $0x368] sm:$0xff]
        %v4513 = vld [vmem:[#allocation5 + $0x370] sm:$0xff]
        %v4514 = vld [vmem:[#allocation5 + $0x378] sm:$0xff]
        %v4515 = vld [vmem:[#allocation5 + $0x380] sm:$0xff]
        %v4516 = vld [vmem:[#allocation5 + $0x388] sm:$0xff]
        %v4517 = vld [vmem:[#allocation5 + $0x390] sm:$0xff]
        %v4518 = vld [vmem:[#allocation5 + $0x398] sm:$0xff]
        %v4519 = vld [vmem:[#allocation5 + $0x3a0] sm:$0xff]
        %v4520 = vld [vmem:[#allocation5 + $0x3a8] sm:$0xff]
        %v4521 = vld [vmem:[#allocation5 + $0x3b0] sm:$0xff]
        %v4522 = vld [vmem:[#allocation5 + $0x3b8] sm:$0xff]
        %v4523 = vld [vmem:[#allocation5 + $0x3c0] sm:$0xff]
        %v4524 = vld [vmem:[#allocation5 + $0x3c8] sm:$0xff]
        %v4525 = vld [vmem:[#allocation5 + $0x3d0] sm:$0xff]
        %v4526 = vld [vmem:[#allocation5 + $0x3d8] sm:$0xff]
        %v4527 = vld [vmem:[#allocation5 + $0x3e0] sm:$0xff]
        %v4528 = vld [vmem:[#allocation5 + $0x3e8] sm:$0xff]
        %v4529 = vld [vmem:[#allocation5 + $0x3f0] sm:$0xff]
        %v4530 = vld [vmem:[#allocation5 + $0x3f8] sm:$0xff]
        %v4531 = vld [vmem:[#allocation5 + $0x400] sm:$0xff]
        %v4532 = vld [vmem:[#allocation5 + $0x408] sm:$0xff]
        %v4533 = vld [vmem:[#allocation5 + $0x410] sm:$0xff]
        %v4534 = vld [vmem:[#allocation5 + $0x418] sm:$0xff]
        %v4535 = vld [vmem:[#allocation5 + $0x420] sm:$0xff]
        %v4536 = vld [vmem:[#allocation5 + $0x428] sm:$0xff]
        %v4537 = vld [vmem:[#allocation5 + $0x430] sm:$0xff]
        %v4538 = vld [vmem:[#allocation5 + $0x438] sm:$0xff]
        %v4539 = vld [vmem:[#allocation5 + $0x440] sm:$0xff]
        %v4540 = vld [vmem:[#allocation5 + $0x448] sm:$0xff]
        %v4541 = vld [vmem:[#allocation5 + $0x450] sm:$0xff]
        %v4542 = vld [vmem:[#allocation5 + $0x458] sm:$0xff]
        %v4543 = vld [vmem:[#allocation5 + $0x460] sm:$0xff]
        %v4544 = vld [vmem:[#allocation5 + $0x468] sm:$0xff]
        %v4545 = vld [vmem:[#allocation5 + $0x470] sm:$0xff]
        %v4546 = vld [vmem:[#allocation5 + $0x478] sm:$0xff]
        %v4547 = vld [vmem:[#allocation5 + $0x480] sm:$0xff]
        %v4548 = vld [vmem:[#allocation5 + $0x488] sm:$0xff]
        %v4549 = vld [vmem:[#allocation5 + $0x490] sm:$0xff]
        %v4550 = vld [vmem:[#allocation5 + $0x498] sm:$0xff]
        %v4551 = vld [vmem:[#allocation5 + $0x4a0] sm:$0xff]
        %v4552 = vld [vmem:[#allocation5 + $0x4a8] sm:$0xff]
        %v4553 = vld [vmem:[#allocation5 + $0x4b0] sm:$0xff]
        %v4554 = vld [vmem:[#allocation5 + $0x4b8] sm:$0xff]
        %v4555 = vld [vmem:[#allocation5 + $0x4c0] sm:$0xff]
        %v4556 = vld [vmem:[#allocation5 + $0x4c8] sm:$0xff]
        %v4557 = vld [vmem:[#allocation5 + $0x4d0] sm:$0xff]
        %v4558 = vld [vmem:[#allocation5 + $0x4d8] sm:$0xff]
        %v4559 = vld [vmem:[#allocation5 + $0x4e0] sm:$0xff]
        %v4560 = vld [vmem:[#allocation5 + $0x4e8] sm:$0xff]
        %v4561 = vld [vmem:[#allocation5 + $0x4f0] sm:$0xff]
        %v4562 = vld [vmem:[#allocation5 + $0x4f8] sm:$0xff]
        %v4563 = vld [vmem:[#allocation5 + $0x500] sm:$0xff]
        %v4564 = vld [vmem:[#allocation5 + $0x508] sm:$0xff]
        %v4565 = vld [vmem:[#allocation5 + $0x510] sm:$0xff]
        %v4566 = vld [vmem:[#allocation5 + $0x518] sm:$0xff]
        %v4567 = vld [vmem:[#allocation5 + $0x520] sm:$0xff]
        %v4568 = vld [vmem:[#allocation5 + $0x528] sm:$0xff]
        %v4569 = vld [vmem:[#allocation5 + $0x530] sm:$0xff]
        %v4570 = vld [vmem:[#allocation5 + $0x538] sm:$0xff]
        %v4571 = vld [vmem:[#allocation5 + $0x540] sm:$0xff]
        %v4572 = vld [vmem:[#allocation5 + $0x548] sm:$0xff]
        %v4573 = vld [vmem:[#allocation5 + $0x550] sm:$0xff]
        %v4574 = vld [vmem:[#allocation5 + $0x558] sm:$0xff]
        %v4575 = vld [vmem:[#allocation5 + $0x560] sm:$0xff]
        %v4576 = vld [vmem:[#allocation5 + $0x568] sm:$0xff]
        %v4577 = vld [vmem:[#allocation5 + $0x570] sm:$0xff]
        %v4578 = vld [vmem:[#allocation5 + $0x578] sm:$0xff]
        %v4579 = vld [vmem:[#allocation5 + $0x580] sm:$0xff]
        %v4580 = vld [vmem:[#allocation5 + $0x588] sm:$0xff]
        %v4581 = vld [vmem:[#allocation5 + $0x590] sm:$0xff]
        %v4582 = vld [vmem:[#allocation5 + $0x598] sm:$0xff]
        %v4583 = vld [vmem:[#allocation5 + $0x5a0] sm:$0xff]
        %v4584 = vld [vmem:[#allocation5 + $0x5a8] sm:$0xff]
        %v4585 = vld [vmem:[#allocation5 + $0x5b0] sm:$0xff]
        %v4586 = vld [vmem:[#allocation5 + $0x5b8] sm:$0xff]
        %v4587 = vld [vmem:[#allocation5 + $0x5c0] sm:$0xff]
        %v4588 = vld [vmem:[#allocation5 + $0x5c8] sm:$0xff]
        %v4589 = vld [vmem:[#allocation5 + $0x5d0] sm:$0xff]
        %v4590 = vld [vmem:[#allocation5 + $0x5d8] sm:$0xff]
        %v4591 = vld [vmem:[#allocation5 + $0x5e0] sm:$0xff]
        %v4592 = vld [vmem:[#allocation5 + $0x5e8] sm:$0xff]
        %v4593 = vld [vmem:[#allocation5 + $0x5f0] sm:$0xff]
        %v4594 = vld [vmem:[#allocation5 + $0x5f8] sm:$0xff]
        %v4595 = vld [vmem:[#allocation5 + $0x600] sm:$0xff]
        %v4596 = vld [vmem:[#allocation5 + $0x608] sm:$0xff]
        %v4597 = vld [vmem:[#allocation5 + $0x610] sm:$0xff]
        %v4598 = vld [vmem:[#allocation5 + $0x618] sm:$0xff]
        %v4599 = vld [vmem:[#allocation5 + $0x620] sm:$0xff]
        %v4600 = vld [vmem:[#allocation5 + $0x628] sm:$0xff]
        %v4601 = vld [vmem:[#allocation5 + $0x630] sm:$0xff]
        %v4602 = vld [vmem:[#allocation5 + $0x638] sm:$0xff]
        %v4603 = vld [vmem:[#allocation5 + $0x640] sm:$0xff]
        %v4604 = vld [vmem:[#allocation5 + $0x648] sm:$0xff]
        %v4605 = vld [vmem:[#allocation5 + $0x650] sm:$0xff]
        %v4606 = vld [vmem:[#allocation5 + $0x658] sm:$0xff]
        %v4607 = vld [vmem:[#allocation5 + $0x660] sm:$0xff]
        %v4608 = vld [vmem:[#allocation5 + $0x668] sm:$0xff]
        %v4609 = vld [vmem:[#allocation5 + $0x670] sm:$0xff]
        %v4610 = vld [vmem:[#allocation5 + $0x678] sm:$0xff]
        %v4611 = vld [vmem:[#allocation5 + $0x680] sm:$0xff]
        %v4612 = vld [vmem:[#allocation5 + $0x688] sm:$0xff]
        %v4613 = vld [vmem:[#allocation5 + $0x690] sm:$0xff]
        %v4614 = vld [vmem:[#allocation5 + $0x698] sm:$0xff]
        %v4615 = vld [vmem:[#allocation5 + $0x6a0] sm:$0xff]
        %v4616 = vld [vmem:[#allocation5 + $0x6a8] sm:$0xff]
        %v4617 = vld [vmem:[#allocation5 + $0x6b0] sm:$0xff]
        %v4618 = vld [vmem:[#allocation5 + $0x6b8] sm:$0xff]
        %v4619 = vld [vmem:[#allocation5 + $0x6c0] sm:$0xff]
        %v4620 = vld [vmem:[#allocation5 + $0x6c8] sm:$0xff]
        %v4621 = vld [vmem:[#allocation5 + $0x6d0] sm:$0xff]
        %v4622 = vld [vmem:[#allocation5 + $0x6d8] sm:$0xff]
        %v4623 = vld [vmem:[#allocation5 + $0x6e0] sm:$0xff]
        %v4624 = vld [vmem:[#allocation5 + $0x6e8] sm:$0xff]
        %v4625 = vld [vmem:[#allocation5 + $0x6f0] sm:$0xff]
        %v4626 = vld [vmem:[#allocation5 + $0x6f8] sm:$0xff]
        %v4627 = vld [vmem:[#allocation5 + $0x700] sm:$0xff]
        %v4628 = vld [vmem:[#allocation5 + $0x708] sm:$0xff]
        %v4629 = vld [vmem:[#allocation5 + $0x710] sm:$0xff]
        %v4630 = vld [vmem:[#allocation5 + $0x718] sm:$0xff]
        %v4631 = vld [vmem:[#allocation5 + $0x720] sm:$0xff]
        %v4632 = vld [vmem:[#allocation5 + $0x728] sm:$0xff]
        %v4633 = vld [vmem:[#allocation5 + $0x730] sm:$0xff]
        %v4634 = vld [vmem:[#allocation5 + $0x738] sm:$0xff]
        %v4635 = vld [vmem:[#allocation5 + $0x740] sm:$0xff]
        %v4636 = vld [vmem:[#allocation5 + $0x748] sm:$0xff]
        %v4637 = vld [vmem:[#allocation5 + $0x750] sm:$0xff]
        %v4638 = vld [vmem:[#allocation5 + $0x758] sm:$0xff]
        %v4639 = vld [vmem:[#allocation5 + $0x760] sm:$0xff]
        %v4640 = vld [vmem:[#allocation5 + $0x768] sm:$0xff]
        %v4641 = vld [vmem:[#allocation5 + $0x770] sm:$0xff]
        %v4642 = vld [vmem:[#allocation5 + $0x778] sm:$0xff]
        %v4643 = vld [vmem:[#allocation5 + $0x780] sm:$0xff]
        %v4644 = vld [vmem:[#allocation5 + $0x788] sm:$0xff]
        %v4645 = vld [vmem:[#allocation5 + $0x790] sm:$0xff]
        %v4646 = vld [vmem:[#allocation5 + $0x798] sm:$0xff]
        %v4647 = vld [vmem:[#allocation5 + $0x7a0] sm:$0xff]
        %v4648 = vld [vmem:[#allocation5 + $0x7a8] sm:$0xff]
        %v4649 = vld [vmem:[#allocation5 + $0x7b0] sm:$0xff]
        %v4650 = vld [vmem:[#allocation5 + $0x7b8] sm:$0xff]
        %v4651 = vld [vmem:[#allocation5 + $0x7c0] sm:$0xff]
        %v4652 = vld [vmem:[#allocation5 + $0x7c8] sm:$0xff]
        %v4653 = vld [vmem:[#allocation5 + $0x7d0] sm:$0xff]
        %v4654 = vld [vmem:[#allocation5 + $0x7d8] sm:$0xff]
        %v4655 = vld [vmem:[#allocation5 + $0x7e0] sm:$0xff]
        %v4656 = vld [vmem:[#allocation5 + $0x7e8] sm:$0xff]
        %v4657 = vld [vmem:[#allocation5 + $0x7f0] sm:$0xff]
        %v4658 = vld [vmem:[#allocation5 + $0x7f8] sm:$0xff]
        %s4660 = sor.u32 256, 16
        %4661 = vbcast.lane.b32.xlu0 %v1872, %s4660
        %v4662 = vpop.permute.xlu0 %4661
        %s4664 = sor.u32 256, 24
        %4665 = vbcast.lane.b32.xlu0 %v1872, %s4664
        %v4666 = vpop.permute.xlu0 %4665
        %s4668 = sor.u32 256, 16
        %4669 = vbcast.lane.b32.xlu0 %v1883, %s4668
        %v4670 = vpop.permute.xlu0 %4669
        %s4672 = sor.u32 256, 24
        %4673 = vbcast.lane.b32.xlu0 %v1883, %s4672
        %v4674 = vpop.permute.xlu0 %4673
        %s4676 = sor.u32 256, 16
        %4677 = vbcast.lane.b32.xlu0 %v1894, %s4676
        %v4678 = vpop.permute.xlu0 %4677
        %s4680 = sor.u32 256, 24
        %4681 = vbcast.lane.b32.xlu0 %v1894, %s4680
        %v4682 = vpop.permute.xlu0 %4681
        %s4684 = sor.u32 256, 16
        %4685 = vbcast.lane.b32.xlu0 %v1905, %s4684
        %v4686 = vpop.permute.xlu0 %4685
        %s4688 = sor.u32 256, 24
        %4689 = vbcast.lane.b32.xlu0 %v1905, %s4688
        %v4690 = vpop.permute.xlu0 %4689
        %s4692 = sor.u32 256, 16
        %4693 = vbcast.lane.b32.xlu0 %v1916, %s4692
        %v4694 = vpop.permute.xlu0 %4693
        %s4696 = sor.u32 256, 24
        %4697 = vbcast.lane.b32.xlu0 %v1916, %s4696
        %v4698 = vpop.permute.xlu0 %4697
        %s4700 = sor.u32 256, 16
        %4701 = vbcast.lane.b32.xlu0 %v1927, %s4700
        %v4702 = vpop.permute.xlu0 %4701
        %s4704 = sor.u32 256, 24
        %4705 = vbcast.lane.b32.xlu0 %v1927, %s4704
        %v4706 = vpop.permute.xlu0 %4705
        %s4708 = sor.u32 256, 16
        %4709 = vbcast.lane.b32.xlu0 %v1938, %s4708
        %v4710 = vpop.permute.xlu0 %4709
        %s4712 = sor.u32 256, 24
        %4713 = vbcast.lane.b32.xlu0 %v1938, %s4712
        %v4714 = vpop.permute.xlu0 %4713
        %s4716 = sor.u32 256, 16
        %4717 = vbcast.lane.b32.xlu0 %v1949, %s4716
        %v4718 = vpop.permute.xlu0 %4717
        %s4720 = sor.u32 256, 24
        %4721 = vbcast.lane.b32.xlu0 %v1949, %s4720
        %v4722 = vpop.permute.xlu0 %4721
        %s4724 = sor.u32 256, 16
        %4725 = vbcast.lane.b32.xlu0 %v1960, %s4724
        %v4726 = vpop.permute.xlu0 %4725
        %s4728 = sor.u32 256, 24
        %4729 = vbcast.lane.b32.xlu0 %v1960, %s4728
        %v4730 = vpop.permute.xlu0 %4729
        %s4732 = sor.u32 256, 16
        %4733 = vbcast.lane.b32.xlu0 %v1971, %s4732
        %v4734 = vpop.permute.xlu0 %4733
        %s4736 = sor.u32 256, 24
        %4737 = vbcast.lane.b32.xlu0 %v1971, %s4736
        %v4738 = vpop.permute.xlu0 %4737
        %s4740 = sor.u32 256, 16
        %4741 = vbcast.lane.b32.xlu0 %v1982, %s4740
        %v4742 = vpop.permute.xlu0 %4741
        %s4744 = sor.u32 256, 24
        %4745 = vbcast.lane.b32.xlu0 %v1982, %s4744
        %v4746 = vpop.permute.xlu0 %4745
        %s4748 = sor.u32 256, 16
        %4749 = vbcast.lane.b32.xlu0 %v1993, %s4748
        %v4750 = vpop.permute.xlu0 %4749
        %s4752 = sor.u32 256, 24
        %4753 = vbcast.lane.b32.xlu0 %v1993, %s4752
        %v4754 = vpop.permute.xlu0 %4753
        %s4756 = sor.u32 256, 16
        %4757 = vbcast.lane.b32.xlu0 %v2004, %s4756
        %v4758 = vpop.permute.xlu0 %4757
        %s4760 = sor.u32 256, 24
        %4761 = vbcast.lane.b32.xlu0 %v2004, %s4760
        %v4762 = vpop.permute.xlu0 %4761
        %s4764 = sor.u32 256, 16
        %4765 = vbcast.lane.b32.xlu0 %v2015, %s4764
        %v4766 = vpop.permute.xlu0 %4765
        %s4768 = sor.u32 256, 24
        %4769 = vbcast.lane.b32.xlu0 %v2015, %s4768
        %v4770 = vpop.permute.xlu0 %4769
        %s4772 = sor.u32 256, 16
        %4773 = vbcast.lane.b32.xlu0 %v2026, %s4772
        %v4774 = vpop.permute.xlu0 %4773
        %s4776 = sor.u32 256, 24
        %4777 = vbcast.lane.b32.xlu0 %v2026, %s4776
        %v4778 = vpop.permute.xlu0 %4777
        %s4780 = sor.u32 256, 16
        %4781 = vbcast.lane.b32.xlu0 %v2037, %s4780
        %v4782 = vpop.permute.xlu0 %4781
        %s4784 = sor.u32 256, 24
        %4785 = vbcast.lane.b32.xlu0 %v2037, %s4784
        %v4786 = vpop.permute.xlu0 %4785
        %s4788 = sor.u32 256, 16
        %4789 = vbcast.lane.b32.xlu0 %v2048, %s4788
        %v4790 = vpop.permute.xlu0 %4789
        %s4792 = sor.u32 256, 24
        %4793 = vbcast.lane.b32.xlu0 %v2048, %s4792
        %v4794 = vpop.permute.xlu0 %4793
        %s4796 = sor.u32 256, 16
        %4797 = vbcast.lane.b32.xlu0 %v2059, %s4796
        %v4798 = vpop.permute.xlu0 %4797
        %s4800 = sor.u32 256, 24
        %4801 = vbcast.lane.b32.xlu0 %v2059, %s4800
        %v4802 = vpop.permute.xlu0 %4801
        %s4804 = sor.u32 256, 16
        %4805 = vbcast.lane.b32.xlu0 %v2070, %s4804
        %v4806 = vpop.permute.xlu0 %4805
        %s4808 = sor.u32 256, 24
        %4809 = vbcast.lane.b32.xlu0 %v2070, %s4808
        %v4810 = vpop.permute.xlu0 %4809
        %s4812 = sor.u32 256, 16
        %4813 = vbcast.lane.b32.xlu0 %v2081, %s4812
        %v4814 = vpop.permute.xlu0 %4813
        %s4816 = sor.u32 256, 24
        %4817 = vbcast.lane.b32.xlu0 %v2081, %s4816
        %v4818 = vpop.permute.xlu0 %4817
        %s4820 = sor.u32 256, 16
        %4821 = vbcast.lane.b32.xlu0 %v2092, %s4820
        %v4822 = vpop.permute.xlu0 %4821
        %s4824 = sor.u32 256, 24
        %4825 = vbcast.lane.b32.xlu0 %v2092, %s4824
        %v4826 = vpop.permute.xlu0 %4825
        %s4828 = sor.u32 256, 16
        %4829 = vbcast.lane.b32.xlu0 %v2103, %s4828
        %v4830 = vpop.permute.xlu0 %4829
        %s4832 = sor.u32 256, 24
        %4833 = vbcast.lane.b32.xlu0 %v2103, %s4832
        %v4834 = vpop.permute.xlu0 %4833
        %s4836 = sor.u32 256, 16
        %4837 = vbcast.lane.b32.xlu0 %v2114, %s4836
        %v4838 = vpop.permute.xlu0 %4837
        %s4840 = sor.u32 256, 24
        %4841 = vbcast.lane.b32.xlu0 %v2114, %s4840
        %v4842 = vpop.permute.xlu0 %4841
        %s4844 = sor.u32 256, 16
        %4845 = vbcast.lane.b32.xlu0 %v2125, %s4844
        %v4846 = vpop.permute.xlu0 %4845
        %s4848 = sor.u32 256, 24
        %4849 = vbcast.lane.b32.xlu0 %v2125, %s4848
        %v4850 = vpop.permute.xlu0 %4849
        %s4852 = sor.u32 256, 16
        %4853 = vbcast.lane.b32.xlu0 %v2136, %s4852
        %v4854 = vpop.permute.xlu0 %4853
        %s4856 = sor.u32 256, 24
        %4857 = vbcast.lane.b32.xlu0 %v2136, %s4856
        %v4858 = vpop.permute.xlu0 %4857
        %s4860 = sor.u32 256, 16
        %4861 = vbcast.lane.b32.xlu0 %v2147, %s4860
        %v4862 = vpop.permute.xlu0 %4861
        %s4864 = sor.u32 256, 24
        %4865 = vbcast.lane.b32.xlu0 %v2147, %s4864
        %v4866 = vpop.permute.xlu0 %4865
        %s4868 = sor.u32 256, 16
        %4869 = vbcast.lane.b32.xlu0 %v2158, %s4868
        %v4870 = vpop.permute.xlu0 %4869
        %s4872 = sor.u32 256, 24
        %4873 = vbcast.lane.b32.xlu0 %v2158, %s4872
        %v4874 = vpop.permute.xlu0 %4873
        %s4876 = sor.u32 256, 16
        %4877 = vbcast.lane.b32.xlu0 %v2169, %s4876
        %v4878 = vpop.permute.xlu0 %4877
        %s4880 = sor.u32 256, 24
        %4881 = vbcast.lane.b32.xlu0 %v2169, %s4880
        %v4882 = vpop.permute.xlu0 %4881
        %s4884 = sor.u32 256, 16
        %4885 = vbcast.lane.b32.xlu0 %v2180, %s4884
        %v4886 = vpop.permute.xlu0 %4885
        %s4888 = sor.u32 256, 24
        %4889 = vbcast.lane.b32.xlu0 %v2180, %s4888
        %v4890 = vpop.permute.xlu0 %4889
        %s4892 = sor.u32 256, 16
        %4893 = vbcast.lane.b32.xlu0 %v2191, %s4892
        %v4894 = vpop.permute.xlu0 %4893
        %s4896 = sor.u32 256, 24
        %4897 = vbcast.lane.b32.xlu0 %v2191, %s4896
        %v4898 = vpop.permute.xlu0 %4897
        %s4900 = sor.u32 256, 16
        %4901 = vbcast.lane.b32.xlu0 %v2202, %s4900
        %v4902 = vpop.permute.xlu0 %4901
        %s4904 = sor.u32 256, 24
        %4905 = vbcast.lane.b32.xlu0 %v2202, %s4904
        %v4906 = vpop.permute.xlu0 %4905
        %s4908 = sor.u32 256, 16
        %4909 = vbcast.lane.b32.xlu0 %v2213, %s4908
        %v4910 = vpop.permute.xlu0 %4909
        %s4912 = sor.u32 256, 24
        %4913 = vbcast.lane.b32.xlu0 %v2213, %s4912
        %v4914 = vpop.permute.xlu0 %4913
        %s4916 = sor.u32 256, 16
        %4917 = vbcast.lane.b32.xlu0 %v2224, %s4916
        %v4918 = vpop.permute.xlu0 %4917
        %s4920 = sor.u32 256, 24
        %4921 = vbcast.lane.b32.xlu0 %v2224, %s4920
        %v4922 = vpop.permute.xlu0 %4921
        %s4924 = sor.u32 256, 16
        %4925 = vbcast.lane.b32.xlu0 %v2235, %s4924
        %v4926 = vpop.permute.xlu0 %4925
        %s4928 = sor.u32 256, 24
        %4929 = vbcast.lane.b32.xlu0 %v2235, %s4928
        %v4930 = vpop.permute.xlu0 %4929
        %s4932 = sor.u32 256, 16
        %4933 = vbcast.lane.b32.xlu0 %v2246, %s4932
        %v4934 = vpop.permute.xlu0 %4933
        %s4936 = sor.u32 256, 24
        %4937 = vbcast.lane.b32.xlu0 %v2246, %s4936
        %v4938 = vpop.permute.xlu0 %4937
        %s4940 = sor.u32 256, 16
        %4941 = vbcast.lane.b32.xlu0 %v2257, %s4940
        %v4942 = vpop.permute.xlu0 %4941
        %s4944 = sor.u32 256, 24
        %4945 = vbcast.lane.b32.xlu0 %v2257, %s4944
        %v4946 = vpop.permute.xlu0 %4945
        %s4948 = sor.u32 256, 16
        %4949 = vbcast.lane.b32.xlu0 %v2268, %s4948
        %v4950 = vpop.permute.xlu0 %4949
        %s4952 = sor.u32 256, 24
        %4953 = vbcast.lane.b32.xlu0 %v2268, %s4952
        %v4954 = vpop.permute.xlu0 %4953
        %s4956 = sor.u32 256, 16
        %4957 = vbcast.lane.b32.xlu0 %v2279, %s4956
        %v4958 = vpop.permute.xlu0 %4957
        %s4960 = sor.u32 256, 24
        %4961 = vbcast.lane.b32.xlu0 %v2279, %s4960
        %v4962 = vpop.permute.xlu0 %4961
        %s4964 = sor.u32 256, 16
        %4965 = vbcast.lane.b32.xlu0 %v2290, %s4964
        %v4966 = vpop.permute.xlu0 %4965
        %s4968 = sor.u32 256, 24
        %4969 = vbcast.lane.b32.xlu0 %v2290, %s4968
        %v4970 = vpop.permute.xlu0 %4969
        %s4972 = sor.u32 256, 16
        %4973 = vbcast.lane.b32.xlu0 %v2301, %s4972
        %v4974 = vpop.permute.xlu0 %4973
        %s4976 = sor.u32 256, 24
        %4977 = vbcast.lane.b32.xlu0 %v2301, %s4976
        %v4978 = vpop.permute.xlu0 %4977
        %s4980 = sor.u32 256, 16
        %4981 = vbcast.lane.b32.xlu0 %v2312, %s4980
        %v4982 = vpop.permute.xlu0 %4981
        %s4984 = sor.u32 256, 24
        %4985 = vbcast.lane.b32.xlu0 %v2312, %s4984
        %v4986 = vpop.permute.xlu0 %4985
        %s4988 = sor.u32 256, 16
        %4989 = vbcast.lane.b32.xlu0 %v2323, %s4988
        %v4990 = vpop.permute.xlu0 %4989
        %s4992 = sor.u32 256, 24
        %4993 = vbcast.lane.b32.xlu0 %v2323, %s4992
        %v4994 = vpop.permute.xlu0 %4993
        %s4996 = sor.u32 256, 16
        %4997 = vbcast.lane.b32.xlu0 %v2334, %s4996
        %v4998 = vpop.permute.xlu0 %4997
        %s5000 = sor.u32 256, 24
        %5001 = vbcast.lane.b32.xlu0 %v2334, %s5000
        %v5002 = vpop.permute.xlu0 %5001
        %s5004 = sor.u32 256, 16
        %5005 = vbcast.lane.b32.xlu0 %v2345, %s5004
        %v5006 = vpop.permute.xlu0 %5005
        %s5008 = sor.u32 256, 24
        %5009 = vbcast.lane.b32.xlu0 %v2345, %s5008
        %v5010 = vpop.permute.xlu0 %5009
        %s5012 = sor.u32 256, 16
        %5013 = vbcast.lane.b32.xlu0 %v2356, %s5012
        %v5014 = vpop.permute.xlu0 %5013
        %s5016 = sor.u32 256, 24
        %5017 = vbcast.lane.b32.xlu0 %v2356, %s5016
        %v5018 = vpop.permute.xlu0 %5017
        %s5020 = sor.u32 256, 16
        %5021 = vbcast.lane.b32.xlu0 %v2367, %s5020
        %v5022 = vpop.permute.xlu0 %5021
        %s5024 = sor.u32 256, 24
        %5025 = vbcast.lane.b32.xlu0 %v2367, %s5024
        %v5026 = vpop.permute.xlu0 %5025
        %s5028 = sor.u32 256, 16
        %5029 = vbcast.lane.b32.xlu0 %v2378, %s5028
        %v5030 = vpop.permute.xlu0 %5029
        %s5032 = sor.u32 256, 24
        %5033 = vbcast.lane.b32.xlu0 %v2378, %s5032
        %v5034 = vpop.permute.xlu0 %5033
        %s5036 = sor.u32 256, 16
        %5037 = vbcast.lane.b32.xlu0 %v2389, %s5036
        %v5038 = vpop.permute.xlu0 %5037
        %s5040 = sor.u32 256, 24
        %5041 = vbcast.lane.b32.xlu0 %v2389, %s5040
        %v5042 = vpop.permute.xlu0 %5041
        %s5044 = sor.u32 256, 16
        %5045 = vbcast.lane.b32.xlu0 %v2400, %s5044
        %v5046 = vpop.permute.xlu0 %5045
        %s5048 = sor.u32 256, 24
        %5049 = vbcast.lane.b32.xlu0 %v2400, %s5048
        %v5050 = vpop.permute.xlu0 %5049
        %s5052 = sor.u32 256, 16
        %5053 = vbcast.lane.b32.xlu0 %v2411, %s5052
        %v5054 = vpop.permute.xlu0 %5053
        %s5056 = sor.u32 256, 24
        %5057 = vbcast.lane.b32.xlu0 %v2411, %s5056
        %v5058 = vpop.permute.xlu0 %5057
        %s5060 = sor.u32 256, 16
        %5061 = vbcast.lane.b32.xlu0 %v2422, %s5060
        %v5062 = vpop.permute.xlu0 %5061
        %s5064 = sor.u32 256, 24
        %5065 = vbcast.lane.b32.xlu0 %v2422, %s5064
        %v5066 = vpop.permute.xlu0 %5065
        %s5068 = sor.u32 256, 16
        %5069 = vbcast.lane.b32.xlu0 %v2433, %s5068
        %v5070 = vpop.permute.xlu0 %5069
        %s5072 = sor.u32 256, 24
        %5073 = vbcast.lane.b32.xlu0 %v2433, %s5072
        %v5074 = vpop.permute.xlu0 %5073
        %s5076 = sor.u32 256, 16
        %5077 = vbcast.lane.b32.xlu0 %v2444, %s5076
        %v5078 = vpop.permute.xlu0 %5077
        %s5080 = sor.u32 256, 24
        %5081 = vbcast.lane.b32.xlu0 %v2444, %s5080
        %v5082 = vpop.permute.xlu0 %5081
        %s5084 = sor.u32 256, 16
        %5085 = vbcast.lane.b32.xlu0 %v2455, %s5084
        %v5086 = vpop.permute.xlu0 %5085
        %s5088 = sor.u32 256, 24
        %5089 = vbcast.lane.b32.xlu0 %v2455, %s5088
        %v5090 = vpop.permute.xlu0 %5089
        %s5092 = sor.u32 256, 16
        %5093 = vbcast.lane.b32.xlu0 %v2466, %s5092
        %v5094 = vpop.permute.xlu0 %5093
        %s5096 = sor.u32 256, 24
        %5097 = vbcast.lane.b32.xlu0 %v2466, %s5096
        %v5098 = vpop.permute.xlu0 %5097
        %s5100 = sor.u32 256, 16
        %5101 = vbcast.lane.b32.xlu0 %v2477, %s5100
        %v5102 = vpop.permute.xlu0 %5101
        %s5104 = sor.u32 256, 24
        %5105 = vbcast.lane.b32.xlu0 %v2477, %s5104
        %v5106 = vpop.permute.xlu0 %5105
        %s5108 = sor.u32 256, 16
        %5109 = vbcast.lane.b32.xlu0 %v2488, %s5108
        %v5110 = vpop.permute.xlu0 %5109
        %s5112 = sor.u32 256, 24
        %5113 = vbcast.lane.b32.xlu0 %v2488, %s5112
        %v5114 = vpop.permute.xlu0 %5113
        %s5116 = sor.u32 256, 16
        %5117 = vbcast.lane.b32.xlu0 %v2499, %s5116
        %v5118 = vpop.permute.xlu0 %5117
        %s5120 = sor.u32 256, 24
        %5121 = vbcast.lane.b32.xlu0 %v2499, %s5120
        %v5122 = vpop.permute.xlu0 %5121
        %s5124 = sor.u32 256, 16
        %5125 = vbcast.lane.b32.xlu0 %v2510, %s5124
        %v5126 = vpop.permute.xlu0 %5125
        %s5128 = sor.u32 256, 24
        %5129 = vbcast.lane.b32.xlu0 %v2510, %s5128
        %v5130 = vpop.permute.xlu0 %5129
        %s5132 = sor.u32 256, 16
        %5133 = vbcast.lane.b32.xlu0 %v2521, %s5132
        %v5134 = vpop.permute.xlu0 %5133
        %s5136 = sor.u32 256, 24
        %5137 = vbcast.lane.b32.xlu0 %v2521, %s5136
        %v5138 = vpop.permute.xlu0 %5137
        %s5140 = sor.u32 256, 16
        %5141 = vbcast.lane.b32.xlu0 %v2532, %s5140
        %v5142 = vpop.permute.xlu0 %5141
        %s5144 = sor.u32 256, 24
        %5145 = vbcast.lane.b32.xlu0 %v2532, %s5144
        %v5146 = vpop.permute.xlu0 %5145
        %s5148 = sor.u32 256, 16
        %5149 = vbcast.lane.b32.xlu0 %v2543, %s5148
        %v5150 = vpop.permute.xlu0 %5149
        %s5152 = sor.u32 256, 24
        %5153 = vbcast.lane.b32.xlu0 %v2543, %s5152
        %v5154 = vpop.permute.xlu0 %5153
        %s5156 = sor.u32 256, 16
        %5157 = vbcast.lane.b32.xlu0 %v2554, %s5156
        %v5158 = vpop.permute.xlu0 %5157
        %s5160 = sor.u32 256, 24
        %5161 = vbcast.lane.b32.xlu0 %v2554, %s5160
        %v5162 = vpop.permute.xlu0 %5161
        %s5164 = sor.u32 256, 16
        %5165 = vbcast.lane.b32.xlu0 %v2565, %s5164
        %v5166 = vpop.permute.xlu0 %5165
        %s5168 = sor.u32 256, 24
        %5169 = vbcast.lane.b32.xlu0 %v2565, %s5168
        %v5170 = vpop.permute.xlu0 %5169
        %v5171 = vmul.f32 %v4403, %v4662
        %v5172 = vmul.f32 %v4404, %v4662
        %v5173 = vmul.f32 %v4405, %v4666
        %v5174 = vmul.f32 %v4406, %v4666
        %v5175 = vmul.f32 %v4407, %v4670
        %v5176 = vmul.f32 %v4408, %v4670
        %v5177 = vmul.f32 %v4409, %v4674
        %v5178 = vmul.f32 %v4410, %v4674
        %v5179 = vmul.f32 %v4411, %v4678
        %v5180 = vmul.f32 %v4412, %v4678
        %v5181 = vmul.f32 %v4413, %v4682
        %v5182 = vmul.f32 %v4414, %v4682
        %v5183 = vmul.f32 %v4415, %v4686
        %v5184 = vmul.f32 %v4416, %v4686
        %v5185 = vmul.f32 %v4417, %v4690
        %v5186 = vmul.f32 %v4418, %v4690
        %v5187 = vmul.f32 %v4419, %v4694
        %v5188 = vmul.f32 %v4420, %v4694
        %v5189 = vmul.f32 %v4421, %v4698
        %v5190 = vmul.f32 %v4422, %v4698
        %v5191 = vmul.f32 %v4423, %v4702
        %v5192 = vmul.f32 %v4424, %v4702
        %v5193 = vmul.f32 %v4425, %v4706
        %v5194 = vmul.f32 %v4426, %v4706
        %v5195 = vmul.f32 %v4427, %v4710
        %v5196 = vmul.f32 %v4428, %v4710
        %v5197 = vmul.f32 %v4429, %v4714
        %v5198 = vmul.f32 %v4430, %v4714
        %v5199 = vmul.f32 %v4431, %v4718
        %v5200 = vmul.f32 %v4432, %v4718
        %v5201 = vmul.f32 %v4433, %v4722
        %v5202 = vmul.f32 %v4434, %v4722
        %v5203 = vmul.f32 %v4435, %v4726
        %v5204 = vmul.f32 %v4436, %v4726
        %v5205 = vmul.f32 %v4437, %v4730
        %v5206 = vmul.f32 %v4438, %v4730
        %v5207 = vmul.f32 %v4439, %v4734
        %v5208 = vmul.f32 %v4440, %v4734
        %v5209 = vmul.f32 %v4441, %v4738
        %v5210 = vmul.f32 %v4442, %v4738
        %v5211 = vmul.f32 %v4443, %v4742
        %v5212 = vmul.f32 %v4444, %v4742
        %v5213 = vmul.f32 %v4445, %v4746
        %v5214 = vmul.f32 %v4446, %v4746
        %v5215 = vmul.f32 %v4447, %v4750
        %v5216 = vmul.f32 %v4448, %v4750
        %v5217 = vmul.f32 %v4449, %v4754
        %v5218 = vmul.f32 %v4450, %v4754
        %v5219 = vmul.f32 %v4451, %v4758
        %v5220 = vmul.f32 %v4452, %v4758
        %v5221 = vmul.f32 %v4453, %v4762
        %v5222 = vmul.f32 %v4454, %v4762
        %v5223 = vmul.f32 %v4455, %v4766
        %v5224 = vmul.f32 %v4456, %v4766
        %v5225 = vmul.f32 %v4457, %v4770
        %v5226 = vmul.f32 %v4458, %v4770
        %v5227 = vmul.f32 %v4459, %v4774
        %v5228 = vmul.f32 %v4460, %v4774
        %v5229 = vmul.f32 %v4461, %v4778
        %v5230 = vmul.f32 %v4462, %v4778
        %v5231 = vmul.f32 %v4463, %v4782
        %v5232 = vmul.f32 %v4464, %v4782
        %v5233 = vmul.f32 %v4465, %v4786
        %v5234 = vmul.f32 %v4466, %v4786
        %v5235 = vmul.f32 %v4467, %v4790
        %v5236 = vmul.f32 %v4468, %v4790
        %v5237 = vmul.f32 %v4469, %v4794
        %v5238 = vmul.f32 %v4470, %v4794
        %v5239 = vmul.f32 %v4471, %v4798
        %v5240 = vmul.f32 %v4472, %v4798
        %v5241 = vmul.f32 %v4473, %v4802
        %v5242 = vmul.f32 %v4474, %v4802
        %v5243 = vmul.f32 %v4475, %v4806
        %v5244 = vmul.f32 %v4476, %v4806
        %v5245 = vmul.f32 %v4477, %v4810
        %v5246 = vmul.f32 %v4478, %v4810
        %v5247 = vmul.f32 %v4479, %v4814
        %v5248 = vmul.f32 %v4480, %v4814
        %v5249 = vmul.f32 %v4481, %v4818
        %v5250 = vmul.f32 %v4482, %v4818
        %v5251 = vmul.f32 %v4483, %v4822
        %v5252 = vmul.f32 %v4484, %v4822
        %v5253 = vmul.f32 %v4485, %v4826
        %v5254 = vmul.f32 %v4486, %v4826
        %v5255 = vmul.f32 %v4487, %v4830
        %v5256 = vmul.f32 %v4488, %v4830
        %v5257 = vmul.f32 %v4489, %v4834
        %v5258 = vmul.f32 %v4490, %v4834
        %v5259 = vmul.f32 %v4491, %v4838
        %v5260 = vmul.f32 %v4492, %v4838
        %v5261 = vmul.f32 %v4493, %v4842
        %v5262 = vmul.f32 %v4494, %v4842
        %v5263 = vmul.f32 %v4495, %v4846
        %v5264 = vmul.f32 %v4496, %v4846
        %v5265 = vmul.f32 %v4497, %v4850
        %v5266 = vmul.f32 %v4498, %v4850
        %v5267 = vmul.f32 %v4499, %v4854
        %v5268 = vmul.f32 %v4500, %v4854
        %v5269 = vmul.f32 %v4501, %v4858
        %v5270 = vmul.f32 %v4502, %v4858
        %v5271 = vmul.f32 %v4503, %v4862
        %v5272 = vmul.f32 %v4504, %v4862
        %v5273 = vmul.f32 %v4505, %v4866
        %v5274 = vmul.f32 %v4506, %v4866
        %v5275 = vmul.f32 %v4507, %v4870
        %v5276 = vmul.f32 %v4508, %v4870
        %v5277 = vmul.f32 %v4509, %v4874
        %v5278 = vmul.f32 %v4510, %v4874
        %v5279 = vmul.f32 %v4511, %v4878
        %v5280 = vmul.f32 %v4512, %v4878
        %v5281 = vmul.f32 %v4513, %v4882
        %v5282 = vmul.f32 %v4514, %v4882
        %v5283 = vmul.f32 %v4515, %v4886
        %v5284 = vmul.f32 %v4516, %v4886
        %v5285 = vmul.f32 %v4517, %v4890
        %v5286 = vmul.f32 %v4518, %v4890
        %v5287 = vmul.f32 %v4519, %v4894
        %v5288 = vmul.f32 %v4520, %v4894
        %v5289 = vmul.f32 %v4521, %v4898
        %v5290 = vmul.f32 %v4522, %v4898
        %v5291 = vmul.f32 %v4523, %v4902
        %v5292 = vmul.f32 %v4524, %v4902
        %v5293 = vmul.f32 %v4525, %v4906
        %v5294 = vmul.f32 %v4526, %v4906
        %v5295 = vmul.f32 %v4527, %v4910
        %v5296 = vmul.f32 %v4528, %v4910
        %v5297 = vmul.f32 %v4529, %v4914
        %v5298 = vmul.f32 %v4530, %v4914
        %v5299 = vmul.f32 %v4531, %v4918
        %v5300 = vmul.f32 %v4532, %v4918
        %v5301 = vmul.f32 %v4533, %v4922
        %v5302 = vmul.f32 %v4534, %v4922
        %v5303 = vmul.f32 %v4535, %v4926
        %v5304 = vmul.f32 %v4536, %v4926
        %v5305 = vmul.f32 %v4537, %v4930
        %v5306 = vmul.f32 %v4538, %v4930
        %v5307 = vmul.f32 %v4539, %v4934
        %v5308 = vmul.f32 %v4540, %v4934
        %v5309 = vmul.f32 %v4541, %v4938
        %v5310 = vmul.f32 %v4542, %v4938
        %v5311 = vmul.f32 %v4543, %v4942
        %v5312 = vmul.f32 %v4544, %v4942
        %v5313 = vmul.f32 %v4545, %v4946
        %v5314 = vmul.f32 %v4546, %v4946
        %v5315 = vmul.f32 %v4547, %v4950
        %v5316 = vmul.f32 %v4548, %v4950
        %v5317 = vmul.f32 %v4549, %v4954
        %v5318 = vmul.f32 %v4550, %v4954
        %v5319 = vmul.f32 %v4551, %v4958
        %v5320 = vmul.f32 %v4552, %v4958
        %v5321 = vmul.f32 %v4553, %v4962
        %v5322 = vmul.f32 %v4554, %v4962
        %v5323 = vmul.f32 %v4555, %v4966
        %v5324 = vmul.f32 %v4556, %v4966
        %v5325 = vmul.f32 %v4557, %v4970
        %v5326 = vmul.f32 %v4558, %v4970
        %v5327 = vmul.f32 %v4559, %v4974
        %v5328 = vmul.f32 %v4560, %v4974
        %v5329 = vmul.f32 %v4561, %v4978
        %v5330 = vmul.f32 %v4562, %v4978
        %v5331 = vmul.f32 %v4563, %v4982
        %v5332 = vmul.f32 %v4564, %v4982
        %v5333 = vmul.f32 %v4565, %v4986
        %v5334 = vmul.f32 %v4566, %v4986
        %v5335 = vmul.f32 %v4567, %v4990
        %v5336 = vmul.f32 %v4568, %v4990
        %v5337 = vmul.f32 %v4569, %v4994
        %v5338 = vmul.f32 %v4570, %v4994
        %v5339 = vmul.f32 %v4571, %v4998
        %v5340 = vmul.f32 %v4572, %v4998
        %v5341 = vmul.f32 %v4573, %v5002
        %v5342 = vmul.f32 %v4574, %v5002
        %v5343 = vmul.f32 %v4575, %v5006
        %v5344 = vmul.f32 %v4576, %v5006
        %v5345 = vmul.f32 %v4577, %v5010
        %v5346 = vmul.f32 %v4578, %v5010
        %v5347 = vmul.f32 %v4579, %v5014
        %v5348 = vmul.f32 %v4580, %v5014
        %v5349 = vmul.f32 %v4581, %v5018
        %v5350 = vmul.f32 %v4582, %v5018
        %v5351 = vmul.f32 %v4583, %v5022
        %v5352 = vmul.f32 %v4584, %v5022
        %v5353 = vmul.f32 %v4585, %v5026
        %v5354 = vmul.f32 %v4586, %v5026
        %v5355 = vmul.f32 %v4587, %v5030
        %v5356 = vmul.f32 %v4588, %v5030
        %v5357 = vmul.f32 %v4589, %v5034
        %v5358 = vmul.f32 %v4590, %v5034
        %v5359 = vmul.f32 %v4591, %v5038
        %v5360 = vmul.f32 %v4592, %v5038
        %v5361 = vmul.f32 %v4593, %v5042
        %v5362 = vmul.f32 %v4594, %v5042
        %v5363 = vmul.f32 %v4595, %v5046
        %v5364 = vmul.f32 %v4596, %v5046
        %v5365 = vmul.f32 %v4597, %v5050
        %v5366 = vmul.f32 %v4598, %v5050
        %v5367 = vmul.f32 %v4599, %v5054
        %v5368 = vmul.f32 %v4600, %v5054
        %v5369 = vmul.f32 %v4601, %v5058
        %v5370 = vmul.f32 %v4602, %v5058
        %v5371 = vmul.f32 %v4603, %v5062
        %v5372 = vmul.f32 %v4604, %v5062
        %v5373 = vmul.f32 %v4605, %v5066
        %v5374 = vmul.f32 %v4606, %v5066
        %v5375 = vmul.f32 %v4607, %v5070
        %v5376 = vmul.f32 %v4608, %v5070
        %v5377 = vmul.f32 %v4609, %v5074
        %v5378 = vmul.f32 %v4610, %v5074
        %v5379 = vmul.f32 %v4611, %v5078
        %v5380 = vmul.f32 %v4612, %v5078
        %v5381 = vmul.f32 %v4613, %v5082
        %v5382 = vmul.f32 %v4614, %v5082
        %v5383 = vmul.f32 %v4615, %v5086
        %v5384 = vmul.f32 %v4616, %v5086
        %v5385 = vmul.f32 %v4617, %v5090
        %v5386 = vmul.f32 %v4618, %v5090
        %v5387 = vmul.f32 %v4619, %v5094
        %v5388 = vmul.f32 %v4620, %v5094
        %v5389 = vmul.f32 %v4621, %v5098
        %v5390 = vmul.f32 %v4622, %v5098
        %v5391 = vmul.f32 %v4623, %v5102
        %v5392 = vmul.f32 %v4624, %v5102
        %v5393 = vmul.f32 %v4625, %v5106
        %v5394 = vmul.f32 %v4626, %v5106
        %v5395 = vmul.f32 %v4627, %v5110
        %v5396 = vmul.f32 %v4628, %v5110
        %v5397 = vmul.f32 %v4629, %v5114
        %v5398 = vmul.f32 %v4630, %v5114
        %v5399 = vmul.f32 %v4631, %v5118
        %v5400 = vmul.f32 %v4632, %v5118
        %v5401 = vmul.f32 %v4633, %v5122
        %v5402 = vmul.f32 %v4634, %v5122
        %v5403 = vmul.f32 %v4635, %v5126
        %v5404 = vmul.f32 %v4636, %v5126
        %v5405 = vmul.f32 %v4637, %v5130
        %v5406 = vmul.f32 %v4638, %v5130
        %v5407 = vmul.f32 %v4639, %v5134
        %v5408 = vmul.f32 %v4640, %v5134
        %v5409 = vmul.f32 %v4641, %v5138
        %v5410 = vmul.f32 %v4642, %v5138
        %v5411 = vmul.f32 %v4643, %v5142
        %v5412 = vmul.f32 %v4644, %v5142
        %v5413 = vmul.f32 %v4645, %v5146
        %v5414 = vmul.f32 %v4646, %v5146
        %v5415 = vmul.f32 %v4647, %v5150
        %v5416 = vmul.f32 %v4648, %v5150
        %v5417 = vmul.f32 %v4649, %v5154
        %v5418 = vmul.f32 %v4650, %v5154
        %v5419 = vmul.f32 %v4651, %v5158
        %v5420 = vmul.f32 %v4652, %v5158
        %v5421 = vmul.f32 %v4653, %v5162
        %v5422 = vmul.f32 %v4654, %v5162
        %v5423 = vmul.f32 %v4655, %v5166
        %v5424 = vmul.f32 %v4656, %v5166
        %v5425 = vmul.f32 %v4657, %v5170
        %v5426 = vmul.f32 %v4658, %v5170
        %v5427 = vadd.f32 %v5171, %v5173
        %v5428 = vrot.slane %v5427, 4
        %v5429 = vadd.f32 %v5427, %v5428
        %v5430 = vrot.slane %v5429, 2
        %v5431 = vadd.f32 %v5429, %v5430
        %v5432 = vrot.slane %v5431, 1
        %v5433 = vadd.f32 %v5431, %v5432
        %v5434 = vadd.f32 %v5172, %v5174
        %v5435 = vrot.slane %v5434, 4
        %v5436 = vadd.f32 %v5434, %v5435
        %v5437 = vrot.slane %v5436, 2
        %v5438 = vadd.f32 %v5436, %v5437
        %v5439 = vrot.slane %v5438, 1
        %v5440 = vadd.f32 %v5438, %v5439
        %v5441 = vadd.f32 %v5175, %v5177
        %v5442 = vrot.slane %v5441, 4
        %v5443 = vadd.f32 %v5441, %v5442
        %v5444 = vrot.slane %v5443, 2
        %v5445 = vadd.f32 %v5443, %v5444
        %v5446 = vrot.slane %v5445, 1
        %v5447 = vadd.f32 %v5445, %v5446
        %v5448 = vadd.f32 %v5176, %v5178
        %v5449 = vrot.slane %v5448, 4
        %v5450 = vadd.f32 %v5448, %v5449
        %v5451 = vrot.slane %v5450, 2
        %v5452 = vadd.f32 %v5450, %v5451
        %v5453 = vrot.slane %v5452, 1
        %v5454 = vadd.f32 %v5452, %v5453
        %v5455 = vadd.f32 %v5179, %v5181
        %v5456 = vrot.slane %v5455, 4
        %v5457 = vadd.f32 %v5455, %v5456
        %v5458 = vrot.slane %v5457, 2
        %v5459 = vadd.f32 %v5457, %v5458
        %v5460 = vrot.slane %v5459, 1
        %v5461 = vadd.f32 %v5459, %v5460
        %v5462 = vadd.f32 %v5180, %v5182
        %v5463 = vrot.slane %v5462, 4
        %v5464 = vadd.f32 %v5462, %v5463
        %v5465 = vrot.slane %v5464, 2
        %v5466 = vadd.f32 %v5464, %v5465
        %v5467 = vrot.slane %v5466, 1
        %v5468 = vadd.f32 %v5466, %v5467
        %v5469 = vadd.f32 %v5183, %v5185
        %v5470 = vrot.slane %v5469, 4
        %v5471 = vadd.f32 %v5469, %v5470
        %v5472 = vrot.slane %v5471, 2
        %v5473 = vadd.f32 %v5471, %v5472
        %v5474 = vrot.slane %v5473, 1
        %v5475 = vadd.f32 %v5473, %v5474
        %v5476 = vadd.f32 %v5184, %v5186
        %v5477 = vrot.slane %v5476, 4
        %v5478 = vadd.f32 %v5476, %v5477
        %v5479 = vrot.slane %v5478, 2
        %v5480 = vadd.f32 %v5478, %v5479
        %v5481 = vrot.slane %v5480, 1
        %v5482 = vadd.f32 %v5480, %v5481
        %v5483 = vadd.f32 %v5187, %v5189
        %v5484 = vrot.slane %v5483, 4
        %v5485 = vadd.f32 %v5483, %v5484
        %v5486 = vrot.slane %v5485, 2
        %v5487 = vadd.f32 %v5485, %v5486
        %v5488 = vrot.slane %v5487, 1
        %v5489 = vadd.f32 %v5487, %v5488
        %v5490 = vadd.f32 %v5188, %v5190
        %v5491 = vrot.slane %v5490, 4
        %v5492 = vadd.f32 %v5490, %v5491
        %v5493 = vrot.slane %v5492, 2
        %v5494 = vadd.f32 %v5492, %v5493
        %v5495 = vrot.slane %v5494, 1
        %v5496 = vadd.f32 %v5494, %v5495
        %v5497 = vadd.f32 %v5191, %v5193
        %v5498 = vrot.slane %v5497, 4
        %v5499 = vadd.f32 %v5497, %v5498
        %v5500 = vrot.slane %v5499, 2
        %v5501 = vadd.f32 %v5499, %v5500
        %v5502 = vrot.slane %v5501, 1
        %v5503 = vadd.f32 %v5501, %v5502
        %v5504 = vadd.f32 %v5192, %v5194
        %v5505 = vrot.slane %v5504, 4
        %v5506 = vadd.f32 %v5504, %v5505
        %v5507 = vrot.slane %v5506, 2
        %v5508 = vadd.f32 %v5506, %v5507
        %v5509 = vrot.slane %v5508, 1
        %v5510 = vadd.f32 %v5508, %v5509
        %v5511 = vadd.f32 %v5195, %v5197
        %v5512 = vrot.slane %v5511, 4
        %v5513 = vadd.f32 %v5511, %v5512
        %v5514 = vrot.slane %v5513, 2
        %v5515 = vadd.f32 %v5513, %v5514
        %v5516 = vrot.slane %v5515, 1
        %v5517 = vadd.f32 %v5515, %v5516
        %v5518 = vadd.f32 %v5196, %v5198
        %v5519 = vrot.slane %v5518, 4
        %v5520 = vadd.f32 %v5518, %v5519
        %v5521 = vrot.slane %v5520, 2
        %v5522 = vadd.f32 %v5520, %v5521
        %v5523 = vrot.slane %v5522, 1
        %v5524 = vadd.f32 %v5522, %v5523
        %v5525 = vadd.f32 %v5199, %v5201
        %v5526 = vrot.slane %v5525, 4
        %v5527 = vadd.f32 %v5525, %v5526
        %v5528 = vrot.slane %v5527, 2
        %v5529 = vadd.f32 %v5527, %v5528
        %v5530 = vrot.slane %v5529, 1
        %v5531 = vadd.f32 %v5529, %v5530
        %v5532 = vadd.f32 %v5200, %v5202
        %v5533 = vrot.slane %v5532, 4
        %v5534 = vadd.f32 %v5532, %v5533
        %v5535 = vrot.slane %v5534, 2
        %v5536 = vadd.f32 %v5534, %v5535
        %v5537 = vrot.slane %v5536, 1
        %v5538 = vadd.f32 %v5536, %v5537
        %v5539 = vadd.f32 %v5203, %v5205
        %v5540 = vrot.slane %v5539, 4
        %v5541 = vadd.f32 %v5539, %v5540
        %v5542 = vrot.slane %v5541, 2
        %v5543 = vadd.f32 %v5541, %v5542
        %v5544 = vrot.slane %v5543, 1
        %v5545 = vadd.f32 %v5543, %v5544
        %v5546 = vadd.f32 %v5204, %v5206
        %v5547 = vrot.slane %v5546, 4
        %v5548 = vadd.f32 %v5546, %v5547
        %v5549 = vrot.slane %v5548, 2
        %v5550 = vadd.f32 %v5548, %v5549
        %v5551 = vrot.slane %v5550, 1
        %v5552 = vadd.f32 %v5550, %v5551
        %v5553 = vadd.f32 %v5207, %v5209
        %v5554 = vrot.slane %v5553, 4
        %v5555 = vadd.f32 %v5553, %v5554
        %v5556 = vrot.slane %v5555, 2
        %v5557 = vadd.f32 %v5555, %v5556
        %v5558 = vrot.slane %v5557, 1
        %v5559 = vadd.f32 %v5557, %v5558
        %v5560 = vadd.f32 %v5208, %v5210
        %v5561 = vrot.slane %v5560, 4
        %v5562 = vadd.f32 %v5560, %v5561
        %v5563 = vrot.slane %v5562, 2
        %v5564 = vadd.f32 %v5562, %v5563
        %v5565 = vrot.slane %v5564, 1
        %v5566 = vadd.f32 %v5564, %v5565
        %v5567 = vadd.f32 %v5211, %v5213
        %v5568 = vrot.slane %v5567, 4
        %v5569 = vadd.f32 %v5567, %v5568
        %v5570 = vrot.slane %v5569, 2
        %v5571 = vadd.f32 %v5569, %v5570
        %v5572 = vrot.slane %v5571, 1
        %v5573 = vadd.f32 %v5571, %v5572
        %v5574 = vadd.f32 %v5212, %v5214
        %v5575 = vrot.slane %v5574, 4
        %v5576 = vadd.f32 %v5574, %v5575
        %v5577 = vrot.slane %v5576, 2
        %v5578 = vadd.f32 %v5576, %v5577
        %v5579 = vrot.slane %v5578, 1
        %v5580 = vadd.f32 %v5578, %v5579
        %v5581 = vadd.f32 %v5215, %v5217
        %v5582 = vrot.slane %v5581, 4
        %v5583 = vadd.f32 %v5581, %v5582
        %v5584 = vrot.slane %v5583, 2
        %v5585 = vadd.f32 %v5583, %v5584
        %v5586 = vrot.slane %v5585, 1
        %v5587 = vadd.f32 %v5585, %v5586
        %v5588 = vadd.f32 %v5216, %v5218
        %v5589 = vrot.slane %v5588, 4
        %v5590 = vadd.f32 %v5588, %v5589
        %v5591 = vrot.slane %v5590, 2
        %v5592 = vadd.f32 %v5590, %v5591
        %v5593 = vrot.slane %v5592, 1
        %v5594 = vadd.f32 %v5592, %v5593
        %v5595 = vadd.f32 %v5219, %v5221
        %v5596 = vrot.slane %v5595, 4
        %v5597 = vadd.f32 %v5595, %v5596
        %v5598 = vrot.slane %v5597, 2
        %v5599 = vadd.f32 %v5597, %v5598
        %v5600 = vrot.slane %v5599, 1
        %v5601 = vadd.f32 %v5599, %v5600
        %v5602 = vadd.f32 %v5220, %v5222
        %v5603 = vrot.slane %v5602, 4
        %v5604 = vadd.f32 %v5602, %v5603
        %v5605 = vrot.slane %v5604, 2
        %v5606 = vadd.f32 %v5604, %v5605
        %v5607 = vrot.slane %v5606, 1
        %v5608 = vadd.f32 %v5606, %v5607
        %v5609 = vadd.f32 %v5223, %v5225
        %v5610 = vrot.slane %v5609, 4
        %v5611 = vadd.f32 %v5609, %v5610
        %v5612 = vrot.slane %v5611, 2
        %v5613 = vadd.f32 %v5611, %v5612
        %v5614 = vrot.slane %v5613, 1
        %v5615 = vadd.f32 %v5613, %v5614
        %v5616 = vadd.f32 %v5224, %v5226
        %v5617 = vrot.slane %v5616, 4
        %v5618 = vadd.f32 %v5616, %v5617
        %v5619 = vrot.slane %v5618, 2
        %v5620 = vadd.f32 %v5618, %v5619
        %v5621 = vrot.slane %v5620, 1
        %v5622 = vadd.f32 %v5620, %v5621
        %v5623 = vadd.f32 %v5227, %v5229
        %v5624 = vrot.slane %v5623, 4
        %v5625 = vadd.f32 %v5623, %v5624
        %v5626 = vrot.slane %v5625, 2
        %v5627 = vadd.f32 %v5625, %v5626
        %v5628 = vrot.slane %v5627, 1
        %v5629 = vadd.f32 %v5627, %v5628
        %v5630 = vadd.f32 %v5228, %v5230
        %v5631 = vrot.slane %v5630, 4
        %v5632 = vadd.f32 %v5630, %v5631
        %v5633 = vrot.slane %v5632, 2
        %v5634 = vadd.f32 %v5632, %v5633
        %v5635 = vrot.slane %v5634, 1
        %v5636 = vadd.f32 %v5634, %v5635
        %v5637 = vadd.f32 %v5231, %v5233
        %v5638 = vrot.slane %v5637, 4
        %v5639 = vadd.f32 %v5637, %v5638
        %v5640 = vrot.slane %v5639, 2
        %v5641 = vadd.f32 %v5639, %v5640
        %v5642 = vrot.slane %v5641, 1
        %v5643 = vadd.f32 %v5641, %v5642
        %v5644 = vadd.f32 %v5232, %v5234
        %v5645 = vrot.slane %v5644, 4
        %v5646 = vadd.f32 %v5644, %v5645
        %v5647 = vrot.slane %v5646, 2
        %v5648 = vadd.f32 %v5646, %v5647
        %v5649 = vrot.slane %v5648, 1
        %v5650 = vadd.f32 %v5648, %v5649
        %v5651 = vadd.f32 %v5235, %v5237
        %v5652 = vrot.slane %v5651, 4
        %v5653 = vadd.f32 %v5651, %v5652
        %v5654 = vrot.slane %v5653, 2
        %v5655 = vadd.f32 %v5653, %v5654
        %v5656 = vrot.slane %v5655, 1
        %v5657 = vadd.f32 %v5655, %v5656
        %v5658 = vadd.f32 %v5236, %v5238
        %v5659 = vrot.slane %v5658, 4
        %v5660 = vadd.f32 %v5658, %v5659
        %v5661 = vrot.slane %v5660, 2
        %v5662 = vadd.f32 %v5660, %v5661
        %v5663 = vrot.slane %v5662, 1
        %v5664 = vadd.f32 %v5662, %v5663
        %v5665 = vadd.f32 %v5239, %v5241
        %v5666 = vrot.slane %v5665, 4
        %v5667 = vadd.f32 %v5665, %v5666
        %v5668 = vrot.slane %v5667, 2
        %v5669 = vadd.f32 %v5667, %v5668
        %v5670 = vrot.slane %v5669, 1
        %v5671 = vadd.f32 %v5669, %v5670
        %v5672 = vadd.f32 %v5240, %v5242
        %v5673 = vrot.slane %v5672, 4
        %v5674 = vadd.f32 %v5672, %v5673
        %v5675 = vrot.slane %v5674, 2
        %v5676 = vadd.f32 %v5674, %v5675
        %v5677 = vrot.slane %v5676, 1
        %v5678 = vadd.f32 %v5676, %v5677
        %v5679 = vadd.f32 %v5243, %v5245
        %v5680 = vrot.slane %v5679, 4
        %v5681 = vadd.f32 %v5679, %v5680
        %v5682 = vrot.slane %v5681, 2
        %v5683 = vadd.f32 %v5681, %v5682
        %v5684 = vrot.slane %v5683, 1
        %v5685 = vadd.f32 %v5683, %v5684
        %v5686 = vadd.f32 %v5244, %v5246
        %v5687 = vrot.slane %v5686, 4
        %v5688 = vadd.f32 %v5686, %v5687
        %v5689 = vrot.slane %v5688, 2
        %v5690 = vadd.f32 %v5688, %v5689
        %v5691 = vrot.slane %v5690, 1
        %v5692 = vadd.f32 %v5690, %v5691
        %v5693 = vadd.f32 %v5247, %v5249
        %v5694 = vrot.slane %v5693, 4
        %v5695 = vadd.f32 %v5693, %v5694
        %v5696 = vrot.slane %v5695, 2
        %v5697 = vadd.f32 %v5695, %v5696
        %v5698 = vrot.slane %v5697, 1
        %v5699 = vadd.f32 %v5697, %v5698
        %v5700 = vadd.f32 %v5248, %v5250
        %v5701 = vrot.slane %v5700, 4
        %v5702 = vadd.f32 %v5700, %v5701
        %v5703 = vrot.slane %v5702, 2
        %v5704 = vadd.f32 %v5702, %v5703
        %v5705 = vrot.slane %v5704, 1
        %v5706 = vadd.f32 %v5704, %v5705
        %v5707 = vadd.f32 %v5251, %v5253
        %v5708 = vrot.slane %v5707, 4
        %v5709 = vadd.f32 %v5707, %v5708
        %v5710 = vrot.slane %v5709, 2
        %v5711 = vadd.f32 %v5709, %v5710
        %v5712 = vrot.slane %v5711, 1
        %v5713 = vadd.f32 %v5711, %v5712
        %v5714 = vadd.f32 %v5252, %v5254
        %v5715 = vrot.slane %v5714, 4
        %v5716 = vadd.f32 %v5714, %v5715
        %v5717 = vrot.slane %v5716, 2
        %v5718 = vadd.f32 %v5716, %v5717
        %v5719 = vrot.slane %v5718, 1
        %v5720 = vadd.f32 %v5718, %v5719
        %v5721 = vadd.f32 %v5255, %v5257
        %v5722 = vrot.slane %v5721, 4
        %v5723 = vadd.f32 %v5721, %v5722
        %v5724 = vrot.slane %v5723, 2
        %v5725 = vadd.f32 %v5723, %v5724
        %v5726 = vrot.slane %v5725, 1
        %v5727 = vadd.f32 %v5725, %v5726
        %v5728 = vadd.f32 %v5256, %v5258
        %v5729 = vrot.slane %v5728, 4
        %v5730 = vadd.f32 %v5728, %v5729
        %v5731 = vrot.slane %v5730, 2
        %v5732 = vadd.f32 %v5730, %v5731
        %v5733 = vrot.slane %v5732, 1
        %v5734 = vadd.f32 %v5732, %v5733
        %v5735 = vadd.f32 %v5259, %v5261
        %v5736 = vrot.slane %v5735, 4
        %v5737 = vadd.f32 %v5735, %v5736
        %v5738 = vrot.slane %v5737, 2
        %v5739 = vadd.f32 %v5737, %v5738
        %v5740 = vrot.slane %v5739, 1
        %v5741 = vadd.f32 %v5739, %v5740
        %v5742 = vadd.f32 %v5260, %v5262
        %v5743 = vrot.slane %v5742, 4
        %v5744 = vadd.f32 %v5742, %v5743
        %v5745 = vrot.slane %v5744, 2
        %v5746 = vadd.f32 %v5744, %v5745
        %v5747 = vrot.slane %v5746, 1
        %v5748 = vadd.f32 %v5746, %v5747
        %v5749 = vadd.f32 %v5263, %v5265
        %v5750 = vrot.slane %v5749, 4
        %v5751 = vadd.f32 %v5749, %v5750
        %v5752 = vrot.slane %v5751, 2
        %v5753 = vadd.f32 %v5751, %v5752
        %v5754 = vrot.slane %v5753, 1
        %v5755 = vadd.f32 %v5753, %v5754
        %v5756 = vadd.f32 %v5264, %v5266
        %v5757 = vrot.slane %v5756, 4
        %v5758 = vadd.f32 %v5756, %v5757
        %v5759 = vrot.slane %v5758, 2
        %v5760 = vadd.f32 %v5758, %v5759
        %v5761 = vrot.slane %v5760, 1
        %v5762 = vadd.f32 %v5760, %v5761
        %v5763 = vadd.f32 %v5267, %v5269
        %v5764 = vrot.slane %v5763, 4
        %v5765 = vadd.f32 %v5763, %v5764
        %v5766 = vrot.slane %v5765, 2
        %v5767 = vadd.f32 %v5765, %v5766
        %v5768 = vrot.slane %v5767, 1
        %v5769 = vadd.f32 %v5767, %v5768
        %v5770 = vadd.f32 %v5268, %v5270
        %v5771 = vrot.slane %v5770, 4
        %v5772 = vadd.f32 %v5770, %v5771
        %v5773 = vrot.slane %v5772, 2
        %v5774 = vadd.f32 %v5772, %v5773
        %v5775 = vrot.slane %v5774, 1
        %v5776 = vadd.f32 %v5774, %v5775
        %v5777 = vadd.f32 %v5271, %v5273
        %v5778 = vrot.slane %v5777, 4
        %v5779 = vadd.f32 %v5777, %v5778
        %v5780 = vrot.slane %v5779, 2
        %v5781 = vadd.f32 %v5779, %v5780
        %v5782 = vrot.slane %v5781, 1
        %v5783 = vadd.f32 %v5781, %v5782
        %v5784 = vadd.f32 %v5272, %v5274
        %v5785 = vrot.slane %v5784, 4
        %v5786 = vadd.f32 %v5784, %v5785
        %v5787 = vrot.slane %v5786, 2
        %v5788 = vadd.f32 %v5786, %v5787
        %v5789 = vrot.slane %v5788, 1
        %v5790 = vadd.f32 %v5788, %v5789
        %v5791 = vadd.f32 %v5275, %v5277
        %v5792 = vrot.slane %v5791, 4
        %v5793 = vadd.f32 %v5791, %v5792
        %v5794 = vrot.slane %v5793, 2
        %v5795 = vadd.f32 %v5793, %v5794
        %v5796 = vrot.slane %v5795, 1
        %v5797 = vadd.f32 %v5795, %v5796
        %v5798 = vadd.f32 %v5276, %v5278
        %v5799 = vrot.slane %v5798, 4
        %v5800 = vadd.f32 %v5798, %v5799
        %v5801 = vrot.slane %v5800, 2
        %v5802 = vadd.f32 %v5800, %v5801
        %v5803 = vrot.slane %v5802, 1
        %v5804 = vadd.f32 %v5802, %v5803
        %v5805 = vadd.f32 %v5279, %v5281
        %v5806 = vrot.slane %v5805, 4
        %v5807 = vadd.f32 %v5805, %v5806
        %v5808 = vrot.slane %v5807, 2
        %v5809 = vadd.f32 %v5807, %v5808
        %v5810 = vrot.slane %v5809, 1
        %v5811 = vadd.f32 %v5809, %v5810
        %v5812 = vadd.f32 %v5280, %v5282
        %v5813 = vrot.slane %v5812, 4
        %v5814 = vadd.f32 %v5812, %v5813
        %v5815 = vrot.slane %v5814, 2
        %v5816 = vadd.f32 %v5814, %v5815
        %v5817 = vrot.slane %v5816, 1
        %v5818 = vadd.f32 %v5816, %v5817
        %v5819 = vadd.f32 %v5283, %v5285
        %v5820 = vrot.slane %v5819, 4
        %v5821 = vadd.f32 %v5819, %v5820
        %v5822 = vrot.slane %v5821, 2
        %v5823 = vadd.f32 %v5821, %v5822
        %v5824 = vrot.slane %v5823, 1
        %v5825 = vadd.f32 %v5823, %v5824
        %v5826 = vadd.f32 %v5284, %v5286
        %v5827 = vrot.slane %v5826, 4
        %v5828 = vadd.f32 %v5826, %v5827
        %v5829 = vrot.slane %v5828, 2
        %v5830 = vadd.f32 %v5828, %v5829
        %v5831 = vrot.slane %v5830, 1
        %v5832 = vadd.f32 %v5830, %v5831
        %v5833 = vadd.f32 %v5287, %v5289
        %v5834 = vrot.slane %v5833, 4
        %v5835 = vadd.f32 %v5833, %v5834
        %v5836 = vrot.slane %v5835, 2
        %v5837 = vadd.f32 %v5835, %v5836
        %v5838 = vrot.slane %v5837, 1
        %v5839 = vadd.f32 %v5837, %v5838
        %v5840 = vadd.f32 %v5288, %v5290
        %v5841 = vrot.slane %v5840, 4
        %v5842 = vadd.f32 %v5840, %v5841
        %v5843 = vrot.slane %v5842, 2
        %v5844 = vadd.f32 %v5842, %v5843
        %v5845 = vrot.slane %v5844, 1
        %v5846 = vadd.f32 %v5844, %v5845
        %v5847 = vadd.f32 %v5291, %v5293
        %v5848 = vrot.slane %v5847, 4
        %v5849 = vadd.f32 %v5847, %v5848
        %v5850 = vrot.slane %v5849, 2
        %v5851 = vadd.f32 %v5849, %v5850
        %v5852 = vrot.slane %v5851, 1
        %v5853 = vadd.f32 %v5851, %v5852
        %v5854 = vadd.f32 %v5292, %v5294
        %v5855 = vrot.slane %v5854, 4
        %v5856 = vadd.f32 %v5854, %v5855
        %v5857 = vrot.slane %v5856, 2
        %v5858 = vadd.f32 %v5856, %v5857
        %v5859 = vrot.slane %v5858, 1
        %v5860 = vadd.f32 %v5858, %v5859
        %v5861 = vadd.f32 %v5295, %v5297
        %v5862 = vrot.slane %v5861, 4
        %v5863 = vadd.f32 %v5861, %v5862
        %v5864 = vrot.slane %v5863, 2
        %v5865 = vadd.f32 %v5863, %v5864
        %v5866 = vrot.slane %v5865, 1
        %v5867 = vadd.f32 %v5865, %v5866
        %v5868 = vadd.f32 %v5296, %v5298
        %v5869 = vrot.slane %v5868, 4
        %v5870 = vadd.f32 %v5868, %v5869
        %v5871 = vrot.slane %v5870, 2
        %v5872 = vadd.f32 %v5870, %v5871
        %v5873 = vrot.slane %v5872, 1
        %v5874 = vadd.f32 %v5872, %v5873
        %v5875 = vadd.f32 %v5299, %v5301
        %v5876 = vrot.slane %v5875, 4
        %v5877 = vadd.f32 %v5875, %v5876
        %v5878 = vrot.slane %v5877, 2
        %v5879 = vadd.f32 %v5877, %v5878
        %v5880 = vrot.slane %v5879, 1
        %v5881 = vadd.f32 %v5879, %v5880
        %v5882 = vadd.f32 %v5300, %v5302
        %v5883 = vrot.slane %v5882, 4
        %v5884 = vadd.f32 %v5882, %v5883
        %v5885 = vrot.slane %v5884, 2
        %v5886 = vadd.f32 %v5884, %v5885
        %v5887 = vrot.slane %v5886, 1
        %v5888 = vadd.f32 %v5886, %v5887
        %v5889 = vadd.f32 %v5303, %v5305
        %v5890 = vrot.slane %v5889, 4
        %v5891 = vadd.f32 %v5889, %v5890
        %v5892 = vrot.slane %v5891, 2
        %v5893 = vadd.f32 %v5891, %v5892
        %v5894 = vrot.slane %v5893, 1
        %v5895 = vadd.f32 %v5893, %v5894
        %v5896 = vadd.f32 %v5304, %v5306
        %v5897 = vrot.slane %v5896, 4
        %v5898 = vadd.f32 %v5896, %v5897
        %v5899 = vrot.slane %v5898, 2
        %v5900 = vadd.f32 %v5898, %v5899
        %v5901 = vrot.slane %v5900, 1
        %v5902 = vadd.f32 %v5900, %v5901
        %v5903 = vadd.f32 %v5307, %v5309
        %v5904 = vrot.slane %v5903, 4
        %v5905 = vadd.f32 %v5903, %v5904
        %v5906 = vrot.slane %v5905, 2
        %v5907 = vadd.f32 %v5905, %v5906
        %v5908 = vrot.slane %v5907, 1
        %v5909 = vadd.f32 %v5907, %v5908
        %v5910 = vadd.f32 %v5308, %v5310
        %v5911 = vrot.slane %v5910, 4
        %v5912 = vadd.f32 %v5910, %v5911
        %v5913 = vrot.slane %v5912, 2
        %v5914 = vadd.f32 %v5912, %v5913
        %v5915 = vrot.slane %v5914, 1
        %v5916 = vadd.f32 %v5914, %v5915
        %v5917 = vadd.f32 %v5311, %v5313
        %v5918 = vrot.slane %v5917, 4
        %v5919 = vadd.f32 %v5917, %v5918
        %v5920 = vrot.slane %v5919, 2
        %v5921 = vadd.f32 %v5919, %v5920
        %v5922 = vrot.slane %v5921, 1
        %v5923 = vadd.f32 %v5921, %v5922
        %v5924 = vadd.f32 %v5312, %v5314
        %v5925 = vrot.slane %v5924, 4
        %v5926 = vadd.f32 %v5924, %v5925
        %v5927 = vrot.slane %v5926, 2
        %v5928 = vadd.f32 %v5926, %v5927
        %v5929 = vrot.slane %v5928, 1
        %v5930 = vadd.f32 %v5928, %v5929
        %v5931 = vadd.f32 %v5315, %v5317
        %v5932 = vrot.slane %v5931, 4
        %v5933 = vadd.f32 %v5931, %v5932
        %v5934 = vrot.slane %v5933, 2
        %v5935 = vadd.f32 %v5933, %v5934
        %v5936 = vrot.slane %v5935, 1
        %v5937 = vadd.f32 %v5935, %v5936
        %v5938 = vadd.f32 %v5316, %v5318
        %v5939 = vrot.slane %v5938, 4
        %v5940 = vadd.f32 %v5938, %v5939
        %v5941 = vrot.slane %v5940, 2
        %v5942 = vadd.f32 %v5940, %v5941
        %v5943 = vrot.slane %v5942, 1
        %v5944 = vadd.f32 %v5942, %v5943
        %v5945 = vadd.f32 %v5319, %v5321
        %v5946 = vrot.slane %v5945, 4
        %v5947 = vadd.f32 %v5945, %v5946
        %v5948 = vrot.slane %v5947, 2
        %v5949 = vadd.f32 %v5947, %v5948
        %v5950 = vrot.slane %v5949, 1
        %v5951 = vadd.f32 %v5949, %v5950
        %v5952 = vadd.f32 %v5320, %v5322
        %v5953 = vrot.slane %v5952, 4
        %v5954 = vadd.f32 %v5952, %v5953
        %v5955 = vrot.slane %v5954, 2
        %v5956 = vadd.f32 %v5954, %v5955
        %v5957 = vrot.slane %v5956, 1
        %v5958 = vadd.f32 %v5956, %v5957
        %v5959 = vadd.f32 %v5323, %v5325
        %v5960 = vrot.slane %v5959, 4
        %v5961 = vadd.f32 %v5959, %v5960
        %v5962 = vrot.slane %v5961, 2
        %v5963 = vadd.f32 %v5961, %v5962
        %v5964 = vrot.slane %v5963, 1
        %v5965 = vadd.f32 %v5963, %v5964
        %v5966 = vadd.f32 %v5324, %v5326
        %v5967 = vrot.slane %v5966, 4
        %v5968 = vadd.f32 %v5966, %v5967
        %v5969 = vrot.slane %v5968, 2
        %v5970 = vadd.f32 %v5968, %v5969
        %v5971 = vrot.slane %v5970, 1
        %v5972 = vadd.f32 %v5970, %v5971
        %v5973 = vadd.f32 %v5327, %v5329
        %v5974 = vrot.slane %v5973, 4
        %v5975 = vadd.f32 %v5973, %v5974
        %v5976 = vrot.slane %v5975, 2
        %v5977 = vadd.f32 %v5975, %v5976
        %v5978 = vrot.slane %v5977, 1
        %v5979 = vadd.f32 %v5977, %v5978
        %v5980 = vadd.f32 %v5328, %v5330
        %v5981 = vrot.slane %v5980, 4
        %v5982 = vadd.f32 %v5980, %v5981
        %v5983 = vrot.slane %v5982, 2
        %v5984 = vadd.f32 %v5982, %v5983
        %v5985 = vrot.slane %v5984, 1
        %v5986 = vadd.f32 %v5984, %v5985
        %v5987 = vadd.f32 %v5331, %v5333
        %v5988 = vrot.slane %v5987, 4
        %v5989 = vadd.f32 %v5987, %v5988
        %v5990 = vrot.slane %v5989, 2
        %v5991 = vadd.f32 %v5989, %v5990
        %v5992 = vrot.slane %v5991, 1
        %v5993 = vadd.f32 %v5991, %v5992
        %v5994 = vadd.f32 %v5332, %v5334
        %v5995 = vrot.slane %v5994, 4
        %v5996 = vadd.f32 %v5994, %v5995
        %v5997 = vrot.slane %v5996, 2
        %v5998 = vadd.f32 %v5996, %v5997
        %v5999 = vrot.slane %v5998, 1
        %v6000 = vadd.f32 %v5998, %v5999
        %v6001 = vadd.f32 %v5335, %v5337
        %v6002 = vrot.slane %v6001, 4
        %v6003 = vadd.f32 %v6001, %v6002
        %v6004 = vrot.slane %v6003, 2
        %v6005 = vadd.f32 %v6003, %v6004
        %v6006 = vrot.slane %v6005, 1
        %v6007 = vadd.f32 %v6005, %v6006
        %v6008 = vadd.f32 %v5336, %v5338
        %v6009 = vrot.slane %v6008, 4
        %v6010 = vadd.f32 %v6008, %v6009
        %v6011 = vrot.slane %v6010, 2
        %v6012 = vadd.f32 %v6010, %v6011
        %v6013 = vrot.slane %v6012, 1
        %v6014 = vadd.f32 %v6012, %v6013
        %v6015 = vadd.f32 %v5339, %v5341
        %v6016 = vrot.slane %v6015, 4
        %v6017 = vadd.f32 %v6015, %v6016
        %v6018 = vrot.slane %v6017, 2
        %v6019 = vadd.f32 %v6017, %v6018
        %v6020 = vrot.slane %v6019, 1
        %v6021 = vadd.f32 %v6019, %v6020
        %v6022 = vadd.f32 %v5340, %v5342
        %v6023 = vrot.slane %v6022, 4
        %v6024 = vadd.f32 %v6022, %v6023
        %v6025 = vrot.slane %v6024, 2
        %v6026 = vadd.f32 %v6024, %v6025
        %v6027 = vrot.slane %v6026, 1
        %v6028 = vadd.f32 %v6026, %v6027
        %v6029 = vadd.f32 %v5343, %v5345
        %v6030 = vrot.slane %v6029, 4
        %v6031 = vadd.f32 %v6029, %v6030
        %v6032 = vrot.slane %v6031, 2
        %v6033 = vadd.f32 %v6031, %v6032
        %v6034 = vrot.slane %v6033, 1
        %v6035 = vadd.f32 %v6033, %v6034
        %v6036 = vadd.f32 %v5344, %v5346
        %v6037 = vrot.slane %v6036, 4
        %v6038 = vadd.f32 %v6036, %v6037
        %v6039 = vrot.slane %v6038, 2
        %v6040 = vadd.f32 %v6038, %v6039
        %v6041 = vrot.slane %v6040, 1
        %v6042 = vadd.f32 %v6040, %v6041
        %v6043 = vadd.f32 %v5347, %v5349
        %v6044 = vrot.slane %v6043, 4
        %v6045 = vadd.f32 %v6043, %v6044
        %v6046 = vrot.slane %v6045, 2
        %v6047 = vadd.f32 %v6045, %v6046
        %v6048 = vrot.slane %v6047, 1
        %v6049 = vadd.f32 %v6047, %v6048
        %v6050 = vadd.f32 %v5348, %v5350
        %v6051 = vrot.slane %v6050, 4
        %v6052 = vadd.f32 %v6050, %v6051
        %v6053 = vrot.slane %v6052, 2
        %v6054 = vadd.f32 %v6052, %v6053
        %v6055 = vrot.slane %v6054, 1
        %v6056 = vadd.f32 %v6054, %v6055
        %v6057 = vadd.f32 %v5351, %v5353
        %v6058 = vrot.slane %v6057, 4
        %v6059 = vadd.f32 %v6057, %v6058
        %v6060 = vrot.slane %v6059, 2
        %v6061 = vadd.f32 %v6059, %v6060
        %v6062 = vrot.slane %v6061, 1
        %v6063 = vadd.f32 %v6061, %v6062
        %v6064 = vadd.f32 %v5352, %v5354
        %v6065 = vrot.slane %v6064, 4
        %v6066 = vadd.f32 %v6064, %v6065
        %v6067 = vrot.slane %v6066, 2
        %v6068 = vadd.f32 %v6066, %v6067
        %v6069 = vrot.slane %v6068, 1
        %v6070 = vadd.f32 %v6068, %v6069
        %v6071 = vadd.f32 %v5355, %v5357
        %v6072 = vrot.slane %v6071, 4
        %v6073 = vadd.f32 %v6071, %v6072
        %v6074 = vrot.slane %v6073, 2
        %v6075 = vadd.f32 %v6073, %v6074
        %v6076 = vrot.slane %v6075, 1
        %v6077 = vadd.f32 %v6075, %v6076
        %v6078 = vadd.f32 %v5356, %v5358
        %v6079 = vrot.slane %v6078, 4
        %v6080 = vadd.f32 %v6078, %v6079
        %v6081 = vrot.slane %v6080, 2
        %v6082 = vadd.f32 %v6080, %v6081
        %v6083 = vrot.slane %v6082, 1
        %v6084 = vadd.f32 %v6082, %v6083
        %v6085 = vadd.f32 %v5359, %v5361
        %v6086 = vrot.slane %v6085, 4
        %v6087 = vadd.f32 %v6085, %v6086
        %v6088 = vrot.slane %v6087, 2
        %v6089 = vadd.f32 %v6087, %v6088
        %v6090 = vrot.slane %v6089, 1
        %v6091 = vadd.f32 %v6089, %v6090
        %v6092 = vadd.f32 %v5360, %v5362
        %v6093 = vrot.slane %v6092, 4
        %v6094 = vadd.f32 %v6092, %v6093
        %v6095 = vrot.slane %v6094, 2
        %v6096 = vadd.f32 %v6094, %v6095
        %v6097 = vrot.slane %v6096, 1
        %v6098 = vadd.f32 %v6096, %v6097
        %v6099 = vadd.f32 %v5363, %v5365
        %v6100 = vrot.slane %v6099, 4
        %v6101 = vadd.f32 %v6099, %v6100
        %v6102 = vrot.slane %v6101, 2
        %v6103 = vadd.f32 %v6101, %v6102
        %v6104 = vrot.slane %v6103, 1
        %v6105 = vadd.f32 %v6103, %v6104
        %v6106 = vadd.f32 %v5364, %v5366
        %v6107 = vrot.slane %v6106, 4
        %v6108 = vadd.f32 %v6106, %v6107
        %v6109 = vrot.slane %v6108, 2
        %v6110 = vadd.f32 %v6108, %v6109
        %v6111 = vrot.slane %v6110, 1
        %v6112 = vadd.f32 %v6110, %v6111
        %v6113 = vadd.f32 %v5367, %v5369
        %v6114 = vrot.slane %v6113, 4
        %v6115 = vadd.f32 %v6113, %v6114
        %v6116 = vrot.slane %v6115, 2
        %v6117 = vadd.f32 %v6115, %v6116
        %v6118 = vrot.slane %v6117, 1
        %v6119 = vadd.f32 %v6117, %v6118
        %v6120 = vadd.f32 %v5368, %v5370
        %v6121 = vrot.slane %v6120, 4
        %v6122 = vadd.f32 %v6120, %v6121
        %v6123 = vrot.slane %v6122, 2
        %v6124 = vadd.f32 %v6122, %v6123
        %v6125 = vrot.slane %v6124, 1
        %v6126 = vadd.f32 %v6124, %v6125
        %v6127 = vadd.f32 %v5371, %v5373
        %v6128 = vrot.slane %v6127, 4
        %v6129 = vadd.f32 %v6127, %v6128
        %v6130 = vrot.slane %v6129, 2
        %v6131 = vadd.f32 %v6129, %v6130
        %v6132 = vrot.slane %v6131, 1
        %v6133 = vadd.f32 %v6131, %v6132
        %v6134 = vadd.f32 %v5372, %v5374
        %v6135 = vrot.slane %v6134, 4
        %v6136 = vadd.f32 %v6134, %v6135
        %v6137 = vrot.slane %v6136, 2
        %v6138 = vadd.f32 %v6136, %v6137
        %v6139 = vrot.slane %v6138, 1
        %v6140 = vadd.f32 %v6138, %v6139
        %v6141 = vadd.f32 %v5375, %v5377
        %v6142 = vrot.slane %v6141, 4
        %v6143 = vadd.f32 %v6141, %v6142
        %v6144 = vrot.slane %v6143, 2
        %v6145 = vadd.f32 %v6143, %v6144
        %v6146 = vrot.slane %v6145, 1
        %v6147 = vadd.f32 %v6145, %v6146
        %v6148 = vadd.f32 %v5376, %v5378
        %v6149 = vrot.slane %v6148, 4
        %v6150 = vadd.f32 %v6148, %v6149
        %v6151 = vrot.slane %v6150, 2
        %v6152 = vadd.f32 %v6150, %v6151
        %v6153 = vrot.slane %v6152, 1
        %v6154 = vadd.f32 %v6152, %v6153
        %v6155 = vadd.f32 %v5379, %v5381
        %v6156 = vrot.slane %v6155, 4
        %v6157 = vadd.f32 %v6155, %v6156
        %v6158 = vrot.slane %v6157, 2
        %v6159 = vadd.f32 %v6157, %v6158
        %v6160 = vrot.slane %v6159, 1
        %v6161 = vadd.f32 %v6159, %v6160
        %v6162 = vadd.f32 %v5380, %v5382
        %v6163 = vrot.slane %v6162, 4
        %v6164 = vadd.f32 %v6162, %v6163
        %v6165 = vrot.slane %v6164, 2
        %v6166 = vadd.f32 %v6164, %v6165
        %v6167 = vrot.slane %v6166, 1
        %v6168 = vadd.f32 %v6166, %v6167
        %v6169 = vadd.f32 %v5383, %v5385
        %v6170 = vrot.slane %v6169, 4
        %v6171 = vadd.f32 %v6169, %v6170
        %v6172 = vrot.slane %v6171, 2
        %v6173 = vadd.f32 %v6171, %v6172
        %v6174 = vrot.slane %v6173, 1
        %v6175 = vadd.f32 %v6173, %v6174
        %v6176 = vadd.f32 %v5384, %v5386
        %v6177 = vrot.slane %v6176, 4
        %v6178 = vadd.f32 %v6176, %v6177
        %v6179 = vrot.slane %v6178, 2
        %v6180 = vadd.f32 %v6178, %v6179
        %v6181 = vrot.slane %v6180, 1
        %v6182 = vadd.f32 %v6180, %v6181
        %v6183 = vadd.f32 %v5387, %v5389
        %v6184 = vrot.slane %v6183, 4
        %v6185 = vadd.f32 %v6183, %v6184
        %v6186 = vrot.slane %v6185, 2
        %v6187 = vadd.f32 %v6185, %v6186
        %v6188 = vrot.slane %v6187, 1
        %v6189 = vadd.f32 %v6187, %v6188
        %v6190 = vadd.f32 %v5388, %v5390
        %v6191 = vrot.slane %v6190, 4
        %v6192 = vadd.f32 %v6190, %v6191
        %v6193 = vrot.slane %v6192, 2
        %v6194 = vadd.f32 %v6192, %v6193
        %v6195 = vrot.slane %v6194, 1
        %v6196 = vadd.f32 %v6194, %v6195
        %v6197 = vadd.f32 %v5391, %v5393
        %v6198 = vrot.slane %v6197, 4
        %v6199 = vadd.f32 %v6197, %v6198
        %v6200 = vrot.slane %v6199, 2
        %v6201 = vadd.f32 %v6199, %v6200
        %v6202 = vrot.slane %v6201, 1
        %v6203 = vadd.f32 %v6201, %v6202
        %v6204 = vadd.f32 %v5392, %v5394
        %v6205 = vrot.slane %v6204, 4
        %v6206 = vadd.f32 %v6204, %v6205
        %v6207 = vrot.slane %v6206, 2
        %v6208 = vadd.f32 %v6206, %v6207
        %v6209 = vrot.slane %v6208, 1
        %v6210 = vadd.f32 %v6208, %v6209
        %v6211 = vadd.f32 %v5395, %v5397
        %v6212 = vrot.slane %v6211, 4
        %v6213 = vadd.f32 %v6211, %v6212
        %v6214 = vrot.slane %v6213, 2
        %v6215 = vadd.f32 %v6213, %v6214
        %v6216 = vrot.slane %v6215, 1
        %v6217 = vadd.f32 %v6215, %v6216
        %v6218 = vadd.f32 %v5396, %v5398
        %v6219 = vrot.slane %v6218, 4
        %v6220 = vadd.f32 %v6218, %v6219
        %v6221 = vrot.slane %v6220, 2
        %v6222 = vadd.f32 %v6220, %v6221
        %v6223 = vrot.slane %v6222, 1
        %v6224 = vadd.f32 %v6222, %v6223
        %v6225 = vadd.f32 %v5399, %v5401
        %v6226 = vrot.slane %v6225, 4
        %v6227 = vadd.f32 %v6225, %v6226
        %v6228 = vrot.slane %v6227, 2
        %v6229 = vadd.f32 %v6227, %v6228
        %v6230 = vrot.slane %v6229, 1
        %v6231 = vadd.f32 %v6229, %v6230
        %v6232 = vadd.f32 %v5400, %v5402
        %v6233 = vrot.slane %v6232, 4
        %v6234 = vadd.f32 %v6232, %v6233
        %v6235 = vrot.slane %v6234, 2
        %v6236 = vadd.f32 %v6234, %v6235
        %v6237 = vrot.slane %v6236, 1
        %v6238 = vadd.f32 %v6236, %v6237
        %v6239 = vadd.f32 %v5403, %v5405
        %v6240 = vrot.slane %v6239, 4
        %v6241 = vadd.f32 %v6239, %v6240
        %v6242 = vrot.slane %v6241, 2
        %v6243 = vadd.f32 %v6241, %v6242
        %v6244 = vrot.slane %v6243, 1
        %v6245 = vadd.f32 %v6243, %v6244
        %v6246 = vadd.f32 %v5404, %v5406
        %v6247 = vrot.slane %v6246, 4
        %v6248 = vadd.f32 %v6246, %v6247
        %v6249 = vrot.slane %v6248, 2
        %v6250 = vadd.f32 %v6248, %v6249
        %v6251 = vrot.slane %v6250, 1
        %v6252 = vadd.f32 %v6250, %v6251
        %v6253 = vadd.f32 %v5407, %v5409
        %v6254 = vrot.slane %v6253, 4
        %v6255 = vadd.f32 %v6253, %v6254
        %v6256 = vrot.slane %v6255, 2
        %v6257 = vadd.f32 %v6255, %v6256
        %v6258 = vrot.slane %v6257, 1
        %v6259 = vadd.f32 %v6257, %v6258
        %v6260 = vadd.f32 %v5408, %v5410
        %v6261 = vrot.slane %v6260, 4
        %v6262 = vadd.f32 %v6260, %v6261
        %v6263 = vrot.slane %v6262, 2
        %v6264 = vadd.f32 %v6262, %v6263
        %v6265 = vrot.slane %v6264, 1
        %v6266 = vadd.f32 %v6264, %v6265
        %v6267 = vadd.f32 %v5411, %v5413
        %v6268 = vrot.slane %v6267, 4
        %v6269 = vadd.f32 %v6267, %v6268
        %v6270 = vrot.slane %v6269, 2
        %v6271 = vadd.f32 %v6269, %v6270
        %v6272 = vrot.slane %v6271, 1
        %v6273 = vadd.f32 %v6271, %v6272
        %v6274 = vadd.f32 %v5412, %v5414
        %v6275 = vrot.slane %v6274, 4
        %v6276 = vadd.f32 %v6274, %v6275
        %v6277 = vrot.slane %v6276, 2
        %v6278 = vadd.f32 %v6276, %v6277
        %v6279 = vrot.slane %v6278, 1
        %v6280 = vadd.f32 %v6278, %v6279
        %v6281 = vadd.f32 %v5415, %v5417
        %v6282 = vrot.slane %v6281, 4
        %v6283 = vadd.f32 %v6281, %v6282
        %v6284 = vrot.slane %v6283, 2
        %v6285 = vadd.f32 %v6283, %v6284
        %v6286 = vrot.slane %v6285, 1
        %v6287 = vadd.f32 %v6285, %v6286
        %v6288 = vadd.f32 %v5416, %v5418
        %v6289 = vrot.slane %v6288, 4
        %v6290 = vadd.f32 %v6288, %v6289
        %v6291 = vrot.slane %v6290, 2
        %v6292 = vadd.f32 %v6290, %v6291
        %v6293 = vrot.slane %v6292, 1
        %v6294 = vadd.f32 %v6292, %v6293
        %v6295 = vadd.f32 %v5419, %v5421
        %v6296 = vrot.slane %v6295, 4
        %v6297 = vadd.f32 %v6295, %v6296
        %v6298 = vrot.slane %v6297, 2
        %v6299 = vadd.f32 %v6297, %v6298
        %v6300 = vrot.slane %v6299, 1
        %v6301 = vadd.f32 %v6299, %v6300
        %v6302 = vadd.f32 %v5420, %v5422
        %v6303 = vrot.slane %v6302, 4
        %v6304 = vadd.f32 %v6302, %v6303
        %v6305 = vrot.slane %v6304, 2
        %v6306 = vadd.f32 %v6304, %v6305
        %v6307 = vrot.slane %v6306, 1
        %v6308 = vadd.f32 %v6306, %v6307
        %v6309 = vadd.f32 %v5423, %v5425
        %v6310 = vrot.slane %v6309, 4
        %v6311 = vadd.f32 %v6309, %v6310
        %v6312 = vrot.slane %v6311, 2
        %v6313 = vadd.f32 %v6311, %v6312
        %v6314 = vrot.slane %v6313, 1
        %v6315 = vadd.f32 %v6313, %v6314
        %v6316 = vadd.f32 %v5424, %v5426
        %v6317 = vrot.slane %v6316, 4
        %v6318 = vadd.f32 %v6316, %v6317
        %v6319 = vrot.slane %v6318, 2
        %v6320 = vadd.f32 %v6318, %v6319
        %v6321 = vrot.slane %v6320, 1
        %v6322 = vadd.f32 %v6320, %v6321
        %v6323 = vld [vmem:[%s8] sm:$0x3]
        %v6325 = vlaneseq
        %v6326 = vshrl.u32 %v6325, 7
        %v6327 = vsub.s32 0, %v6326
        %v6328 = vrot.slane %v6323, %v6327
        %v6329 = vlaneseq
        %v6330 = vshrl.u32 %v6329, 7
        %v6331 = vsub.s32 1, %v6330
        %v6332 = vrot.slane %v6323, %v6331
        %v6335 = vmul.f32 %v1271, %v6328
        %v6336 = vmul.f32 %v1272, %v6332
        %v6337 = vmul.f32 %v1273, %v6328
        %v6338 = vmul.f32 %v1274, %v6332
        %v6339 = vmul.f32 %v1275, %v6328
        %v6340 = vmul.f32 %v1276, %v6332
        %v6341 = vmul.f32 %v1277, %v6328
        %v6342 = vmul.f32 %v1278, %v6332
        %v6343 = vmul.f32 %v1279, %v6328
        %v6344 = vmul.f32 %v1280, %v6332
        %v6345 = vmul.f32 %v1281, %v6328
        %v6346 = vmul.f32 %v1282, %v6332
        %v6347 = vmul.f32 %v1283, %v6328
        %v6348 = vmul.f32 %v1284, %v6332
        %v6349 = vmul.f32 %v1285, %v6328
        %v6350 = vmul.f32 %v1286, %v6332
        %v6367 = vrot.slane %v6335, 1
        %v6368 = vrot.slane %v6336, 1
        %v6369 = vrot.slane %v6335, 2
        %v6370 = vrot.slane %v6336, 2
        %v6371 = vrot.slane %v6335, 3
        %v6372 = vrot.slane %v6336, 3
        %v6373 = vrot.slane %v6335, 4
        %v6374 = vrot.slane %v6336, 4
        %v6375 = vrot.slane %v6335, 5
        %v6376 = vrot.slane %v6336, 5
        %v6377 = vrot.slane %v6335, 6
        %v6378 = vrot.slane %v6336, 6
        %v6379 = vrot.slane %v6335, 7
        %v6380 = vrot.slane %v6336, 7
        %v6381 = vrot.slane %v6337, 1
        %v6382 = vrot.slane %v6338, 1
        %v6383 = vrot.slane %v6337, 2
        %v6384 = vrot.slane %v6338, 2
        %v6385 = vrot.slane %v6337, 3
        %v6386 = vrot.slane %v6338, 3
        %v6387 = vrot.slane %v6337, 4
        %v6388 = vrot.slane %v6338, 4
        %v6389 = vrot.slane %v6337, 5
        %v6390 = vrot.slane %v6338, 5
        %v6391 = vrot.slane %v6337, 6
        %v6392 = vrot.slane %v6338, 6
        %v6393 = vrot.slane %v6337, 7
        %v6394 = vrot.slane %v6338, 7
        %v6395 = vrot.slane %v6339, 1
        %v6396 = vrot.slane %v6340, 1
        %v6397 = vrot.slane %v6339, 2
        %v6398 = vrot.slane %v6340, 2
        %v6399 = vrot.slane %v6339, 3
        %v6400 = vrot.slane %v6340, 3
        %v6401 = vrot.slane %v6339, 4
        %v6402 = vrot.slane %v6340, 4
        %v6403 = vrot.slane %v6339, 5
        %v6404 = vrot.slane %v6340, 5
        %v6405 = vrot.slane %v6339, 6
        %v6406 = vrot.slane %v6340, 6
        %v6407 = vrot.slane %v6339, 7
        %v6408 = vrot.slane %v6340, 7
        %v6409 = vrot.slane %v6341, 1
        %v6410 = vrot.slane %v6342, 1
        %v6411 = vrot.slane %v6341, 2
        %v6412 = vrot.slane %v6342, 2
        %v6413 = vrot.slane %v6341, 3
        %v6414 = vrot.slane %v6342, 3
        %v6415 = vrot.slane %v6341, 4
        %v6416 = vrot.slane %v6342, 4
        %v6417 = vrot.slane %v6341, 5
        %v6418 = vrot.slane %v6342, 5
        %v6419 = vrot.slane %v6341, 6
        %v6420 = vrot.slane %v6342, 6
        %v6421 = vrot.slane %v6341, 7
        %v6422 = vrot.slane %v6342, 7
        %v6423 = vrot.slane %v6343, 1
        %v6424 = vrot.slane %v6344, 1
        %v6425 = vrot.slane %v6343, 2
        %v6426 = vrot.slane %v6344, 2
        %v6427 = vrot.slane %v6343, 3
        %v6428 = vrot.slane %v6344, 3
        %v6429 = vrot.slane %v6343, 4
        %v6430 = vrot.slane %v6344, 4
        %v6431 = vrot.slane %v6343, 5
        %v6432 = vrot.slane %v6344, 5
        %v6433 = vrot.slane %v6343, 6
        %v6434 = vrot.slane %v6344, 6
        %v6435 = vrot.slane %v6343, 7
        %v6436 = vrot.slane %v6344, 7
        %v6437 = vrot.slane %v6345, 1
        %v6438 = vrot.slane %v6346, 1
        %v6439 = vrot.slane %v6345, 2
        %v6440 = vrot.slane %v6346, 2
        %v6441 = vrot.slane %v6345, 3
        %v6442 = vrot.slane %v6346, 3
        %v6443 = vrot.slane %v6345, 4
        %v6444 = vrot.slane %v6346, 4
        %v6445 = vrot.slane %v6345, 5
        %v6446 = vrot.slane %v6346, 5
        %v6447 = vrot.slane %v6345, 6
        %v6448 = vrot.slane %v6346, 6
        %v6449 = vrot.slane %v6345, 7
        %v6450 = vrot.slane %v6346, 7
        %v6451 = vrot.slane %v6347, 1
        %v6452 = vrot.slane %v6348, 1
        %v6453 = vrot.slane %v6347, 2
        %v6454 = vrot.slane %v6348, 2
        %v6455 = vrot.slane %v6347, 3
        %v6456 = vrot.slane %v6348, 3
        %v6457 = vrot.slane %v6347, 4
        %v6458 = vrot.slane %v6348, 4
        %v6459 = vrot.slane %v6347, 5
        %v6460 = vrot.slane %v6348, 5
        %v6461 = vrot.slane %v6347, 6
        %v6462 = vrot.slane %v6348, 6
        %v6463 = vrot.slane %v6347, 7
        %v6464 = vrot.slane %v6348, 7
        %v6465 = vrot.slane %v6349, 1
        %v6466 = vrot.slane %v6350, 1
        %v6467 = vrot.slane %v6349, 2
        %v6468 = vrot.slane %v6350, 2
        %v6469 = vrot.slane %v6349, 3
        %v6470 = vrot.slane %v6350, 3
        %v6471 = vrot.slane %v6349, 4
        %v6472 = vrot.slane %v6350, 4
        %v6473 = vrot.slane %v6349, 5
        %v6474 = vrot.slane %v6350, 5
        %v6475 = vrot.slane %v6349, 6
        %v6476 = vrot.slane %v6350, 6
        %v6477 = vrot.slane %v6349, 7
        %v6478 = vrot.slane %v6350, 7
        %v6607 = vadd.f32 %v5433, %v6335
        %v6608 = vadd.f32 %v5440, %v6336
        %v6609 = vadd.f32 %v5447, %v6367
        %v6610 = vadd.f32 %v5454, %v6368
        %v6611 = vadd.f32 %v5461, %v6369
        %v6612 = vadd.f32 %v5468, %v6370
        %v6613 = vadd.f32 %v5475, %v6371
        %v6614 = vadd.f32 %v5482, %v6372
        %v6615 = vadd.f32 %v5489, %v6373
        %v6616 = vadd.f32 %v5496, %v6374
        %v6617 = vadd.f32 %v5503, %v6375
        %v6618 = vadd.f32 %v5510, %v6376
        %v6619 = vadd.f32 %v5517, %v6377
        %v6620 = vadd.f32 %v5524, %v6378
        %v6621 = vadd.f32 %v5531, %v6379
        %v6622 = vadd.f32 %v5538, %v6380
        %v6623 = vadd.f32 %v5545, %v6337
        %v6624 = vadd.f32 %v5552, %v6338
        %v6625 = vadd.f32 %v5559, %v6381
        %v6626 = vadd.f32 %v5566, %v6382
        %v6627 = vadd.f32 %v5573, %v6383
        %v6628 = vadd.f32 %v5580, %v6384
        %v6629 = vadd.f32 %v5587, %v6385
        %v6630 = vadd.f32 %v5594, %v6386
        %v6631 = vadd.f32 %v5601, %v6387
        %v6632 = vadd.f32 %v5608, %v6388
        %v6633 = vadd.f32 %v5615, %v6389
        %v6634 = vadd.f32 %v5622, %v6390
        %v6635 = vadd.f32 %v5629, %v6391
        %v6636 = vadd.f32 %v5636, %v6392
        %v6637 = vadd.f32 %v5643, %v6393
        %v6638 = vadd.f32 %v5650, %v6394
        %v6639 = vadd.f32 %v5657, %v6339
        %v6640 = vadd.f32 %v5664, %v6340
        %v6641 = vadd.f32 %v5671, %v6395
        %v6642 = vadd.f32 %v5678, %v6396
        %v6643 = vadd.f32 %v5685, %v6397
        %v6644 = vadd.f32 %v5692, %v6398
        %v6645 = vadd.f32 %v5699, %v6399
        %v6646 = vadd.f32 %v5706, %v6400
        %v6647 = vadd.f32 %v5713, %v6401
        %v6648 = vadd.f32 %v5720, %v6402
        %v6649 = vadd.f32 %v5727, %v6403
        %v6650 = vadd.f32 %v5734, %v6404
        %v6651 = vadd.f32 %v5741, %v6405
        %v6652 = vadd.f32 %v5748, %v6406
        %v6653 = vadd.f32 %v5755, %v6407
        %v6654 = vadd.f32 %v5762, %v6408
        %v6655 = vadd.f32 %v5769, %v6341
        %v6656 = vadd.f32 %v5776, %v6342
        %v6657 = vadd.f32 %v5783, %v6409
        %v6658 = vadd.f32 %v5790, %v6410
        %v6659 = vadd.f32 %v5797, %v6411
        %v6660 = vadd.f32 %v5804, %v6412
        %v6661 = vadd.f32 %v5811, %v6413
        %v6662 = vadd.f32 %v5818, %v6414
        %v6663 = vadd.f32 %v5825, %v6415
        %v6664 = vadd.f32 %v5832, %v6416
        %v6665 = vadd.f32 %v5839, %v6417
        %v6666 = vadd.f32 %v5846, %v6418
        %v6667 = vadd.f32 %v5853, %v6419
        %v6668 = vadd.f32 %v5860, %v6420
        %v6669 = vadd.f32 %v5867, %v6421
        %v6670 = vadd.f32 %v5874, %v6422
        %v6671 = vadd.f32 %v5881, %v6343
        %v6672 = vadd.f32 %v5888, %v6344
        %v6673 = vadd.f32 %v5895, %v6423
        %v6674 = vadd.f32 %v5902, %v6424
        %v6675 = vadd.f32 %v5909, %v6425
        %v6676 = vadd.f32 %v5916, %v6426
        %v6677 = vadd.f32 %v5923, %v6427
        %v6678 = vadd.f32 %v5930, %v6428
        %v6679 = vadd.f32 %v5937, %v6429
        %v6680 = vadd.f32 %v5944, %v6430
        %v6681 = vadd.f32 %v5951, %v6431
        %v6682 = vadd.f32 %v5958, %v6432
        %v6683 = vadd.f32 %v5965, %v6433
        %v6684 = vadd.f32 %v5972, %v6434
        %v6685 = vadd.f32 %v5979, %v6435
        %v6686 = vadd.f32 %v5986, %v6436
        %v6687 = vadd.f32 %v5993, %v6345
        %v6688 = vadd.f32 %v6000, %v6346
        %v6689 = vadd.f32 %v6007, %v6437
        %v6690 = vadd.f32 %v6014, %v6438
        %v6691 = vadd.f32 %v6021, %v6439
        %v6692 = vadd.f32 %v6028, %v6440
        %v6693 = vadd.f32 %v6035, %v6441
        %v6694 = vadd.f32 %v6042, %v6442
        %v6695 = vadd.f32 %v6049, %v6443
        %v6696 = vadd.f32 %v6056, %v6444
        %v6697 = vadd.f32 %v6063, %v6445
        %v6698 = vadd.f32 %v6070, %v6446
        %v6699 = vadd.f32 %v6077, %v6447
        %v6700 = vadd.f32 %v6084, %v6448
        %v6701 = vadd.f32 %v6091, %v6449
        %v6702 = vadd.f32 %v6098, %v6450
        %v6703 = vadd.f32 %v6105, %v6347
        %v6704 = vadd.f32 %v6112, %v6348
        %v6705 = vadd.f32 %v6119, %v6451
        %v6706 = vadd.f32 %v6126, %v6452
        %v6707 = vadd.f32 %v6133, %v6453
        %v6708 = vadd.f32 %v6140, %v6454
        %v6709 = vadd.f32 %v6147, %v6455
        %v6710 = vadd.f32 %v6154, %v6456
        %v6711 = vadd.f32 %v6161, %v6457
        %v6712 = vadd.f32 %v6168, %v6458
        %v6713 = vadd.f32 %v6175, %v6459
        %v6714 = vadd.f32 %v6182, %v6460
        %v6715 = vadd.f32 %v6189, %v6461
        %v6716 = vadd.f32 %v6196, %v6462
        %v6717 = vadd.f32 %v6203, %v6463
        %v6718 = vadd.f32 %v6210, %v6464
        %v6719 = vadd.f32 %v6217, %v6349
        %v6720 = vadd.f32 %v6224, %v6350
        %v6721 = vadd.f32 %v6231, %v6465
        %v6722 = vadd.f32 %v6238, %v6466
        %v6723 = vadd.f32 %v6245, %v6467
        %v6724 = vadd.f32 %v6252, %v6468
        %v6725 = vadd.f32 %v6259, %v6469
        %v6726 = vadd.f32 %v6266, %v6470
        %v6727 = vadd.f32 %v6273, %v6471
        %v6728 = vadd.f32 %v6280, %v6472
        %v6729 = vadd.f32 %v6287, %v6473
        %v6730 = vadd.f32 %v6294, %v6474
        %v6731 = vadd.f32 %v6301, %v6475
        %v6732 = vadd.f32 %v6308, %v6476
        %v6733 = vadd.f32 %v6315, %v6477
        %v6734 = vadd.f32 %v6322, %v6478
        %v6735 = vxor.u32 %v700, 2147483648
        %v6736 = vxor.u32 %v702, 2147483648
        %v6737 = vxor.u32 %v706, 2147483648
        %v6738 = vxor.u32 %v708, 2147483648
        %v6739 = vxor.u32 %v712, 2147483648
        %v6740 = vxor.u32 %v714, 2147483648
        %v6741 = vxor.u32 %v718, 2147483648
        %v6742 = vxor.u32 %v720, 2147483648
        %v6743 = vxor.u32 %v724, 2147483648
        %v6744 = vxor.u32 %v726, 2147483648
        %v6745 = vxor.u32 %v730, 2147483648
        %v6746 = vxor.u32 %v732, 2147483648
        %v6747 = vxor.u32 %v736, 2147483648
        %v6748 = vxor.u32 %v738, 2147483648
        %v6749 = vxor.u32 %v742, 2147483648
        %v6750 = vxor.u32 %v744, 2147483648
        %v6751 = vmul.f32 %v6735, 1.442695
        %v6752 = vpow.pop %v6751
        %v6753 = vmul.f32 %v6736, 1.442695
        %v6754 = vpow.pop %v6753
        %v6755 = vmul.f32 %v6737, 1.442695
        %v6756 = vpow.pop %v6755
        %v6757 = vmul.f32 %v6738, 1.442695
        %v6758 = vpow.pop %v6757
        %v6759 = vmul.f32 %v6739, 1.442695
        %v6760 = vpow.pop %v6759
        %v6761 = vmul.f32 %v6740, 1.442695
        %v6762 = vpow.pop %v6761
        %v6763 = vmul.f32 %v6741, 1.442695
        %v6764 = vpow.pop %v6763
        %v6765 = vmul.f32 %v6742, 1.442695
        %v6766 = vpow.pop %v6765
        %v6767 = vmul.f32 %v6743, 1.442695
        %v6768 = vpow.pop %v6767
        %v6769 = vmul.f32 %v6744, 1.442695
        %v6770 = vpow.pop %v6769
        %v6771 = vmul.f32 %v6745, 1.442695
        %v6772 = vpow.pop %v6771
        %v6773 = vmul.f32 %v6746, 1.442695
        %v6774 = vpow.pop %v6773
        %v6775 = vmul.f32 %v6747, 1.442695
        %v6776 = vpow.pop %v6775
        %v6777 = vmul.f32 %v6748, 1.442695
        %v6778 = vpow.pop %v6777
        %v6779 = vmul.f32 %v6749, 1.442695
        %v6780 = vpow.pop %v6779
        %v6781 = vmul.f32 %v6750, 1.442695
        %v6782 = vpow.pop %v6781
        %v6783 = vadd.f32 %v6752, 1.0
        %v6784 = vadd.f32 %v6754, 1.0
        %v6785 = vadd.f32 %v6756, 1.0
        %v6786 = vadd.f32 %v6758, 1.0
        %v6787 = vadd.f32 %v6760, 1.0
        %v6788 = vadd.f32 %v6762, 1.0
        %v6789 = vadd.f32 %v6764, 1.0
        %v6790 = vadd.f32 %v6766, 1.0
        %v6791 = vadd.f32 %v6768, 1.0
        %v6792 = vadd.f32 %v6770, 1.0
        %v6793 = vadd.f32 %v6772, 1.0
        %v6794 = vadd.f32 %v6774, 1.0
        %v6795 = vadd.f32 %v6776, 1.0
        %v6796 = vadd.f32 %v6778, 1.0
        %v6797 = vadd.f32 %v6780, 1.0
        %v6798 = vadd.f32 %v6782, 1.0
        %v6799 = vrcp.pop %v6783
        %v6800 = vmul.f32 1.0, %v6799
        %v6801 = vrcp.pop %v6784
        %v6802 = vmul.f32 1.0, %v6801
        %v6803 = vrcp.pop %v6785
        %v6804 = vmul.f32 1.0, %v6803
        %v6805 = vrcp.pop %v6786
        %v6806 = vmul.f32 1.0, %v6805
        %v6807 = vrcp.pop %v6787
        %v6808 = vmul.f32 1.0, %v6807
        %v6809 = vrcp.pop %v6788
        %v6810 = vmul.f32 1.0, %v6809
        %v6811 = vrcp.pop %v6789
        %v6812 = vmul.f32 1.0, %v6811
        %v6813 = vrcp.pop %v6790
        %v6814 = vmul.f32 1.0, %v6813
        %v6815 = vrcp.pop %v6791
        %v6816 = vmul.f32 1.0, %v6815
        %v6817 = vrcp.pop %v6792
        %v6818 = vmul.f32 1.0, %v6817
        %v6819 = vrcp.pop %v6793
        %v6820 = vmul.f32 1.0, %v6819
        %v6821 = vrcp.pop %v6794
        %v6822 = vmul.f32 1.0, %v6821
        %v6823 = vrcp.pop %v6795
        %v6824 = vmul.f32 1.0, %v6823
        %v6825 = vrcp.pop %v6796
        %v6826 = vmul.f32 1.0, %v6825
        %v6827 = vrcp.pop %v6797
        %v6828 = vmul.f32 1.0, %v6827
        %v6829 = vrcp.pop %v6798
        %v6830 = vmul.f32 1.0, %v6829
        %v6831 = vmul.f32 %v700, %v6800
        %v6832 = vmul.f32 %v702, %v6802
        %v6833 = vmul.f32 %v706, %v6804
        %v6834 = vmul.f32 %v708, %v6806
        %v6835 = vmul.f32 %v712, %v6808
        %v6836 = vmul.f32 %v714, %v6810
        %v6837 = vmul.f32 %v718, %v6812
        %v6838 = vmul.f32 %v720, %v6814
        %v6839 = vmul.f32 %v724, %v6816
        %v6840 = vmul.f32 %v726, %v6818
        %v6841 = vmul.f32 %v730, %v6820
        %v6842 = vmul.f32 %v732, %v6822
        %v6843 = vmul.f32 %v736, %v6824
        %v6844 = vmul.f32 %v738, %v6826
        %v6845 = vmul.f32 %v742, %v6828
        %v6846 = vmul.f32 %v744, %v6830
        %v6863 = vrot.slane %v6831, 1
        %v6864 = vrot.slane %v6832, 1
        %v6865 = vrot.slane %v6831, 2
        %v6866 = vrot.slane %v6832, 2
        %v6867 = vrot.slane %v6831, 3
        %v6868 = vrot.slane %v6832, 3
        %v6869 = vrot.slane %v6831, 4
        %v6870 = vrot.slane %v6832, 4
        %v6871 = vrot.slane %v6831, 5
        %v6872 = vrot.slane %v6832, 5
        %v6873 = vrot.slane %v6831, 6
        %v6874 = vrot.slane %v6832, 6
        %v6875 = vrot.slane %v6831, 7
        %v6876 = vrot.slane %v6832, 7
        %v6877 = vrot.slane %v6833, 1
        %v6878 = vrot.slane %v6834, 1
        %v6879 = vrot.slane %v6833, 2
        %v6880 = vrot.slane %v6834, 2
        %v6881 = vrot.slane %v6833, 3
        %v6882 = vrot.slane %v6834, 3
        %v6883 = vrot.slane %v6833, 4
        %v6884 = vrot.slane %v6834, 4
        %v6885 = vrot.slane %v6833, 5
        %v6886 = vrot.slane %v6834, 5
        %v6887 = vrot.slane %v6833, 6
        %v6888 = vrot.slane %v6834, 6
        %v6889 = vrot.slane %v6833, 7
        %v6890 = vrot.slane %v6834, 7
        %v6891 = vrot.slane %v6835, 1
        %v6892 = vrot.slane %v6836, 1
        %v6893 = vrot.slane %v6835, 2
        %v6894 = vrot.slane %v6836, 2
        %v6895 = vrot.slane %v6835, 3
        %v6896 = vrot.slane %v6836, 3
        %v6897 = vrot.slane %v6835, 4
        %v6898 = vrot.slane %v6836, 4
        %v6899 = vrot.slane %v6835, 5
        %v6900 = vrot.slane %v6836, 5
        %v6901 = vrot.slane %v6835, 6
        %v6902 = vrot.slane %v6836, 6
        %v6903 = vrot.slane %v6835, 7
        %v6904 = vrot.slane %v6836, 7
        %v6905 = vrot.slane %v6837, 1
        %v6906 = vrot.slane %v6838, 1
        %v6907 = vrot.slane %v6837, 2
        %v6908 = vrot.slane %v6838, 2
        %v6909 = vrot.slane %v6837, 3
        %v6910 = vrot.slane %v6838, 3
        %v6911 = vrot.slane %v6837, 4
        %v6912 = vrot.slane %v6838, 4
        %v6913 = vrot.slane %v6837, 5
        %v6914 = vrot.slane %v6838, 5
        %v6915 = vrot.slane %v6837, 6
        %v6916 = vrot.slane %v6838, 6
        %v6917 = vrot.slane %v6837, 7
        %v6918 = vrot.slane %v6838, 7
        %v6919 = vrot.slane %v6839, 1
        %v6920 = vrot.slane %v6840, 1
        %v6921 = vrot.slane %v6839, 2
        %v6922 = vrot.slane %v6840, 2
        %v6923 = vrot.slane %v6839, 3
        %v6924 = vrot.slane %v6840, 3
        %v6925 = vrot.slane %v6839, 4
        %v6926 = vrot.slane %v6840, 4
        %v6927 = vrot.slane %v6839, 5
        %v6928 = vrot.slane %v6840, 5
        %v6929 = vrot.slane %v6839, 6
        %v6930 = vrot.slane %v6840, 6
        %v6931 = vrot.slane %v6839, 7
        %v6932 = vrot.slane %v6840, 7
        %v6933 = vrot.slane %v6841, 1
        %v6934 = vrot.slane %v6842, 1
        %v6935 = vrot.slane %v6841, 2
        %v6936 = vrot.slane %v6842, 2
        %v6937 = vrot.slane %v6841, 3
        %v6938 = vrot.slane %v6842, 3
        %v6939 = vrot.slane %v6841, 4
        %v6940 = vrot.slane %v6842, 4
        %v6941 = vrot.slane %v6841, 5
        %v6942 = vrot.slane %v6842, 5
        %v6943 = vrot.slane %v6841, 6
        %v6944 = vrot.slane %v6842, 6
        %v6945 = vrot.slane %v6841, 7
        %v6946 = vrot.slane %v6842, 7
        %v6947 = vrot.slane %v6843, 1
        %v6948 = vrot.slane %v6844, 1
        %v6949 = vrot.slane %v6843, 2
        %v6950 = vrot.slane %v6844, 2
        %v6951 = vrot.slane %v6843, 3
        %v6952 = vrot.slane %v6844, 3
        %v6953 = vrot.slane %v6843, 4
        %v6954 = vrot.slane %v6844, 4
        %v6955 = vrot.slane %v6843, 5
        %v6956 = vrot.slane %v6844, 5
        %v6957 = vrot.slane %v6843, 6
        %v6958 = vrot.slane %v6844, 6
        %v6959 = vrot.slane %v6843, 7
        %v6960 = vrot.slane %v6844, 7
        %v6961 = vrot.slane %v6845, 1
        %v6962 = vrot.slane %v6846, 1
        %v6963 = vrot.slane %v6845, 2
        %v6964 = vrot.slane %v6846, 2
        %v6965 = vrot.slane %v6845, 3
        %v6966 = vrot.slane %v6846, 3
        %v6967 = vrot.slane %v6845, 4
        %v6968 = vrot.slane %v6846, 4
        %v6969 = vrot.slane %v6845, 5
        %v6970 = vrot.slane %v6846, 5
        %v6971 = vrot.slane %v6845, 6
        %v6972 = vrot.slane %v6846, 6
        %v6973 = vrot.slane %v6845, 7
        %v6974 = vrot.slane %v6846, 7
        %v7103 = vmul.f32 %v6607, %v6831
        %v7104 = vmul.f32 %v6608, %v6832
        %v7105 = vmul.f32 %v6609, %v6863
        %v7106 = vmul.f32 %v6610, %v6864
        %v7107 = vmul.f32 %v6611, %v6865
        %v7108 = vmul.f32 %v6612, %v6866
        %v7109 = vmul.f32 %v6613, %v6867
        %v7110 = vmul.f32 %v6614, %v6868
        %v7111 = vmul.f32 %v6615, %v6869
        %v7112 = vmul.f32 %v6616, %v6870
        %v7113 = vmul.f32 %v6617, %v6871
        %v7114 = vmul.f32 %v6618, %v6872
        %v7115 = vmul.f32 %v6619, %v6873
        %v7116 = vmul.f32 %v6620, %v6874
        %v7117 = vmul.f32 %v6621, %v6875
        %v7118 = vmul.f32 %v6622, %v6876
        %v7119 = vmul.f32 %v6623, %v6833
        %v7120 = vmul.f32 %v6624, %v6834
        %v7121 = vmul.f32 %v6625, %v6877
        %v7122 = vmul.f32 %v6626, %v6878
        %v7123 = vmul.f32 %v6627, %v6879
        %v7124 = vmul.f32 %v6628, %v6880
        %v7125 = vmul.f32 %v6629, %v6881
        %v7126 = vmul.f32 %v6630, %v6882
        %v7127 = vmul.f32 %v6631, %v6883
        %v7128 = vmul.f32 %v6632, %v6884
        %v7129 = vmul.f32 %v6633, %v6885
        %v7130 = vmul.f32 %v6634, %v6886
        %v7131 = vmul.f32 %v6635, %v6887
        %v7132 = vmul.f32 %v6636, %v6888
        %v7133 = vmul.f32 %v6637, %v6889
        %v7134 = vmul.f32 %v6638, %v6890
        %v7135 = vmul.f32 %v6639, %v6835
        %v7136 = vmul.f32 %v6640, %v6836
        %v7137 = vmul.f32 %v6641, %v6891
        %v7138 = vmul.f32 %v6642, %v6892
        %v7139 = vmul.f32 %v6643, %v6893
        %v7140 = vmul.f32 %v6644, %v6894
        %v7141 = vmul.f32 %v6645, %v6895
        %v7142 = vmul.f32 %v6646, %v6896
        %v7143 = vmul.f32 %v6647, %v6897
        %v7144 = vmul.f32 %v6648, %v6898
        %v7145 = vmul.f32 %v6649, %v6899
        %v7146 = vmul.f32 %v6650, %v6900
        %v7147 = vmul.f32 %v6651, %v6901
        %v7148 = vmul.f32 %v6652, %v6902
        %v7149 = vmul.f32 %v6653, %v6903
        %v7150 = vmul.f32 %v6654, %v6904
        %v7151 = vmul.f32 %v6655, %v6837
        %v7152 = vmul.f32 %v6656, %v6838
        %v7153 = vmul.f32 %v6657, %v6905
        %v7154 = vmul.f32 %v6658, %v6906
        %v7155 = vmul.f32 %v6659, %v6907
        %v7156 = vmul.f32 %v6660, %v6908
        %v7157 = vmul.f32 %v6661, %v6909
        %v7158 = vmul.f32 %v6662, %v6910
        %v7159 = vmul.f32 %v6663, %v6911
        %v7160 = vmul.f32 %v6664, %v6912
        %v7161 = vmul.f32 %v6665, %v6913
        %v7162 = vmul.f32 %v6666, %v6914
        %v7163 = vmul.f32 %v6667, %v6915
        %v7164 = vmul.f32 %v6668, %v6916
        %v7165 = vmul.f32 %v6669, %v6917
        %v7166 = vmul.f32 %v6670, %v6918
        %v7167 = vmul.f32 %v6671, %v6839
        %v7168 = vmul.f32 %v6672, %v6840
        %v7169 = vmul.f32 %v6673, %v6919
        %v7170 = vmul.f32 %v6674, %v6920
        %v7171 = vmul.f32 %v6675, %v6921
        %v7172 = vmul.f32 %v6676, %v6922
        %v7173 = vmul.f32 %v6677, %v6923
        %v7174 = vmul.f32 %v6678, %v6924
        %v7175 = vmul.f32 %v6679, %v6925
        %v7176 = vmul.f32 %v6680, %v6926
        %v7177 = vmul.f32 %v6681, %v6927
        %v7178 = vmul.f32 %v6682, %v6928
        %v7179 = vmul.f32 %v6683, %v6929
        %v7180 = vmul.f32 %v6684, %v6930
        %v7181 = vmul.f32 %v6685, %v6931
        %v7182 = vmul.f32 %v6686, %v6932
        %v7183 = vmul.f32 %v6687, %v6841
        %v7184 = vmul.f32 %v6688, %v6842
        %v7185 = vmul.f32 %v6689, %v6933
        %v7186 = vmul.f32 %v6690, %v6934
        %v7187 = vmul.f32 %v6691, %v6935
        %v7188 = vmul.f32 %v6692, %v6936
        %v7189 = vmul.f32 %v6693, %v6937
        %v7190 = vmul.f32 %v6694, %v6938
        %v7191 = vmul.f32 %v6695, %v6939
        %v7192 = vmul.f32 %v6696, %v6940
        %v7193 = vmul.f32 %v6697, %v6941
        %v7194 = vmul.f32 %v6698, %v6942
        %v7195 = vmul.f32 %v6699, %v6943
        %v7196 = vmul.f32 %v6700, %v6944
        %v7197 = vmul.f32 %v6701, %v6945
        %v7198 = vmul.f32 %v6702, %v6946
        %v7199 = vmul.f32 %v6703, %v6843
        %v7200 = vmul.f32 %v6704, %v6844
        %v7201 = vmul.f32 %v6705, %v6947
        %v7202 = vmul.f32 %v6706, %v6948
        %v7203 = vmul.f32 %v6707, %v6949
        %v7204 = vmul.f32 %v6708, %v6950
        %v7205 = vmul.f32 %v6709, %v6951
        %v7206 = vmul.f32 %v6710, %v6952
        %v7207 = vmul.f32 %v6711, %v6953
        %v7208 = vmul.f32 %v6712, %v6954
        %v7209 = vmul.f32 %v6713, %v6955
        %v7210 = vmul.f32 %v6714, %v6956
        %v7211 = vmul.f32 %v6715, %v6957
        %v7212 = vmul.f32 %v6716, %v6958
        %v7213 = vmul.f32 %v6717, %v6959
        %v7214 = vmul.f32 %v6718, %v6960
        %v7215 = vmul.f32 %v6719, %v6845
        %v7216 = vmul.f32 %v6720, %v6846
        %v7217 = vmul.f32 %v6721, %v6961
        %v7218 = vmul.f32 %v6722, %v6962
        %v7219 = vmul.f32 %v6723, %v6963
        %v7220 = vmul.f32 %v6724, %v6964
        %v7221 = vmul.f32 %v6725, %v6965
        %v7222 = vmul.f32 %v6726, %v6966
        %v7223 = vmul.f32 %v6727, %v6967
        %v7224 = vmul.f32 %v6728, %v6968
        %v7225 = vmul.f32 %v6729, %v6969
        %v7226 = vmul.f32 %v6730, %v6970
        %v7227 = vmul.f32 %v6731, %v6971
        %v7228 = vmul.f32 %v6732, %v6972
        %v7229 = vmul.f32 %v6733, %v6973
        %v7230 = vmul.f32 %v6734, %v6974
        %v7231 = vld [vmem:[%s9] sm:$0xff]
        %v7232 = vld [vmem:[%s9 + $0x8] sm:$0xff]
        %v7233 = vld [vmem:[%s9 + $0x10] sm:$0xff]
        %v7234 = vld [vmem:[%s9 + $0x18] sm:$0xff]
        %v7235 = vld [vmem:[%s9 + $0x20] sm:$0xff]
        %v7236 = vld [vmem:[%s9 + $0x28] sm:$0xff]
        %v7237 = vld [vmem:[%s9 + $0x30] sm:$0xff]
        %v7238 = vld [vmem:[%s9 + $0x38] sm:$0xff]
        %v7239 = vld [vmem:[%s9 + $0x40] sm:$0xff]
        %v7240 = vld [vmem:[%s9 + $0x48] sm:$0xff]
        %v7241 = vld [vmem:[%s9 + $0x50] sm:$0xff]
        %v7242 = vld [vmem:[%s9 + $0x58] sm:$0xff]
        %v7243 = vld [vmem:[%s9 + $0x60] sm:$0xff]
        %v7244 = vld [vmem:[%s9 + $0x68] sm:$0xff]
        %v7245 = vld [vmem:[%s9 + $0x70] sm:$0xff]
        %v7246 = vld [vmem:[%s9 + $0x78] sm:$0xff]
        %v7247 = vld [vmem:[%s9 + $0x80] sm:$0xff]
        %v7248 = vld [vmem:[%s9 + $0x88] sm:$0xff]
        %v7249 = vld [vmem:[%s9 + $0x90] sm:$0xff]
        %v7250 = vld [vmem:[%s9 + $0x98] sm:$0xff]
        %v7251 = vld [vmem:[%s9 + $0xa0] sm:$0xff]
        %v7252 = vld [vmem:[%s9 + $0xa8] sm:$0xff]
        %v7253 = vld [vmem:[%s9 + $0xb0] sm:$0xff]
        %v7254 = vld [vmem:[%s9 + $0xb8] sm:$0xff]
        %v7255 = vld [vmem:[%s9 + $0xc0] sm:$0xff]
        %v7256 = vld [vmem:[%s9 + $0xc8] sm:$0xff]
        %v7257 = vld [vmem:[%s9 + $0xd0] sm:$0xff]
        %v7258 = vld [vmem:[%s9 + $0xd8] sm:$0xff]
        %v7259 = vld [vmem:[%s9 + $0xe0] sm:$0xff]
        %v7260 = vld [vmem:[%s9 + $0xe8] sm:$0xff]
        %v7261 = vld [vmem:[%s9 + $0xf0] sm:$0xff]
        %v7262 = vld [vmem:[%s9 + $0xf8] sm:$0xff]
        %v7263 = vld [vmem:[%s10] sm:$0x1]
        %v7265 = vlaneseq
        %v7266 = vshrl.u32 %v7265, 7
        %v7267 = vsub.s32 0, %v7266
        %v7268 = vrot.slane %v7263, %v7267
        %v7398 = vrot.slane %v7105, 7
        %vm7399 = vcmask 1041409
        %v7400 = vsel %vm7399, %v7398, %v7103
        %v7401 = vrot.slane %v7107, 6
        %vm7402 = vcmask 1042434
        %v7403 = vsel %vm7402, %v7401, %v7400
        %v7404 = vrot.slane %v7109, 5
        %vm7405 = vcmask 1043459
        %v7406 = vsel %vm7405, %v7404, %v7403
        %v7407 = vrot.slane %v7111, 4
        %vm7408 = vcmask 1044484
        %v7409 = vsel %vm7408, %v7407, %v7406
        %v7410 = vrot.slane %v7113, 3
        %vm7411 = vcmask 1045509
        %v7412 = vsel %vm7411, %v7410, %v7409
        %v7413 = vrot.slane %v7115, 2
        %vm7414 = vcmask 1046534
        %v7415 = vsel %vm7414, %v7413, %v7412
        %v7416 = vrot.slane %v7117, 1
        %vm7417 = vcmask 1047559
        %v7418 = vsel %vm7417, %v7416, %v7415
        %v7419 = vrot.slane %v7106, 7
        %v7420 = vsel %vm7399, %v7419, %v7104
        %v7421 = vrot.slane %v7108, 6
        %v7422 = vsel %vm7402, %v7421, %v7420
        %v7423 = vrot.slane %v7110, 5
        %v7424 = vsel %vm7405, %v7423, %v7422
        %v7425 = vrot.slane %v7112, 4
        %v7426 = vsel %vm7408, %v7425, %v7424
        %v7427 = vrot.slane %v7114, 3
        %v7428 = vsel %vm7411, %v7427, %v7426
        %v7429 = vrot.slane %v7116, 2
        %v7430 = vsel %vm7414, %v7429, %v7428
        %v7431 = vrot.slane %v7118, 1
        %v7432 = vsel %vm7417, %v7431, %v7430
        %v7433 = vrot.slane %v7121, 7
        %v7434 = vsel %vm7399, %v7433, %v7119
        %v7435 = vrot.slane %v7123, 6
        %v7436 = vsel %vm7402, %v7435, %v7434
        %v7437 = vrot.slane %v7125, 5
        %v7438 = vsel %vm7405, %v7437, %v7436
        %v7439 = vrot.slane %v7127, 4
        %v7440 = vsel %vm7408, %v7439, %v7438
        %v7441 = vrot.slane %v7129, 3
        %v7442 = vsel %vm7411, %v7441, %v7440
        %v7443 = vrot.slane %v7131, 2
        %v7444 = vsel %vm7414, %v7443, %v7442
        %v7445 = vrot.slane %v7133, 1
        %v7446 = vsel %vm7417, %v7445, %v7444
        %v7447 = vrot.slane %v7122, 7
        %v7448 = vsel %vm7399, %v7447, %v7120
        %v7449 = vrot.slane %v7124, 6
        %v7450 = vsel %vm7402, %v7449, %v7448
        %v7451 = vrot.slane %v7126, 5
        %v7452 = vsel %vm7405, %v7451, %v7450
        %v7453 = vrot.slane %v7128, 4
        %v7454 = vsel %vm7408, %v7453, %v7452
        %v7455 = vrot.slane %v7130, 3
        %v7456 = vsel %vm7411, %v7455, %v7454
        %v7457 = vrot.slane %v7132, 2
        %v7458 = vsel %vm7414, %v7457, %v7456
        %v7459 = vrot.slane %v7134, 1
        %v7460 = vsel %vm7417, %v7459, %v7458
        %v7461 = vrot.slane %v7137, 7
        %v7462 = vsel %vm7399, %v7461, %v7135
        %v7463 = vrot.slane %v7139, 6
        %v7464 = vsel %vm7402, %v7463, %v7462
        %v7465 = vrot.slane %v7141, 5
        %v7466 = vsel %vm7405, %v7465, %v7464
        %v7467 = vrot.slane %v7143, 4
        %v7468 = vsel %vm7408, %v7467, %v7466
        %v7469 = vrot.slane %v7145, 3
        %v7470 = vsel %vm7411, %v7469, %v7468
        %v7471 = vrot.slane %v7147, 2
        %v7472 = vsel %vm7414, %v7471, %v7470
        %v7473 = vrot.slane %v7149, 1
        %v7474 = vsel %vm7417, %v7473, %v7472
        %v7475 = vrot.slane %v7138, 7
        %v7476 = vsel %vm7399, %v7475, %v7136
        %v7477 = vrot.slane %v7140, 6
        %v7478 = vsel %vm7402, %v7477, %v7476
        %v7479 = vrot.slane %v7142, 5
        %v7480 = vsel %vm7405, %v7479, %v7478
        %v7481 = vrot.slane %v7144, 4
        %v7482 = vsel %vm7408, %v7481, %v7480
        %v7483 = vrot.slane %v7146, 3
        %v7484 = vsel %vm7411, %v7483, %v7482
        %v7485 = vrot.slane %v7148, 2
        %v7486 = vsel %vm7414, %v7485, %v7484
        %v7487 = vrot.slane %v7150, 1
        %v7488 = vsel %vm7417, %v7487, %v7486
        %v7489 = vrot.slane %v7153, 7
        %v7490 = vsel %vm7399, %v7489, %v7151
        %v7491 = vrot.slane %v7155, 6
        %v7492 = vsel %vm7402, %v7491, %v7490
        %v7493 = vrot.slane %v7157, 5
        %v7494 = vsel %vm7405, %v7493, %v7492
        %v7495 = vrot.slane %v7159, 4
        %v7496 = vsel %vm7408, %v7495, %v7494
        %v7497 = vrot.slane %v7161, 3
        %v7498 = vsel %vm7411, %v7497, %v7496
        %v7499 = vrot.slane %v7163, 2
        %v7500 = vsel %vm7414, %v7499, %v7498
        %v7501 = vrot.slane %v7165, 1
        %v7502 = vsel %vm7417, %v7501, %v7500
        %v7503 = vrot.slane %v7154, 7
        %v7504 = vsel %vm7399, %v7503, %v7152
        %v7505 = vrot.slane %v7156, 6
        %v7506 = vsel %vm7402, %v7505, %v7504
        %v7507 = vrot.slane %v7158, 5
        %v7508 = vsel %vm7405, %v7507, %v7506
        %v7509 = vrot.slane %v7160, 4
        %v7510 = vsel %vm7408, %v7509, %v7508
        %v7511 = vrot.slane %v7162, 3
        %v7512 = vsel %vm7411, %v7511, %v7510
        %v7513 = vrot.slane %v7164, 2
        %v7514 = vsel %vm7414, %v7513, %v7512
        %v7515 = vrot.slane %v7166, 1
        %v7516 = vsel %vm7417, %v7515, %v7514
        %v7517 = vrot.slane %v7169, 7
        %v7518 = vsel %vm7399, %v7517, %v7167
        %v7519 = vrot.slane %v7171, 6
        %v7520 = vsel %vm7402, %v7519, %v7518
        %v7521 = vrot.slane %v7173, 5
        %v7522 = vsel %vm7405, %v7521, %v7520
        %v7523 = vrot.slane %v7175, 4
        %v7524 = vsel %vm7408, %v7523, %v7522
        %v7525 = vrot.slane %v7177, 3
        %v7526 = vsel %vm7411, %v7525, %v7524
        %v7527 = vrot.slane %v7179, 2
        %v7528 = vsel %vm7414, %v7527, %v7526
        %v7529 = vrot.slane %v7181, 1
        %v7530 = vsel %vm7417, %v7529, %v7528
        %v7531 = vrot.slane %v7170, 7
        %v7532 = vsel %vm7399, %v7531, %v7168
        %v7533 = vrot.slane %v7172, 6
        %v7534 = vsel %vm7402, %v7533, %v7532
        %v7535 = vrot.slane %v7174, 5
        %v7536 = vsel %vm7405, %v7535, %v7534
        %v7537 = vrot.slane %v7176, 4
        %v7538 = vsel %vm7408, %v7537, %v7536
        %v7539 = vrot.slane %v7178, 3
        %v7540 = vsel %vm7411, %v7539, %v7538
        %v7541 = vrot.slane %v7180, 2
        %v7542 = vsel %vm7414, %v7541, %v7540
        %v7543 = vrot.slane %v7182, 1
        %v7544 = vsel %vm7417, %v7543, %v7542
        %v7545 = vrot.slane %v7185, 7
        %v7546 = vsel %vm7399, %v7545, %v7183
        %v7547 = vrot.slane %v7187, 6
        %v7548 = vsel %vm7402, %v7547, %v7546
        %v7549 = vrot.slane %v7189, 5
        %v7550 = vsel %vm7405, %v7549, %v7548
        %v7551 = vrot.slane %v7191, 4
        %v7552 = vsel %vm7408, %v7551, %v7550
        %v7553 = vrot.slane %v7193, 3
        %v7554 = vsel %vm7411, %v7553, %v7552
        %v7555 = vrot.slane %v7195, 2
        %v7556 = vsel %vm7414, %v7555, %v7554
        %v7557 = vrot.slane %v7197, 1
        %v7558 = vsel %vm7417, %v7557, %v7556
        %v7559 = vrot.slane %v7186, 7
        %v7560 = vsel %vm7399, %v7559, %v7184
        %v7561 = vrot.slane %v7188, 6
        %v7562 = vsel %vm7402, %v7561, %v7560
        %v7563 = vrot.slane %v7190, 5
        %v7564 = vsel %vm7405, %v7563, %v7562
        %v7565 = vrot.slane %v7192, 4
        %v7566 = vsel %vm7408, %v7565, %v7564
        %v7567 = vrot.slane %v7194, 3
        %v7568 = vsel %vm7411, %v7567, %v7566
        %v7569 = vrot.slane %v7196, 2
        %v7570 = vsel %vm7414, %v7569, %v7568
        %v7571 = vrot.slane %v7198, 1
        %v7572 = vsel %vm7417, %v7571, %v7570
        %v7573 = vrot.slane %v7201, 7
        %v7574 = vsel %vm7399, %v7573, %v7199
        %v7575 = vrot.slane %v7203, 6
        %v7576 = vsel %vm7402, %v7575, %v7574
        %v7577 = vrot.slane %v7205, 5
        %v7578 = vsel %vm7405, %v7577, %v7576
        %v7579 = vrot.slane %v7207, 4
        %v7580 = vsel %vm7408, %v7579, %v7578
        %v7581 = vrot.slane %v7209, 3
        %v7582 = vsel %vm7411, %v7581, %v7580
        %v7583 = vrot.slane %v7211, 2
        %v7584 = vsel %vm7414, %v7583, %v7582
        %v7585 = vrot.slane %v7213, 1
        %v7586 = vsel %vm7417, %v7585, %v7584
        %v7587 = vrot.slane %v7202, 7
        %v7588 = vsel %vm7399, %v7587, %v7200
        %v7589 = vrot.slane %v7204, 6
        %v7590 = vsel %vm7402, %v7589, %v7588
        %v7591 = vrot.slane %v7206, 5
        %v7592 = vsel %vm7405, %v7591, %v7590
        %v7593 = vrot.slane %v7208, 4
        %v7594 = vsel %vm7408, %v7593, %v7592
        %v7595 = vrot.slane %v7210, 3
        %v7596 = vsel %vm7411, %v7595, %v7594
        %v7597 = vrot.slane %v7212, 2
        %v7598 = vsel %vm7414, %v7597, %v7596
        %v7599 = vrot.slane %v7214, 1
        %v7600 = vsel %vm7417, %v7599, %v7598
        %v7601 = vrot.slane %v7217, 7
        %v7602 = vsel %vm7399, %v7601, %v7215
        %v7603 = vrot.slane %v7219, 6
        %v7604 = vsel %vm7402, %v7603, %v7602
        %v7605 = vrot.slane %v7221, 5
        %v7606 = vsel %vm7405, %v7605, %v7604
        %v7607 = vrot.slane %v7223, 4
        %v7608 = vsel %vm7408, %v7607, %v7606
        %v7609 = vrot.slane %v7225, 3
        %v7610 = vsel %vm7411, %v7609, %v7608
        %v7611 = vrot.slane %v7227, 2
        %v7612 = vsel %vm7414, %v7611, %v7610
        %v7613 = vrot.slane %v7229, 1
        %v7614 = vsel %vm7417, %v7613, %v7612
        %v7615 = vrot.slane %v7218, 7
        %v7616 = vsel %vm7399, %v7615, %v7216
        %v7617 = vrot.slane %v7220, 6
        %v7618 = vsel %vm7402, %v7617, %v7616
        %v7619 = vrot.slane %v7222, 5
        %v7620 = vsel %vm7405, %v7619, %v7618
        %v7621 = vrot.slane %v7224, 4
        %v7622 = vsel %vm7408, %v7621, %v7620
        %v7623 = vrot.slane %v7226, 3
        %v7624 = vsel %vm7411, %v7623, %v7622
        %v7625 = vrot.slane %v7228, 2
        %v7626 = vsel %vm7414, %v7625, %v7624
        %v7627 = vrot.slane %v7230, 1
        %v7628 = vsel %vm7417, %v7627, %v7626
        %7645 = vmatprep.subr.mxu0 0.0
        %7646 = vmatpush1.msra.mxu0 %v7231
        %7647 = vmatprep.subr.mxu0 0.0
        %7648 = vmatpush1.msra.mxu0 %v7232
        %7649 = vmatprep.subr.mxu0 0.0
        %7650 = vmatpush1.msra.mxu0 %v7233
        %7651 = vmatprep.subr.mxu0 0.0
        %7652 = vmatpush1.msra.mxu0 %v7234
        %7653 = vmatprep.subr.mxu0 0.0
        %7654 = vmatpush1.msra.mxu0 %v7235
        %7655 = vmatprep.subr.mxu0 0.0
        %7656 = vmatpush1.msra.mxu0 %v7236
        %7657 = vmatprep.subr.mxu0 0.0
        %7658 = vmatpush1.msra.mxu0 %v7237
        %7659 = vmatprep.subr.mxu0 0.0
        %7660 = vmatpush1.msra.mxu0 %v7238
        %7661 = vmatprep.subr.mxu0 0.0
        %7662 = vmatpush1.msra.mxu0 %v7239
        %7663 = vmatprep.subr.mxu0 0.0
        %7664 = vmatpush1.msra.mxu0 %v7240
        %7665 = vmatprep.subr.mxu0 0.0
        %7666 = vmatpush1.msra.mxu0 %v7241
        %7667 = vmatprep.subr.mxu0 0.0
        %7668 = vmatpush1.msra.mxu0 %v7242
        %7669 = vmatprep.subr.mxu0 0.0
        %7670 = vmatpush1.msra.mxu0 %v7243
        %7671 = vmatprep.subr.mxu0 0.0
        %7672 = vmatpush1.msra.mxu0 %v7244
        %7673 = vmatprep.subr.mxu0 0.0
        %7674 = vmatpush1.msra.mxu0 %v7245
        %7675 = vmatprep.subr.mxu0 0.0
        %7676 = vmatpush1.msra.mxu0 %v7246
        %7677 = vmatprep.subr.mxu0 0.0
        %7678 = vmatpush1.msra.mxu0 %v7247
        %7679 = vmatprep.subr.mxu0 0.0
        %7680 = vmatpush1.msra.mxu0 %v7248
        %7681 = vmatprep.subr.mxu0 0.0
        %7682 = vmatpush1.msra.mxu0 %v7249
        %7683 = vmatprep.subr.mxu0 0.0
        %7684 = vmatpush1.msra.mxu0 %v7250
        %7685 = vmatprep.subr.mxu0 0.0
        %7686 = vmatpush1.msra.mxu0 %v7251
        %7687 = vmatprep.subr.mxu0 0.0
        %7688 = vmatpush1.msra.mxu0 %v7252
        %7689 = vmatprep.subr.mxu0 0.0
        %7690 = vmatpush1.msra.mxu0 %v7253
        %7691 = vmatprep.subr.mxu0 0.0
        %7692 = vmatpush1.msra.mxu0 %v7254
        %7693 = vmatprep.subr.mxu0 0.0
        %7694 = vmatpush1.msra.mxu0 %v7255
        %7695 = vmatprep.subr.mxu0 0.0
        %7696 = vmatpush1.msra.mxu0 %v7256
        %7697 = vmatprep.subr.mxu0 0.0
        %7698 = vmatpush1.msra.mxu0 %v7257
        %7699 = vmatprep.subr.mxu0 0.0
        %7700 = vmatpush1.msra.mxu0 %v7258
        %7701 = vmatprep.subr.mxu0 0.0
        %7702 = vmatpush1.msra.mxu0 %v7259
        %7703 = vmatprep.subr.mxu0 0.0
        %7704 = vmatpush1.msra.mxu0 %v7260
        %7705 = vmatprep.subr.mxu0 0.0
        %7706 = vmatpush1.msra.mxu0 %v7261
        %7707 = vmatprep.subr.mxu0 0.0
        %7708 = vmatpush1.msra.mxu0 %v7262
        %7709 = vmatprep.mubr.f32.mxu0 %v7432
        %7710 = vmatmul.mubr.f32.gmra.mrb[0].mxu0 %v7418
        %v7711 = vpop.f32.mrb[0].mxu0
        %v7712 = vadd.f32 %v7268, %v7711
        %v7713 = vpop.f32.mrb[0].mxu0
        %7714 = vmatprep.mubr.f32.mxu0 %v7460
        %7715 = vmatmul.mubr.f32.gmra.mrb[0].mxu0 %v7446
        %v7716 = vpop.f32.mrb[0].mxu0
        %v7717 = vadd.f32 %v7268, %v7716
        %v7718 = vpop.f32.mrb[0].mxu0
        %7719 = vmatprep.mubr.f32.mxu0 %v7488
        %7720 = vmatmul.mubr.f32.gmra.mrb[0].mxu0 %v7474
        %v7721 = vpop.f32.mrb[0].mxu0
        %v7722 = vadd.f32 %v7268, %v7721
        %v7723 = vpop.f32.mrb[0].mxu0
        %7724 = vmatprep.mubr.f32.mxu0 %v7516
        %7725 = vmatmul.mubr.f32.gmra.mrb[0].mxu0 %v7502
        %v7726 = vpop.f32.mrb[0].mxu0
        %v7727 = vadd.f32 %v7268, %v7726
        %v7728 = vpop.f32.mrb[0].mxu0
        %7729 = vmatprep.mubr.f32.mxu0 %v7544
        %7730 = vmatmul.mubr.f32.gmra.mrb[0].mxu0 %v7530
        %v7731 = vpop.f32.mrb[0].mxu0
        %v7732 = vadd.f32 %v7268, %v7731
        %v7733 = vpop.f32.mrb[0].mxu0
        %7734 = vmatprep.mubr.f32.mxu0 %v7572
        %7735 = vmatmul.mubr.f32.gmra.mrb[0].mxu0 %v7558
        %v7736 = vpop.f32.mrb[0].mxu0
        %v7737 = vadd.f32 %v7268, %v7736
        %v7738 = vpop.f32.mrb[0].mxu0
        %7739 = vmatprep.mubr.f32.mxu0 %v7600
        %7740 = vmatmul.mubr.f32.gmra.mrb[0].mxu0 %v7586
        %v7741 = vpop.f32.mrb[0].mxu0
        %v7742 = vadd.f32 %v7268, %v7741
        %v7743 = vpop.f32.mrb[0].mxu0
        %7744 = vmatprep.mubr.f32.mxu0 %v7628
        %7745 = vmatmul.mubr.f32.gmra.mrb[0].mxu0 %v7614
        %v7746 = vpop.f32.mrb[0].mxu0
        %v7747 = vadd.f32 %v7268, %v7746
        %v7748 = vpop.f32.mrb[0].mxu0
        %7749 = vdwg.mxu0
        %7750 = vst [vmem:[%s404] sm:$0xff] %v7712
        %7751 = vst [vmem:[%s404 + $0x8] sm:$0xff] %v7717
        %7752 = vst [vmem:[%s404 + $0x10] sm:$0xff] %v7722
        %7753 = vst [vmem:[%s404 + $0x18] sm:$0xff] %v7727
        %7754 = vst [vmem:[%s404 + $0x20] sm:$0xff] %v7732
        %7755 = vst [vmem:[%s404 + $0x28] sm:$0xff] %v7737
        %7756 = vst [vmem:[%s404 + $0x30] sm:$0xff] %v7742
        %7757 = vst [vmem:[%s404 + $0x38] sm:$0xff] %v7747
        %s7758 = sand.u32 %s285, 1
        %s7759 = scalar_lea.sflag [#allocation7], %s7758
        %s7760 = sand.u32 %s285, 1
        %s7761 = smul.addr %s7760, 64
        %s7762 = scalar_lea.vmem [#allocation6], %s7761
        // Predicated region
        $region76: #{tpu_custom_call.1} parent=63 // pred_check
          %p7763 = pneg %p295
        $region77: #{tpu_custom_call.1} parent=63 // pred_check_branch
          %7765 = sbr.rel (%p7763) target = $region79
        $region78: #{tpu_custom_call.1} parent=63 // pred_region
          %s7766 = smul.u32 8, %s30
          %s7768 = ssub.s32 1024, 1024
          %7769 = vsyncadd %s7759, %s7768
          %s7770 = smul.addr %s29, 8
          %s7771 = sadd.s32 %s7766, %s7770
          %s7772 = smul.addr %s7771, 128
          %s7773 = scalar_lea.hbm %s11, %s7772
          %s7774 = sshll.u32 %s7762, 4
          %s7775 = int_to_ptr.vmem [resolvable:$true] %s7774
          %7780 = dma.vmem_to_hbm [thread:$0]  %s7775, 1024, %s7773, %s7759, 128, 128, 8
        $region79: #{tpu_custom_call.1} parent=63 // pred_fallthru
          _
      $region64: #{tpu_custom_call.1} parent=5 // pred_fallthru
        _
      %p7781 = scmp.le.s32.totalorder 2, %s20
      // Predicated region
      $region80: #{tpu_custom_call.1} parent=5 // pred_check
        %p7782 = pneg %p7781
      $region81: #{tpu_custom_call.1} parent=5 // pred_check_branch
        %7784 = sbr.rel (%p7782) target = $region83
      $region82: #{tpu_custom_call.1} parent=5 // pred_region
        %s7785 = ssub.s32 %s20, 2
        // Predicated region
        $region84: #{tpu_custom_call.1} parent=82 // pred_check
          %p7786 = pneg %p301
        $region85: #{tpu_custom_call.1} parent=82 // pred_check_branch
          %7788 = sbr.rel (%p7786) target = $region87
        $region86: #{tpu_custom_call.1} parent=82 // pred_region
          %s7789 = sand.u32 %s286, 1
          %s7790 = scalar_lea.sflag [#allocation7], %s7789
          %s7791 = sand.u32 %s286, 1
          %s7792 = smul.addr %s7791, 64
          %s7793 = scalar_lea.vmem [#allocation6], %s7792
          %7794 = dma.done %s7790, 1024
        $region87: #{tpu_custom_call.1} parent=82 // pred_fallthru
          _
      $region83: #{tpu_custom_call.1} parent=5 // pred_fallthru
        _
    $region6: #{tpu_custom_call.1} parent=1 // loop_footer
      %s24 = sadd.s32 1, %s20
    $region7: #{tpu_custom_call.1} parent=1 // loop_footer_branch
      %19 = sbr.rel target = $region3
    $region8: #{tpu_custom_call.1} parent=1 // loop_exit
      _
    %7795 = vsyncpa [#allocation7], 1
    %s7796 = scalar_lea.sflag [#allocation7], 1
    %7797 = vsyncpa %s7796, 1

</llo_original>
